<compile_context>
chip_gen: v7x
topology: tpu7x:2x2x1
jax: 0.10.0
libtpu: 0.0.40
codegen_flags: <defaults>
</compile_context>

<pallas_src>
import functools

import jax
import jax.numpy as jnp
from jax.experimental import pallas as pl
from jax.experimental.pallas import tpu as pltpu


# ----------------------------------------------------------------------------
# Fused kernel: conv(k1 x k1) -> LReLU, then 3x [conv3x3 -> LReLU], one row tile
# ----------------------------------------------------------------------------
def _quad_conv_kernel(xlo_ref, xhi_ref, w1_ref, b1_ref, w2_ref, b2_ref,
                      w3_ref, b3_ref, w4_ref, b4_ref, o_ref, *,
                      th, w_out, h_out, k1, pack_g, neg_slope):
    """xlo_ref: (1, th, w_in, cg)  bf16   row block i of the s2d input
       xhi_ref: (1, 8,  w_in, cg)  bf16   8-row halo block directly below it
       wK_ref : (taps*Cin_k, Cout_k) bf16 im2col weight matrix
       bK_ref : (1, Cout_k)          f32
       o_ref  : (1, 1, th*w_out//pack_g, pack_g*Cout4) f32  lane-dense store
    """
    i = pl.program_id(1)                       # row-tile index

    def conv_stage(a, r_out, k, w_ref, b_ref):
        # a: (>= r_out + k - 1, w_out + k - 1, C) bf16 -> (r_out*w_out, Cout) f32
        taps = []
        for dy in range(k):
            for dx in range(k):
                taps.append(a[dy:dy + r_out, dx:dx + w_out, :])
        p = jnp.concatenate(taps, axis=-1)                       # in-VMEM im2col
        p = p.reshape(r_out * w_out, k * k * a.shape[-1])
        y = jnp.dot(p, w_ref[...], preferred_element_type=jnp.float32)
        y = y + b_ref[...]                                       # f32 bias + LReLU
        return jnp.where(y > 0, y, neg_slope * y)

    def mask_and_pad(y, r_out, c, off):
        # bf16 epilogue: zero the halo rows outside the true image (exactly what
        # the next conv's zero padding would have seen), then zero-pad width by 1
        # column each side.  Masking after the bf16 cast is exact.
        y = y.astype(jnp.bfloat16).reshape(r_out, w_out, c)
        r = jax.lax.broadcasted_iota(jnp.int32, (r_out, 1, 1), 0)
        g = i * th - off + r
        y = jnp.where(jnp.logical_and(g >= 0, g < h_out), y, 0.0)
        z = jnp.zeros((r_out, 1, c), jnp.bfloat16)
        return jnp.concatenate([z, y, z], axis=1)

    r1, r2, r3, r4 = th + 6, th + 4, th + 2, th
    c1 = w1_ref.shape[1]
    c2 = w2_ref.shape[1]
    c3 = w3_ref.shape[1]

    # (th + 8, w_in, cg): row block + bottom halo.  The top halo is baked into the
    # global zero padding; rows past (th + 5 + k1) are simply never sliced.
    x0 = jnp.concatenate([xlo_ref[0], xhi_ref[0]], axis=0)
    a1 = conv_stage(x0, r1, k1, w1_ref, b1_ref)
    x1 = mask_and_pad(a1, r1, c1, 3)
    a2 = conv_stage(x1, r2, 3, w2_ref, b2_ref)
    x2 = mask_and_pad(a2, r2, c2, 2)
    a3 = conv_stage(x2, r3, 3, w3_ref, b3_ref)
    x3 = mask_and_pad(a3, r3, c3, 1)
    a4 = conv_stage(x3, r4, 3, w4_ref, b4_ref)                   # (th*w_out, c4s) f32

    if pack_g > 1:
        # Lane-dense packing: put pack_g contiguous pixel chunks side-by-side so
        # the HBM store is an unmasked 128-lane vst; the wrapper undoes this.
        mq = (r4 * w_out) // pack_g
        a4 = jnp.concatenate([a4[j * mq:(j + 1) * mq] for j in range(pack_g)],
                             axis=-1)
    o_ref[0, 0] = a4


# ----------------------------------------------------------------------------
# Wrapper: layout glue (NCHW<->NHWC, space-to-depth for stride, per-chip tiling)
# ----------------------------------------------------------------------------
def quadruple_conv_lr(params, x_nchw, *, stride=1, tile_rows=None, neg_slope=0.1):
    w1, b1 = params["w1"], params["b1"]
    w2, b2 = params["w2"], params["b2"]
    w3, b3 = params["w3"], params["b3"]
    w4, b4 = params["w4"], params["b4"]

    s = int(stride)
    # All wrapper re-layout work happens directly in bf16 (what the kernel eats).
    x = jnp.transpose(x_nchw, (0, 2, 3, 1)).astype(jnp.bfloat16)      # NHWC
    n, h, w, cin = x.shape
    c1, c2, c3, c4 = w1.shape[-1], w2.shape[-1], w3.shape[-1], w4.shape[-1]

    h_out = (h - 1) // s + 1
    w_out = (w - 1) // s + 1
    k1 = 2 // s + 1                    # conv1 taps per axis after space-to-depth
    cg = s * s * cin                   # conv1 input channels after space-to-depth
    w_in = w_out + k1 - 1

    # --- per-generation VMEM budget / tile size --------------------------------
    try:
        vmem_cap = int(getattr(pltpu.get_tpu_info(), "vmem_capacity_bytes",
                               128 * 1024 * 1024))
    except Exception:
        vmem_cap = 128 * 1024 * 1024
    vmem_limit = max(32 * 1024 * 1024,
                     int(min(vmem_cap * 3 // 4, vmem_cap - 16 * 1024 * 1024)))

    pack_g = 128 // c4 if 128 % c4 == 0 else 1
    c_store = c4 if (pack_g > 1 or c4 % 128 == 0) else (-(-c4 // 128) * 128)
    c_mid = max(c1, c2, c3)
    if tile_rows is None:
        per_px = (2 * 2 * cg           # double-buffered bf16 input slab
                  + 2 * 4 * c_store    # double-buffered f32 output slab
                  + 2 * 9 * c_mid      # largest in-VMEM bf16 im2col buffer
                  + 4 * c_mid          # one f32 stage result
                  + 3 * 2 * c_mid      # padded bf16 stage activations
                  + 4 * c_store)       # lane-packing temp
        th = (vmem_cap // 4) // max(1, w_out * per_px)
    else:
        th = int(tile_rows)
    th = max(8, min(th, 512))
    th = (th // 8) * 8                            # halo-block trick needs th % 8 == 0
    th = min(th, -(-h_out // 8) * 8)              # no point exceeding h_out
    th = max(8, th)
    rt = -(-h_out // th)
    if tile_rows is None and n * rt < 2 and h_out > 8:
        # v7x has 2 TensorCores: give the parallel grid at least 2 programs.
        th = max(8, (-(-((h_out + 1) // 2) // 8)) * 8)
        rt = -(-h_out // th)
    if (th * w_out) % pack_g != 0:                # rare fallback (tiny c4)
        pack_g = 1
        c_store = c4 if c4 % 128 == 0 else (-(-c4 // 128) * 128)
    mq = (th * w_out) // pack_g
    out_cols = pack_g * c_store

    # --- input: zero-pad + space-to-depth (stride folded into channels) --------
    R = rt * th + 8                               # s2d rows incl. bottom halo block
    rows = s * R
    top = 3 * s + 1
    wp = s * w_in
    xe = jnp.pad(x, ((0, 0), (top, rows - top - h),
                     (1, max(wp - 1 - w, 0)), (0, 0)))[:, :, :wp, :]
    xe = xe.reshape(n, R, s, w_in, s, cin)
    xe = xe.transpose(0, 1, 3, 2, 4, 5).reshape(n, R, w_in, cg)

    # --- im2col weight matrices (bf16) / biases (f32) --------------------------
    w1p = jnp.pad(w1, ((0, k1 * s - 3), (0, k1 * s - 3), (0, 0), (0, 0)))
    w1m = w1p.reshape(k1, s, k1, s, cin, c1).transpose(0, 2, 1, 3, 4, 5)
    w1m = w1m.reshape(k1 * k1 * cg, c1)
    w2m = w2.reshape(9 * c1, c2)
    w3m = w3.reshape(9 * c2, c3)
    if c_store == c4:
        w4m = w4.reshape(9 * c3, c4)
        b4v = b4
    else:
        w4m = jnp.pad(w4, ((0, 0), (0, 0), (0, 0), (0, c_store - c4)))
        w4m = w4m.reshape(9 * c3, c_store)
        b4v = jnp.pad(b4, ((0, c_store - c4),))
    bf = lambda a: a.astype(jnp.bfloat16)

    # Advisory cost for XLA's scheduler around the custom call.
    flops = 2 * n * rt * ((th + 6) * w_out * (k1 * k1 * cg) * c1
                          + (th + 4) * w_out * 9 * c1 * c2
                          + (th + 2) * w_out * 9 * c2 * c3
                          + th * w_out * 9 * c3 * c_store)
    bytes_accessed = (n * rt * (th + 8) * w_in * cg * 2
                      + n * rt * mq * out_cols * 4
                      + 2 * (w1m.size + w2m.size + w3m.size + w4m.size))

    hb = th // 8                                  # x_hi block-index stride
    kernel = functools.partial(_quad_conv_kernel, th=th, w_out=w_out,
                               h_out=h_out, k1=k1, pack_g=pack_g,
                               neg_slope=neg_slope)
    out = pl.pallas_call(
        kernel,
        out_shape=jax.ShapeDtypeStruct((n, rt, mq, out_cols), jnp.float32),
        grid=(n, rt),
        in_specs=[
            pl.BlockSpec((1, th, w_in, cg), lambda b, i: (b, i, 0, 0)),
            pl.BlockSpec((1, 8, w_in, cg), lambda b, i: (b, (i + 1) * hb, 0, 0)),
            pl.BlockSpec(w1m.shape, lambda b, i: (0, 0)),
            pl.BlockSpec((1, c1), lambda b, i: (0, 0)),
            pl.BlockSpec(w2m.shape, lambda b, i: (0, 0)),
            pl.BlockSpec((1, c2), lambda b, i: (0, 0)),
            pl.BlockSpec(w3m.shape, lambda b, i: (0, 0)),
            pl.BlockSpec((1, c3), lambda b, i: (0, 0)),
            pl.BlockSpec(w4m.shape, lambda b, i: (0, 0)),
            pl.BlockSpec((1, c_store), lambda b, i: (0, 0)),
        ],
        out_specs=pl.BlockSpec((1, 1, mq, out_cols), lambda b, i: (b, i, 0, 0)),
        compiler_params=pltpu.CompilerParams(
            dimension_semantics=("parallel", "parallel"),
            vmem_limit_bytes=vmem_limit),
        cost_estimate=pl.CostEstimate(flops=flops, transcendentals=0,
                                      bytes_accessed=bytes_accessed),
    )(xe, xe, bf(w1m), b1.reshape(1, c1), bf(w2m), b2.reshape(1, c2),
      bf(w3m), b3.reshape(1, c3), bf(w4m), b4v.reshape(1, c_store))

    # --- unpack the lane-packed output back to (N, C, H, W) --------------------
    y = out.reshape(n, rt, mq, pack_g, c_store)
    y = jnp.transpose(y, (0, 1, 3, 2, 4)).reshape(n, rt * th, w_out, c_store)
    y = y[:, :h_out, :, :c4]
    return jnp.transpose(y, (0, 3, 1, 2))                        # back to NCHW


# ----------------------------------------------------------------------------
# Parameters (PyTorch Conv2d default init) and a pure-JAX reference
# ----------------------------------------------------------------------------
def init_quadruple_conv_lr_params(key, in_channels, out_channels):
    def conv_init(k, cin, cout):
        kw, kb = jax.random.split(k)
        bound = 1.0 / (9.0 * cin) ** 0.5
        wgt = jax.random.uniform(kw, (3, 3, cin, cout), jnp.float32, -bound, bound)
        bia = jax.random.uniform(kb, (cout,), jnp.float32, -bound, bound)
        return wgt, bia

    k1, k2, k3, k4 = jax.random.split(key, 4)
    p = {}
    p["w1"], p["b1"] = conv_init(k1, in_channels, out_channels)
    p["w2"], p["b2"] = conv_init(k2, out_channels, out_channels)
    p["w3"], p["b3"] = conv_init(k3, out_channels, out_channels)
    p["w4"], p["b4"] = conv_init(k4, out_channels, out_channels)
    return p


def _reference_forward(params, x_nchw, *, stride=1, neg_slope=0.1):
    """Pure-JAX reference with the same bf16 operand rounding as the kernel."""
    q = lambda a: a.astype(jnp.bfloat16).astype(jnp.float32)

    def conv(xx, wgt, bia, s):
        y = jax.lax.conv_general_dilated(
            q(xx), q(wgt), window_strides=(s, s), padding=((1, 1), (1, 1)),
            dimension_numbers=("NHWC", "HWIO", "NHWC"),
            precision=jax.lax.Precision.HIGHEST)
        y = y + bia.reshape(1, 1, 1, -1)
        return jnp.where(y > 0, y, neg_slope * y)

    xx = jnp.transpose(x_nchw, (0, 2, 3, 1)).astype(jnp.float32)
    xx = conv(xx, params["w1"], params["b1"], stride)
    xx = conv(xx, params["w2"], params["b2"], 1)
    xx = conv(xx, params["w3"], params["b3"], 1)
    xx = conv(xx, params["w4"], params["b4"], 1)
    return jnp.transpose(xx, (0, 3, 1, 2))


# ----------------------------------------------------------------------------
if __name__ == "__main__":
    key = jax.random.PRNGKey(0)
    k_param, k_x1, k_x2 = jax.random.split(key, 3)

    in_ch, out_ch = 8, 32
    params = init_quadruple_conv_lr_params(k_param, in_ch, out_ch)

    # stride=1 (module default), per-chip default tiling: (2,8,16,16) -> (2,32,16,16)
    x1 = jax.random.normal(k_x1, (2, in_ch, 16, 16), jnp.float32)
    y1 = jax.jit(functools.partial(quadruple_conv_lr, stride=1))(params, x1)
    jax.block_until_ready(y1)
    assert y1.shape == (2, out_ch, 16, 16), y1.shape
    err1 = float(jnp.max(jnp.abs(y1 - _reference_forward(params, x1, stride=1))))

    # Same shapes with an explicit small tile -> exercises the multi-tile halo path.
    y1t = jax.jit(functools.partial(quadruple_conv_lr, stride=1, tile_rows=8))(params, x1)
    jax.block_until_ready(y1t)
    err1t = float(jnp.max(jnp.abs(y1t - _reference_forward(params, x1, stride=1))))

    # stride=2 (downsampling use): (2, 8, 32, 32) -> (2, 32, 16, 16)
    x2 = jax.random.normal(k_x2, (2, in_ch, 32, 32), jnp.float32)
    y2 = jax.jit(functools.partial(quadruple_conv_lr, stride=2))(params, x2)
    jax.block_until_ready(y2)
    assert y2.shape == (2, out_ch, 16, 16), y2.shape
    err2 = float(jnp.max(jnp.abs(y2 - _reference_forward(params, x2, stride=2))))

    assert bool(jnp.all(jnp.isfinite(y1))) and bool(jnp.all(jnp.isfinite(y2)))
    assert err1 < 5e-3 and err1t < 5e-3 and err2 < 5e-3, (err1, err1t, err2)
    print("KERNEL_OK")
</pallas_src>

<mosaic_0001>
module attributes {stable_mosaic.version = 11 : i64} {
  func.func @_quad_conv_kernel(%arg0: i32, %arg1: i32, %arg2: memref<1x16x18x8xbf16, #tpu.memory_space<vmem>>, %arg3: memref<1x8x18x8xbf16, #tpu.memory_space<vmem>>, %arg4: memref<72x32xbf16, #tpu.memory_space<vmem>>, %arg5: memref<1x32xf32, #tpu.memory_space<vmem>>, %arg6: memref<288x32xbf16, #tpu.memory_space<vmem>>, %arg7: memref<1x32xf32, #tpu.memory_space<vmem>>, %arg8: memref<288x32xbf16, #tpu.memory_space<vmem>>, %arg9: memref<1x32xf32, #tpu.memory_space<vmem>>, %arg10: memref<288x32xbf16, #tpu.memory_space<vmem>>, %arg11: memref<1x32xf32, #tpu.memory_space<vmem>>, %arg12: memref<1x1x64x128xf32, #tpu.memory_space<vmem>>) attributes {dimension_semantics = [#tpu.dimension_semantics<parallel>, #tpu.dimension_semantics<parallel>], iteration_bounds = array<i64: 2, 1>, scalar_prefetch = 0 : i64, scratch_operands = 0 : i64, tpu.core_type = #tpu.core_type<tc>, window_params = [{transform_indices = @transform_0, window_bounds = array<i64: 1, 16, 18, 8>}, {transform_indices = @transform_1, window_bounds = array<i64: 1, 8, 18, 8>}, {pipeline_mode = #tpu.pipeline_mode<synchronous>, transform_indices = @transform_2, window_bounds = array<i64: 72, 32>}, {pipeline_mode = #tpu.pipeline_mode<synchronous>, transform_indices = @transform_3, window_bounds = array<i64: 1, 32>}, {pipeline_mode = #tpu.pipeline_mode<synchronous>, transform_indices = @transform_4, window_bounds = array<i64: 288, 32>}, {pipeline_mode = #tpu.pipeline_mode<synchronous>, transform_indices = @transform_5, window_bounds = array<i64: 1, 32>}, {pipeline_mode = #tpu.pipeline_mode<synchronous>, transform_indices = @transform_6, window_bounds = array<i64: 288, 32>}, {pipeline_mode = #tpu.pipeline_mode<synchronous>, transform_indices = @transform_7, window_bounds = array<i64: 1, 32>}, {pipeline_mode = #tpu.pipeline_mode<synchronous>, transform_indices = @transform_8, window_bounds = array<i64: 288, 32>}, {pipeline_mode = #tpu.pipeline_mode<synchronous>, transform_indices = @transform_9, window_bounds = array<i64: 1, 32>}, {transform_indices = @transform_10, window_bounds = array<i64: 1, 1, 64, 128>}]} {
    %c0 = arith.constant 0 : index
    %c0_0 = arith.constant 0 : index
    %c0_1 = arith.constant 0 : index
    %c0_2 = arith.constant 0 : index
    %0 = vector.load %arg2[%c0, %c0_0, %c0_1, %c0_2] : memref<1x16x18x8xbf16, #tpu.memory_space<vmem>>, vector<1x16x18x8xbf16>
    %1 = vector.shape_cast %0 : vector<1x16x18x8xbf16> to vector<16x18x8xbf16>
    %c0_3 = arith.constant 0 : index
    %c0_4 = arith.constant 0 : index
    %c0_5 = arith.constant 0 : index
    %c0_6 = arith.constant 0 : index
    %2 = vector.load %arg3[%c0_3, %c0_4, %c0_5, %c0_6] : memref<1x8x18x8xbf16, #tpu.memory_space<vmem>>, vector<1x8x18x8xbf16>
    %3 = vector.shape_cast %2 : vector<1x8x18x8xbf16> to vector<8x18x8xbf16>
    %4 = tpu.concatenate %1, %3 in 0 : vector<16x18x8xbf16>, vector<8x18x8xbf16> -> vector<24x18x8xbf16>
    %5 = vector.extract_strided_slice %4 {offsets = [0, 0, 0], sizes = [22, 16, 8], strides = [1, 1, 1]} : vector<24x18x8xbf16> to vector<22x16x8xbf16>
    %6 = vector.extract_strided_slice %4 {offsets = [0, 1, 0], sizes = [22, 16, 8], strides = [1, 1, 1]} : vector<24x18x8xbf16> to vector<22x16x8xbf16>
    %7 = vector.extract_strided_slice %4 {offsets = [0, 2, 0], sizes = [22, 16, 8], strides = [1, 1, 1]} : vector<24x18x8xbf16> to vector<22x16x8xbf16>
    %8 = vector.extract_strided_slice %4 {offsets = [1, 0, 0], sizes = [22, 16, 8], strides = [1, 1, 1]} : vector<24x18x8xbf16> to vector<22x16x8xbf16>
    %9 = vector.extract_strided_slice %4 {offsets = [1, 1, 0], sizes = [22, 16, 8], strides = [1, 1, 1]} : vector<24x18x8xbf16> to vector<22x16x8xbf16>
    %10 = vector.extract_strided_slice %4 {offsets = [1, 2, 0], sizes = [22, 16, 8], strides = [1, 1, 1]} : vector<24x18x8xbf16> to vector<22x16x8xbf16>
    %11 = vector.extract_strided_slice %4 {offsets = [2, 0, 0], sizes = [22, 16, 8], strides = [1, 1, 1]} : vector<24x18x8xbf16> to vector<22x16x8xbf16>
    %12 = vector.extract_strided_slice %4 {offsets = [2, 1, 0], sizes = [22, 16, 8], strides = [1, 1, 1]} : vector<24x18x8xbf16> to vector<22x16x8xbf16>
    %13 = vector.extract_strided_slice %4 {offsets = [2, 2, 0], sizes = [22, 16, 8], strides = [1, 1, 1]} : vector<24x18x8xbf16> to vector<22x16x8xbf16>
    %14 = tpu.concatenate %5, %6, %7, %8, %9, %10, %11, %12, %13 in 2 : vector<22x16x8xbf16>, vector<22x16x8xbf16>, vector<22x16x8xbf16>, vector<22x16x8xbf16>, vector<22x16x8xbf16>, vector<22x16x8xbf16>, vector<22x16x8xbf16>, vector<22x16x8xbf16>, vector<22x16x8xbf16> -> vector<22x16x72xbf16>
    %15 = vector.shape_cast %14 : vector<22x16x72xbf16> to vector<352x72xbf16>
    %c0_7 = arith.constant 0 : index
    %c0_8 = arith.constant 0 : index
    %16 = vector.load %arg4[%c0_7, %c0_8] : memref<72x32xbf16, #tpu.memory_space<vmem>>, vector<72x32xbf16>
    %cst = arith.constant dense<0.000000e+00> : vector<352x32xf32>
    %17 = tpu.matmul %15, %16, %cst {dimension_numbers = #tpu.dot_dimension_numbers<[1], [0], [0], [1], [0, 0, 1, 1], [], []>} : vector<352x72xbf16>, vector<72x32xbf16>, vector<352x32xf32> -> vector<352x32xf32>
    %c0_9 = arith.constant 0 : index
    %c0_10 = arith.constant 0 : index
    %18 = vector.load %arg5[%c0_9, %c0_10] : memref<1x32xf32, #tpu.memory_space<vmem>>, vector<1x32xf32>
    %19 = vector.broadcast %18 : vector<1x32xf32> to vector<352x32xf32>
    %20 = arith.addf %17, %19 : vector<352x32xf32>
    %cst_11 = arith.constant 0.000000e+00 : f32
    %21 = vector.broadcast %cst_11 : f32 to vector<352x32xf32>
    %22 = arith.cmpf ogt, %20, %21 : vector<352x32xf32>
    %cst_12 = arith.constant 1.000000e-01 : f32
    %23 = vector.broadcast %cst_12 : f32 to vector<352x32xf32>
    %24 = arith.mulf %23, %20 : vector<352x32xf32>
    %25 = arith.select %22, %20, %24 : vector<352x32xi1>, vector<352x32xf32>
    %26 = arith.truncf %25 : vector<352x32xf32> to vector<352x32xbf16>
    %27 = vector.shape_cast %26 : vector<352x32xbf16> to vector<22x16x32xbf16>
    %28 = tpu.iota {dimensions = array<i32: 0>} : vector<22x1x1xi32>
    %c16_i32 = arith.constant 16 : i32
    %29 = arith.muli %arg1, %c16_i32 : i32
    %c3_i32 = arith.constant 3 : i32
    %30 = arith.subi %29, %c3_i32 : i32
    %31 = vector.broadcast %30 : i32 to vector<22x1x1xi32>
    %32 = arith.addi %31, %28 : vector<22x1x1xi32>
    %c0_i32 = arith.constant 0 : i32
    %33 = vector.broadcast %c0_i32 : i32 to vector<22x1x1xi32>
    %34 = arith.cmpi sge, %32, %33 : vector<22x1x1xi32>
    %c16_i32_13 = arith.constant 16 : i32
    %35 = vector.broadcast %c16_i32_13 : i32 to vector<22x1x1xi32>
    %36 = arith.cmpi slt, %32, %35 : vector<22x1x1xi32>
    %37 = arith.andi %34, %36 : vector<22x1x1xi1>
    %cst_14 = arith.constant 0.000000e+00 : f32
    %38 = arith.truncf %cst_14 : f32 to bf16
    %39 = vector.shape_cast %37 : vector<22x1x1xi1> to vector<22x1x1xi1>
    %40 = vector.broadcast %39 : vector<22x1x1xi1> to vector<22x16x32xi1>
    %41 = vector.broadcast %38 : bf16 to vector<22x16x32xbf16>
    %42 = arith.select %40, %27, %41 : vector<22x16x32xi1>, vector<22x16x32xbf16>
    %cst_15 = arith.constant 0.000000e+00 : bf16
    %43 = vector.broadcast %cst_15 : bf16 to vector<22x1x32xbf16>
    %44 = tpu.concatenate %43, %42, %43 in 1 : vector<22x1x32xbf16>, vector<22x16x32xbf16>, vector<22x1x32xbf16> -> vector<22x18x32xbf16>
    %45 = vector.extract_strided_slice %44 {offsets = [0, 0, 0], sizes = [20, 16, 32], strides = [1, 1, 1]} : vector<22x18x32xbf16> to vector<20x16x32xbf16>
    %46 = vector.extract_strided_slice %44 {offsets = [0, 1, 0], sizes = [20, 16, 32], strides = [1, 1, 1]} : vector<22x18x32xbf16> to vector<20x16x32xbf16>
    %47 = vector.extract_strided_slice %44 {offsets = [0, 2, 0], sizes = [20, 16, 32], strides = [1, 1, 1]} : vector<22x18x32xbf16> to vector<20x16x32xbf16>
    %48 = vector.extract_strided_slice %44 {offsets = [1, 0, 0], sizes = [20, 16, 32], strides = [1, 1, 1]} : vector<22x18x32xbf16> to vector<20x16x32xbf16>
    %49 = vector.extract_strided_slice %44 {offsets = [1, 1, 0], sizes = [20, 16, 32], strides = [1, 1, 1]} : vector<22x18x32xbf16> to vector<20x16x32xbf16>
    %50 = vector.extract_strided_slice %44 {offsets = [1, 2, 0], sizes = [20, 16, 32], strides = [1, 1, 1]} : vector<22x18x32xbf16> to vector<20x16x32xbf16>
    %51 = vector.extract_strided_slice %44 {offsets = [2, 0, 0], sizes = [20, 16, 32], strides = [1, 1, 1]} : vector<22x18x32xbf16> to vector<20x16x32xbf16>
    %52 = vector.extract_strided_slice %44 {offsets = [2, 1, 0], sizes = [20, 16, 32], strides = [1, 1, 1]} : vector<22x18x32xbf16> to vector<20x16x32xbf16>
    %53 = vector.extract_strided_slice %44 {offsets = [2, 2, 0], sizes = [20, 16, 32], strides = [1, 1, 1]} : vector<22x18x32xbf16> to vector<20x16x32xbf16>
    %54 = tpu.concatenate %45, %46, %47, %48, %49, %50, %51, %52, %53 in 2 : vector<20x16x32xbf16>, vector<20x16x32xbf16>, vector<20x16x32xbf16>, vector<20x16x32xbf16>, vector<20x16x32xbf16>, vector<20x16x32xbf16>, vector<20x16x32xbf16>, vector<20x16x32xbf16>, vector<20x16x32xbf16> -> vector<20x16x288xbf16>
    %55 = vector.shape_cast %54 : vector<20x16x288xbf16> to vector<320x288xbf16>
    %c0_16 = arith.constant 0 : index
    %c0_17 = arith.constant 0 : index
    %56 = vector.load %arg6[%c0_16, %c0_17] : memref<288x32xbf16, #tpu.memory_space<vmem>>, vector<288x32xbf16>
    %cst_18 = arith.constant dense<0.000000e+00> : vector<320x32xf32>
    %57 = tpu.matmul %55, %56, %cst_18 {dimension_numbers = #tpu.dot_dimension_numbers<[1], [0], [0], [1], [0, 0, 1, 1], [], []>} : vector<320x288xbf16>, vector<288x32xbf16>, vector<320x32xf32> -> vector<320x32xf32>
    %c0_19 = arith.constant 0 : index
    %c0_20 = arith.constant 0 : index
    %58 = vector.load %arg7[%c0_19, %c0_20] : memref<1x32xf32, #tpu.memory_space<vmem>>, vector<1x32xf32>
    %59 = vector.broadcast %58 : vector<1x32xf32> to vector<320x32xf32>
    %60 = arith.addf %57, %59 : vector<320x32xf32>
    %cst_21 = arith.constant 0.000000e+00 : f32
    %61 = vector.broadcast %cst_21 : f32 to vector<320x32xf32>
    %62 = arith.cmpf ogt, %60, %61 : vector<320x32xf32>
    %cst_22 = arith.constant 1.000000e-01 : f32
    %63 = vector.broadcast %cst_22 : f32 to vector<320x32xf32>
    %64 = arith.mulf %63, %60 : vector<320x32xf32>
    %65 = arith.select %62, %60, %64 : vector<320x32xi1>, vector<320x32xf32>
    %66 = arith.truncf %65 : vector<320x32xf32> to vector<320x32xbf16>
    %67 = vector.shape_cast %66 : vector<320x32xbf16> to vector<20x16x32xbf16>
    %68 = tpu.iota {dimensions = array<i32: 0>} : vector<20x1x1xi32>
    %c16_i32_23 = arith.constant 16 : i32
    %69 = arith.muli %arg1, %c16_i32_23 : i32
    %c2_i32 = arith.constant 2 : i32
    %70 = arith.subi %69, %c2_i32 : i32
    %71 = vector.broadcast %70 : i32 to vector<20x1x1xi32>
    %72 = arith.addi %71, %68 : vector<20x1x1xi32>
    %c0_i32_24 = arith.constant 0 : i32
    %73 = vector.broadcast %c0_i32_24 : i32 to vector<20x1x1xi32>
    %74 = arith.cmpi sge, %72, %73 : vector<20x1x1xi32>
    %c16_i32_25 = arith.constant 16 : i32
    %75 = vector.broadcast %c16_i32_25 : i32 to vector<20x1x1xi32>
    %76 = arith.cmpi slt, %72, %75 : vector<20x1x1xi32>
    %77 = arith.andi %74, %76 : vector<20x1x1xi1>
    %cst_26 = arith.constant 0.000000e+00 : f32
    %78 = arith.truncf %cst_26 : f32 to bf16
    %79 = vector.shape_cast %77 : vector<20x1x1xi1> to vector<20x1x1xi1>
    %80 = vector.broadcast %79 : vector<20x1x1xi1> to vector<20x16x32xi1>
    %81 = vector.broadcast %78 : bf16 to vector<20x16x32xbf16>
    %82 = arith.select %80, %67, %81 : vector<20x16x32xi1>, vector<20x16x32xbf16>
    %cst_27 = arith.constant 0.000000e+00 : bf16
    %83 = vector.broadcast %cst_27 : bf16 to vector<20x1x32xbf16>
    %84 = tpu.concatenate %83, %82, %83 in 1 : vector<20x1x32xbf16>, vector<20x16x32xbf16>, vector<20x1x32xbf16> -> vector<20x18x32xbf16>
    %85 = vector.extract_strided_slice %84 {offsets = [0, 0, 0], sizes = [18, 16, 32], strides = [1, 1, 1]} : vector<20x18x32xbf16> to vector<18x16x32xbf16>
    %86 = vector.extract_strided_slice %84 {offsets = [0, 1, 0], sizes = [18, 16, 32], strides = [1, 1, 1]} : vector<20x18x32xbf16> to vector<18x16x32xbf16>
    %87 = vector.extract_strided_slice %84 {offsets = [0, 2, 0], sizes = [18, 16, 32], strides = [1, 1, 1]} : vector<20x18x32xbf16> to vector<18x16x32xbf16>
    %88 = vector.extract_strided_slice %84 {offsets = [1, 0, 0], sizes = [18, 16, 32], strides = [1, 1, 1]} : vector<20x18x32xbf16> to vector<18x16x32xbf16>
    %89 = vector.extract_strided_slice %84 {offsets = [1, 1, 0], sizes = [18, 16, 32], strides = [1, 1, 1]} : vector<20x18x32xbf16> to vector<18x16x32xbf16>
    %90 = vector.extract_strided_slice %84 {offsets = [1, 2, 0], sizes = [18, 16, 32], strides = [1, 1, 1]} : vector<20x18x32xbf16> to vector<18x16x32xbf16>
    %91 = vector.extract_strided_slice %84 {offsets = [2, 0, 0], sizes = [18, 16, 32], strides = [1, 1, 1]} : vector<20x18x32xbf16> to vector<18x16x32xbf16>
    %92 = vector.extract_strided_slice %84 {offsets = [2, 1, 0], sizes = [18, 16, 32], strides = [1, 1, 1]} : vector<20x18x32xbf16> to vector<18x16x32xbf16>
    %93 = vector.extract_strided_slice %84 {offsets = [2, 2, 0], sizes = [18, 16, 32], strides = [1, 1, 1]} : vector<20x18x32xbf16> to vector<18x16x32xbf16>
    %94 = tpu.concatenate %85, %86, %87, %88, %89, %90, %91, %92, %93 in 2 : vector<18x16x32xbf16>, vector<18x16x32xbf16>, vector<18x16x32xbf16>, vector<18x16x32xbf16>, vector<18x16x32xbf16>, vector<18x16x32xbf16>, vector<18x16x32xbf16>, vector<18x16x32xbf16>, vector<18x16x32xbf16> -> vector<18x16x288xbf16>
    %95 = vector.shape_cast %94 : vector<18x16x288xbf16> to vector<288x288xbf16>
    %c0_28 = arith.constant 0 : index
    %c0_29 = arith.constant 0 : index
    %96 = vector.load %arg8[%c0_28, %c0_29] : memref<288x32xbf16, #tpu.memory_space<vmem>>, vector<288x32xbf16>
    %cst_30 = arith.constant dense<0.000000e+00> : vector<288x32xf32>
    %97 = tpu.matmul %95, %96, %cst_30 {dimension_numbers = #tpu.dot_dimension_numbers<[1], [0], [0], [1], [0, 0, 1, 1], [], []>} : vector<288x288xbf16>, vector<288x32xbf16>, vector<288x32xf32> -> vector<288x32xf32>
    %c0_31 = arith.constant 0 : index
    %c0_32 = arith.constant 0 : index
    %98 = vector.load %arg9[%c0_31, %c0_32] : memref<1x32xf32, #tpu.memory_space<vmem>>, vector<1x32xf32>
    %99 = vector.broadcast %98 : vector<1x32xf32> to vector<288x32xf32>
    %100 = arith.addf %97, %99 : vector<288x32xf32>
    %cst_33 = arith.constant 0.000000e+00 : f32
    %101 = vector.broadcast %cst_33 : f32 to vector<288x32xf32>
    %102 = arith.cmpf ogt, %100, %101 : vector<288x32xf32>
    %cst_34 = arith.constant 1.000000e-01 : f32
    %103 = vector.broadcast %cst_34 : f32 to vector<288x32xf32>
    %104 = arith.mulf %103, %100 : vector<288x32xf32>
    %105 = arith.select %102, %100, %104 : vector<288x32xi1>, vector<288x32xf32>
    %106 = arith.truncf %105 : vector<288x32xf32> to vector<288x32xbf16>
    %107 = vector.shape_cast %106 : vector<288x32xbf16> to vector<18x16x32xbf16>
    %108 = tpu.iota {dimensions = array<i32: 0>} : vector<18x1x1xi32>
    %c16_i32_35 = arith.constant 16 : i32
    %109 = arith.muli %arg1, %c16_i32_35 : i32
    %c1_i32 = arith.constant 1 : i32
    %110 = arith.subi %109, %c1_i32 : i32
    %111 = vector.broadcast %110 : i32 to vector<18x1x1xi32>
    %112 = arith.addi %111, %108 : vector<18x1x1xi32>
    %c0_i32_36 = arith.constant 0 : i32
    %113 = vector.broadcast %c0_i32_36 : i32 to vector<18x1x1xi32>
    %114 = arith.cmpi sge, %112, %113 : vector<18x1x1xi32>
    %c16_i32_37 = arith.constant 16 : i32
    %115 = vector.broadcast %c16_i32_37 : i32 to vector<18x1x1xi32>
    %116 = arith.cmpi slt, %112, %115 : vector<18x1x1xi32>
    %117 = arith.andi %114, %116 : vector<18x1x1xi1>
    %cst_38 = arith.constant 0.000000e+00 : f32
    %118 = arith.truncf %cst_38 : f32 to bf16
    %119 = vector.shape_cast %117 : vector<18x1x1xi1> to vector<18x1x1xi1>
    %120 = vector.broadcast %119 : vector<18x1x1xi1> to vector<18x16x32xi1>
    %121 = vector.broadcast %118 : bf16 to vector<18x16x32xbf16>
    %122 = arith.select %120, %107, %121 : vector<18x16x32xi1>, vector<18x16x32xbf16>
    %cst_39 = arith.constant 0.000000e+00 : bf16
    %123 = vector.broadcast %cst_39 : bf16 to vector<18x1x32xbf16>
    %124 = tpu.concatenate %123, %122, %123 in 1 : vector<18x1x32xbf16>, vector<18x16x32xbf16>, vector<18x1x32xbf16> -> vector<18x18x32xbf16>
    %125 = vector.extract_strided_slice %124 {offsets = [0, 0, 0], sizes = [16, 16, 32], strides = [1, 1, 1]} : vector<18x18x32xbf16> to vector<16x16x32xbf16>
    %126 = vector.extract_strided_slice %124 {offsets = [0, 1, 0], sizes = [16, 16, 32], strides = [1, 1, 1]} : vector<18x18x32xbf16> to vector<16x16x32xbf16>
    %127 = vector.extract_strided_slice %124 {offsets = [0, 2, 0], sizes = [16, 16, 32], strides = [1, 1, 1]} : vector<18x18x32xbf16> to vector<16x16x32xbf16>
    %128 = vector.extract_strided_slice %124 {offsets = [1, 0, 0], sizes = [16, 16, 32], strides = [1, 1, 1]} : vector<18x18x32xbf16> to vector<16x16x32xbf16>
    %129 = vector.extract_strided_slice %124 {offsets = [1, 1, 0], sizes = [16, 16, 32], strides = [1, 1, 1]} : vector<18x18x32xbf16> to vector<16x16x32xbf16>
    %130 = vector.extract_strided_slice %124 {offsets = [1, 2, 0], sizes = [16, 16, 32], strides = [1, 1, 1]} : vector<18x18x32xbf16> to vector<16x16x32xbf16>
    %131 = vector.extract_strided_slice %124 {offsets = [2, 0, 0], sizes = [16, 16, 32], strides = [1, 1, 1]} : vector<18x18x32xbf16> to vector<16x16x32xbf16>
    %132 = vector.extract_strided_slice %124 {offsets = [2, 1, 0], sizes = [16, 16, 32], strides = [1, 1, 1]} : vector<18x18x32xbf16> to vector<16x16x32xbf16>
    %133 = vector.extract_strided_slice %124 {offsets = [2, 2, 0], sizes = [16, 16, 32], strides = [1, 1, 1]} : vector<18x18x32xbf16> to vector<16x16x32xbf16>
    %134 = tpu.concatenate %125, %126, %127, %128, %129, %130, %131, %132, %133 in 2 : vector<16x16x32xbf16>, vector<16x16x32xbf16>, vector<16x16x32xbf16>, vector<16x16x32xbf16>, vector<16x16x32xbf16>, vector<16x16x32xbf16>, vector<16x16x32xbf16>, vector<16x16x32xbf16>, vector<16x16x32xbf16> -> vector<16x16x288xbf16>
    %135 = vector.shape_cast %134 : vector<16x16x288xbf16> to vector<256x288xbf16>
    %c0_40 = arith.constant 0 : index
    %c0_41 = arith.constant 0 : index
    %136 = vector.load %arg10[%c0_40, %c0_41] : memref<288x32xbf16, #tpu.memory_space<vmem>>, vector<288x32xbf16>
    %cst_42 = arith.constant dense<0.000000e+00> : vector<256x32xf32>
    %137 = tpu.matmul %135, %136, %cst_42 {dimension_numbers = #tpu.dot_dimension_numbers<[1], [0], [0], [1], [0, 0, 1, 1], [], []>} : vector<256x288xbf16>, vector<288x32xbf16>, vector<256x32xf32> -> vector<256x32xf32>
    %c0_43 = arith.constant 0 : index
    %c0_44 = arith.constant 0 : index
    %138 = vector.load %arg11[%c0_43, %c0_44] : memref<1x32xf32, #tpu.memory_space<vmem>>, vector<1x32xf32>
    %139 = vector.broadcast %138 : vector<1x32xf32> to vector<256x32xf32>
    %140 = arith.addf %137, %139 : vector<256x32xf32>
    %cst_45 = arith.constant 0.000000e+00 : f32
    %141 = vector.broadcast %cst_45 : f32 to vector<256x32xf32>
    %142 = arith.cmpf ogt, %140, %141 : vector<256x32xf32>
    %cst_46 = arith.constant 1.000000e-01 : f32
    %143 = vector.broadcast %cst_46 : f32 to vector<256x32xf32>
    %144 = arith.mulf %143, %140 : vector<256x32xf32>
    %145 = arith.select %142, %140, %144 : vector<256x32xi1>, vector<256x32xf32>
    %146 = vector.extract_strided_slice %145 {offsets = [0, 0], sizes = [64, 32], strides = [1, 1]} : vector<256x32xf32> to vector<64x32xf32>
    %147 = vector.extract_strided_slice %145 {offsets = [64, 0], sizes = [64, 32], strides = [1, 1]} : vector<256x32xf32> to vector<64x32xf32>
    %148 = vector.extract_strided_slice %145 {offsets = [128, 0], sizes = [64, 32], strides = [1, 1]} : vector<256x32xf32> to vector<64x32xf32>
    %149 = vector.extract_strided_slice %145 {offsets = [192, 0], sizes = [64, 32], strides = [1, 1]} : vector<256x32xf32> to vector<64x32xf32>
    %150 = tpu.concatenate %146, %147, %148, %149 in 1 : vector<64x32xf32>, vector<64x32xf32>, vector<64x32xf32>, vector<64x32xf32> -> vector<64x128xf32>
    %c0_47 = arith.constant 0 : index
    %c0_48 = arith.constant 0 : index
    %c0_49 = arith.constant 0 : index
    %c0_50 = arith.constant 0 : index
    %151 = vector.load %arg12[%c0_47, %c0_48, %c0_49, %c0_50] : memref<1x1x64x128xf32, #tpu.memory_space<vmem>>, vector<1x1x64x128xf32>
    %152 = vector.shape_cast %151 : vector<1x1x64x128xf32> to vector<64x128xf32>
    %153 = vector.shape_cast %150 : vector<64x128xf32> to vector<1x1x64x128xf32>
    tpu.vector_store %arg12[%c0_47, %c0_48, %c0_49, %c0_50], %153 {strides = array<i32>} : memref<1x1x64x128xf32, #tpu.memory_space<vmem>>, vector<1x1x64x128xf32>,
    return
  }
  func.func @transform_0(%arg0: i32, %arg1: i32) -> (i32, i32, i32, i32) {
    %c0_i32 = arith.constant 0 : i32
    %c0_i32_0 = arith.constant 0 : i32
    %c0_i32_1 = arith.constant 0 : i32
    return %arg0, %arg1, %c0_i32, %c0_i32_0 : i32, i32, i32, i32
  }
  func.func @transform_1(%arg0: i32, %arg1: i32) -> (i32, i32, i32, i32) {
    %c1_i32 = arith.constant 1 : i32
    %0 = arith.addi %arg1, %c1_i32 : i32
    %c2_i32 = arith.constant 2 : i32
    %1 = arith.muli %0, %c2_i32 : i32
    %c0_i32 = arith.constant 0 : i32
    %c0_i32_0 = arith.constant 0 : i32
    %c0_i32_1 = arith.constant 0 : i32
    return %arg0, %1, %c0_i32, %c0_i32_0 : i32, i32, i32, i32
  }
  func.func @transform_2(%arg0: i32, %arg1: i32) -> (i32, i32) {
    %c0_i32 = arith.constant 0 : i32
    %c0_i32_0 = arith.constant 0 : i32
    %c0_i32_1 = arith.constant 0 : i32
    return %c0_i32, %c0_i32_0 : i32, i32
  }
  func.func @transform_3(%arg0: i32, %arg1: i32) -> (i32, i32) {
    %c0_i32 = arith.constant 0 : i32
    %c0_i32_0 = arith.constant 0 : i32
    %c0_i32_1 = arith.constant 0 : i32
    return %c0_i32, %c0_i32_0 : i32, i32
  }
  func.func @transform_4(%arg0: i32, %arg1: i32) -> (i32, i32) {
    %c0_i32 = arith.constant 0 : i32
    %c0_i32_0 = arith.constant 0 : i32
    %c0_i32_1 = arith.constant 0 : i32
    return %c0_i32, %c0_i32_0 : i32, i32
  }
  func.func @transform_5(%arg0: i32, %arg1: i32) -> (i32, i32) {
    %c0_i32 = arith.constant 0 : i32
    %c0_i32_0 = arith.constant 0 : i32
    %c0_i32_1 = arith.constant 0 : i32
    return %c0_i32, %c0_i32_0 : i32, i32
  }
  func.func @transform_6(%arg0: i32, %arg1: i32) -> (i32, i32) {
    %c0_i32 = arith.constant 0 : i32
    %c0_i32_0 = arith.constant 0 : i32
    %c0_i32_1 = arith.constant 0 : i32
    return %c0_i32, %c0_i32_0 : i32, i32
  }
  func.func @transform_7(%arg0: i32, %arg1: i32) -> (i32, i32) {
    %c0_i32 = arith.constant 0 : i32
    %c0_i32_0 = arith.constant 0 : i32
    %c0_i32_1 = arith.constant 0 : i32
    return %c0_i32, %c0_i32_0 : i32, i32
  }
  func.func @transform_8(%arg0: i32, %arg1: i32) -> (i32, i32) {
    %c0_i32 = arith.constant 0 : i32
    %c0_i32_0 = arith.constant 0 : i32
    %c0_i32_1 = arith.constant 0 : i32
    return %c0_i32, %c0_i32_0 : i32, i32
  }
  func.func @transform_9(%arg0: i32, %arg1: i32) -> (i32, i32) {
    %c0_i32 = arith.constant 0 : i32
    %c0_i32_0 = arith.constant 0 : i32
    %c0_i32_1 = arith.constant 0 : i32
    return %c0_i32, %c0_i32_0 : i32, i32
  }
  func.func @transform_10(%arg0: i32, %arg1: i32) -> (i32, i32, i32, i32) {
    %c0_i32 = arith.constant 0 : i32
    %c0_i32_0 = arith.constant 0 : i32
    %c0_i32_1 = arith.constant 0 : i32
    return %arg0, %arg1, %c0_i32, %c0_i32_0 : i32, i32, i32, i32
  }
}

</mosaic_0001>

<llo_original>
// kernel: quadruple_conv_lr.1
$region0: #{quadruple_conv_lr.1}
  #allocation0 [shape = 'u32[]', space=smem, size = 0x4, offset = 0x4, fixed_abs, tag = 'smem constant byte address 0x4 - core index']
  #allocation1 [shape = 'u32[144,128]{1,0:T(1,128)}', space=vmem, size = 0x12000, scoped, tag = 'internal scratch']
  %s0 = inlined_call_operand.hbm [shape: bf16[2,24,18,8], index: 0, kind: input, shape index: {}, may-alias: {0,1}]
  %s1 = inlined_call_operand.hbm [shape: bf16[2,24,18,8], index: 1, kind: input, shape index: {}, may-alias: {0,1}]
  %s2 = inlined_call_operand.hbm [shape: bf16[72,32], index: 2, kind: input, shape index: {}]
  %s3 = inlined_call_operand.hbm [shape: f32[1,32], index: 3, kind: input, shape index: {}]
  %s4 = inlined_call_operand.hbm [shape: bf16[288,32], index: 4, kind: input, shape index: {}]
  %s5 = inlined_call_operand.hbm [shape: f32[1,32], index: 5, kind: input, shape index: {}]
  %s6 = inlined_call_operand.hbm [shape: bf16[288,32], index: 6, kind: input, shape index: {}]
  %s7 = inlined_call_operand.hbm [shape: f32[1,32], index: 7, kind: input, shape index: {}]
  %s8 = inlined_call_operand.hbm [shape: bf16[288,32], index: 8, kind: input, shape index: {}]
  %s9 = inlined_call_operand.hbm [shape: f32[1,32], index: 9, kind: input, shape index: {}]
  %s10 = inlined_call_operand.hbm [shape: f32[2,1,64,128], index: 10, kind: output, shape index: {}]
  %s11 = sld [smem:[#allocation0]]
  $region113: #{quadruple_conv_lr.1} parent=0
    _
  %s13 = ssub.s32 1, %s11
  %s14 = scalar_select 0, %s13, %s11
  $region1: #{quadruple_conv_lr.1} parent=0
    #allocation2 [shape = 'u8[196608]{0}', space=vmem, size = 0x30000, scoped, tag = 'input window, operand 0']
    #allocation3 [shape = 's32[2]{0}', space=sflag, size = 0x8, scoped, tag = 'scoped memory for quadruple_conv_lr.1']
    #allocation4 [shape = 's32[2]{0}', space=sflag, size = 0x8, scoped, tag = 'scoped memory for quadruple_conv_lr.1']
    #allocation5 [shape = 'u8[98304]{0}', space=vmem, size = 0x18000, scoped, tag = 'input window, operand 1']
    #allocation6 [shape = 's32[2]{0}', space=sflag, size = 0x8, scoped, tag = 'scoped memory for quadruple_conv_lr.1']
    #allocation7 [shape = 'u8[18432]{0}', space=vmem, size = 0x4800, scoped, tag = 'input window, operand 2, single buffered']
    #allocation8 [shape = 'u8[512]{0}', space=vmem, size = 0x400, scoped, tag = 'input window, operand 3, single buffered']
    #allocation9 [shape = 's32[1]{0}', space=sflag, size = 0x4, scoped, tag = 'scoped memory for quadruple_conv_lr.1']
    #allocation10 [shape = 'u8[73728]{0}', space=vmem, size = 0x12000, scoped, tag = 'input window, operand 4, single buffered']
    #allocation11 [shape = 'u8[512]{0}', space=vmem, size = 0x400, scoped, tag = 'input window, operand 5, single buffered']
    #allocation12 [shape = 's32[1]{0}', space=sflag, size = 0x4, scoped, tag = 'scoped memory for quadruple_conv_lr.1']
    #allocation13 [shape = 'u8[73728]{0}', space=vmem, size = 0x12000, scoped, tag = 'input window, operand 6, single buffered']
    #allocation14 [shape = 'u8[512]{0}', space=vmem, size = 0x400, scoped, tag = 'input window, operand 7, single buffered']
    #allocation15 [shape = 's32[1]{0}', space=sflag, size = 0x4, scoped, tag = 'scoped memory for quadruple_conv_lr.1']
    #allocation16 [shape = 'u8[73728]{0}', space=vmem, size = 0x12000, scoped, tag = 'input window, operand 8, single buffered']
    #allocation17 [shape = 'u8[512]{0}', space=vmem, size = 0x400, scoped, tag = 'input window, operand 9, single buffered']
    #allocation18 [shape = 's32[1]{0}', space=sflag, size = 0x4, scoped, tag = 'scoped memory for quadruple_conv_lr.1']
    #allocation19 [shape = 'u8[65536]{0}', space=vmem, size = 0x10000, scoped, tag = 'output window, operand 0']
    %15 = vsyncpa [#allocation3], 0
    %s16 = scalar_lea.sflag [#allocation3], 1
    %17 = vsyncpa %s16, 0
    %18 = vsyncpa [#allocation6], 0
    %s19 = scalar_lea.sflag [#allocation6], 1
    %20 = vsyncpa %s19, 0
    %21 = vsyncpa [#allocation9], 0
    %22 = vsyncpa [#allocation12], 0
    %23 = vsyncpa [#allocation15], 0
    %24 = vsyncpa [#allocation18], 0
    %25 = vsyncpa [#allocation4], 0
    %s26 = scalar_lea.sflag [#allocation4], 1
    %27 = vsyncpa %s26, 0
    loop: start=0, step=1, limit=4
    $region2: #{quadruple_conv_lr.1} parent=1 // loop_pre_header
      _
    $region3: #{quadruple_conv_lr.1} parent=1 // loop_header
      %s29 = sphi 0, %s33
      %p30 = scmp.ge.s32.totalorder %s29, 4
      %s36 = sphi 0, %s48
      %s37 = sphi 0, %s44
      %s38 = sphi 0, %s36
      %s39 = sphi 0, %s37
      %s40 = sphi 0, %s38
      %s41 = sphi 0, %s39
      %s53 = sphi 0, %s55
      %s56 = sphi 0, %s53
      %s57 = sphi 0, %s56
      %s73 = sphi 0, %s57
      %s85 = sphi 0, %s87
      %s88 = sphi 0, %s85
      %s89 = sphi 0, %s88
      %s105 = sphi 0, %s89
      %s109 = sphi 0, %s109
      %s111 = sphi 0, %s109
      %s112 = sphi 0, %s111
      %s126 = sphi 0, %s112
      %s130 = sphi 0, %s130
      %s132 = sphi 0, %s130
      %s133 = sphi 0, %s132
      %s147 = sphi 0, %s133
      %s151 = sphi 0, %s151
      %s153 = sphi 0, %s151
      %s154 = sphi 0, %s153
      %s168 = sphi 0, %s154
      %s172 = sphi 0, %s172
      %s174 = sphi 0, %s172
      %s175 = sphi 0, %s174
      %s189 = sphi 0, %s175
      %s193 = sphi 0, %s193
      %s195 = sphi 0, %s193
      %s196 = sphi 0, %s195
      %s210 = sphi 0, %s196
      %s214 = sphi 0, %s214
      %s216 = sphi 0, %s214
      %s217 = sphi 0, %s216
      %s231 = sphi 0, %s217
      %s235 = sphi 0, %s235
      %s237 = sphi 0, %s235
      %s238 = sphi 0, %s237
      %s252 = sphi 0, %s238
      %s256 = sphi 0, %s256
      %s258 = sphi 0, %s256
      %s259 = sphi 0, %s258
      %s273 = sphi 0, %s259
      %s281 = sphi 0, %s283
      %s284 = sphi 0, %s281
      %s285 = sphi 0, %s284
      %s301 = sphi 0, %s285
    $region4: #{quadruple_conv_lr.1} parent=1 // loop_header_branch
      %32 = sbr.rel (%p30) target = $region8
    $region5: #{quadruple_conv_lr.1} parent=1 // loop_body
      %s34 = ssub.s32 %s29, 1
      %s35 = ssub.s32 %s29, 2
      %s42 = sadd.s32 1, %s37
      %p43 = scmp.ge.s32.totalorder %s42, 1
      %s44 = scalar_select %p43, 0, %s42
      %s45 = sadd.s32 1, %s36
      %s46 = scalar_select %p43, %s45, %s36
      %p47 = scmp.ge.s32.totalorder %s46, 2
      %s48 = scalar_select %p47, 0, %s46
      %s49 = ssub.s32 %s36, %s48
      %s50 = ssub.s32 %s37, %s44
      %s51 = sor.u32 %s49, %s50
      %p52 = scmp.eq.s32.totalorder %s51, 0
      %s54 = sadd.s32 %s53, 1
      %s55 = scalar_select %p52, %s53, %s54
      %p58 = pneg %p52
      %p59 = scmp.eq.s32.totalorder %s29, 1
      %p60 = por %p58, %p59
      %p61 = scmp.ne.s32.totalorder %s53, %s56
      %p62 = scmp.eq.s32.totalorder %s29, 0
      %p63 = por %p61, %p62
      %p64 = scmp.ne.s32.totalorder %s53, %s56
      %p65 = scmp.eq.s32.totalorder %s34, 1
      %p66 = por %p64, %p65
      %p67 = scmp.ne.s32.totalorder %s56, %s57
      %p68 = scmp.eq.s32.totalorder %s34, 0
      %p69 = por %p67, %p68
      %p70 = scmp.ne.s32.totalorder %s56, %s57
      %p71 = scmp.eq.s32.totalorder %s35, 1
      %p72 = por %p70, %p71
      %p74 = scmp.ne.s32.totalorder %s57, %s73
      %p75 = scmp.eq.s32.totalorder %s35, 0
      %p76 = por %p74, %p75
      %s77 = sadd.s32 %s37, 1
      %s78 = smul.u32 %s77, 2
      %s79 = sadd.s32 %s44, 1
      %s80 = smul.u32 %s79, 2
      %s81 = ssub.s32 %s36, %s48
      %s82 = ssub.s32 %s78, %s80
      %s83 = sor.u32 %s81, %s82
      %p84 = scmp.eq.s32.totalorder %s83, 0
      %s86 = sadd.s32 %s85, 1
      %s87 = scalar_select %p84, %s85, %s86
      %p90 = pneg %p84
      %p91 = scmp.eq.s32.totalorder %s29, 1
      %p92 = por %p90, %p91
      %p93 = scmp.ne.s32.totalorder %s85, %s88
      %p94 = scmp.eq.s32.totalorder %s29, 0
      %p95 = por %p93, %p94
      %p96 = scmp.ne.s32.totalorder %s85, %s88
      %p97 = scmp.eq.s32.totalorder %s34, 1
      %p98 = por %p96, %p97
      %p99 = scmp.ne.s32.totalorder %s88, %s89
      %p100 = scmp.eq.s32.totalorder %s34, 0
      %p101 = por %p99, %p100
      %p102 = scmp.ne.s32.totalorder %s88, %s89
      %p103 = scmp.eq.s32.totalorder %s35, 1
      %p104 = por %p102, %p103
      %p106 = scmp.ne.s32.totalorder %s89, %s105
      %p107 = scmp.eq.s32.totalorder %s35, 0
      %p108 = por %p106, %p107
      %s110 = sadd.s32 %s109, 1
      %p113 = scmp.eq.s32.totalorder %s29, 1
      %p114 = scmp.ne.s32.totalorder %s109, %s111
      %p115 = scmp.eq.s32.totalorder %s29, 0
      %p116 = por %p114, %p115
      %p117 = scmp.ne.s32.totalorder %s109, %s111
      %p118 = scmp.eq.s32.totalorder %s34, 1
      %p119 = por %p117, %p118
      %p120 = scmp.ne.s32.totalorder %s111, %s112
      %p121 = scmp.eq.s32.totalorder %s34, 0
      %p122 = por %p120, %p121
      %p123 = scmp.ne.s32.totalorder %s111, %s112
      %p124 = scmp.eq.s32.totalorder %s35, 1
      %p125 = por %p123, %p124
      %p127 = scmp.ne.s32.totalorder %s112, %s126
      %p128 = scmp.eq.s32.totalorder %s35, 0
      %p129 = por %p127, %p128
      %s131 = sadd.s32 %s130, 1
      %p134 = scmp.eq.s32.totalorder %s29, 1
      %p135 = scmp.ne.s32.totalorder %s130, %s132
      %p136 = scmp.eq.s32.totalorder %s29, 0
      %p137 = por %p135, %p136
      %p138 = scmp.ne.s32.totalorder %s130, %s132
      %p139 = scmp.eq.s32.totalorder %s34, 1
      %p140 = por %p138, %p139
      %p141 = scmp.ne.s32.totalorder %s132, %s133
      %p142 = scmp.eq.s32.totalorder %s34, 0
      %p143 = por %p141, %p142
      %p144 = scmp.ne.s32.totalorder %s132, %s133
      %p145 = scmp.eq.s32.totalorder %s35, 1
      %p146 = por %p144, %p145
      %p148 = scmp.ne.s32.totalorder %s133, %s147
      %p149 = scmp.eq.s32.totalorder %s35, 0
      %p150 = por %p148, %p149
      %s152 = sadd.s32 %s151, 1
      %p155 = scmp.eq.s32.totalorder %s29, 1
      %p156 = scmp.ne.s32.totalorder %s151, %s153
      %p157 = scmp.eq.s32.totalorder %s29, 0
      %p158 = por %p156, %p157
      %p159 = scmp.ne.s32.totalorder %s151, %s153
      %p160 = scmp.eq.s32.totalorder %s34, 1
      %p161 = por %p159, %p160
      %p162 = scmp.ne.s32.totalorder %s153, %s154
      %p163 = scmp.eq.s32.totalorder %s34, 0
      %p164 = por %p162, %p163
      %p165 = scmp.ne.s32.totalorder %s153, %s154
      %p166 = scmp.eq.s32.totalorder %s35, 1
      %p167 = por %p165, %p166
      %p169 = scmp.ne.s32.totalorder %s154, %s168
      %p170 = scmp.eq.s32.totalorder %s35, 0
      %p171 = por %p169, %p170
      %s173 = sadd.s32 %s172, 1
      %p176 = scmp.eq.s32.totalorder %s29, 1
      %p177 = scmp.ne.s32.totalorder %s172, %s174
      %p178 = scmp.eq.s32.totalorder %s29, 0
      %p179 = por %p177, %p178
      %p180 = scmp.ne.s32.totalorder %s172, %s174
      %p181 = scmp.eq.s32.totalorder %s34, 1
      %p182 = por %p180, %p181
      %p183 = scmp.ne.s32.totalorder %s174, %s175
      %p184 = scmp.eq.s32.totalorder %s34, 0
      %p185 = por %p183, %p184
      %p186 = scmp.ne.s32.totalorder %s174, %s175
      %p187 = scmp.eq.s32.totalorder %s35, 1
      %p188 = por %p186, %p187
      %p190 = scmp.ne.s32.totalorder %s175, %s189
      %p191 = scmp.eq.s32.totalorder %s35, 0
      %p192 = por %p190, %p191
      %s194 = sadd.s32 %s193, 1
      %p197 = scmp.eq.s32.totalorder %s29, 1
      %p198 = scmp.ne.s32.totalorder %s193, %s195
      %p199 = scmp.eq.s32.totalorder %s29, 0
      %p200 = por %p198, %p199
      %p201 = scmp.ne.s32.totalorder %s193, %s195
      %p202 = scmp.eq.s32.totalorder %s34, 1
      %p203 = por %p201, %p202
      %p204 = scmp.ne.s32.totalorder %s195, %s196
      %p205 = scmp.eq.s32.totalorder %s34, 0
      %p206 = por %p204, %p205
      %p207 = scmp.ne.s32.totalorder %s195, %s196
      %p208 = scmp.eq.s32.totalorder %s35, 1
      %p209 = por %p207, %p208
      %p211 = scmp.ne.s32.totalorder %s196, %s210
      %p212 = scmp.eq.s32.totalorder %s35, 0
      %p213 = por %p211, %p212
      %s215 = sadd.s32 %s214, 1
      %p218 = scmp.eq.s32.totalorder %s29, 1
      %p219 = scmp.ne.s32.totalorder %s214, %s216
      %p220 = scmp.eq.s32.totalorder %s29, 0
      %p221 = por %p219, %p220
      %p222 = scmp.ne.s32.totalorder %s214, %s216
      %p223 = scmp.eq.s32.totalorder %s34, 1
      %p224 = por %p222, %p223
      %p225 = scmp.ne.s32.totalorder %s216, %s217
      %p226 = scmp.eq.s32.totalorder %s34, 0
      %p227 = por %p225, %p226
      %p228 = scmp.ne.s32.totalorder %s216, %s217
      %p229 = scmp.eq.s32.totalorder %s35, 1
      %p230 = por %p228, %p229
      %p232 = scmp.ne.s32.totalorder %s217, %s231
      %p233 = scmp.eq.s32.totalorder %s35, 0
      %p234 = por %p232, %p233
      %s236 = sadd.s32 %s235, 1
      %p239 = scmp.eq.s32.totalorder %s29, 1
      %p240 = scmp.ne.s32.totalorder %s235, %s237
      %p241 = scmp.eq.s32.totalorder %s29, 0
      %p242 = por %p240, %p241
      %p243 = scmp.ne.s32.totalorder %s235, %s237
      %p244 = scmp.eq.s32.totalorder %s34, 1
      %p245 = por %p243, %p244
      %p246 = scmp.ne.s32.totalorder %s237, %s238
      %p247 = scmp.eq.s32.totalorder %s34, 0
      %p248 = por %p246, %p247
      %p249 = scmp.ne.s32.totalorder %s237, %s238
      %p250 = scmp.eq.s32.totalorder %s35, 1
      %p251 = por %p249, %p250
      %p253 = scmp.ne.s32.totalorder %s238, %s252
      %p254 = scmp.eq.s32.totalorder %s35, 0
      %p255 = por %p253, %p254
      %s257 = sadd.s32 %s256, 1
      %p260 = scmp.eq.s32.totalorder %s29, 1
      %p261 = scmp.ne.s32.totalorder %s256, %s258
      %p262 = scmp.eq.s32.totalorder %s29, 0
      %p263 = por %p261, %p262
      %p264 = scmp.ne.s32.totalorder %s256, %s258
      %p265 = scmp.eq.s32.totalorder %s34, 1
      %p266 = por %p264, %p265
      %p267 = scmp.ne.s32.totalorder %s258, %s259
      %p268 = scmp.eq.s32.totalorder %s34, 0
      %p269 = por %p267, %p268
      %p270 = scmp.ne.s32.totalorder %s258, %s259
      %p271 = scmp.eq.s32.totalorder %s35, 1
      %p272 = por %p270, %p271
      %p274 = scmp.ne.s32.totalorder %s259, %s273
      %p275 = scmp.eq.s32.totalorder %s35, 0
      %p276 = por %p274, %p275
      %s277 = ssub.s32 %s36, %s48
      %s278 = ssub.s32 %s37, %s44
      %s279 = sor.u32 %s277, %s278
      %p280 = scmp.eq.s32.totalorder %s279, 0
      %s282 = sadd.s32 %s281, 1
      %s283 = scalar_select %p280, %s281, %s282
      %p286 = pneg %p280
      %p287 = scmp.eq.s32.totalorder %s29, 1
      %p288 = por %p286, %p287
      %p289 = scmp.ne.s32.totalorder %s281, %s284
      %p290 = scmp.eq.s32.totalorder %s29, 0
      %p291 = por %p289, %p290
      %p292 = scmp.ne.s32.totalorder %s281, %s284
      %p293 = scmp.eq.s32.totalorder %s34, 1
      %p294 = por %p292, %p293
      %p295 = scmp.ne.s32.totalorder %s284, %s285
      %p296 = scmp.eq.s32.totalorder %s34, 0
      %p297 = por %p295, %p296
      %p298 = scmp.ne.s32.totalorder %s284, %s285
      %p299 = scmp.eq.s32.totalorder %s35, 1
      %p300 = por %p298, %p299
      %p302 = scmp.ne.s32.totalorder %s285, %s301
      %p303 = scmp.eq.s32.totalorder %s35, 0
      %p304 = por %p302, %p303
      %p305 = scmp.le.s32.totalorder 1, %s29
      %p306 = scmp.lt.s32.totalorder %s29, 3
      %p307 = pnand %p305, %p306
      %p308 = pneg %p307
      // Predicated region
      $region9: #{quadruple_conv_lr.1} parent=5 // pred_check
        _
      $region10: #{quadruple_conv_lr.1} parent=5 // pred_check_branch
        %310 = sbr.rel (%p307) target = $region12
      $region11: #{quadruple_conv_lr.1} parent=5 // pred_region
        %s311 = ssub.s32 %s29, 1
        // Predicated region
        $region13: #{quadruple_conv_lr.1} parent=11 // pred_check
          %p312 = pneg %p122
        $region14: #{quadruple_conv_lr.1} parent=11 // pred_check_branch
          %314 = sbr.rel (%p312) target = $region16
        $region15: #{quadruple_conv_lr.1} parent=11 // pred_region
          %s316 = ssub.s32 576, 576
          %317 = vsyncadd [#allocation6], %s316
          %s318 = sshll.u32 [#allocation7], 4
          %s319 = int_to_ptr.vmem [resolvable:$true] %s318
          %324 = dma.hbm_to_vmem [thread:$0]  %s2, 576, %s319, [#allocation6], 64, 64, 4
        $region16: #{quadruple_conv_lr.1} parent=11 // pred_fallthru
          _
        // Predicated region
        $region17: #{quadruple_conv_lr.1} parent=11 // pred_check
          %p325 = pneg %p143
        $region18: #{quadruple_conv_lr.1} parent=11 // pred_check_branch
          %327 = sbr.rel (%p325) target = $region20
        $region19: #{quadruple_conv_lr.1} parent=11 // pred_region
          %s329 = ssub.s32 16, 16
          %330 = vsyncadd [#allocation9], %s329
          %s332 = sshll.u32 [#allocation8], 4
          %s333 = int_to_ptr.vmem [resolvable:$true] %s332
          %335 = dma.hbm_to_vmem [thread:$0]  %s3, 16, %s333, [#allocation9]
        $region20: #{quadruple_conv_lr.1} parent=11 // pred_fallthru
          _
        // Predicated region
        $region21: #{quadruple_conv_lr.1} parent=11 // pred_check
          %p336 = pneg %p164
        $region22: #{quadruple_conv_lr.1} parent=11 // pred_check_branch
          %338 = sbr.rel (%p336) target = $region24
        $region23: #{quadruple_conv_lr.1} parent=11 // pred_region
          %s340 = ssub.s32 2304, 2304
          %341 = vsyncadd [#allocation9], %s340
          %s342 = sshll.u32 [#allocation10], 4
          %s343 = int_to_ptr.vmem [resolvable:$true] %s342
          %348 = dma.hbm_to_vmem [thread:$0]  %s4, 2304, %s343, [#allocation9], 64, 64, 4
        $region24: #{quadruple_conv_lr.1} parent=11 // pred_fallthru
          _
        // Predicated region
        $region25: #{quadruple_conv_lr.1} parent=11 // pred_check
          %p349 = pneg %p185
        $region26: #{quadruple_conv_lr.1} parent=11 // pred_check_branch
          %351 = sbr.rel (%p349) target = $region28
        $region27: #{quadruple_conv_lr.1} parent=11 // pred_region
          %s353 = ssub.s32 16, 16
          %354 = vsyncadd [#allocation12], %s353
          %s356 = sshll.u32 [#allocation11], 4
          %s357 = int_to_ptr.vmem [resolvable:$true] %s356
          %359 = dma.hbm_to_vmem [thread:$0]  %s5, 16, %s357, [#allocation12]
        $region28: #{quadruple_conv_lr.1} parent=11 // pred_fallthru
          _
        // Predicated region
        $region29: #{quadruple_conv_lr.1} parent=11 // pred_check
          %p360 = pneg %p206
        $region30: #{quadruple_conv_lr.1} parent=11 // pred_check_branch
          %362 = sbr.rel (%p360) target = $region32
        $region31: #{quadruple_conv_lr.1} parent=11 // pred_region
          %s364 = ssub.s32 2304, 2304
          %365 = vsyncadd [#allocation12], %s364
          %s366 = sshll.u32 [#allocation13], 4
          %s367 = int_to_ptr.vmem [resolvable:$true] %s366
          %372 = dma.hbm_to_vmem [thread:$0]  %s6, 2304, %s367, [#allocation12], 64, 64, 4
        $region32: #{quadruple_conv_lr.1} parent=11 // pred_fallthru
          _
        // Predicated region
        $region33: #{quadruple_conv_lr.1} parent=11 // pred_check
          %p373 = pneg %p227
        $region34: #{quadruple_conv_lr.1} parent=11 // pred_check_branch
          %375 = sbr.rel (%p373) target = $region36
        $region35: #{quadruple_conv_lr.1} parent=11 // pred_region
          %s377 = ssub.s32 16, 16
          %378 = vsyncadd [#allocation15], %s377
          %s380 = sshll.u32 [#allocation14], 4
          %s381 = int_to_ptr.vmem [resolvable:$true] %s380
          %383 = dma.hbm_to_vmem [thread:$0]  %s7, 16, %s381, [#allocation15]
        $region36: #{quadruple_conv_lr.1} parent=11 // pred_fallthru
          _
        // Predicated region
        $region37: #{quadruple_conv_lr.1} parent=11 // pred_check
          %p384 = pneg %p248
        $region38: #{quadruple_conv_lr.1} parent=11 // pred_check_branch
          %386 = sbr.rel (%p384) target = $region40
        $region39: #{quadruple_conv_lr.1} parent=11 // pred_region
          %s388 = ssub.s32 2304, 2304
          %389 = vsyncadd [#allocation15], %s388
          %s390 = sshll.u32 [#allocation16], 4
          %s391 = int_to_ptr.vmem [resolvable:$true] %s390
          %396 = dma.hbm_to_vmem [thread:$0]  %s8, 2304, %s391, [#allocation15], 64, 64, 4
        $region40: #{quadruple_conv_lr.1} parent=11 // pred_fallthru
          _
        // Predicated region
        $region41: #{quadruple_conv_lr.1} parent=11 // pred_check
          %p397 = pneg %p269
        $region42: #{quadruple_conv_lr.1} parent=11 // pred_check_branch
          %399 = sbr.rel (%p397) target = $region44
        $region43: #{quadruple_conv_lr.1} parent=11 // pred_region
          %s401 = ssub.s32 16, 16
          %402 = vsyncadd [#allocation18], %s401
          %s404 = sshll.u32 [#allocation17], 4
          %s405 = int_to_ptr.vmem [resolvable:$true] %s404
          %407 = dma.hbm_to_vmem [thread:$0]  %s9, 16, %s405, [#allocation18]
        $region44: #{quadruple_conv_lr.1} parent=11 // pred_fallthru
          _
      $region12: #{quadruple_conv_lr.1} parent=5 // pred_fallthru
        _
      %p408 = scmp.lt.s32.totalorder %s29, 2
      // Predicated region
      $region45: #{quadruple_conv_lr.1} parent=5 // pred_check
        %p409 = pneg %p408
      $region46: #{quadruple_conv_lr.1} parent=5 // pred_check_branch
        %411 = sbr.rel (%p409) target = $region48
      $region47: #{quadruple_conv_lr.1} parent=5 // pred_region
        // Predicated region
        $region49: #{quadruple_conv_lr.1} parent=47 // pred_check
          %p412 = pneg %p63
        $region50: #{quadruple_conv_lr.1} parent=47 // pred_check_branch
          %414 = sbr.rel (%p412) target = $region52
        $region51: #{quadruple_conv_lr.1} parent=47 // pred_region
          %s415 = sand.u32 %s53, 1
          %s416 = scalar_lea.sflag [#allocation3], %s415
          %s417 = sand.u32 %s53, 1
          %s418 = smul.addr %s417, 192
          %s419 = scalar_lea.vmem [#allocation2], %s418
          %s420 = smul.u32 16, %s37
          %s421 = ssub.s32 24, %s420
          %p422 = scmp.lt.s32.totalorder %s421, 16
          %s423 = scalar_select %p422, %s421, 16
          %s424 = smul.u32 64, %s423
          %s425 = smul.u32 %s424, 3
          %s427 = ssub.s32 3072, %s425
          %428 = vsyncadd %s416, %s427
          %p429 = scmp.ne.s32.totalorder 0, %s425
          %s430 = smul.addr %s420, 3
          %s431 = smul.addr %s36, 72
          %s432 = sadd.s32 %s430, %s431
          %s433 = smul.addr %s432, 64
          %s434 = scalar_lea.hbm %s0, %s433
          %s435 = smul.u32 %s423, 3
          %s436 = smul.u32 4, %s435
          %s437 = sshll.u32 %s419, 4
          %s438 = int_to_ptr.vmem [resolvable:$true] %s437
          %s439 = sshll.u32 %s436, 4
          %443 = dma.hbm_to_vmem [thread:$0]  (%p429), %s434, %s439, %s438, %s416, 64, 64, 4
        $region52: #{quadruple_conv_lr.1} parent=47 // pred_fallthru
          _
        // Predicated region
        $region53: #{quadruple_conv_lr.1} parent=47 // pred_check
          %p444 = pneg %p95
        $region54: #{quadruple_conv_lr.1} parent=47 // pred_check_branch
          %446 = sbr.rel (%p444) target = $region56
        $region55: #{quadruple_conv_lr.1} parent=47 // pred_region
          %s447 = sand.u32 %s29, 1
          %s448 = scalar_lea.sflag [#allocation6], %s447
          %s449 = sand.u32 %s85, 1
          %s450 = smul.addr %s449, 96
          %s451 = scalar_lea.vmem [#allocation5], %s450
          %s452 = sadd.s32 %s37, 1
          %s453 = smul.u32 %s452, 2
          %s454 = smul.u32 8, %s453
          %s456 = ssub.s32 1536, 1536
          %457 = vsyncadd %s448, %s456
          %s458 = smul.addr %s454, 3
          %s459 = smul.addr %s36, 72
          %s460 = sadd.s32 %s458, %s459
          %s461 = smul.addr %s460, 64
          %s462 = scalar_lea.hbm %s1, %s461
          %s463 = sshll.u32 %s451, 4
          %s464 = int_to_ptr.vmem [resolvable:$true] %s463
          %469 = dma.hbm_to_vmem [thread:$0]  %s462, 1536, %s464, %s448, 64, 64, 4
        $region56: #{quadruple_conv_lr.1} parent=47 // pred_fallthru
          _
      $region48: #{quadruple_conv_lr.1} parent=5 // pred_fallthru
        _
      %p470 = scmp.le.s32.totalorder 1, %s29
      %p471 = scmp.lt.s32.totalorder %s29, 3
      %p472 = pnand %p470, %p471
      %p473 = pneg %p472
      // Predicated region
      $region57: #{quadruple_conv_lr.1} parent=5 // pred_check
        _
      $region58: #{quadruple_conv_lr.1} parent=5 // pred_check_branch
        %475 = sbr.rel (%p472) target = $region60
      $region59: #{quadruple_conv_lr.1} parent=5 // pred_region
        %s476 = ssub.s32 %s29, 1
        %s477 = sand.u32 %s56, 1
        %s478 = scalar_lea.sflag [#allocation3], %s477
        %s479 = sand.u32 %s56, 1
        %s480 = smul.addr %s479, 192
        %s481 = scalar_lea.vmem [#allocation2], %s480
        // Predicated region
        $region61: #{quadruple_conv_lr.1} parent=59 // pred_check
          %p482 = pneg %p69
        $region62: #{quadruple_conv_lr.1} parent=59 // pred_check_branch
          %484 = sbr.rel (%p482) target = $region64
        $region63: #{quadruple_conv_lr.1} parent=59 // pred_region
          %485 = dma.done %s478, 3072
        $region64: #{quadruple_conv_lr.1} parent=59 // pred_fallthru
          _
        %s486 = sand.u32 %s34, 1
        %s487 = scalar_lea.sflag [#allocation6], %s486
        %s488 = sand.u32 %s88, 1
        %s489 = smul.addr %s488, 96
        %s490 = scalar_lea.vmem [#allocation5], %s489
        // Predicated region
        $region65: #{quadruple_conv_lr.1} parent=59 // pred_check
          %p491 = pneg %p101
        $region66: #{quadruple_conv_lr.1} parent=59 // pred_check_branch
          %493 = sbr.rel (%p491) target = $region68
        $region67: #{quadruple_conv_lr.1} parent=59 // pred_region
          %494 = dma.done %s487, 1536
        $region68: #{quadruple_conv_lr.1} parent=59 // pred_fallthru
          _
        // Predicated region
        $region69: #{quadruple_conv_lr.1} parent=59 // pred_check
          %p495 = pneg %p122
        $region70: #{quadruple_conv_lr.1} parent=59 // pred_check_branch
          %497 = sbr.rel (%p495) target = $region72
        $region71: #{quadruple_conv_lr.1} parent=59 // pred_region
          %498 = dma.done [#allocation6], 576
        $region72: #{quadruple_conv_lr.1} parent=59 // pred_fallthru
          _
        // Predicated region
        $region73: #{quadruple_conv_lr.1} parent=59 // pred_check
          %p499 = pneg %p143
        $region74: #{quadruple_conv_lr.1} parent=59 // pred_check_branch
          %501 = sbr.rel (%p499) target = $region76
        $region75: #{quadruple_conv_lr.1} parent=59 // pred_region
          %502 = dma.done [#allocation9], 16
        $region76: #{quadruple_conv_lr.1} parent=59 // pred_fallthru
          _
        // Predicated region
        $region77: #{quadruple_conv_lr.1} parent=59 // pred_check
          %p503 = pneg %p164
        $region78: #{quadruple_conv_lr.1} parent=59 // pred_check_branch
          %505 = sbr.rel (%p503) target = $region80
        $region79: #{quadruple_conv_lr.1} parent=59 // pred_region
          %506 = dma.done [#allocation9], 2304
        $region80: #{quadruple_conv_lr.1} parent=59 // pred_fallthru
          _
        // Predicated region
        $region81: #{quadruple_conv_lr.1} parent=59 // pred_check
          %p507 = pneg %p185
        $region82: #{quadruple_conv_lr.1} parent=59 // pred_check_branch
          %509 = sbr.rel (%p507) target = $region84
        $region83: #{quadruple_conv_lr.1} parent=59 // pred_region
          %510 = dma.done [#allocation12], 16
        $region84: #{quadruple_conv_lr.1} parent=59 // pred_fallthru
          _
        // Predicated region
        $region85: #{quadruple_conv_lr.1} parent=59 // pred_check
          %p511 = pneg %p206
        $region86: #{quadruple_conv_lr.1} parent=59 // pred_check_branch
          %513 = sbr.rel (%p511) target = $region88
        $region87: #{quadruple_conv_lr.1} parent=59 // pred_region
          %514 = dma.done [#allocation12], 2304
        $region88: #{quadruple_conv_lr.1} parent=59 // pred_fallthru
          _
        // Predicated region
        $region89: #{quadruple_conv_lr.1} parent=59 // pred_check
          %p515 = pneg %p227
        $region90: #{quadruple_conv_lr.1} parent=59 // pred_check_branch
          %517 = sbr.rel (%p515) target = $region92
        $region91: #{quadruple_conv_lr.1} parent=59 // pred_region
          %518 = dma.done [#allocation15], 16
        $region92: #{quadruple_conv_lr.1} parent=59 // pred_fallthru
          _
        // Predicated region
        $region93: #{quadruple_conv_lr.1} parent=59 // pred_check
          %p519 = pneg %p248
        $region94: #{quadruple_conv_lr.1} parent=59 // pred_check_branch
          %521 = sbr.rel (%p519) target = $region96
        $region95: #{quadruple_conv_lr.1} parent=59 // pred_region
          %522 = dma.done [#allocation15], 2304
        $region96: #{quadruple_conv_lr.1} parent=59 // pred_fallthru
          _
        // Predicated region
        $region97: #{quadruple_conv_lr.1} parent=59 // pred_check
          %p523 = pneg %p269
        $region98: #{quadruple_conv_lr.1} parent=59 // pred_check_branch
          %525 = sbr.rel (%p523) target = $region100
        $region99: #{quadruple_conv_lr.1} parent=59 // pred_region
          %526 = dma.done [#allocation18], 16
        $region100: #{quadruple_conv_lr.1} parent=59 // pred_fallthru
          _
        %s527 = sand.u32 %s56, 1
        %s528 = scalar_lea.sflag [#allocation3], %s527
        %s529 = sand.u32 %s56, 1
        %s530 = smul.addr %s529, 192
        %s531 = scalar_lea.vmem [#allocation2], %s530
        %p532 = pneg %p69
        %p533 = pneg %p66
        %s534 = sand.u32 %s34, 1
        %s535 = scalar_lea.sflag [#allocation6], %s534
        %s536 = sand.u32 %s88, 1
        %s537 = smul.addr %s536, 96
        %s538 = scalar_lea.vmem [#allocation5], %s537
        %p539 = pneg %p101
        %p540 = pneg %p98
        %p541 = pneg %p122
        %p542 = pneg %p119
        %p543 = pneg %p143
        %p544 = pneg %p140
        %p545 = pneg %p164
        %p546 = pneg %p161
        %p547 = pneg %p185
        %p548 = pneg %p182
        %p549 = pneg %p206
        %p550 = pneg %p203
        %p551 = pneg %p227
        %p552 = pneg %p224
        %p553 = pneg %p248
        %p554 = pneg %p245
        %p555 = pneg %p269
        %p556 = pneg %p266
        %p557 = pneg %p297
        %p558 = pneg %p294
        %s559 = sand.u32 %s284, 1
        %s560 = scalar_lea.sflag [#allocation4], %s559
        %s561 = sand.u32 %s284, 1
        %s562 = smul.addr %s561, 64
        %s563 = scalar_lea.vmem [#allocation19], %s562
        %s564 = smul.u32 16, %s39
        %s565 = ssub.s32 24, %s564
        %p566 = scmp.lt.s32.totalorder %s565, 16
        %s567 = scalar_select %p566, %s565, 16
        %s568 = smul.u32 64, %s567
        %s569 = smul.u32 %s568, 3
        %s570 = sadd.s32 %s39, 1
        %s571 = smul.u32 %s570, 2
        %s572 = smul.u32 8, %s571
        %v574 = vld [vmem:[%s481] sm:$0xf]
        %v575 = vld [vmem:[%s481 + $0x4] sm:$0xf]
        %v576 = vld [vmem:[%s481 + $0x8] sm:$0x1]
        %v577 = vld [vmem:[%s481 + $0xc] sm:$0xf]
        %v578 = vld [vmem:[%s481 + $0x10] sm:$0xf]
        %v579 = vld [vmem:[%s481 + $0x14] sm:$0x1]
        %v580 = vld [vmem:[%s481 + $0x18] sm:$0xf]
        %v581 = vld [vmem:[%s481 + $0x1c] sm:$0xf]
        %v582 = vld [vmem:[%s481 + $0x20] sm:$0x1]
        %v583 = vld [vmem:[%s481 + $0x24] sm:$0xf]
        %v584 = vld [vmem:[%s481 + $0x28] sm:$0xf]
        %v585 = vld [vmem:[%s481 + $0x2c] sm:$0x1]
        %v586 = vld [vmem:[%s481 + $0x30] sm:$0xf]
        %v587 = vld [vmem:[%s481 + $0x34] sm:$0xf]
        %v588 = vld [vmem:[%s481 + $0x38] sm:$0x1]
        %v589 = vld [vmem:[%s481 + $0x3c] sm:$0xf]
        %v590 = vld [vmem:[%s481 + $0x40] sm:$0xf]
        %v591 = vld [vmem:[%s481 + $0x44] sm:$0x1]
        %v592 = vld [vmem:[%s481 + $0x48] sm:$0xf]
        %v593 = vld [vmem:[%s481 + $0x4c] sm:$0xf]
        %v594 = vld [vmem:[%s481 + $0x50] sm:$0x1]
        %v595 = vld [vmem:[%s481 + $0x54] sm:$0xf]
        %v596 = vld [vmem:[%s481 + $0x58] sm:$0xf]
        %v597 = vld [vmem:[%s481 + $0x5c] sm:$0x1]
        %v598 = vld [vmem:[%s481 + $0x60] sm:$0xf]
        %v599 = vld [vmem:[%s481 + $0x64] sm:$0xf]
        %v600 = vld [vmem:[%s481 + $0x68] sm:$0x1]
        %v601 = vld [vmem:[%s481 + $0x6c] sm:$0xf]
        %v602 = vld [vmem:[%s481 + $0x70] sm:$0xf]
        %v603 = vld [vmem:[%s481 + $0x74] sm:$0x1]
        %v604 = vld [vmem:[%s481 + $0x78] sm:$0xf]
        %v605 = vld [vmem:[%s481 + $0x7c] sm:$0xf]
        %v606 = vld [vmem:[%s481 + $0x80] sm:$0x1]
        %v607 = vld [vmem:[%s481 + $0x84] sm:$0xf]
        %v608 = vld [vmem:[%s481 + $0x88] sm:$0xf]
        %v609 = vld [vmem:[%s481 + $0x8c] sm:$0x1]
        %v610 = vld [vmem:[%s481 + $0x90] sm:$0xf]
        %v611 = vld [vmem:[%s481 + $0x94] sm:$0xf]
        %v612 = vld [vmem:[%s481 + $0x98] sm:$0x1]
        %v613 = vld [vmem:[%s481 + $0x9c] sm:$0xf]
        %v614 = vld [vmem:[%s481 + $0xa0] sm:$0xf]
        %v615 = vld [vmem:[%s481 + $0xa4] sm:$0x1]
        %v616 = vld [vmem:[%s481 + $0xa8] sm:$0xf]
        %v617 = vld [vmem:[%s481 + $0xac] sm:$0xf]
        %v618 = vld [vmem:[%s481 + $0xb0] sm:$0x1]
        %v619 = vld [vmem:[%s481 + $0xb4] sm:$0xf]
        %v620 = vld [vmem:[%s481 + $0xb8] sm:$0xf]
        %v621 = vld [vmem:[%s481 + $0xbc] sm:$0x1]
        %v622 = vld [vmem:[%s490] sm:$0xf]
        %v623 = vld [vmem:[%s490 + $0x4] sm:$0xf]
        %v624 = vld [vmem:[%s490 + $0x8] sm:$0x1]
        %v625 = vld [vmem:[%s490 + $0xc] sm:$0xf]
        %v626 = vld [vmem:[%s490 + $0x10] sm:$0xf]
        %v627 = vld [vmem:[%s490 + $0x14] sm:$0x1]
        %v628 = vld [vmem:[%s490 + $0x18] sm:$0xf]
        %v629 = vld [vmem:[%s490 + $0x1c] sm:$0xf]
        %v630 = vld [vmem:[%s490 + $0x20] sm:$0x1]
        %v631 = vld [vmem:[%s490 + $0x24] sm:$0xf]
        %v632 = vld [vmem:[%s490 + $0x28] sm:$0xf]
        %v633 = vld [vmem:[%s490 + $0x2c] sm:$0x1]
        %v634 = vld [vmem:[%s490 + $0x30] sm:$0xf]
        %v635 = vld [vmem:[%s490 + $0x34] sm:$0xf]
        %v636 = vld [vmem:[%s490 + $0x38] sm:$0x1]
        %v637 = vld [vmem:[%s490 + $0x3c] sm:$0xf]
        %v638 = vld [vmem:[%s490 + $0x40] sm:$0xf]
        %v639 = vld [vmem:[%s490 + $0x44] sm:$0x1]
        %v640 = vld [vmem:[%s490 + $0x48] sm:$0xf]
        %v641 = vld [vmem:[%s490 + $0x4c] sm:$0xf]
        %v642 = vld [vmem:[%s490 + $0x50] sm:$0x1]
        %v643 = vld [vmem:[%s490 + $0x54] sm:$0xf]
        %v644 = vld [vmem:[%s490 + $0x58] sm:$0xf]
        %v645 = vld [vmem:[%s490 + $0x5c] sm:$0x1]
        %v690 = vunpack.c.l.b16 %v574
        %v691 = vunpack.c.l.b16 %v575
        %v692 = vunpack.c.l.b16 %v577
        %v693 = vunpack.c.l.b16 %v578
        %v694 = vunpack.c.l.b16 %v580
        %v695 = vunpack.c.l.b16 %v581
        %v696 = vunpack.c.l.b16 %v583
        %v697 = vunpack.c.l.b16 %v584
        %v698 = vunpack.c.l.b16 %v586
        %v699 = vunpack.c.l.b16 %v587
        %v700 = vunpack.c.l.b16 %v589
        %v701 = vunpack.c.l.b16 %v590
        %v702 = vunpack.c.l.b16 %v592
        %v703 = vunpack.c.l.b16 %v593
        %v704 = vunpack.c.l.b16 %v595
        %v705 = vunpack.c.l.b16 %v596
        %v706 = vunpack.c.l.b16 %v598
        %v707 = vunpack.c.l.b16 %v599
        %v708 = vunpack.c.l.b16 %v601
        %v709 = vunpack.c.l.b16 %v602
        %v710 = vunpack.c.l.b16 %v604
        %v711 = vunpack.c.l.b16 %v605
        %v712 = vunpack.c.l.b16 %v607
        %v713 = vunpack.c.l.b16 %v608
        %v714 = vunpack.c.l.b16 %v610
        %v715 = vunpack.c.l.b16 %v611
        %v716 = vunpack.c.l.b16 %v613
        %v717 = vunpack.c.l.b16 %v614
        %v718 = vunpack.c.l.b16 %v616
        %v719 = vunpack.c.l.b16 %v617
        %v720 = vunpack.c.l.b16 %v619
        %v721 = vunpack.c.l.b16 %v620
        %v722 = vunpack.c.l.b16 %v622
        %v723 = vunpack.c.l.b16 %v623
        %v724 = vunpack.c.l.b16 %v625
        %v725 = vunpack.c.l.b16 %v626
        %v726 = vunpack.c.l.b16 %v628
        %v727 = vunpack.c.l.b16 %v629
        %v728 = vunpack.c.l.b16 %v631
        %v729 = vunpack.c.l.b16 %v632
        %v730 = vunpack.c.l.b16 %v634
        %v731 = vunpack.c.l.b16 %v635
        %v732 = vunpack.c.l.b16 %v637
        %v733 = vunpack.c.l.b16 %v638
        %v734 = vpack.c.b16 %v691, %v690
        %v735 = vpack.c.b16 %v693, %v692
        %v736 = vpack.c.b16 %v695, %v694
        %v737 = vpack.c.b16 %v697, %v696
        %v738 = vpack.c.b16 %v699, %v698
        %v739 = vpack.c.b16 %v701, %v700
        %v740 = vpack.c.b16 %v703, %v702
        %v741 = vpack.c.b16 %v705, %v704
        %v742 = vpack.c.b16 %v707, %v706
        %v743 = vpack.c.b16 %v709, %v708
        %v744 = vpack.c.b16 %v711, %v710
        %v745 = vpack.c.b16 %v713, %v712
        %v746 = vpack.c.b16 %v715, %v714
        %v747 = vpack.c.b16 %v717, %v716
        %v748 = vpack.c.b16 %v719, %v718
        %v749 = vpack.c.b16 %v721, %v720
        %v750 = vpack.c.b16 %v723, %v722
        %v751 = vpack.c.b16 %v725, %v724
        %v752 = vpack.c.b16 %v727, %v726
        %v753 = vpack.c.b16 %v729, %v728
        %v754 = vpack.c.b16 %v731, %v730
        %v755 = vpack.c.b16 %v733, %v732
        %v778 = vunpack.c.l.b16 %v576
        %v779 = vunpack.c.l.b16 %v579
        %v780 = vunpack.c.l.b16 %v582
        %v781 = vunpack.c.l.b16 %v585
        %v782 = vunpack.c.l.b16 %v588
        %v783 = vunpack.c.l.b16 %v591
        %v784 = vunpack.c.l.b16 %v594
        %v785 = vunpack.c.l.b16 %v597
        %v786 = vunpack.c.l.b16 %v600
        %v787 = vunpack.c.l.b16 %v603
        %v788 = vunpack.c.l.b16 %v606
        %v789 = vunpack.c.l.b16 %v609
        %v790 = vunpack.c.l.b16 %v612
        %v791 = vunpack.c.l.b16 %v615
        %v792 = vunpack.c.l.b16 %v618
        %v793 = vunpack.c.l.b16 %v621
        %v794 = vunpack.c.l.b16 %v624
        %v795 = vunpack.c.l.b16 %v627
        %v796 = vunpack.c.l.b16 %v630
        %v797 = vunpack.c.l.b16 %v633
        %v798 = vunpack.c.l.b16 %v636
        %v799 = vunpack.c.l.b16 %v639
        %v800 = vpack.c.b16 %v778, %v778
        %v801 = vpack.c.b16 %v779, %v779
        %v802 = vpack.c.b16 %v780, %v780
        %v803 = vpack.c.b16 %v781, %v781
        %v804 = vpack.c.b16 %v782, %v782
        %v805 = vpack.c.b16 %v783, %v783
        %v806 = vpack.c.b16 %v784, %v784
        %v807 = vpack.c.b16 %v785, %v785
        %v808 = vpack.c.b16 %v786, %v786
        %v809 = vpack.c.b16 %v787, %v787
        %v810 = vpack.c.b16 %v788, %v788
        %v811 = vpack.c.b16 %v789, %v789
        %v812 = vpack.c.b16 %v790, %v790
        %v813 = vpack.c.b16 %v791, %v791
        %v814 = vpack.c.b16 %v792, %v792
        %v815 = vpack.c.b16 %v793, %v793
        %v816 = vpack.c.b16 %v794, %v794
        %v817 = vpack.c.b16 %v795, %v795
        %v818 = vpack.c.b16 %v796, %v796
        %v819 = vpack.c.b16 %v797, %v797
        %v820 = vpack.c.b16 %v798, %v798
        %v821 = vpack.c.b16 %v799, %v799
        %vm822 = vsmask.f32 7424
        %v824 = vshrl.u32 %v734, 16
        %v826 = vshll.u32 %v734, 16
        %v828 = vrot.slane %v826, 1
        %v829 = vor.u32 %v824, %v828
        %v831 = vshll.u32 %v800, 16
        %v833 = vrot.slane %v831, 1
        %v834 = vsel %vm822, %v829, %v833
        %v836 = vshrl.u32 %v735, 16
        %v838 = vshll.u32 %v735, 16
        %v840 = vrot.slane %v838, 1
        %v841 = vor.u32 %v836, %v840
        %v843 = vshll.u32 %v801, 16
        %v845 = vrot.slane %v843, 1
        %v846 = vsel %vm822, %v841, %v845
        %v848 = vshrl.u32 %v736, 16
        %v850 = vshll.u32 %v736, 16
        %v852 = vrot.slane %v850, 1
        %v853 = vor.u32 %v848, %v852
        %v855 = vshll.u32 %v802, 16
        %v857 = vrot.slane %v855, 1
        %v858 = vsel %vm822, %v853, %v857
        %v860 = vshrl.u32 %v737, 16
        %v862 = vshll.u32 %v737, 16
        %v864 = vrot.slane %v862, 1
        %v865 = vor.u32 %v860, %v864
        %v867 = vshll.u32 %v803, 16
        %v869 = vrot.slane %v867, 1
        %v870 = vsel %vm822, %v865, %v869
        %v872 = vshrl.u32 %v738, 16
        %v874 = vshll.u32 %v738, 16
        %v876 = vrot.slane %v874, 1
        %v877 = vor.u32 %v872, %v876
        %v879 = vshll.u32 %v804, 16
        %v881 = vrot.slane %v879, 1
        %v882 = vsel %vm822, %v877, %v881
        %v884 = vshrl.u32 %v739, 16
        %v886 = vshll.u32 %v739, 16
        %v888 = vrot.slane %v886, 1
        %v889 = vor.u32 %v884, %v888
        %v891 = vshll.u32 %v805, 16
        %v893 = vrot.slane %v891, 1
        %v894 = vsel %vm822, %v889, %v893
        %v896 = vshrl.u32 %v740, 16
        %v898 = vshll.u32 %v740, 16
        %v900 = vrot.slane %v898, 1
        %v901 = vor.u32 %v896, %v900
        %v903 = vshll.u32 %v806, 16
        %v905 = vrot.slane %v903, 1
        %v906 = vsel %vm822, %v901, %v905
        %v908 = vshrl.u32 %v741, 16
        %v910 = vshll.u32 %v741, 16
        %v912 = vrot.slane %v910, 1
        %v913 = vor.u32 %v908, %v912
        %v915 = vshll.u32 %v807, 16
        %v917 = vrot.slane %v915, 1
        %v918 = vsel %vm822, %v913, %v917
        %v920 = vshrl.u32 %v742, 16
        %v922 = vshll.u32 %v742, 16
        %v924 = vrot.slane %v922, 1
        %v925 = vor.u32 %v920, %v924
        %v927 = vshll.u32 %v808, 16
        %v929 = vrot.slane %v927, 1
        %v930 = vsel %vm822, %v925, %v929
        %v932 = vshrl.u32 %v743, 16
        %v934 = vshll.u32 %v743, 16
        %v936 = vrot.slane %v934, 1
        %v937 = vor.u32 %v932, %v936
        %v939 = vshll.u32 %v809, 16
        %v941 = vrot.slane %v939, 1
        %v942 = vsel %vm822, %v937, %v941
        %v944 = vshrl.u32 %v744, 16
        %v946 = vshll.u32 %v744, 16
        %v948 = vrot.slane %v946, 1
        %v949 = vor.u32 %v944, %v948
        %v951 = vshll.u32 %v810, 16
        %v953 = vrot.slane %v951, 1
        %v954 = vsel %vm822, %v949, %v953
        %v956 = vshrl.u32 %v745, 16
        %v958 = vshll.u32 %v745, 16
        %v960 = vrot.slane %v958, 1
        %v961 = vor.u32 %v956, %v960
        %v963 = vshll.u32 %v811, 16
        %v965 = vrot.slane %v963, 1
        %v966 = vsel %vm822, %v961, %v965
        %v968 = vshrl.u32 %v746, 16
        %v970 = vshll.u32 %v746, 16
        %v972 = vrot.slane %v970, 1
        %v973 = vor.u32 %v968, %v972
        %v975 = vshll.u32 %v812, 16
        %v977 = vrot.slane %v975, 1
        %v978 = vsel %vm822, %v973, %v977
        %v980 = vshrl.u32 %v747, 16
        %v982 = vshll.u32 %v747, 16
        %v984 = vrot.slane %v982, 1
        %v985 = vor.u32 %v980, %v984
        %v987 = vshll.u32 %v813, 16
        %v989 = vrot.slane %v987, 1
        %v990 = vsel %vm822, %v985, %v989
        %v992 = vshrl.u32 %v748, 16
        %v994 = vshll.u32 %v748, 16
        %v996 = vrot.slane %v994, 1
        %v997 = vor.u32 %v992, %v996
        %v999 = vshll.u32 %v814, 16
        %v1001 = vrot.slane %v999, 1
        %v1002 = vsel %vm822, %v997, %v1001
        %v1004 = vshrl.u32 %v749, 16
        %v1006 = vshll.u32 %v749, 16
        %v1008 = vrot.slane %v1006, 1
        %v1009 = vor.u32 %v1004, %v1008
        %v1011 = vshll.u32 %v815, 16
        %v1013 = vrot.slane %v1011, 1
        %v1014 = vsel %vm822, %v1009, %v1013
        %v1016 = vshrl.u32 %v750, 16
        %v1018 = vshll.u32 %v750, 16
        %v1020 = vrot.slane %v1018, 1
        %v1021 = vor.u32 %v1016, %v1020
        %v1023 = vshll.u32 %v816, 16
        %v1025 = vrot.slane %v1023, 1
        %v1026 = vsel %vm822, %v1021, %v1025
        %v1028 = vshrl.u32 %v751, 16
        %v1030 = vshll.u32 %v751, 16
        %v1032 = vrot.slane %v1030, 1
        %v1033 = vor.u32 %v1028, %v1032
        %v1035 = vshll.u32 %v817, 16
        %v1037 = vrot.slane %v1035, 1
        %v1038 = vsel %vm822, %v1033, %v1037
        %v1040 = vshrl.u32 %v752, 16
        %v1042 = vshll.u32 %v752, 16
        %v1044 = vrot.slane %v1042, 1
        %v1045 = vor.u32 %v1040, %v1044
        %v1047 = vshll.u32 %v818, 16
        %v1049 = vrot.slane %v1047, 1
        %v1050 = vsel %vm822, %v1045, %v1049
        %v1052 = vshrl.u32 %v753, 16
        %v1054 = vshll.u32 %v753, 16
        %v1056 = vrot.slane %v1054, 1
        %v1057 = vor.u32 %v1052, %v1056
        %v1059 = vshll.u32 %v819, 16
        %v1061 = vrot.slane %v1059, 1
        %v1062 = vsel %vm822, %v1057, %v1061
        %v1064 = vshrl.u32 %v754, 16
        %v1066 = vshll.u32 %v754, 16
        %v1068 = vrot.slane %v1066, 1
        %v1069 = vor.u32 %v1064, %v1068
        %v1071 = vshll.u32 %v820, 16
        %v1073 = vrot.slane %v1071, 1
        %v1074 = vsel %vm822, %v1069, %v1073
        %v1076 = vshrl.u32 %v755, 16
        %v1078 = vshll.u32 %v755, 16
        %v1080 = vrot.slane %v1078, 1
        %v1081 = vor.u32 %v1076, %v1080
        %v1083 = vshll.u32 %v821, 16
        %v1085 = vrot.slane %v1083, 1
        %v1086 = vsel %vm822, %v1081, %v1085
        %1087 = vrot.lane.b32.xlu0 %v834, 8
        %v1088 = vpop.permute.xlu0 %1087
        %1089 = vrot.lane.b32.xlu0 %v846, 8
        %v1090 = vpop.permute.xlu0 %1089
        %1091 = vrot.lane.b32.xlu0 %v858, 8
        %v1092 = vpop.permute.xlu0 %1091
        %1093 = vrot.lane.b32.xlu0 %v870, 8
        %v1094 = vpop.permute.xlu0 %1093
        %1095 = vrot.lane.b32.xlu0 %v882, 8
        %v1096 = vpop.permute.xlu0 %1095
        %1097 = vrot.lane.b32.xlu0 %v894, 8
        %v1098 = vpop.permute.xlu0 %1097
        %1099 = vrot.lane.b32.xlu0 %v906, 8
        %v1100 = vpop.permute.xlu0 %1099
        %1101 = vrot.lane.b32.xlu0 %v918, 8
        %v1102 = vpop.permute.xlu0 %1101
        %1103 = vrot.lane.b32.xlu0 %v930, 8
        %v1104 = vpop.permute.xlu0 %1103
        %1105 = vrot.lane.b32.xlu0 %v942, 8
        %v1106 = vpop.permute.xlu0 %1105
        %1107 = vrot.lane.b32.xlu0 %v954, 8
        %v1108 = vpop.permute.xlu0 %1107
        %1109 = vrot.lane.b32.xlu0 %v966, 8
        %v1110 = vpop.permute.xlu0 %1109
        %1111 = vrot.lane.b32.xlu0 %v978, 8
        %v1112 = vpop.permute.xlu0 %1111
        %1113 = vrot.lane.b32.xlu0 %v990, 8
        %v1114 = vpop.permute.xlu0 %1113
        %1115 = vrot.lane.b32.xlu0 %v1002, 8
        %v1116 = vpop.permute.xlu0 %1115
        %1117 = vrot.lane.b32.xlu0 %v1014, 8
        %v1118 = vpop.permute.xlu0 %1117
        %1119 = vrot.lane.b32.xlu0 %v1026, 8
        %v1120 = vpop.permute.xlu0 %1119
        %1121 = vrot.lane.b32.xlu0 %v1038, 8
        %v1122 = vpop.permute.xlu0 %1121
        %1123 = vrot.lane.b32.xlu0 %v1050, 8
        %v1124 = vpop.permute.xlu0 %1123
        %1125 = vrot.lane.b32.xlu0 %v1062, 8
        %v1126 = vpop.permute.xlu0 %1125
        %1127 = vrot.lane.b32.xlu0 %v1074, 8
        %v1128 = vpop.permute.xlu0 %1127
        %1129 = vrot.lane.b32.xlu0 %v1086, 8
        %v1130 = vpop.permute.xlu0 %1129
        %vm1131 = vcmask 1046528
        %v1132 = vrot.slane %v734, 1
        %v1133 = vrot.slane %v800, 1
        %v1134 = vsel %vm1131, %v1132, %v1133
        %v1135 = vrot.slane %v735, 1
        %v1136 = vrot.slane %v801, 1
        %v1137 = vsel %vm1131, %v1135, %v1136
        %v1138 = vrot.slane %v736, 1
        %v1139 = vrot.slane %v802, 1
        %v1140 = vsel %vm1131, %v1138, %v1139
        %v1141 = vrot.slane %v737, 1
        %v1142 = vrot.slane %v803, 1
        %v1143 = vsel %vm1131, %v1141, %v1142
        %v1144 = vrot.slane %v738, 1
        %v1145 = vrot.slane %v804, 1
        %v1146 = vsel %vm1131, %v1144, %v1145
        %v1147 = vrot.slane %v739, 1
        %v1148 = vrot.slane %v805, 1
        %v1149 = vsel %vm1131, %v1147, %v1148
        %v1150 = vrot.slane %v740, 1
        %v1151 = vrot.slane %v806, 1
        %v1152 = vsel %vm1131, %v1150, %v1151
        %v1153 = vrot.slane %v741, 1
        %v1154 = vrot.slane %v807, 1
        %v1155 = vsel %vm1131, %v1153, %v1154
        %v1156 = vrot.slane %v742, 1
        %v1157 = vrot.slane %v808, 1
        %v1158 = vsel %vm1131, %v1156, %v1157
        %v1159 = vrot.slane %v743, 1
        %v1160 = vrot.slane %v809, 1
        %v1161 = vsel %vm1131, %v1159, %v1160
        %v1162 = vrot.slane %v744, 1
        %v1163 = vrot.slane %v810, 1
        %v1164 = vsel %vm1131, %v1162, %v1163
        %v1165 = vrot.slane %v745, 1
        %v1166 = vrot.slane %v811, 1
        %v1167 = vsel %vm1131, %v1165, %v1166
        %v1168 = vrot.slane %v746, 1
        %v1169 = vrot.slane %v812, 1
        %v1170 = vsel %vm1131, %v1168, %v1169
        %v1171 = vrot.slane %v747, 1
        %v1172 = vrot.slane %v813, 1
        %v1173 = vsel %vm1131, %v1171, %v1172
        %v1174 = vrot.slane %v748, 1
        %v1175 = vrot.slane %v814, 1
        %v1176 = vsel %vm1131, %v1174, %v1175
        %v1177 = vrot.slane %v749, 1
        %v1178 = vrot.slane %v815, 1
        %v1179 = vsel %vm1131, %v1177, %v1178
        %v1180 = vrot.slane %v750, 1
        %v1181 = vrot.slane %v816, 1
        %v1182 = vsel %vm1131, %v1180, %v1181
        %v1183 = vrot.slane %v751, 1
        %v1184 = vrot.slane %v817, 1
        %v1185 = vsel %vm1131, %v1183, %v1184
        %v1186 = vrot.slane %v752, 1
        %v1187 = vrot.slane %v818, 1
        %v1188 = vsel %vm1131, %v1186, %v1187
        %v1189 = vrot.slane %v753, 1
        %v1190 = vrot.slane %v819, 1
        %v1191 = vsel %vm1131, %v1189, %v1190
        %v1192 = vrot.slane %v754, 1
        %v1193 = vrot.slane %v820, 1
        %v1194 = vsel %vm1131, %v1192, %v1193
        %v1195 = vrot.slane %v755, 1
        %v1196 = vrot.slane %v821, 1
        %v1197 = vsel %vm1131, %v1195, %v1196
        %1198 = vrot.lane.b32.xlu0 %v1134, 16
        %v1199 = vpop.permute.xlu0 %1198
        %1200 = vrot.lane.b32.xlu0 %v1137, 16
        %v1201 = vpop.permute.xlu0 %1200
        %1202 = vrot.lane.b32.xlu0 %v1140, 16
        %v1203 = vpop.permute.xlu0 %1202
        %1204 = vrot.lane.b32.xlu0 %v1143, 16
        %v1205 = vpop.permute.xlu0 %1204
        %1206 = vrot.lane.b32.xlu0 %v1146, 16
        %v1207 = vpop.permute.xlu0 %1206
        %1208 = vrot.lane.b32.xlu0 %v1149, 16
        %v1209 = vpop.permute.xlu0 %1208
        %1210 = vrot.lane.b32.xlu0 %v1152, 16
        %v1211 = vpop.permute.xlu0 %1210
        %1212 = vrot.lane.b32.xlu0 %v1155, 16
        %v1213 = vpop.permute.xlu0 %1212
        %1214 = vrot.lane.b32.xlu0 %v1158, 16
        %v1215 = vpop.permute.xlu0 %1214
        %1216 = vrot.lane.b32.xlu0 %v1161, 16
        %v1217 = vpop.permute.xlu0 %1216
        %1218 = vrot.lane.b32.xlu0 %v1164, 16
        %v1219 = vpop.permute.xlu0 %1218
        %1220 = vrot.lane.b32.xlu0 %v1167, 16
        %v1221 = vpop.permute.xlu0 %1220
        %1222 = vrot.lane.b32.xlu0 %v1170, 16
        %v1223 = vpop.permute.xlu0 %1222
        %1224 = vrot.lane.b32.xlu0 %v1173, 16
        %v1225 = vpop.permute.xlu0 %1224
        %1226 = vrot.lane.b32.xlu0 %v1176, 16
        %v1227 = vpop.permute.xlu0 %1226
        %1228 = vrot.lane.b32.xlu0 %v1179, 16
        %v1229 = vpop.permute.xlu0 %1228
        %1230 = vrot.lane.b32.xlu0 %v1182, 16
        %v1231 = vpop.permute.xlu0 %1230
        %1232 = vrot.lane.b32.xlu0 %v1185, 16
        %v1233 = vpop.permute.xlu0 %1232
        %1234 = vrot.lane.b32.xlu0 %v1188, 16
        %v1235 = vpop.permute.xlu0 %1234
        %1236 = vrot.lane.b32.xlu0 %v1191, 16
        %v1237 = vpop.permute.xlu0 %1236
        %1238 = vrot.lane.b32.xlu0 %v1194, 16
        %v1239 = vpop.permute.xlu0 %1238
        %1240 = vrot.lane.b32.xlu0 %v1197, 16
        %v1241 = vpop.permute.xlu0 %1240
        %v1244 = vunpack.c.l.b16 %v640
        %v1245 = vunpack.c.l.b16 %v641
        %v1246 = vpack.c.b16 %v1245, %v1244
        %1247 = vrot.lane.b32.xlu0 %v735, 24
        %v1248 = vpop.permute.xlu0 %1247
        %1249 = vrot.lane.b32.xlu0 %v736, 24
        %v1250 = vpop.permute.xlu0 %1249
        %1251 = vrot.lane.b32.xlu0 %v737, 24
        %v1252 = vpop.permute.xlu0 %1251
        %1253 = vrot.lane.b32.xlu0 %v738, 24
        %v1254 = vpop.permute.xlu0 %1253
        %1255 = vrot.lane.b32.xlu0 %v739, 24
        %v1256 = vpop.permute.xlu0 %1255
        %1257 = vrot.lane.b32.xlu0 %v740, 24
        %v1258 = vpop.permute.xlu0 %1257
        %1259 = vrot.lane.b32.xlu0 %v741, 24
        %v1260 = vpop.permute.xlu0 %1259
        %1261 = vrot.lane.b32.xlu0 %v742, 24
        %v1262 = vpop.permute.xlu0 %1261
        %1263 = vrot.lane.b32.xlu0 %v743, 24
        %v1264 = vpop.permute.xlu0 %1263
        %1265 = vrot.lane.b32.xlu0 %v744, 24
        %v1266 = vpop.permute.xlu0 %1265
        %1267 = vrot.lane.b32.xlu0 %v745, 24
        %v1268 = vpop.permute.xlu0 %1267
        %1269 = vrot.lane.b32.xlu0 %v746, 24
        %v1270 = vpop.permute.xlu0 %1269
        %1271 = vrot.lane.b32.xlu0 %v747, 24
        %v1272 = vpop.permute.xlu0 %1271
        %1273 = vrot.lane.b32.xlu0 %v748, 24
        %v1274 = vpop.permute.xlu0 %1273
        %1275 = vrot.lane.b32.xlu0 %v749, 24
        %v1276 = vpop.permute.xlu0 %1275
        %1277 = vrot.lane.b32.xlu0 %v750, 24
        %v1278 = vpop.permute.xlu0 %1277
        %1279 = vrot.lane.b32.xlu0 %v751, 24
        %v1280 = vpop.permute.xlu0 %1279
        %1281 = vrot.lane.b32.xlu0 %v752, 24
        %v1282 = vpop.permute.xlu0 %1281
        %1283 = vrot.lane.b32.xlu0 %v753, 24
        %v1284 = vpop.permute.xlu0 %1283
        %1285 = vrot.lane.b32.xlu0 %v754, 24
        %v1286 = vpop.permute.xlu0 %1285
        %1287 = vrot.lane.b32.xlu0 %v755, 24
        %v1288 = vpop.permute.xlu0 %1287
        %1289 = vrot.lane.b32.xlu0 %v1246, 24
        %v1290 = vpop.permute.xlu0 %1289
        %v1292 = vunpack.c.l.b16 %v642
        %v1293 = vpack.c.b16 %v1292, %v1292
        %v1295 = vshrl.u32 %v1246, 16
        %v1297 = vshll.u32 %v1246, 16
        %v1299 = vrot.slane %v1297, 1
        %v1300 = vor.u32 %v1295, %v1299
        %v1302 = vshll.u32 %v1293, 16
        %v1304 = vrot.slane %v1302, 1
        %v1305 = vsel %vm822, %v1300, %v1304
        %1306 = vrot.lane.b32.xlu0 %v846, 32
        %v1307 = vpop.permute.xlu0 %1306
        %1308 = vrot.lane.b32.xlu0 %v858, 32
        %v1309 = vpop.permute.xlu0 %1308
        %1310 = vrot.lane.b32.xlu0 %v870, 32
        %v1311 = vpop.permute.xlu0 %1310
        %1312 = vrot.lane.b32.xlu0 %v882, 32
        %v1313 = vpop.permute.xlu0 %1312
        %1314 = vrot.lane.b32.xlu0 %v894, 32
        %v1315 = vpop.permute.xlu0 %1314
        %1316 = vrot.lane.b32.xlu0 %v906, 32
        %v1317 = vpop.permute.xlu0 %1316
        %1318 = vrot.lane.b32.xlu0 %v918, 32
        %v1319 = vpop.permute.xlu0 %1318
        %1320 = vrot.lane.b32.xlu0 %v930, 32
        %v1321 = vpop.permute.xlu0 %1320
        %1322 = vrot.lane.b32.xlu0 %v942, 32
        %v1323 = vpop.permute.xlu0 %1322
        %1324 = vrot.lane.b32.xlu0 %v954, 32
        %v1325 = vpop.permute.xlu0 %1324
        %1326 = vrot.lane.b32.xlu0 %v966, 32
        %v1327 = vpop.permute.xlu0 %1326
        %1328 = vrot.lane.b32.xlu0 %v978, 32
        %v1329 = vpop.permute.xlu0 %1328
        %1330 = vrot.lane.b32.xlu0 %v990, 32
        %v1331 = vpop.permute.xlu0 %1330
        %1332 = vrot.lane.b32.xlu0 %v1002, 32
        %v1333 = vpop.permute.xlu0 %1332
        %1334 = vrot.lane.b32.xlu0 %v1014, 32
        %v1335 = vpop.permute.xlu0 %1334
        %1336 = vrot.lane.b32.xlu0 %v1026, 32
        %v1337 = vpop.permute.xlu0 %1336
        %1338 = vrot.lane.b32.xlu0 %v1038, 32
        %v1339 = vpop.permute.xlu0 %1338
        %1340 = vrot.lane.b32.xlu0 %v1050, 32
        %v1341 = vpop.permute.xlu0 %1340
        %1342 = vrot.lane.b32.xlu0 %v1062, 32
        %v1343 = vpop.permute.xlu0 %1342
        %1344 = vrot.lane.b32.xlu0 %v1074, 32
        %v1345 = vpop.permute.xlu0 %1344
        %1346 = vrot.lane.b32.xlu0 %v1086, 32
        %v1347 = vpop.permute.xlu0 %1346
        %1348 = vrot.lane.b32.xlu0 %v1305, 32
        %v1349 = vpop.permute.xlu0 %1348
        %v1350 = vrot.slane %v1246, 1
        %v1351 = vrot.slane %v1293, 1
        %v1352 = vsel %vm1131, %v1350, %v1351
        %1353 = vrot.lane.b32.xlu0 %v1137, 40
        %v1354 = vpop.permute.xlu0 %1353
        %1355 = vrot.lane.b32.xlu0 %v1140, 40
        %v1356 = vpop.permute.xlu0 %1355
        %1357 = vrot.lane.b32.xlu0 %v1143, 40
        %v1358 = vpop.permute.xlu0 %1357
        %1359 = vrot.lane.b32.xlu0 %v1146, 40
        %v1360 = vpop.permute.xlu0 %1359
        %1361 = vrot.lane.b32.xlu0 %v1149, 40
        %v1362 = vpop.permute.xlu0 %1361
        %1363 = vrot.lane.b32.xlu0 %v1152, 40
        %v1364 = vpop.permute.xlu0 %1363
        %1365 = vrot.lane.b32.xlu0 %v1155, 40
        %v1366 = vpop.permute.xlu0 %1365
        %1367 = vrot.lane.b32.xlu0 %v1158, 40
        %v1368 = vpop.permute.xlu0 %1367
        %1369 = vrot.lane.b32.xlu0 %v1161, 40
        %v1370 = vpop.permute.xlu0 %1369
        %1371 = vrot.lane.b32.xlu0 %v1164, 40
        %v1372 = vpop.permute.xlu0 %1371
        %1373 = vrot.lane.b32.xlu0 %v1167, 40
        %v1374 = vpop.permute.xlu0 %1373
        %1375 = vrot.lane.b32.xlu0 %v1170, 40
        %v1376 = vpop.permute.xlu0 %1375
        %1377 = vrot.lane.b32.xlu0 %v1173, 40
        %v1378 = vpop.permute.xlu0 %1377
        %1379 = vrot.lane.b32.xlu0 %v1176, 40
        %v1380 = vpop.permute.xlu0 %1379
        %1381 = vrot.lane.b32.xlu0 %v1179, 40
        %v1382 = vpop.permute.xlu0 %1381
        %1383 = vrot.lane.b32.xlu0 %v1182, 40
        %v1384 = vpop.permute.xlu0 %1383
        %1385 = vrot.lane.b32.xlu0 %v1185, 40
        %v1386 = vpop.permute.xlu0 %1385
        %1387 = vrot.lane.b32.xlu0 %v1188, 40
        %v1388 = vpop.permute.xlu0 %1387
        %1389 = vrot.lane.b32.xlu0 %v1191, 40
        %v1390 = vpop.permute.xlu0 %1389
        %1391 = vrot.lane.b32.xlu0 %v1194, 40
        %v1392 = vpop.permute.xlu0 %1391
        %1393 = vrot.lane.b32.xlu0 %v1197, 40
        %v1394 = vpop.permute.xlu0 %1393
        %1395 = vrot.lane.b32.xlu0 %v1352, 40
        %v1396 = vpop.permute.xlu0 %1395
        %v1399 = vunpack.c.l.b16 %v643
        %v1400 = vunpack.c.l.b16 %v644
        %v1401 = vpack.c.b16 %v1400, %v1399
        %1402 = vrot.lane.b32.xlu0 %v736, 48
        %v1403 = vpop.permute.xlu0 %1402
        %1404 = vrot.lane.b32.xlu0 %v737, 48
        %v1405 = vpop.permute.xlu0 %1404
        %1406 = vrot.lane.b32.xlu0 %v738, 48
        %v1407 = vpop.permute.xlu0 %1406
        %1408 = vrot.lane.b32.xlu0 %v739, 48
        %v1409 = vpop.permute.xlu0 %1408
        %1410 = vrot.lane.b32.xlu0 %v740, 48
        %v1411 = vpop.permute.xlu0 %1410
        %1412 = vrot.lane.b32.xlu0 %v741, 48
        %v1413 = vpop.permute.xlu0 %1412
        %1414 = vrot.lane.b32.xlu0 %v742, 48
        %v1415 = vpop.permute.xlu0 %1414
        %1416 = vrot.lane.b32.xlu0 %v743, 48
        %v1417 = vpop.permute.xlu0 %1416
        %1418 = vrot.lane.b32.xlu0 %v744, 48
        %v1419 = vpop.permute.xlu0 %1418
        %1420 = vrot.lane.b32.xlu0 %v745, 48
        %v1421 = vpop.permute.xlu0 %1420
        %1422 = vrot.lane.b32.xlu0 %v746, 48
        %v1423 = vpop.permute.xlu0 %1422
        %1424 = vrot.lane.b32.xlu0 %v747, 48
        %v1425 = vpop.permute.xlu0 %1424
        %1426 = vrot.lane.b32.xlu0 %v748, 48
        %v1427 = vpop.permute.xlu0 %1426
        %1428 = vrot.lane.b32.xlu0 %v749, 48
        %v1429 = vpop.permute.xlu0 %1428
        %1430 = vrot.lane.b32.xlu0 %v750, 48
        %v1431 = vpop.permute.xlu0 %1430
        %1432 = vrot.lane.b32.xlu0 %v751, 48
        %v1433 = vpop.permute.xlu0 %1432
        %1434 = vrot.lane.b32.xlu0 %v752, 48
        %v1435 = vpop.permute.xlu0 %1434
        %1436 = vrot.lane.b32.xlu0 %v753, 48
        %v1437 = vpop.permute.xlu0 %1436
        %1438 = vrot.lane.b32.xlu0 %v754, 48
        %v1439 = vpop.permute.xlu0 %1438
        %1440 = vrot.lane.b32.xlu0 %v755, 48
        %v1441 = vpop.permute.xlu0 %1440
        %1442 = vrot.lane.b32.xlu0 %v1246, 48
        %v1443 = vpop.permute.xlu0 %1442
        %1444 = vrot.lane.b32.xlu0 %v1401, 48
        %v1445 = vpop.permute.xlu0 %1444
        %v1447 = vunpack.c.l.b16 %v645
        %v1448 = vpack.c.b16 %v1447, %v1447
        %v1450 = vshrl.u32 %v1401, 16
        %v1452 = vshll.u32 %v1401, 16
        %v1454 = vrot.slane %v1452, 1
        %v1455 = vor.u32 %v1450, %v1454
        %v1457 = vshll.u32 %v1448, 16
        %v1459 = vrot.slane %v1457, 1
        %v1460 = vsel %vm822, %v1455, %v1459
        %1461 = vrot.lane.b32.xlu0 %v858, 56
        %v1462 = vpop.permute.xlu0 %1461
        %1463 = vrot.lane.b32.xlu0 %v870, 56
        %v1464 = vpop.permute.xlu0 %1463
        %1465 = vrot.lane.b32.xlu0 %v882, 56
        %v1466 = vpop.permute.xlu0 %1465
        %1467 = vrot.lane.b32.xlu0 %v894, 56
        %v1468 = vpop.permute.xlu0 %1467
        %1469 = vrot.lane.b32.xlu0 %v906, 56
        %v1470 = vpop.permute.xlu0 %1469
        %1471 = vrot.lane.b32.xlu0 %v918, 56
        %v1472 = vpop.permute.xlu0 %1471
        %1473 = vrot.lane.b32.xlu0 %v930, 56
        %v1474 = vpop.permute.xlu0 %1473
        %1475 = vrot.lane.b32.xlu0 %v942, 56
        %v1476 = vpop.permute.xlu0 %1475
        %1477 = vrot.lane.b32.xlu0 %v954, 56
        %v1478 = vpop.permute.xlu0 %1477
        %1479 = vrot.lane.b32.xlu0 %v966, 56
        %v1480 = vpop.permute.xlu0 %1479
        %1481 = vrot.lane.b32.xlu0 %v978, 56
        %v1482 = vpop.permute.xlu0 %1481
        %1483 = vrot.lane.b32.xlu0 %v990, 56
        %v1484 = vpop.permute.xlu0 %1483
        %1485 = vrot.lane.b32.xlu0 %v1002, 56
        %v1486 = vpop.permute.xlu0 %1485
        %1487 = vrot.lane.b32.xlu0 %v1014, 56
        %v1488 = vpop.permute.xlu0 %1487
        %1489 = vrot.lane.b32.xlu0 %v1026, 56
        %v1490 = vpop.permute.xlu0 %1489
        %1491 = vrot.lane.b32.xlu0 %v1038, 56
        %v1492 = vpop.permute.xlu0 %1491
        %1493 = vrot.lane.b32.xlu0 %v1050, 56
        %v1494 = vpop.permute.xlu0 %1493
        %1495 = vrot.lane.b32.xlu0 %v1062, 56
        %v1496 = vpop.permute.xlu0 %1495
        %1497 = vrot.lane.b32.xlu0 %v1074, 56
        %v1498 = vpop.permute.xlu0 %1497
        %1499 = vrot.lane.b32.xlu0 %v1086, 56
        %v1500 = vpop.permute.xlu0 %1499
        %1501 = vrot.lane.b32.xlu0 %v1305, 56
        %v1502 = vpop.permute.xlu0 %1501
        %1503 = vrot.lane.b32.xlu0 %v1460, 56
        %v1504 = vpop.permute.xlu0 %1503
        %v1505 = vrot.slane %v1401, 1
        %v1506 = vrot.slane %v1448, 1
        %v1507 = vsel %vm1131, %v1505, %v1506
        %1508 = vrot.lane.b32.xlu0 %v1140, 64
        %v1509 = vpop.permute.xlu0 %1508
        %1510 = vrot.lane.b32.xlu0 %v1143, 64
        %v1511 = vpop.permute.xlu0 %1510
        %1512 = vrot.lane.b32.xlu0 %v1146, 64
        %v1513 = vpop.permute.xlu0 %1512
        %1514 = vrot.lane.b32.xlu0 %v1149, 64
        %v1515 = vpop.permute.xlu0 %1514
        %1516 = vrot.lane.b32.xlu0 %v1152, 64
        %v1517 = vpop.permute.xlu0 %1516
        %1518 = vrot.lane.b32.xlu0 %v1155, 64
        %v1519 = vpop.permute.xlu0 %1518
        %1520 = vrot.lane.b32.xlu0 %v1158, 64
        %v1521 = vpop.permute.xlu0 %1520
        %1522 = vrot.lane.b32.xlu0 %v1161, 64
        %v1523 = vpop.permute.xlu0 %1522
        %1524 = vrot.lane.b32.xlu0 %v1164, 64
        %v1525 = vpop.permute.xlu0 %1524
        %1526 = vrot.lane.b32.xlu0 %v1167, 64
        %v1527 = vpop.permute.xlu0 %1526
        %1528 = vrot.lane.b32.xlu0 %v1170, 64
        %v1529 = vpop.permute.xlu0 %1528
        %1530 = vrot.lane.b32.xlu0 %v1173, 64
        %v1531 = vpop.permute.xlu0 %1530
        %1532 = vrot.lane.b32.xlu0 %v1176, 64
        %v1533 = vpop.permute.xlu0 %1532
        %1534 = vrot.lane.b32.xlu0 %v1179, 64
        %v1535 = vpop.permute.xlu0 %1534
        %1536 = vrot.lane.b32.xlu0 %v1182, 64
        %v1537 = vpop.permute.xlu0 %1536
        %1538 = vrot.lane.b32.xlu0 %v1185, 64
        %v1539 = vpop.permute.xlu0 %1538
        %1540 = vrot.lane.b32.xlu0 %v1188, 64
        %v1541 = vpop.permute.xlu0 %1540
        %1542 = vrot.lane.b32.xlu0 %v1191, 64
        %v1543 = vpop.permute.xlu0 %1542
        %1544 = vrot.lane.b32.xlu0 %v1194, 64
        %v1545 = vpop.permute.xlu0 %1544
        %1546 = vrot.lane.b32.xlu0 %v1197, 64
        %v1547 = vpop.permute.xlu0 %1546
        %1548 = vrot.lane.b32.xlu0 %v1352, 64
        %v1549 = vpop.permute.xlu0 %1548
        %1550 = vrot.lane.b32.xlu0 %v1507, 64
        %v1551 = vpop.permute.xlu0 %1550
        %vm1552 = vcmask 64512
        %v1554 = vsel %vm1552, %v734, %v1088
        %v1556 = vsel %vm1552, %v735, %v1090
        %v1558 = vsel %vm1552, %v736, %v1092
        %v1560 = vsel %vm1552, %v737, %v1094
        %v1562 = vsel %vm1552, %v738, %v1096
        %v1564 = vsel %vm1552, %v739, %v1098
        %v1566 = vsel %vm1552, %v740, %v1100
        %v1568 = vsel %vm1552, %v741, %v1102
        %v1570 = vsel %vm1552, %v742, %v1104
        %v1572 = vsel %vm1552, %v743, %v1106
        %v1574 = vsel %vm1552, %v744, %v1108
        %v1576 = vsel %vm1552, %v745, %v1110
        %v1578 = vsel %vm1552, %v746, %v1112
        %v1580 = vsel %vm1552, %v747, %v1114
        %v1582 = vsel %vm1552, %v748, %v1116
        %v1584 = vsel %vm1552, %v749, %v1118
        %v1586 = vsel %vm1552, %v750, %v1120
        %v1588 = vsel %vm1552, %v751, %v1122
        %v1590 = vsel %vm1552, %v752, %v1124
        %v1592 = vsel %vm1552, %v753, %v1126
        %v1594 = vsel %vm1552, %v754, %v1128
        %v1596 = vsel %vm1552, %v755, %v1130
        %vm1597 = vcmask 130048
        %v1599 = vsel %vm1597, %v1554, %v1199
        %v1601 = vsel %vm1597, %v1556, %v1201
        %v1603 = vsel %vm1597, %v1558, %v1203
        %v1605 = vsel %vm1597, %v1560, %v1205
        %v1607 = vsel %vm1597, %v1562, %v1207
        %v1609 = vsel %vm1597, %v1564, %v1209
        %v1611 = vsel %vm1597, %v1566, %v1211
        %v1613 = vsel %vm1597, %v1568, %v1213
        %v1615 = vsel %vm1597, %v1570, %v1215
        %v1617 = vsel %vm1597, %v1572, %v1217
        %v1619 = vsel %vm1597, %v1574, %v1219
        %v1621 = vsel %vm1597, %v1576, %v1221
        %v1623 = vsel %vm1597, %v1578, %v1223
        %v1625 = vsel %vm1597, %v1580, %v1225
        %v1627 = vsel %vm1597, %v1582, %v1227
        %v1629 = vsel %vm1597, %v1584, %v1229
        %v1631 = vsel %vm1597, %v1586, %v1231
        %v1633 = vsel %vm1597, %v1588, %v1233
        %v1635 = vsel %vm1597, %v1590, %v1235
        %v1637 = vsel %vm1597, %v1592, %v1237
        %v1639 = vsel %vm1597, %v1594, %v1239
        %v1641 = vsel %vm1597, %v1596, %v1241
        %vm1642 = vcmask 195584
        %v1644 = vsel %vm1642, %v1599, %v1248
        %v1646 = vsel %vm1642, %v1601, %v1250
        %v1648 = vsel %vm1642, %v1603, %v1252
        %v1650 = vsel %vm1642, %v1605, %v1254
        %v1652 = vsel %vm1642, %v1607, %v1256
        %v1654 = vsel %vm1642, %v1609, %v1258
        %v1656 = vsel %vm1642, %v1611, %v1260
        %v1658 = vsel %vm1642, %v1613, %v1262
        %v1660 = vsel %vm1642, %v1615, %v1264
        %v1662 = vsel %vm1642, %v1617, %v1266
        %v1664 = vsel %vm1642, %v1619, %v1268
        %v1666 = vsel %vm1642, %v1621, %v1270
        %v1668 = vsel %vm1642, %v1623, %v1272
        %v1670 = vsel %vm1642, %v1625, %v1274
        %v1672 = vsel %vm1642, %v1627, %v1276
        %v1674 = vsel %vm1642, %v1629, %v1278
        %v1676 = vsel %vm1642, %v1631, %v1280
        %v1678 = vsel %vm1642, %v1633, %v1282
        %v1680 = vsel %vm1642, %v1635, %v1284
        %v1682 = vsel %vm1642, %v1637, %v1286
        %v1684 = vsel %vm1642, %v1639, %v1288
        %v1686 = vsel %vm1642, %v1641, %v1290
        %vm1687 = vcmask 261120
        %v1689 = vsel %vm1687, %v1644, %v1307
        %v1691 = vsel %vm1687, %v1646, %v1309
        %v1693 = vsel %vm1687, %v1648, %v1311
        %v1695 = vsel %vm1687, %v1650, %v1313
        %v1697 = vsel %vm1687, %v1652, %v1315
        %v1699 = vsel %vm1687, %v1654, %v1317
        %v1701 = vsel %vm1687, %v1656, %v1319
        %v1703 = vsel %vm1687, %v1658, %v1321
        %v1705 = vsel %vm1687, %v1660, %v1323
        %v1707 = vsel %vm1687, %v1662, %v1325
        %v1709 = vsel %vm1687, %v1664, %v1327
        %v1711 = vsel %vm1687, %v1666, %v1329
        %v1713 = vsel %vm1687, %v1668, %v1331
        %v1715 = vsel %vm1687, %v1670, %v1333
        %v1717 = vsel %vm1687, %v1672, %v1335
        %v1719 = vsel %vm1687, %v1674, %v1337
        %v1721 = vsel %vm1687, %v1676, %v1339
        %v1723 = vsel %vm1687, %v1678, %v1341
        %v1725 = vsel %vm1687, %v1680, %v1343
        %v1727 = vsel %vm1687, %v1682, %v1345
        %v1729 = vsel %vm1687, %v1684, %v1347
        %v1731 = vsel %vm1687, %v1686, %v1349
        %vm1732 = vcmask 326656
        %v1734 = vsel %vm1732, %v1689, %v1354
        %v1736 = vsel %vm1732, %v1691, %v1356
        %v1738 = vsel %vm1732, %v1693, %v1358
        %v1740 = vsel %vm1732, %v1695, %v1360
        %v1742 = vsel %vm1732, %v1697, %v1362
        %v1744 = vsel %vm1732, %v1699, %v1364
        %v1746 = vsel %vm1732, %v1701, %v1366
        %v1748 = vsel %vm1732, %v1703, %v1368
        %v1750 = vsel %vm1732, %v1705, %v1370
        %v1752 = vsel %vm1732, %v1707, %v1372
        %v1754 = vsel %vm1732, %v1709, %v1374
        %v1756 = vsel %vm1732, %v1711, %v1376
        %v1758 = vsel %vm1732, %v1713, %v1378
        %v1760 = vsel %vm1732, %v1715, %v1380
        %v1762 = vsel %vm1732, %v1717, %v1382
        %v1764 = vsel %vm1732, %v1719, %v1384
        %v1766 = vsel %vm1732, %v1721, %v1386
        %v1768 = vsel %vm1732, %v1723, %v1388
        %v1770 = vsel %vm1732, %v1725, %v1390
        %v1772 = vsel %vm1732, %v1727, %v1392
        %v1774 = vsel %vm1732, %v1729, %v1394
        %v1776 = vsel %vm1732, %v1731, %v1396
        %vm1777 = vcmask 392192
        %v1779 = vsel %vm1777, %v1734, %v1403
        %v1781 = vsel %vm1777, %v1736, %v1405
        %v1783 = vsel %vm1777, %v1738, %v1407
        %v1785 = vsel %vm1777, %v1740, %v1409
        %v1787 = vsel %vm1777, %v1742, %v1411
        %v1789 = vsel %vm1777, %v1744, %v1413
        %v1791 = vsel %vm1777, %v1746, %v1415
        %v1793 = vsel %vm1777, %v1748, %v1417
        %v1795 = vsel %vm1777, %v1750, %v1419
        %v1797 = vsel %vm1777, %v1752, %v1421
        %v1799 = vsel %vm1777, %v1754, %v1423
        %v1801 = vsel %vm1777, %v1756, %v1425
        %v1803 = vsel %vm1777, %v1758, %v1427
        %v1805 = vsel %vm1777, %v1760, %v1429
        %v1807 = vsel %vm1777, %v1762, %v1431
        %v1809 = vsel %vm1777, %v1764, %v1433
        %v1811 = vsel %vm1777, %v1766, %v1435
        %v1813 = vsel %vm1777, %v1768, %v1437
        %v1815 = vsel %vm1777, %v1770, %v1439
        %v1817 = vsel %vm1777, %v1772, %v1441
        %v1819 = vsel %vm1777, %v1774, %v1443
        %v1821 = vsel %vm1777, %v1776, %v1445
        %vm1822 = vcmask 457728
        %v1824 = vsel %vm1822, %v1779, %v1462
        %v1826 = vsel %vm1822, %v1781, %v1464
        %v1828 = vsel %vm1822, %v1783, %v1466
        %v1830 = vsel %vm1822, %v1785, %v1468
        %v1832 = vsel %vm1822, %v1787, %v1470
        %v1834 = vsel %vm1822, %v1789, %v1472
        %v1836 = vsel %vm1822, %v1791, %v1474
        %v1838 = vsel %vm1822, %v1793, %v1476
        %v1840 = vsel %vm1822, %v1795, %v1478
        %v1842 = vsel %vm1822, %v1797, %v1480
        %v1844 = vsel %vm1822, %v1799, %v1482
        %v1846 = vsel %vm1822, %v1801, %v1484
        %v1848 = vsel %vm1822, %v1803, %v1486
        %v1850 = vsel %vm1822, %v1805, %v1488
        %v1852 = vsel %vm1822, %v1807, %v1490
        %v1854 = vsel %vm1822, %v1809, %v1492
        %v1856 = vsel %vm1822, %v1811, %v1494
        %v1858 = vsel %vm1822, %v1813, %v1496
        %v1860 = vsel %vm1822, %v1815, %v1498
        %v1862 = vsel %vm1822, %v1817, %v1500
        %v1864 = vsel %vm1822, %v1819, %v1502
        %v1866 = vsel %vm1822, %v1821, %v1504
        %vm1867 = vcmask 523264
        %v1869 = vsel %vm1867, %v1824, %v1509
        %v1871 = vsel %vm1867, %v1826, %v1511
        %v1873 = vsel %vm1867, %v1828, %v1513
        %v1875 = vsel %vm1867, %v1830, %v1515
        %v1877 = vsel %vm1867, %v1832, %v1517
        %v1879 = vsel %vm1867, %v1834, %v1519
        %v1881 = vsel %vm1867, %v1836, %v1521
        %v1883 = vsel %vm1867, %v1838, %v1523
        %v1885 = vsel %vm1867, %v1840, %v1525
        %v1887 = vsel %vm1867, %v1842, %v1527
        %v1889 = vsel %vm1867, %v1844, %v1529
        %v1891 = vsel %vm1867, %v1846, %v1531
        %v1893 = vsel %vm1867, %v1848, %v1533
        %v1895 = vsel %vm1867, %v1850, %v1535
        %v1897 = vsel %vm1867, %v1852, %v1537
        %v1899 = vsel %vm1867, %v1854, %v1539
        %v1901 = vsel %vm1867, %v1856, %v1541
        %v1903 = vsel %vm1867, %v1858, %v1543
        %v1905 = vsel %vm1867, %v1860, %v1545
        %v1907 = vsel %vm1867, %v1862, %v1547
        %v1909 = vsel %vm1867, %v1864, %v1549
        %v1911 = vsel %vm1867, %v1866, %v1551
        %v1912 = vld [vmem:[#allocation7] sm:$0xf]
        %v1913 = vld [vmem:[#allocation7 + $0x4] sm:$0xf]
        %v1914 = vld [vmem:[#allocation7 + $0x8] sm:$0xf]
        %v1915 = vld [vmem:[#allocation7 + $0xc] sm:$0xf]
        %v1916 = vld [vmem:[#allocation7 + $0x10] sm:$0xf]
        %v1917 = vld [vmem:[#allocation7 + $0x14] sm:$0xf]
        %v1918 = vld [vmem:[#allocation7 + $0x18] sm:$0xf]
        %v1919 = vld [vmem:[#allocation7 + $0x1c] sm:$0xf]
        %v1920 = vld [vmem:[#allocation7 + $0x20] sm:$0xf]
        %v1921 = vld [vmem:[#allocation8] sm:$0x1]
        %v1923 = vlaneseq
        %v1924 = vshrl.u32 %v1923, 7
        %v1925 = vsub.s32 0, %v1924
        %v1926 = vrot.slane %v1921, %v1925
        %v1937 = vunpack.c.l.b16 %v1912
        %v1938 = vunpack.c.l.b16 %v1913
        %v1939 = vunpack.c.l.b16 %v1914
        %v1940 = vunpack.c.l.b16 %v1915
        %v1941 = vunpack.c.l.b16 %v1916
        %v1942 = vunpack.c.l.b16 %v1917
        %v1943 = vunpack.c.l.b16 %v1918
        %v1944 = vunpack.c.l.b16 %v1919
        %v1945 = vunpack.c.l.b16 %v1920
        %v1946 = vpack.c.b16 %v1938, %v1937
        %v1947 = vpack.c.b16 %v1940, %v1939
        %v1948 = vpack.c.b16 %v1942, %v1941
        %v1949 = vpack.c.b16 %v1944, %v1943
        %v1950 = vpack.c.b16 %v1945, %v1945
        %vm1955 = vcmask 588800
        %v1956 = vsel %vm1955, %v1869, 0
        %v1958 = vsel %vm1955, %v1871, 0
        %v1960 = vsel %vm1955, %v1873, 0
        %v1962 = vsel %vm1955, %v1875, 0
        %v1964 = vsel %vm1955, %v1877, 0
        %v1966 = vsel %vm1955, %v1879, 0
        %v1968 = vsel %vm1955, %v1881, 0
        %v1970 = vsel %vm1955, %v1883, 0
        %v1972 = vsel %vm1955, %v1885, 0
        %v1974 = vsel %vm1955, %v1887, 0
        %v1976 = vsel %vm1955, %v1889, 0
        %v1978 = vsel %vm1955, %v1891, 0
        %v1980 = vsel %vm1955, %v1893, 0
        %v1982 = vsel %vm1955, %v1895, 0
        %v1984 = vsel %vm1955, %v1897, 0
        %v1986 = vsel %vm1955, %v1899, 0
        %v1988 = vsel %vm1955, %v1901, 0
        %v1990 = vsel %vm1955, %v1903, 0
        %v1992 = vsel %vm1955, %v1905, 0
        %v1994 = vsel %vm1955, %v1907, 0
        %v1996 = vsel %vm1955, %v1909, 0
        %v1998 = vsel %vm1955, %v1911, 0
        %vm2000 = vcmask 1043456
        %v2002 = vsel %vm2000, %v1950, 0
        %2004 = vmatprep.subr.bf16.mxu0 0
        %2005 = vmatpush1.bf16.msra.mxu0 %v1946
        %2006 = vmatprep.subr.bf16.mxu0 0
        %2007 = vmatpush1.bf16.msra.mxu0 %v1947
        %2008 = vmatprep.subr.bf16.mxu0 0
        %2009 = vmatpush1.bf16.msra.mxu0 %v1948
        %2010 = vmatprep.subr.bf16.mxu0 0
        %2011 = vmatpush1.bf16.msra.mxu0 %v1949
        %2012 = vmatprep.subr.bf16.mxu0 0
        %2013 = vmatpush1.bf16.msra.mxu0 %v2002
        %2014 = vmatprep.subr.bf16.mxu0 0
        %2015 = vmatpush1.bf16.msra.mxu0 0
        %2016 = vmatprep.subr.bf16.mxu0 0
        %2017 = vmatpush1.bf16.msra.mxu0 0
        %2018 = vmatprep.subr.bf16.mxu0 0
        %2019 = vmatpush1.bf16.msra.mxu0 0
        %2020 = vmatprep.subr.bf16.mxu0 0
        %2021 = vmatpush1.bf16.msra.mxu0 0
        %2022 = vmatprep.subr.bf16.mxu0 0
        %2023 = vmatpush1.bf16.msra.mxu0 0
        %2024 = vmatprep.subr.bf16.mxu0 0
        %2025 = vmatpush1.bf16.msra.mxu0 0
        %2026 = vmatprep.subr.bf16.mxu0 0
        %2027 = vmatpush1.bf16.msra.mxu0 0
        %2028 = vmatprep.subr.bf16.mxu0 0
        %2029 = vmatpush1.bf16.msra.mxu0 0
        %2030 = vmatprep.subr.bf16.mxu0 0
        %2031 = vmatpush1.bf16.msra.mxu0 0
        %2032 = vmatprep.subr.bf16.mxu0 0
        %2033 = vmatpush1.bf16.msra.mxu0 0
        %2034 = vmatprep.subr.bf16.mxu0 0
        %2035 = vmatpush1.bf16.msra.mxu0 0
        %2036 = vmatprep.mubr.bf16.mxu0 0
        %2037 = vmatmul.mubr.bf16.gmra.mrb[0].mxu0 %v1956
        %v2038 = vpop.f32.mrb[0].mxu0
        %v2039 = vadd.f32 %v1926, %v2038
        %v2040 = vpop.f32.mrb[0].mxu0
        %v2041 = vpop.f32.mrb[0].mxu0
        %v2042 = vadd.f32 %v1926, %v2041
        %v2043 = vpop.f32.mrb[0].mxu0
        %2044 = vmatprep.mubr.bf16.mxu0 0
        %2045 = vmatmul.mubr.bf16.gmra.mrb[0].mxu0 %v1958
        %v2046 = vpop.f32.mrb[0].mxu0
        %v2047 = vadd.f32 %v1926, %v2046
        %v2048 = vpop.f32.mrb[0].mxu0
        %v2049 = vpop.f32.mrb[0].mxu0
        %v2050 = vadd.f32 %v1926, %v2049
        %v2051 = vpop.f32.mrb[0].mxu0
        %2052 = vmatprep.mubr.bf16.mxu0 0
        %2053 = vmatmul.mubr.bf16.gmra.mrb[0].mxu0 %v1960
        %v2054 = vpop.f32.mrb[0].mxu0
        %v2055 = vadd.f32 %v1926, %v2054
        %v2056 = vpop.f32.mrb[0].mxu0
        %v2057 = vpop.f32.mrb[0].mxu0
        %v2058 = vadd.f32 %v1926, %v2057
        %v2059 = vpop.f32.mrb[0].mxu0
        %2060 = vmatprep.mubr.bf16.mxu0 0
        %2061 = vmatmul.mubr.bf16.gmra.mrb[0].mxu0 %v1962
        %v2062 = vpop.f32.mrb[0].mxu0
        %v2063 = vadd.f32 %v1926, %v2062
        %v2064 = vpop.f32.mrb[0].mxu0
        %v2065 = vpop.f32.mrb[0].mxu0
        %v2066 = vadd.f32 %v1926, %v2065
        %v2067 = vpop.f32.mrb[0].mxu0
        %2068 = vmatprep.mubr.bf16.mxu0 0
        %2069 = vmatmul.mubr.bf16.gmra.mrb[0].mxu0 %v1964
        %v2070 = vpop.f32.mrb[0].mxu0
        %v2071 = vadd.f32 %v1926, %v2070
        %v2072 = vpop.f32.mrb[0].mxu0
        %v2073 = vpop.f32.mrb[0].mxu0
        %v2074 = vadd.f32 %v1926, %v2073
        %v2075 = vpop.f32.mrb[0].mxu0
        %2076 = vmatprep.mubr.bf16.mxu0 0
        %2077 = vmatmul.mubr.bf16.gmra.mrb[0].mxu0 %v1966
        %v2078 = vpop.f32.mrb[0].mxu0
        %v2079 = vadd.f32 %v1926, %v2078
        %v2080 = vpop.f32.mrb[0].mxu0
        %v2081 = vpop.f32.mrb[0].mxu0
        %v2082 = vadd.f32 %v1926, %v2081
        %v2083 = vpop.f32.mrb[0].mxu0
        %2084 = vmatprep.mubr.bf16.mxu0 0
        %2085 = vmatmul.mubr.bf16.gmra.mrb[0].mxu0 %v1968
        %v2086 = vpop.f32.mrb[0].mxu0
        %v2087 = vadd.f32 %v1926, %v2086
        %v2088 = vpop.f32.mrb[0].mxu0
        %v2089 = vpop.f32.mrb[0].mxu0
        %v2090 = vadd.f32 %v1926, %v2089
        %v2091 = vpop.f32.mrb[0].mxu0
        %2092 = vmatprep.mubr.bf16.mxu0 0
        %2093 = vmatmul.mubr.bf16.gmra.mrb[0].mxu0 %v1970
        %v2094 = vpop.f32.mrb[0].mxu0
        %v2095 = vadd.f32 %v1926, %v2094
        %v2096 = vpop.f32.mrb[0].mxu0
        %v2097 = vpop.f32.mrb[0].mxu0
        %v2098 = vadd.f32 %v1926, %v2097
        %v2099 = vpop.f32.mrb[0].mxu0
        %2100 = vmatprep.mubr.bf16.mxu0 0
        %2101 = vmatmul.mubr.bf16.gmra.mrb[0].mxu0 %v1972
        %v2102 = vpop.f32.mrb[0].mxu0
        %v2103 = vadd.f32 %v1926, %v2102
        %v2104 = vpop.f32.mrb[0].mxu0
        %v2105 = vpop.f32.mrb[0].mxu0
        %v2106 = vadd.f32 %v1926, %v2105
        %v2107 = vpop.f32.mrb[0].mxu0
        %2108 = vmatprep.mubr.bf16.mxu0 0
        %2109 = vmatmul.mubr.bf16.gmra.mrb[0].mxu0 %v1974
        %v2110 = vpop.f32.mrb[0].mxu0
        %v2111 = vadd.f32 %v1926, %v2110
        %v2112 = vpop.f32.mrb[0].mxu0
        %v2113 = vpop.f32.mrb[0].mxu0
        %v2114 = vadd.f32 %v1926, %v2113
        %v2115 = vpop.f32.mrb[0].mxu0
        %2116 = vmatprep.mubr.bf16.mxu0 0
        %2117 = vmatmul.mubr.bf16.gmra.mrb[0].mxu0 %v1976
        %v2118 = vpop.f32.mrb[0].mxu0
        %v2119 = vadd.f32 %v1926, %v2118
        %v2120 = vpop.f32.mrb[0].mxu0
        %v2121 = vpop.f32.mrb[0].mxu0
        %v2122 = vadd.f32 %v1926, %v2121
        %v2123 = vpop.f32.mrb[0].mxu0
        %2124 = vmatprep.mubr.bf16.mxu0 0
        %2125 = vmatmul.mubr.bf16.gmra.mrb[0].mxu0 %v1978
        %v2126 = vpop.f32.mrb[0].mxu0
        %v2127 = vadd.f32 %v1926, %v2126
        %v2128 = vpop.f32.mrb[0].mxu0
        %v2129 = vpop.f32.mrb[0].mxu0
        %v2130 = vadd.f32 %v1926, %v2129
        %v2131 = vpop.f32.mrb[0].mxu0
        %2132 = vmatprep.mubr.bf16.mxu0 0
        %2133 = vmatmul.mubr.bf16.gmra.mrb[0].mxu0 %v1980
        %v2134 = vpop.f32.mrb[0].mxu0
        %v2135 = vadd.f32 %v1926, %v2134
        %v2136 = vpop.f32.mrb[0].mxu0
        %v2137 = vpop.f32.mrb[0].mxu0
        %v2138 = vadd.f32 %v1926, %v2137
        %v2139 = vpop.f32.mrb[0].mxu0
        %2140 = vmatprep.mubr.bf16.mxu0 0
        %2141 = vmatmul.mubr.bf16.gmra.mrb[0].mxu0 %v1982
        %v2142 = vpop.f32.mrb[0].mxu0
        %v2143 = vadd.f32 %v1926, %v2142
        %v2144 = vpop.f32.mrb[0].mxu0
        %v2145 = vpop.f32.mrb[0].mxu0
        %v2146 = vadd.f32 %v1926, %v2145
        %v2147 = vpop.f32.mrb[0].mxu0
        %2148 = vmatprep.mubr.bf16.mxu0 0
        %2149 = vmatmul.mubr.bf16.gmra.mrb[0].mxu0 %v1984
        %v2150 = vpop.f32.mrb[0].mxu0
        %v2151 = vadd.f32 %v1926, %v2150
        %v2152 = vpop.f32.mrb[0].mxu0
        %v2153 = vpop.f32.mrb[0].mxu0
        %v2154 = vadd.f32 %v1926, %v2153
        %v2155 = vpop.f32.mrb[0].mxu0
        %2156 = vmatprep.mubr.bf16.mxu0 0
        %2157 = vmatmul.mubr.bf16.gmra.mrb[0].mxu0 %v1986
        %v2158 = vpop.f32.mrb[0].mxu0
        %v2159 = vadd.f32 %v1926, %v2158
        %v2160 = vpop.f32.mrb[0].mxu0
        %v2161 = vpop.f32.mrb[0].mxu0
        %v2162 = vadd.f32 %v1926, %v2161
        %v2163 = vpop.f32.mrb[0].mxu0
        %2164 = vmatprep.mubr.bf16.mxu0 0
        %2165 = vmatmul.mubr.bf16.gmra.mrb[0].mxu0 %v1988
        %v2166 = vpop.f32.mrb[0].mxu0
        %v2167 = vadd.f32 %v1926, %v2166
        %v2168 = vpop.f32.mrb[0].mxu0
        %v2169 = vpop.f32.mrb[0].mxu0
        %v2170 = vadd.f32 %v1926, %v2169
        %v2171 = vpop.f32.mrb[0].mxu0
        %2172 = vmatprep.mubr.bf16.mxu0 0
        %2173 = vmatmul.mubr.bf16.gmra.mrb[0].mxu0 %v1990
        %v2174 = vpop.f32.mrb[0].mxu0
        %v2175 = vadd.f32 %v1926, %v2174
        %v2176 = vpop.f32.mrb[0].mxu0
        %v2177 = vpop.f32.mrb[0].mxu0
        %v2178 = vadd.f32 %v1926, %v2177
        %v2179 = vpop.f32.mrb[0].mxu0
        %2180 = vmatprep.mubr.bf16.mxu0 0
        %2181 = vmatmul.mubr.bf16.gmra.mrb[0].mxu0 %v1992
        %v2182 = vpop.f32.mrb[0].mxu0
        %v2183 = vadd.f32 %v1926, %v2182
        %v2184 = vpop.f32.mrb[0].mxu0
        %v2185 = vpop.f32.mrb[0].mxu0
        %v2186 = vadd.f32 %v1926, %v2185
        %v2187 = vpop.f32.mrb[0].mxu0
        %2188 = vmatprep.mubr.bf16.mxu0 0
        %2189 = vmatmul.mubr.bf16.gmra.mrb[0].mxu0 %v1994
        %v2190 = vpop.f32.mrb[0].mxu0
        %v2191 = vadd.f32 %v1926, %v2190
        %v2192 = vpop.f32.mrb[0].mxu0
        %v2193 = vpop.f32.mrb[0].mxu0
        %v2194 = vadd.f32 %v1926, %v2193
        %v2195 = vpop.f32.mrb[0].mxu0
        %2196 = vmatprep.mubr.bf16.mxu0 0
        %2197 = vmatmul.mubr.bf16.gmra.mrb[0].mxu0 %v1996
        %v2198 = vpop.f32.mrb[0].mxu0
        %v2199 = vadd.f32 %v1926, %v2198
        %v2200 = vpop.f32.mrb[0].mxu0
        %v2201 = vpop.f32.mrb[0].mxu0
        %v2202 = vadd.f32 %v1926, %v2201
        %v2203 = vpop.f32.mrb[0].mxu0
        %2204 = vmatprep.mubr.bf16.mxu0 0
        %2205 = vmatmul.mubr.bf16.gmra.mrb[0].mxu0 %v1998
        %v2206 = vpop.f32.mrb[0].mxu0
        %v2207 = vadd.f32 %v1926, %v2206
        %v2208 = vpop.f32.mrb[0].mxu0
        %v2209 = vpop.f32.mrb[0].mxu0
        %v2210 = vadd.f32 %v1926, %v2209
        %v2211 = vpop.f32.mrb[0].mxu0
        %2212 = vdwg.mxu0
        %vm2213 = vcmp.gt.f32.partialorder %v2039, 0.0
        %vm2214 = vcmp.gt.f32.partialorder %v2042, 0.0
        %vm2215 = vcmp.gt.f32.partialorder %v2047, 0.0
        %vm2216 = vcmp.gt.f32.partialorder %v2050, 0.0
        %vm2217 = vcmp.gt.f32.partialorder %v2055, 0.0
        %vm2218 = vcmp.gt.f32.partialorder %v2058, 0.0
        %vm2219 = vcmp.gt.f32.partialorder %v2063, 0.0
        %vm2220 = vcmp.gt.f32.partialorder %v2066, 0.0
        %vm2221 = vcmp.gt.f32.partialorder %v2071, 0.0
        %vm2222 = vcmp.gt.f32.partialorder %v2074, 0.0
        %vm2223 = vcmp.gt.f32.partialorder %v2079, 0.0
        %vm2224 = vcmp.gt.f32.partialorder %v2082, 0.0
        %vm2225 = vcmp.gt.f32.partialorder %v2087, 0.0
        %vm2226 = vcmp.gt.f32.partialorder %v2090, 0.0
        %vm2227 = vcmp.gt.f32.partialorder %v2095, 0.0
        %vm2228 = vcmp.gt.f32.partialorder %v2098, 0.0
        %vm2229 = vcmp.gt.f32.partialorder %v2103, 0.0
        %vm2230 = vcmp.gt.f32.partialorder %v2106, 0.0
        %vm2231 = vcmp.gt.f32.partialorder %v2111, 0.0
        %vm2232 = vcmp.gt.f32.partialorder %v2114, 0.0
        %vm2233 = vcmp.gt.f32.partialorder %v2119, 0.0
        %vm2234 = vcmp.gt.f32.partialorder %v2122, 0.0
        %vm2235 = vcmp.gt.f32.partialorder %v2127, 0.0
        %vm2236 = vcmp.gt.f32.partialorder %v2130, 0.0
        %vm2237 = vcmp.gt.f32.partialorder %v2135, 0.0
        %vm2238 = vcmp.gt.f32.partialorder %v2138, 0.0
        %vm2239 = vcmp.gt.f32.partialorder %v2143, 0.0
        %vm2240 = vcmp.gt.f32.partialorder %v2146, 0.0
        %vm2241 = vcmp.gt.f32.partialorder %v2151, 0.0
        %vm2242 = vcmp.gt.f32.partialorder %v2154, 0.0
        %vm2243 = vcmp.gt.f32.partialorder %v2159, 0.0
        %vm2244 = vcmp.gt.f32.partialorder %v2162, 0.0
        %vm2245 = vcmp.gt.f32.partialorder %v2167, 0.0
        %vm2246 = vcmp.gt.f32.partialorder %v2170, 0.0
        %vm2247 = vcmp.gt.f32.partialorder %v2175, 0.0
        %vm2248 = vcmp.gt.f32.partialorder %v2178, 0.0
        %vm2249 = vcmp.gt.f32.partialorder %v2183, 0.0
        %vm2250 = vcmp.gt.f32.partialorder %v2186, 0.0
        %vm2251 = vcmp.gt.f32.partialorder %v2191, 0.0
        %vm2252 = vcmp.gt.f32.partialorder %v2194, 0.0
        %vm2253 = vcmp.gt.f32.partialorder %v2199, 0.0
        %vm2254 = vcmp.gt.f32.partialorder %v2202, 0.0
        %vm2255 = vcmp.gt.f32.partialorder %v2207, 0.0
        %vm2256 = vcmp.gt.f32.partialorder %v2210, 0.0
        %v2257 = vmul.f32 %v2039, 0.1
        %v2258 = vmul.f32 %v2042, 0.1
        %v2259 = vmul.f32 %v2047, 0.1
        %v2260 = vmul.f32 %v2050, 0.1
        %v2261 = vmul.f32 %v2055, 0.1
        %v2262 = vmul.f32 %v2058, 0.1
        %v2263 = vmul.f32 %v2063, 0.1
        %v2264 = vmul.f32 %v2066, 0.1
        %v2265 = vmul.f32 %v2071, 0.1
        %v2266 = vmul.f32 %v2074, 0.1
        %v2267 = vmul.f32 %v2079, 0.1
        %v2268 = vmul.f32 %v2082, 0.1
        %v2269 = vmul.f32 %v2087, 0.1
        %v2270 = vmul.f32 %v2090, 0.1
        %v2271 = vmul.f32 %v2095, 0.1
        %v2272 = vmul.f32 %v2098, 0.1
        %v2273 = vmul.f32 %v2103, 0.1
        %v2274 = vmul.f32 %v2106, 0.1
        %v2275 = vmul.f32 %v2111, 0.1
        %v2276 = vmul.f32 %v2114, 0.1
        %v2277 = vmul.f32 %v2119, 0.1
        %v2278 = vmul.f32 %v2122, 0.1
        %v2279 = vmul.f32 %v2127, 0.1
        %v2280 = vmul.f32 %v2130, 0.1
        %v2281 = vmul.f32 %v2135, 0.1
        %v2282 = vmul.f32 %v2138, 0.1
        %v2283 = vmul.f32 %v2143, 0.1
        %v2284 = vmul.f32 %v2146, 0.1
        %v2285 = vmul.f32 %v2151, 0.1
        %v2286 = vmul.f32 %v2154, 0.1
        %v2287 = vmul.f32 %v2159, 0.1
        %v2288 = vmul.f32 %v2162, 0.1
        %v2289 = vmul.f32 %v2167, 0.1
        %v2290 = vmul.f32 %v2170, 0.1
        %v2291 = vmul.f32 %v2175, 0.1
        %v2292 = vmul.f32 %v2178, 0.1
        %v2293 = vmul.f32 %v2183, 0.1
        %v2294 = vmul.f32 %v2186, 0.1
        %v2295 = vmul.f32 %v2191, 0.1
        %v2296 = vmul.f32 %v2194, 0.1
        %v2297 = vmul.f32 %v2199, 0.1
        %v2298 = vmul.f32 %v2202, 0.1
        %v2299 = vmul.f32 %v2207, 0.1
        %v2300 = vmul.f32 %v2210, 0.1
        %v2301 = vsel %vm2213, %v2039, %v2257
        %v2302 = vsel %vm2214, %v2042, %v2258
        %v2303 = vsel %vm2215, %v2047, %v2259
        %v2304 = vsel %vm2216, %v2050, %v2260
        %v2305 = vsel %vm2217, %v2055, %v2261
        %v2306 = vsel %vm2218, %v2058, %v2262
        %v2307 = vsel %vm2219, %v2063, %v2263
        %v2308 = vsel %vm2220, %v2066, %v2264
        %v2309 = vsel %vm2221, %v2071, %v2265
        %v2310 = vsel %vm2222, %v2074, %v2266
        %v2311 = vsel %vm2223, %v2079, %v2267
        %v2312 = vsel %vm2224, %v2082, %v2268
        %v2313 = vsel %vm2225, %v2087, %v2269
        %v2314 = vsel %vm2226, %v2090, %v2270
        %v2315 = vsel %vm2227, %v2095, %v2271
        %v2316 = vsel %vm2228, %v2098, %v2272
        %v2317 = vsel %vm2229, %v2103, %v2273
        %v2318 = vsel %vm2230, %v2106, %v2274
        %v2319 = vsel %vm2231, %v2111, %v2275
        %v2320 = vsel %vm2232, %v2114, %v2276
        %v2321 = vsel %vm2233, %v2119, %v2277
        %v2322 = vsel %vm2234, %v2122, %v2278
        %v2323 = vsel %vm2235, %v2127, %v2279
        %v2324 = vsel %vm2236, %v2130, %v2280
        %v2325 = vsel %vm2237, %v2135, %v2281
        %v2326 = vsel %vm2238, %v2138, %v2282
        %v2327 = vsel %vm2239, %v2143, %v2283
        %v2328 = vsel %vm2240, %v2146, %v2284
        %v2329 = vsel %vm2241, %v2151, %v2285
        %v2330 = vsel %vm2242, %v2154, %v2286
        %v2331 = vsel %vm2243, %v2159, %v2287
        %v2332 = vsel %vm2244, %v2162, %v2288
        %v2333 = vsel %vm2245, %v2167, %v2289
        %v2334 = vsel %vm2246, %v2170, %v2290
        %v2335 = vsel %vm2247, %v2175, %v2291
        %v2336 = vsel %vm2248, %v2178, %v2292
        %v2337 = vsel %vm2249, %v2183, %v2293
        %v2338 = vsel %vm2250, %v2186, %v2294
        %v2339 = vsel %vm2251, %v2191, %v2295
        %v2340 = vsel %vm2252, %v2194, %v2296
        %v2341 = vsel %vm2253, %v2199, %v2297
        %v2342 = vsel %vm2254, %v2202, %v2298
        %v2343 = vsel %vm2255, %v2207, %v2299
        %v2344 = vsel %vm2256, %v2210, %v2300
        %v2345 = vpack.c.bf16 %v2302, %v2301
        %v2346 = vpack.c.bf16 %v2304, %v2303
        %v2347 = vpack.c.bf16 %v2306, %v2305
        %v2348 = vpack.c.bf16 %v2308, %v2307
        %v2349 = vpack.c.bf16 %v2310, %v2309
        %v2350 = vpack.c.bf16 %v2312, %v2311
        %v2351 = vpack.c.bf16 %v2314, %v2313
        %v2352 = vpack.c.bf16 %v2316, %v2315
        %v2353 = vpack.c.bf16 %v2318, %v2317
        %v2354 = vpack.c.bf16 %v2320, %v2319
        %v2355 = vpack.c.bf16 %v2322, %v2321
        %v2356 = vpack.c.bf16 %v2324, %v2323
        %v2357 = vpack.c.bf16 %v2326, %v2325
        %v2358 = vpack.c.bf16 %v2328, %v2327
        %v2359 = vpack.c.bf16 %v2330, %v2329
        %v2360 = vpack.c.bf16 %v2332, %v2331
        %v2361 = vpack.c.bf16 %v2334, %v2333
        %v2362 = vpack.c.bf16 %v2336, %v2335
        %v2363 = vpack.c.bf16 %v2338, %v2337
        %v2364 = vpack.c.bf16 %v2340, %v2339
        %v2365 = vpack.c.bf16 %v2342, %v2341
        %v2366 = vpack.c.bf16 %v2344, %v2343
        %s2367 = smul.u32 %s39, 16
        %s2368 = ssub.s32 %s2367, 3
        %v2369 = vstv %s2368
        %v2370 = vadd.s32 %v2369, 1
        %v2371 = vadd.s32 %v2369, 2
        %v2372 = vadd.s32 %v2369, 3
        %v2373 = vadd.s32 %v2369, 4
        %v2374 = vadd.s32 %v2369, 5
        %v2375 = vadd.s32 %v2369, 6
        %v2376 = vadd.s32 %v2369, 7
        %v2377 = vadd.s32 %v2369, 8
        %v2378 = vadd.s32 %v2369, 9
        %v2379 = vadd.s32 %v2369, 10
        %v2380 = vadd.s32 %v2369, 11
        %v2381 = vadd.s32 %v2369, 12
        %v2382 = vadd.s32 %v2369, 13
        %v2383 = vadd.s32 %v2369, 14
        %v2384 = vadd.s32 %v2369, 15
        %v2385 = vadd.s32 %v2369, 16
        %v2386 = vadd.s32 %v2369, 17
        %v2387 = vadd.s32 %v2369, 18
        %v2388 = vadd.s32 %v2369, 19
        %v2389 = vadd.s32 %v2369, 20
        %v2390 = vadd.s32 %v2369, 21
        %vm2391 = vcmp.ge.s32.totalorder %v2369, 0
        %vm2392 = vcmp.ge.s32.totalorder %v2370, 0
        %vm2393 = vcmp.ge.s32.totalorder %v2371, 0
        %vm2394 = vcmp.ge.s32.totalorder %v2372, 0
        %vm2395 = vcmp.ge.s32.totalorder %v2373, 0
        %vm2396 = vcmp.ge.s32.totalorder %v2374, 0
        %vm2397 = vcmp.ge.s32.totalorder %v2375, 0
        %vm2398 = vcmp.ge.s32.totalorder %v2376, 0
        %vm2399 = vcmp.ge.s32.totalorder %v2377, 0
        %vm2400 = vcmp.ge.s32.totalorder %v2378, 0
        %vm2401 = vcmp.ge.s32.totalorder %v2379, 0
        %vm2402 = vcmp.ge.s32.totalorder %v2380, 0
        %vm2403 = vcmp.ge.s32.totalorder %v2381, 0
        %vm2404 = vcmp.ge.s32.totalorder %v2382, 0
        %vm2405 = vcmp.ge.s32.totalorder %v2383, 0
        %vm2406 = vcmp.ge.s32.totalorder %v2384, 0
        %vm2407 = vcmp.ge.s32.totalorder %v2385, 0
        %vm2408 = vcmp.ge.s32.totalorder %v2386, 0
        %vm2409 = vcmp.ge.s32.totalorder %v2387, 0
        %vm2410 = vcmp.ge.s32.totalorder %v2388, 0
        %vm2411 = vcmp.ge.s32.totalorder %v2389, 0
        %vm2412 = vcmp.ge.s32.totalorder %v2390, 0
        %vm2413 = vcmp.lt.s32.totalorder %v2369, 16
        %vm2414 = vcmp.lt.s32.totalorder %v2370, 16
        %vm2415 = vcmp.lt.s32.totalorder %v2371, 16
        %vm2416 = vcmp.lt.s32.totalorder %v2372, 16
        %vm2417 = vcmp.lt.s32.totalorder %v2373, 16
        %vm2418 = vcmp.lt.s32.totalorder %v2374, 16
        %vm2419 = vcmp.lt.s32.totalorder %v2375, 16
        %vm2420 = vcmp.lt.s32.totalorder %v2376, 16
        %vm2421 = vcmp.lt.s32.totalorder %v2377, 16
        %vm2422 = vcmp.lt.s32.totalorder %v2378, 16
        %vm2423 = vcmp.lt.s32.totalorder %v2379, 16
        %vm2424 = vcmp.lt.s32.totalorder %v2380, 16
        %vm2425 = vcmp.lt.s32.totalorder %v2381, 16
        %vm2426 = vcmp.lt.s32.totalorder %v2382, 16
        %vm2427 = vcmp.lt.s32.totalorder %v2383, 16
        %vm2428 = vcmp.lt.s32.totalorder %v2384, 16
        %vm2429 = vcmp.lt.s32.totalorder %v2385, 16
        %vm2430 = vcmp.lt.s32.totalorder %v2386, 16
        %vm2431 = vcmp.lt.s32.totalorder %v2387, 16
        %vm2432 = vcmp.lt.s32.totalorder %v2388, 16
        %vm2433 = vcmp.lt.s32.totalorder %v2389, 16
        %vm2434 = vcmp.lt.s32.totalorder %v2390, 16
        %vm2435 = vmand %vm2391, %vm2413
        %vm2436 = vmand %vm2392, %vm2414
        %vm2437 = vmand %vm2393, %vm2415
        %vm2438 = vmand %vm2394, %vm2416
        %vm2439 = vmand %vm2395, %vm2417
        %vm2440 = vmand %vm2396, %vm2418
        %vm2441 = vmand %vm2397, %vm2419
        %vm2442 = vmand %vm2398, %vm2420
        %vm2443 = vmand %vm2399, %vm2421
        %vm2444 = vmand %vm2400, %vm2422
        %vm2445 = vmand %vm2401, %vm2423
        %vm2446 = vmand %vm2402, %vm2424
        %vm2447 = vmand %vm2403, %vm2425
        %vm2448 = vmand %vm2404, %vm2426
        %vm2449 = vmand %vm2405, %vm2427
        %vm2450 = vmand %vm2406, %vm2428
        %vm2451 = vmand %vm2407, %vm2429
        %vm2452 = vmand %vm2408, %vm2430
        %vm2453 = vmand %vm2409, %vm2431
        %vm2454 = vmand %vm2410, %vm2432
        %vm2455 = vmand %vm2411, %vm2433
        %vm2456 = vmand %vm2412, %vm2434
        %v2457 = vsel %vm2435, 1, 0
        %v2458 = vsel %vm2436, 1, 0
        %v2459 = vsel %vm2437, 1, 0
        %v2460 = vsel %vm2438, 1, 0
        %v2461 = vsel %vm2439, 1, 0
        %v2462 = vsel %vm2440, 1, 0
        %v2463 = vsel %vm2441, 1, 0
        %v2464 = vsel %vm2442, 1, 0
        %v2465 = vsel %vm2443, 1, 0
        %v2466 = vsel %vm2444, 1, 0
        %v2467 = vsel %vm2445, 1, 0
        %v2468 = vsel %vm2446, 1, 0
        %v2469 = vsel %vm2447, 1, 0
        %v2470 = vsel %vm2448, 1, 0
        %v2471 = vsel %vm2449, 1, 0
        %v2472 = vsel %vm2450, 1, 0
        %v2473 = vsel %vm2451, 1, 0
        %v2474 = vsel %vm2452, 1, 0
        %v2475 = vsel %vm2453, 1, 0
        %v2476 = vsel %vm2454, 1, 0
        %v2477 = vsel %vm2455, 1, 0
        %v2478 = vsel %vm2456, 1, 0
        %vm2479 = vcmp.eq.s32.totalorder %v2457, 1
        %vm2480 = vcmp.eq.s32.totalorder %v2458, 1
        %vm2481 = vcmp.eq.s32.totalorder %v2459, 1
        %vm2482 = vcmp.eq.s32.totalorder %v2460, 1
        %vm2483 = vcmp.eq.s32.totalorder %v2461, 1
        %vm2484 = vcmp.eq.s32.totalorder %v2462, 1
        %vm2485 = vcmp.eq.s32.totalorder %v2463, 1
        %vm2486 = vcmp.eq.s32.totalorder %v2464, 1
        %vm2487 = vcmp.eq.s32.totalorder %v2465, 1
        %vm2488 = vcmp.eq.s32.totalorder %v2466, 1
        %vm2489 = vcmp.eq.s32.totalorder %v2467, 1
        %vm2490 = vcmp.eq.s32.totalorder %v2468, 1
        %vm2491 = vcmp.eq.s32.totalorder %v2469, 1
        %vm2492 = vcmp.eq.s32.totalorder %v2470, 1
        %vm2493 = vcmp.eq.s32.totalorder %v2471, 1
        %vm2494 = vcmp.eq.s32.totalorder %v2472, 1
        %vm2495 = vcmp.eq.s32.totalorder %v2473, 1
        %vm2496 = vcmp.eq.s32.totalorder %v2474, 1
        %vm2497 = vcmp.eq.s32.totalorder %v2475, 1
        %vm2498 = vcmp.eq.s32.totalorder %v2476, 1
        %vm2499 = vcmp.eq.s32.totalorder %v2477, 1
        %vm2500 = vcmp.eq.s32.totalorder %v2478, 1
        %v2501 = vsel %vm2479, %v2345, 0
        %v2502 = vsel %vm2480, %v2346, 0
        %v2503 = vsel %vm2481, %v2347, 0
        %v2504 = vsel %vm2482, %v2348, 0
        %v2505 = vsel %vm2483, %v2349, 0
        %v2506 = vsel %vm2484, %v2350, 0
        %v2507 = vsel %vm2485, %v2351, 0
        %v2508 = vsel %vm2486, %v2352, 0
        %v2509 = vsel %vm2487, %v2353, 0
        %v2510 = vsel %vm2488, %v2354, 0
        %v2511 = vsel %vm2489, %v2355, 0
        %v2512 = vsel %vm2490, %v2356, 0
        %v2513 = vsel %vm2491, %v2357, 0
        %v2514 = vsel %vm2492, %v2358, 0
        %v2515 = vsel %vm2493, %v2359, 0
        %v2516 = vsel %vm2494, %v2360, 0
        %v2517 = vsel %vm2495, %v2361, 0
        %v2518 = vsel %vm2496, %v2362, 0
        %v2519 = vsel %vm2497, %v2363, 0
        %v2520 = vsel %vm2498, %v2364, 0
        %v2521 = vsel %vm2499, %v2365, 0
        %v2522 = vsel %vm2500, %v2366, 0
        %v2524 = vshrl.u32 %v2501, 16
        %v2526 = vrot.slane %v2524, 7
        %v2527 = vshll.u32 %v2501, 16
        %v2529 = vor.u32 %v2526, %v2527
        %v2531 = vshrl.u32 %v2502, 16
        %v2533 = vrot.slane %v2531, 7
        %v2534 = vshll.u32 %v2502, 16
        %v2536 = vor.u32 %v2533, %v2534
        %v2538 = vshrl.u32 %v2503, 16
        %v2540 = vrot.slane %v2538, 7
        %v2541 = vshll.u32 %v2503, 16
        %v2543 = vor.u32 %v2540, %v2541
        %v2545 = vshrl.u32 %v2504, 16
        %v2547 = vrot.slane %v2545, 7
        %v2548 = vshll.u32 %v2504, 16
        %v2550 = vor.u32 %v2547, %v2548
        %v2552 = vshrl.u32 %v2505, 16
        %v2554 = vrot.slane %v2552, 7
        %v2555 = vshll.u32 %v2505, 16
        %v2557 = vor.u32 %v2554, %v2555
        %v2559 = vshrl.u32 %v2506, 16
        %v2561 = vrot.slane %v2559, 7
        %v2562 = vshll.u32 %v2506, 16
        %v2564 = vor.u32 %v2561, %v2562
        %v2566 = vshrl.u32 %v2507, 16
        %v2568 = vrot.slane %v2566, 7
        %v2569 = vshll.u32 %v2507, 16
        %v2571 = vor.u32 %v2568, %v2569
        %v2573 = vshrl.u32 %v2508, 16
        %v2575 = vrot.slane %v2573, 7
        %v2576 = vshll.u32 %v2508, 16
        %v2578 = vor.u32 %v2575, %v2576
        %v2580 = vshrl.u32 %v2509, 16
        %v2582 = vrot.slane %v2580, 7
        %v2583 = vshll.u32 %v2509, 16
        %v2585 = vor.u32 %v2582, %v2583
        %v2587 = vshrl.u32 %v2510, 16
        %v2589 = vrot.slane %v2587, 7
        %v2590 = vshll.u32 %v2510, 16
        %v2592 = vor.u32 %v2589, %v2590
        %v2594 = vshrl.u32 %v2511, 16
        %v2596 = vrot.slane %v2594, 7
        %v2597 = vshll.u32 %v2511, 16
        %v2599 = vor.u32 %v2596, %v2597
        %v2601 = vshrl.u32 %v2512, 16
        %v2603 = vrot.slane %v2601, 7
        %v2604 = vshll.u32 %v2512, 16
        %v2606 = vor.u32 %v2603, %v2604
        %v2608 = vshrl.u32 %v2513, 16
        %v2610 = vrot.slane %v2608, 7
        %v2611 = vshll.u32 %v2513, 16
        %v2613 = vor.u32 %v2610, %v2611
        %v2615 = vshrl.u32 %v2514, 16
        %v2617 = vrot.slane %v2615, 7
        %v2618 = vshll.u32 %v2514, 16
        %v2620 = vor.u32 %v2617, %v2618
        %v2622 = vshrl.u32 %v2515, 16
        %v2624 = vrot.slane %v2622, 7
        %v2625 = vshll.u32 %v2515, 16
        %v2627 = vor.u32 %v2624, %v2625
        %v2629 = vshrl.u32 %v2516, 16
        %v2631 = vrot.slane %v2629, 7
        %v2632 = vshll.u32 %v2516, 16
        %v2634 = vor.u32 %v2631, %v2632
        %v2636 = vshrl.u32 %v2517, 16
        %v2638 = vrot.slane %v2636, 7
        %v2639 = vshll.u32 %v2517, 16
        %v2641 = vor.u32 %v2638, %v2639
        %v2643 = vshrl.u32 %v2518, 16
        %v2645 = vrot.slane %v2643, 7
        %v2646 = vshll.u32 %v2518, 16
        %v2648 = vor.u32 %v2645, %v2646
        %v2650 = vshrl.u32 %v2519, 16
        %v2652 = vrot.slane %v2650, 7
        %v2653 = vshll.u32 %v2519, 16
        %v2655 = vor.u32 %v2652, %v2653
        %v2657 = vshrl.u32 %v2520, 16
        %v2659 = vrot.slane %v2657, 7
        %v2660 = vshll.u32 %v2520, 16
        %v2662 = vor.u32 %v2659, %v2660
        %v2664 = vshrl.u32 %v2521, 16
        %v2666 = vrot.slane %v2664, 7
        %v2667 = vshll.u32 %v2521, 16
        %v2669 = vor.u32 %v2666, %v2667
        %v2671 = vshrl.u32 %v2522, 16
        %v2673 = vrot.slane %v2671, 7
        %v2674 = vshll.u32 %v2522, 16
        %v2676 = vor.u32 %v2673, %v2674
        %vm2721 = vcmask 1040384
        %vm2722 = vsmask.f32 256
        %vm2723 = vmand %vm2721, %vm2722
        %v2724 = vsel %vm2723, 0, %v2529
        %v2725 = vsel %vm2723, 0, %v2536
        %v2726 = vsel %vm2723, 0, %v2543
        %v2727 = vsel %vm2723, 0, %v2550
        %v2728 = vsel %vm2723, 0, %v2557
        %v2729 = vsel %vm2723, 0, %v2564
        %v2730 = vsel %vm2723, 0, %v2571
        %v2731 = vsel %vm2723, 0, %v2578
        %v2732 = vsel %vm2723, 0, %v2585
        %v2733 = vsel %vm2723, 0, %v2592
        %v2734 = vsel %vm2723, 0, %v2599
        %v2735 = vsel %vm2723, 0, %v2606
        %v2736 = vsel %vm2723, 0, %v2613
        %v2737 = vsel %vm2723, 0, %v2620
        %v2738 = vsel %vm2723, 0, %v2627
        %v2739 = vsel %vm2723, 0, %v2634
        %v2740 = vsel %vm2723, 0, %v2641
        %v2741 = vsel %vm2723, 0, %v2648
        %v2742 = vsel %vm2723, 0, %v2655
        %v2743 = vsel %vm2723, 0, %v2662
        %v2744 = vsel %vm2723, 0, %v2669
        %v2745 = vsel %vm2723, 0, %v2676
        %v2746 = vsel %vm2723, %v2526, 0
        %v2747 = vsel %vm2723, %v2533, 0
        %v2748 = vsel %vm2723, %v2540, 0
        %v2749 = vsel %vm2723, %v2547, 0
        %v2750 = vsel %vm2723, %v2554, 0
        %v2751 = vsel %vm2723, %v2561, 0
        %v2752 = vsel %vm2723, %v2568, 0
        %v2753 = vsel %vm2723, %v2575, 0
        %v2754 = vsel %vm2723, %v2582, 0
        %v2755 = vsel %vm2723, %v2589, 0
        %v2756 = vsel %vm2723, %v2596, 0
        %v2757 = vsel %vm2723, %v2603, 0
        %v2758 = vsel %vm2723, %v2610, 0
        %v2759 = vsel %vm2723, %v2617, 0
        %v2760 = vsel %vm2723, %v2624, 0
        %v2761 = vsel %vm2723, %v2631, 0
        %v2762 = vsel %vm2723, %v2638, 0
        %v2763 = vsel %vm2723, %v2645, 0
        %v2764 = vsel %vm2723, %v2652, 0
        %v2765 = vsel %vm2723, %v2659, 0
        %v2766 = vsel %vm2723, %v2666, 0
        %v2767 = vsel %vm2723, %v2673, 0
        %v2769 = vshrl.u32 %v2724, 16
        %v2771 = vshll.u32 %v2724, 16
        %v2773 = vrot.slane %v2771, 1
        %v2774 = vor.u32 %v2769, %v2773
        %v2776 = vshll.u32 %v2746, 16
        %v2778 = vrot.slane %v2776, 1
        %v2779 = vsel %vm822, %v2774, %v2778
        %v2781 = vshrl.u32 %v2725, 16
        %v2783 = vshll.u32 %v2725, 16
        %v2785 = vrot.slane %v2783, 1
        %v2786 = vor.u32 %v2781, %v2785
        %v2788 = vshll.u32 %v2747, 16
        %v2790 = vrot.slane %v2788, 1
        %v2791 = vsel %vm822, %v2786, %v2790
        %v2793 = vshrl.u32 %v2726, 16
        %v2795 = vshll.u32 %v2726, 16
        %v2797 = vrot.slane %v2795, 1
        %v2798 = vor.u32 %v2793, %v2797
        %v2800 = vshll.u32 %v2748, 16
        %v2802 = vrot.slane %v2800, 1
        %v2803 = vsel %vm822, %v2798, %v2802
        %v2805 = vshrl.u32 %v2727, 16
        %v2807 = vshll.u32 %v2727, 16
        %v2809 = vrot.slane %v2807, 1
        %v2810 = vor.u32 %v2805, %v2809
        %v2812 = vshll.u32 %v2749, 16
        %v2814 = vrot.slane %v2812, 1
        %v2815 = vsel %vm822, %v2810, %v2814
        %v2817 = vshrl.u32 %v2728, 16
        %v2819 = vshll.u32 %v2728, 16
        %v2821 = vrot.slane %v2819, 1
        %v2822 = vor.u32 %v2817, %v2821
        %v2824 = vshll.u32 %v2750, 16
        %v2826 = vrot.slane %v2824, 1
        %v2827 = vsel %vm822, %v2822, %v2826
        %v2829 = vshrl.u32 %v2729, 16
        %v2831 = vshll.u32 %v2729, 16
        %v2833 = vrot.slane %v2831, 1
        %v2834 = vor.u32 %v2829, %v2833
        %v2836 = vshll.u32 %v2751, 16
        %v2838 = vrot.slane %v2836, 1
        %v2839 = vsel %vm822, %v2834, %v2838
        %v2841 = vshrl.u32 %v2730, 16
        %v2843 = vshll.u32 %v2730, 16
        %v2845 = vrot.slane %v2843, 1
        %v2846 = vor.u32 %v2841, %v2845
        %v2848 = vshll.u32 %v2752, 16
        %v2850 = vrot.slane %v2848, 1
        %v2851 = vsel %vm822, %v2846, %v2850
        %v2853 = vshrl.u32 %v2731, 16
        %v2855 = vshll.u32 %v2731, 16
        %v2857 = vrot.slane %v2855, 1
        %v2858 = vor.u32 %v2853, %v2857
        %v2860 = vshll.u32 %v2753, 16
        %v2862 = vrot.slane %v2860, 1
        %v2863 = vsel %vm822, %v2858, %v2862
        %v2865 = vshrl.u32 %v2732, 16
        %v2867 = vshll.u32 %v2732, 16
        %v2869 = vrot.slane %v2867, 1
        %v2870 = vor.u32 %v2865, %v2869
        %v2872 = vshll.u32 %v2754, 16
        %v2874 = vrot.slane %v2872, 1
        %v2875 = vsel %vm822, %v2870, %v2874
        %v2877 = vshrl.u32 %v2733, 16
        %v2879 = vshll.u32 %v2733, 16
        %v2881 = vrot.slane %v2879, 1
        %v2882 = vor.u32 %v2877, %v2881
        %v2884 = vshll.u32 %v2755, 16
        %v2886 = vrot.slane %v2884, 1
        %v2887 = vsel %vm822, %v2882, %v2886
        %v2889 = vshrl.u32 %v2734, 16
        %v2891 = vshll.u32 %v2734, 16
        %v2893 = vrot.slane %v2891, 1
        %v2894 = vor.u32 %v2889, %v2893
        %v2896 = vshll.u32 %v2756, 16
        %v2898 = vrot.slane %v2896, 1
        %v2899 = vsel %vm822, %v2894, %v2898
        %v2901 = vshrl.u32 %v2735, 16
        %v2903 = vshll.u32 %v2735, 16
        %v2905 = vrot.slane %v2903, 1
        %v2906 = vor.u32 %v2901, %v2905
        %v2908 = vshll.u32 %v2757, 16
        %v2910 = vrot.slane %v2908, 1
        %v2911 = vsel %vm822, %v2906, %v2910
        %v2913 = vshrl.u32 %v2736, 16
        %v2915 = vshll.u32 %v2736, 16
        %v2917 = vrot.slane %v2915, 1
        %v2918 = vor.u32 %v2913, %v2917
        %v2920 = vshll.u32 %v2758, 16
        %v2922 = vrot.slane %v2920, 1
        %v2923 = vsel %vm822, %v2918, %v2922
        %v2925 = vshrl.u32 %v2737, 16
        %v2927 = vshll.u32 %v2737, 16
        %v2929 = vrot.slane %v2927, 1
        %v2930 = vor.u32 %v2925, %v2929
        %v2932 = vshll.u32 %v2759, 16
        %v2934 = vrot.slane %v2932, 1
        %v2935 = vsel %vm822, %v2930, %v2934
        %v2937 = vshrl.u32 %v2738, 16
        %v2939 = vshll.u32 %v2738, 16
        %v2941 = vrot.slane %v2939, 1
        %v2942 = vor.u32 %v2937, %v2941
        %v2944 = vshll.u32 %v2760, 16
        %v2946 = vrot.slane %v2944, 1
        %v2947 = vsel %vm822, %v2942, %v2946
        %v2949 = vshrl.u32 %v2739, 16
        %v2951 = vshll.u32 %v2739, 16
        %v2953 = vrot.slane %v2951, 1
        %v2954 = vor.u32 %v2949, %v2953
        %v2956 = vshll.u32 %v2761, 16
        %v2958 = vrot.slane %v2956, 1
        %v2959 = vsel %vm822, %v2954, %v2958
        %v2961 = vshrl.u32 %v2740, 16
        %v2963 = vshll.u32 %v2740, 16
        %v2965 = vrot.slane %v2963, 1
        %v2966 = vor.u32 %v2961, %v2965
        %v2968 = vshll.u32 %v2762, 16
        %v2970 = vrot.slane %v2968, 1
        %v2971 = vsel %vm822, %v2966, %v2970
        %v2973 = vshrl.u32 %v2741, 16
        %v2975 = vshll.u32 %v2741, 16
        %v2977 = vrot.slane %v2975, 1
        %v2978 = vor.u32 %v2973, %v2977
        %v2980 = vshll.u32 %v2763, 16
        %v2982 = vrot.slane %v2980, 1
        %v2983 = vsel %vm822, %v2978, %v2982
        %v2985 = vshrl.u32 %v2742, 16
        %v2987 = vshll.u32 %v2742, 16
        %v2989 = vrot.slane %v2987, 1
        %v2990 = vor.u32 %v2985, %v2989
        %v2992 = vshll.u32 %v2764, 16
        %v2994 = vrot.slane %v2992, 1
        %v2995 = vsel %vm822, %v2990, %v2994
        %v2997 = vshrl.u32 %v2743, 16
        %v2999 = vshll.u32 %v2743, 16
        %v3001 = vrot.slane %v2999, 1
        %v3002 = vor.u32 %v2997, %v3001
        %v3004 = vshll.u32 %v2765, 16
        %v3006 = vrot.slane %v3004, 1
        %v3007 = vsel %vm822, %v3002, %v3006
        %3008 = vrot.lane.b32.xlu0 %v2779, 32
        %v3009 = vpop.permute.xlu0 %3008
        %3010 = vrot.lane.b32.xlu0 %v2791, 32
        %v3011 = vpop.permute.xlu0 %3010
        %3012 = vrot.lane.b32.xlu0 %v2803, 32
        %v3013 = vpop.permute.xlu0 %3012
        %3014 = vrot.lane.b32.xlu0 %v2815, 32
        %v3015 = vpop.permute.xlu0 %3014
        %3016 = vrot.lane.b32.xlu0 %v2827, 32
        %v3017 = vpop.permute.xlu0 %3016
        %3018 = vrot.lane.b32.xlu0 %v2839, 32
        %v3019 = vpop.permute.xlu0 %3018
        %3020 = vrot.lane.b32.xlu0 %v2851, 32
        %v3021 = vpop.permute.xlu0 %3020
        %3022 = vrot.lane.b32.xlu0 %v2863, 32
        %v3023 = vpop.permute.xlu0 %3022
        %3024 = vrot.lane.b32.xlu0 %v2875, 32
        %v3025 = vpop.permute.xlu0 %3024
        %3026 = vrot.lane.b32.xlu0 %v2887, 32
        %v3027 = vpop.permute.xlu0 %3026
        %3028 = vrot.lane.b32.xlu0 %v2899, 32
        %v3029 = vpop.permute.xlu0 %3028
        %3030 = vrot.lane.b32.xlu0 %v2911, 32
        %v3031 = vpop.permute.xlu0 %3030
        %3032 = vrot.lane.b32.xlu0 %v2923, 32
        %v3033 = vpop.permute.xlu0 %3032
        %3034 = vrot.lane.b32.xlu0 %v2935, 32
        %v3035 = vpop.permute.xlu0 %3034
        %3036 = vrot.lane.b32.xlu0 %v2947, 32
        %v3037 = vpop.permute.xlu0 %3036
        %3038 = vrot.lane.b32.xlu0 %v2959, 32
        %v3039 = vpop.permute.xlu0 %3038
        %3040 = vrot.lane.b32.xlu0 %v2971, 32
        %v3041 = vpop.permute.xlu0 %3040
        %3042 = vrot.lane.b32.xlu0 %v2983, 32
        %v3043 = vpop.permute.xlu0 %3042
        %3044 = vrot.lane.b32.xlu0 %v2995, 32
        %v3045 = vpop.permute.xlu0 %3044
        %3046 = vrot.lane.b32.xlu0 %v3007, 32
        %v3047 = vpop.permute.xlu0 %3046
        %v3088 = vrot.slane %v2724, 1
        %v3089 = vrot.slane %v2746, 1
        %v3090 = vsel %vm1131, %v3088, %v3089
        %v3091 = vrot.slane %v2725, 1
        %v3092 = vrot.slane %v2747, 1
        %v3093 = vsel %vm1131, %v3091, %v3092
        %v3094 = vrot.slane %v2726, 1
        %v3095 = vrot.slane %v2748, 1
        %v3096 = vsel %vm1131, %v3094, %v3095
        %v3097 = vrot.slane %v2727, 1
        %v3098 = vrot.slane %v2749, 1
        %v3099 = vsel %vm1131, %v3097, %v3098
        %v3100 = vrot.slane %v2728, 1
        %v3101 = vrot.slane %v2750, 1
        %v3102 = vsel %vm1131, %v3100, %v3101
        %v3103 = vrot.slane %v2729, 1
        %v3104 = vrot.slane %v2751, 1
        %v3105 = vsel %vm1131, %v3103, %v3104
        %v3106 = vrot.slane %v2730, 1
        %v3107 = vrot.slane %v2752, 1
        %v3108 = vsel %vm1131, %v3106, %v3107
        %v3109 = vrot.slane %v2731, 1
        %v3110 = vrot.slane %v2753, 1
        %v3111 = vsel %vm1131, %v3109, %v3110
        %v3112 = vrot.slane %v2732, 1
        %v3113 = vrot.slane %v2754, 1
        %v3114 = vsel %vm1131, %v3112, %v3113
        %v3115 = vrot.slane %v2733, 1
        %v3116 = vrot.slane %v2755, 1
        %v3117 = vsel %vm1131, %v3115, %v3116
        %v3118 = vrot.slane %v2734, 1
        %v3119 = vrot.slane %v2756, 1
        %v3120 = vsel %vm1131, %v3118, %v3119
        %v3121 = vrot.slane %v2735, 1
        %v3122 = vrot.slane %v2757, 1
        %v3123 = vsel %vm1131, %v3121, %v3122
        %v3124 = vrot.slane %v2736, 1
        %v3125 = vrot.slane %v2758, 1
        %v3126 = vsel %vm1131, %v3124, %v3125
        %v3127 = vrot.slane %v2737, 1
        %v3128 = vrot.slane %v2759, 1
        %v3129 = vsel %vm1131, %v3127, %v3128
        %v3130 = vrot.slane %v2738, 1
        %v3131 = vrot.slane %v2760, 1
        %v3132 = vsel %vm1131, %v3130, %v3131
        %v3133 = vrot.slane %v2739, 1
        %v3134 = vrot.slane %v2761, 1
        %v3135 = vsel %vm1131, %v3133, %v3134
        %v3136 = vrot.slane %v2740, 1
        %v3137 = vrot.slane %v2762, 1
        %v3138 = vsel %vm1131, %v3136, %v3137
        %v3139 = vrot.slane %v2741, 1
        %v3140 = vrot.slane %v2763, 1
        %v3141 = vsel %vm1131, %v3139, %v3140
        %v3142 = vrot.slane %v2742, 1
        %v3143 = vrot.slane %v2764, 1
        %v3144 = vsel %vm1131, %v3142, %v3143
        %v3145 = vrot.slane %v2743, 1
        %v3146 = vrot.slane %v2765, 1
        %v3147 = vsel %vm1131, %v3145, %v3146
        %3148 = vrot.lane.b32.xlu0 %v3090, 64
        %v3149 = vpop.permute.xlu0 %3148
        %3150 = vrot.lane.b32.xlu0 %v3093, 64
        %v3151 = vpop.permute.xlu0 %3150
        %3152 = vrot.lane.b32.xlu0 %v3096, 64
        %v3153 = vpop.permute.xlu0 %3152
        %3154 = vrot.lane.b32.xlu0 %v3099, 64
        %v3155 = vpop.permute.xlu0 %3154
        %3156 = vrot.lane.b32.xlu0 %v3102, 64
        %v3157 = vpop.permute.xlu0 %3156
        %3158 = vrot.lane.b32.xlu0 %v3105, 64
        %v3159 = vpop.permute.xlu0 %3158
        %3160 = vrot.lane.b32.xlu0 %v3108, 64
        %v3161 = vpop.permute.xlu0 %3160
        %3162 = vrot.lane.b32.xlu0 %v3111, 64
        %v3163 = vpop.permute.xlu0 %3162
        %3164 = vrot.lane.b32.xlu0 %v3114, 64
        %v3165 = vpop.permute.xlu0 %3164
        %3166 = vrot.lane.b32.xlu0 %v3117, 64
        %v3167 = vpop.permute.xlu0 %3166
        %3168 = vrot.lane.b32.xlu0 %v3120, 64
        %v3169 = vpop.permute.xlu0 %3168
        %3170 = vrot.lane.b32.xlu0 %v3123, 64
        %v3171 = vpop.permute.xlu0 %3170
        %3172 = vrot.lane.b32.xlu0 %v3126, 64
        %v3173 = vpop.permute.xlu0 %3172
        %3174 = vrot.lane.b32.xlu0 %v3129, 64
        %v3175 = vpop.permute.xlu0 %3174
        %3176 = vrot.lane.b32.xlu0 %v3132, 64
        %v3177 = vpop.permute.xlu0 %3176
        %3178 = vrot.lane.b32.xlu0 %v3135, 64
        %v3179 = vpop.permute.xlu0 %3178
        %3180 = vrot.lane.b32.xlu0 %v3138, 64
        %v3181 = vpop.permute.xlu0 %3180
        %3182 = vrot.lane.b32.xlu0 %v3141, 64
        %v3183 = vpop.permute.xlu0 %3182
        %3184 = vrot.lane.b32.xlu0 %v3144, 64
        %v3185 = vpop.permute.xlu0 %3184
        %3186 = vrot.lane.b32.xlu0 %v3147, 64
        %v3187 = vpop.permute.xlu0 %3186
        %3189 = vrot.lane.b32.xlu0 %v2725, 96
        %v3190 = vpop.permute.xlu0 %3189
        %3191 = vrot.lane.b32.xlu0 %v2726, 96
        %v3192 = vpop.permute.xlu0 %3191
        %3193 = vrot.lane.b32.xlu0 %v2727, 96
        %v3194 = vpop.permute.xlu0 %3193
        %3195 = vrot.lane.b32.xlu0 %v2728, 96
        %v3196 = vpop.permute.xlu0 %3195
        %3197 = vrot.lane.b32.xlu0 %v2729, 96
        %v3198 = vpop.permute.xlu0 %3197
        %3199 = vrot.lane.b32.xlu0 %v2730, 96
        %v3200 = vpop.permute.xlu0 %3199
        %3201 = vrot.lane.b32.xlu0 %v2731, 96
        %v3202 = vpop.permute.xlu0 %3201
        %3203 = vrot.lane.b32.xlu0 %v2732, 96
        %v3204 = vpop.permute.xlu0 %3203
        %3205 = vrot.lane.b32.xlu0 %v2733, 96
        %v3206 = vpop.permute.xlu0 %3205
        %3207 = vrot.lane.b32.xlu0 %v2734, 96
        %v3208 = vpop.permute.xlu0 %3207
        %3209 = vrot.lane.b32.xlu0 %v2735, 96
        %v3210 = vpop.permute.xlu0 %3209
        %3211 = vrot.lane.b32.xlu0 %v2736, 96
        %v3212 = vpop.permute.xlu0 %3211
        %3213 = vrot.lane.b32.xlu0 %v2737, 96
        %v3214 = vpop.permute.xlu0 %3213
        %3215 = vrot.lane.b32.xlu0 %v2738, 96
        %v3216 = vpop.permute.xlu0 %3215
        %3217 = vrot.lane.b32.xlu0 %v2739, 96
        %v3218 = vpop.permute.xlu0 %3217
        %3219 = vrot.lane.b32.xlu0 %v2740, 96
        %v3220 = vpop.permute.xlu0 %3219
        %3221 = vrot.lane.b32.xlu0 %v2741, 96
        %v3222 = vpop.permute.xlu0 %3221
        %3223 = vrot.lane.b32.xlu0 %v2742, 96
        %v3224 = vpop.permute.xlu0 %3223
        %3225 = vrot.lane.b32.xlu0 %v2743, 96
        %v3226 = vpop.permute.xlu0 %3225
        %3227 = vrot.lane.b32.xlu0 %v2744, 96
        %v3228 = vpop.permute.xlu0 %3227
        %v3230 = vshrl.u32 %v2744, 16
        %v3232 = vshll.u32 %v2744, 16
        %v3234 = vrot.slane %v3232, 1
        %v3235 = vor.u32 %v3230, %v3234
        %v3237 = vshll.u32 %v2766, 16
        %v3239 = vrot.slane %v3237, 1
        %v3240 = vsel %vm822, %v3235, %v3239
        %v3242 = vrot.slane %v2744, 1
        %v3243 = vrot.slane %v2766, 1
        %v3244 = vsel %vm1131, %v3242, %v3243
        %3245 = vrot.lane.b32.xlu0 %v3093, 32
        %v3246 = vpop.permute.xlu0 %3245
        %3247 = vrot.lane.b32.xlu0 %v3096, 32
        %v3248 = vpop.permute.xlu0 %3247
        %3249 = vrot.lane.b32.xlu0 %v3099, 32
        %v3250 = vpop.permute.xlu0 %3249
        %3251 = vrot.lane.b32.xlu0 %v3102, 32
        %v3252 = vpop.permute.xlu0 %3251
        %3253 = vrot.lane.b32.xlu0 %v3105, 32
        %v3254 = vpop.permute.xlu0 %3253
        %3255 = vrot.lane.b32.xlu0 %v3108, 32
        %v3256 = vpop.permute.xlu0 %3255
        %3257 = vrot.lane.b32.xlu0 %v3111, 32
        %v3258 = vpop.permute.xlu0 %3257
        %3259 = vrot.lane.b32.xlu0 %v3114, 32
        %v3260 = vpop.permute.xlu0 %3259
        %3261 = vrot.lane.b32.xlu0 %v3117, 32
        %v3262 = vpop.permute.xlu0 %3261
        %3263 = vrot.lane.b32.xlu0 %v3120, 32
        %v3264 = vpop.permute.xlu0 %3263
        %3265 = vrot.lane.b32.xlu0 %v3123, 32
        %v3266 = vpop.permute.xlu0 %3265
        %3267 = vrot.lane.b32.xlu0 %v3126, 32
        %v3268 = vpop.permute.xlu0 %3267
        %3269 = vrot.lane.b32.xlu0 %v3129, 32
        %v3270 = vpop.permute.xlu0 %3269
        %3271 = vrot.lane.b32.xlu0 %v3132, 32
        %v3272 = vpop.permute.xlu0 %3271
        %3273 = vrot.lane.b32.xlu0 %v3135, 32
        %v3274 = vpop.permute.xlu0 %3273
        %3275 = vrot.lane.b32.xlu0 %v3138, 32
        %v3276 = vpop.permute.xlu0 %3275
        %3277 = vrot.lane.b32.xlu0 %v3141, 32
        %v3278 = vpop.permute.xlu0 %3277
        %3279 = vrot.lane.b32.xlu0 %v3144, 32
        %v3280 = vpop.permute.xlu0 %3279
        %3281 = vrot.lane.b32.xlu0 %v3147, 32
        %v3282 = vpop.permute.xlu0 %3281
        %3283 = vrot.lane.b32.xlu0 %v3244, 32
        %v3284 = vpop.permute.xlu0 %3283
        %3286 = vrot.lane.b32.xlu0 %v2726, 64
        %v3287 = vpop.permute.xlu0 %3286
        %3288 = vrot.lane.b32.xlu0 %v2727, 64
        %v3289 = vpop.permute.xlu0 %3288
        %3290 = vrot.lane.b32.xlu0 %v2728, 64
        %v3291 = vpop.permute.xlu0 %3290
        %3292 = vrot.lane.b32.xlu0 %v2729, 64
        %v3293 = vpop.permute.xlu0 %3292
        %3294 = vrot.lane.b32.xlu0 %v2730, 64
        %v3295 = vpop.permute.xlu0 %3294
        %3296 = vrot.lane.b32.xlu0 %v2731, 64
        %v3297 = vpop.permute.xlu0 %3296
        %3298 = vrot.lane.b32.xlu0 %v2732, 64
        %v3299 = vpop.permute.xlu0 %3298
        %3300 = vrot.lane.b32.xlu0 %v2733, 64
        %v3301 = vpop.permute.xlu0 %3300
        %3302 = vrot.lane.b32.xlu0 %v2734, 64
        %v3303 = vpop.permute.xlu0 %3302
        %3304 = vrot.lane.b32.xlu0 %v2735, 64
        %v3305 = vpop.permute.xlu0 %3304
        %3306 = vrot.lane.b32.xlu0 %v2736, 64
        %v3307 = vpop.permute.xlu0 %3306
        %3308 = vrot.lane.b32.xlu0 %v2737, 64
        %v3309 = vpop.permute.xlu0 %3308
        %3310 = vrot.lane.b32.xlu0 %v2738, 64
        %v3311 = vpop.permute.xlu0 %3310
        %3312 = vrot.lane.b32.xlu0 %v2739, 64
        %v3313 = vpop.permute.xlu0 %3312
        %3314 = vrot.lane.b32.xlu0 %v2740, 64
        %v3315 = vpop.permute.xlu0 %3314
        %3316 = vrot.lane.b32.xlu0 %v2741, 64
        %v3317 = vpop.permute.xlu0 %3316
        %3318 = vrot.lane.b32.xlu0 %v2742, 64
        %v3319 = vpop.permute.xlu0 %3318
        %3320 = vrot.lane.b32.xlu0 %v2743, 64
        %v3321 = vpop.permute.xlu0 %3320
        %3322 = vrot.lane.b32.xlu0 %v2744, 64
        %v3323 = vpop.permute.xlu0 %3322
        %3324 = vrot.lane.b32.xlu0 %v2745, 64
        %v3325 = vpop.permute.xlu0 %3324
        %v3327 = vshrl.u32 %v2745, 16
        %v3329 = vshll.u32 %v2745, 16
        %v3331 = vrot.slane %v3329, 1
        %v3332 = vor.u32 %v3327, %v3331
        %v3334 = vshll.u32 %v2767, 16
        %v3336 = vrot.slane %v3334, 1
        %v3337 = vsel %vm822, %v3332, %v3336
        %3338 = vrot.lane.b32.xlu0 %v2803, 96
        %v3339 = vpop.permute.xlu0 %3338
        %3340 = vrot.lane.b32.xlu0 %v2815, 96
        %v3341 = vpop.permute.xlu0 %3340
        %3342 = vrot.lane.b32.xlu0 %v2827, 96
        %v3343 = vpop.permute.xlu0 %3342
        %3344 = vrot.lane.b32.xlu0 %v2839, 96
        %v3345 = vpop.permute.xlu0 %3344
        %3346 = vrot.lane.b32.xlu0 %v2851, 96
        %v3347 = vpop.permute.xlu0 %3346
        %3348 = vrot.lane.b32.xlu0 %v2863, 96
        %v3349 = vpop.permute.xlu0 %3348
        %3350 = vrot.lane.b32.xlu0 %v2875, 96
        %v3351 = vpop.permute.xlu0 %3350
        %3352 = vrot.lane.b32.xlu0 %v2887, 96
        %v3353 = vpop.permute.xlu0 %3352
        %3354 = vrot.lane.b32.xlu0 %v2899, 96
        %v3355 = vpop.permute.xlu0 %3354
        %3356 = vrot.lane.b32.xlu0 %v2911, 96
        %v3357 = vpop.permute.xlu0 %3356
        %3358 = vrot.lane.b32.xlu0 %v2923, 96
        %v3359 = vpop.permute.xlu0 %3358
        %3360 = vrot.lane.b32.xlu0 %v2935, 96
        %v3361 = vpop.permute.xlu0 %3360
        %3362 = vrot.lane.b32.xlu0 %v2947, 96
        %v3363 = vpop.permute.xlu0 %3362
        %3364 = vrot.lane.b32.xlu0 %v2959, 96
        %v3365 = vpop.permute.xlu0 %3364
        %3366 = vrot.lane.b32.xlu0 %v2971, 96
        %v3367 = vpop.permute.xlu0 %3366
        %3368 = vrot.lane.b32.xlu0 %v2983, 96
        %v3369 = vpop.permute.xlu0 %3368
        %3370 = vrot.lane.b32.xlu0 %v2995, 96
        %v3371 = vpop.permute.xlu0 %3370
        %3372 = vrot.lane.b32.xlu0 %v3007, 96
        %v3373 = vpop.permute.xlu0 %3372
        %3374 = vrot.lane.b32.xlu0 %v3240, 96
        %v3375 = vpop.permute.xlu0 %3374
        %3376 = vrot.lane.b32.xlu0 %v3337, 96
        %v3377 = vpop.permute.xlu0 %3376
        %v3379 = vrot.slane %v2745, 1
        %v3380 = vrot.slane %v2767, 1
        %v3381 = vsel %vm1131, %v3379, %v3380
        %v3383 = vsel %vm1687, %v2724, %v3009
        %v3385 = vsel %vm1687, %v2725, %v3011
        %v3387 = vsel %vm1687, %v2726, %v3013
        %v3389 = vsel %vm1687, %v2727, %v3015
        %v3391 = vsel %vm1687, %v2728, %v3017
        %v3393 = vsel %vm1687, %v2729, %v3019
        %v3395 = vsel %vm1687, %v2730, %v3021
        %v3397 = vsel %vm1687, %v2731, %v3023
        %v3399 = vsel %vm1687, %v2732, %v3025
        %v3401 = vsel %vm1687, %v2733, %v3027
        %v3403 = vsel %vm1687, %v2734, %v3029
        %v3405 = vsel %vm1687, %v2735, %v3031
        %v3407 = vsel %vm1687, %v2736, %v3033
        %v3409 = vsel %vm1687, %v2737, %v3035
        %v3411 = vsel %vm1687, %v2738, %v3037
        %v3413 = vsel %vm1687, %v2739, %v3039
        %v3415 = vsel %vm1687, %v2740, %v3041
        %v3417 = vsel %vm1687, %v2741, %v3043
        %v3419 = vsel %vm1687, %v2742, %v3045
        %v3421 = vsel %vm1687, %v2743, %v3047
        %v3423 = vsel %vm1867, %v3383, %v3149
        %v3425 = vsel %vm1867, %v3385, %v3151
        %v3427 = vsel %vm1867, %v3387, %v3153
        %v3429 = vsel %vm1867, %v3389, %v3155
        %v3431 = vsel %vm1867, %v3391, %v3157
        %v3433 = vsel %vm1867, %v3393, %v3159
        %v3435 = vsel %vm1867, %v3395, %v3161
        %v3437 = vsel %vm1867, %v3397, %v3163
        %v3439 = vsel %vm1867, %v3399, %v3165
        %v3441 = vsel %vm1867, %v3401, %v3167
        %v3443 = vsel %vm1867, %v3403, %v3169
        %v3445 = vsel %vm1867, %v3405, %v3171
        %v3447 = vsel %vm1867, %v3407, %v3173
        %v3449 = vsel %vm1867, %v3409, %v3175
        %v3451 = vsel %vm1867, %v3411, %v3177
        %v3453 = vsel %vm1867, %v3413, %v3179
        %v3455 = vsel %vm1867, %v3415, %v3181
        %v3457 = vsel %vm1867, %v3417, %v3183
        %v3459 = vsel %vm1867, %v3419, %v3185
        %v3461 = vsel %vm1867, %v3421, %v3187
        %vm3462 = vcmask 785408
        %v3464 = vsel %vm3462, %v3423, %v3190
        %v3467 = vsel %vm3462, %v3425, %v3192
        %v3470 = vsel %vm3462, %v3427, %v3194
        %v3473 = vsel %vm3462, %v3429, %v3196
        %v3476 = vsel %vm3462, %v3431, %v3198
        %v3479 = vsel %vm3462, %v3433, %v3200
        %v3482 = vsel %vm3462, %v3435, %v3202
        %v3485 = vsel %vm3462, %v3437, %v3204
        %v3488 = vsel %vm3462, %v3439, %v3206
        %v3491 = vsel %vm3462, %v3441, %v3208
        %v3494 = vsel %vm3462, %v3443, %v3210
        %v3497 = vsel %vm3462, %v3445, %v3212
        %v3500 = vsel %vm3462, %v3447, %v3214
        %v3503 = vsel %vm3462, %v3449, %v3216
        %v3506 = vsel %vm3462, %v3451, %v3218
        %v3509 = vsel %vm3462, %v3453, %v3220
        %v3512 = vsel %vm3462, %v3455, %v3222
        %v3515 = vsel %vm3462, %v3457, %v3224
        %v3518 = vsel %vm3462, %v3459, %v3226
        %v3521 = vsel %vm3462, %v3461, %v3228
        %v3525 = vsel %vm1687, %v2791, %v3246
        %v3528 = vsel %vm1687, %v2803, %v3248
        %v3531 = vsel %vm1687, %v2815, %v3250
        %v3534 = vsel %vm1687, %v2827, %v3252
        %v3537 = vsel %vm1687, %v2839, %v3254
        %v3540 = vsel %vm1687, %v2851, %v3256
        %v3543 = vsel %vm1687, %v2863, %v3258
        %v3546 = vsel %vm1687, %v2875, %v3260
        %v3549 = vsel %vm1687, %v2887, %v3262
        %v3552 = vsel %vm1687, %v2899, %v3264
        %v3555 = vsel %vm1687, %v2911, %v3266
        %v3558 = vsel %vm1687, %v2923, %v3268
        %v3561 = vsel %vm1687, %v2935, %v3270
        %v3564 = vsel %vm1687, %v2947, %v3272
        %v3567 = vsel %vm1687, %v2959, %v3274
        %v3570 = vsel %vm1687, %v2971, %v3276
        %v3573 = vsel %vm1687, %v2983, %v3278
        %v3576 = vsel %vm1687, %v2995, %v3280
        %v3579 = vsel %vm1687, %v3007, %v3282
        %v3582 = vsel %vm1687, %v3240, %v3284
        %v3584 = vsel %vm1867, %v3525, %v3287
        %v3586 = vsel %vm1867, %v3528, %v3289
        %v3588 = vsel %vm1867, %v3531, %v3291
        %v3590 = vsel %vm1867, %v3534, %v3293
        %v3592 = vsel %vm1867, %v3537, %v3295
        %v3594 = vsel %vm1867, %v3540, %v3297
        %v3596 = vsel %vm1867, %v3543, %v3299
        %v3598 = vsel %vm1867, %v3546, %v3301
        %v3600 = vsel %vm1867, %v3549, %v3303
        %v3602 = vsel %vm1867, %v3552, %v3305
        %v3604 = vsel %vm1867, %v3555, %v3307
        %v3606 = vsel %vm1867, %v3558, %v3309
        %v3608 = vsel %vm1867, %v3561, %v3311
        %v3610 = vsel %vm1867, %v3564, %v3313
        %v3612 = vsel %vm1867, %v3567, %v3315
        %v3614 = vsel %vm1867, %v3570, %v3317
        %v3616 = vsel %vm1867, %v3573, %v3319
        %v3618 = vsel %vm1867, %v3576, %v3321
        %v3620 = vsel %vm1867, %v3579, %v3323
        %v3622 = vsel %vm1867, %v3582, %v3325
        %v3624 = vsel %vm3462, %v3584, %v3339
        %v3627 = vsel %vm3462, %v3586, %v3341
        %v3630 = vsel %vm3462, %v3588, %v3343
        %v3633 = vsel %vm3462, %v3590, %v3345
        %v3636 = vsel %vm3462, %v3592, %v3347
        %v3639 = vsel %vm3462, %v3594, %v3349
        %v3642 = vsel %vm3462, %v3596, %v3351
        %v3645 = vsel %vm3462, %v3598, %v3353
        %v3648 = vsel %vm3462, %v3600, %v3355
        %v3651 = vsel %vm3462, %v3602, %v3357
        %v3654 = vsel %vm3462, %v3604, %v3359
        %v3657 = vsel %vm3462, %v3606, %v3361
        %v3660 = vsel %vm3462, %v3608, %v3363
        %v3663 = vsel %vm3462, %v3610, %v3365
        %v3666 = vsel %vm3462, %v3612, %v3367
        %v3669 = vsel %vm3462, %v3614, %v3369
        %v3672 = vsel %vm3462, %v3616, %v3371
        %v3675 = vsel %vm3462, %v3618, %v3373
        %v3678 = vsel %vm3462, %v3620, %v3375
        %v3681 = vsel %vm3462, %v3622, %v3377
        %v3683 = vld [vmem:[#allocation10] sm:$0xf]
        %v3684 = vld [vmem:[#allocation10 + $0x4] sm:$0xf]
        %v3685 = vld [vmem:[#allocation10 + $0x8] sm:$0xf]
        %v3686 = vld [vmem:[#allocation10 + $0xc] sm:$0xf]
        %v3687 = vld [vmem:[#allocation10 + $0x10] sm:$0xf]
        %v3688 = vld [vmem:[#allocation10 + $0x14] sm:$0xf]
        %v3689 = vld [vmem:[#allocation10 + $0x18] sm:$0xf]
        %v3690 = vld [vmem:[#allocation10 + $0x1c] sm:$0xf]
        %v3691 = vld [vmem:[#allocation10 + $0x20] sm:$0xf]
        %v3692 = vld [vmem:[#allocation10 + $0x24] sm:$0xf]
        %v3693 = vld [vmem:[#allocation10 + $0x28] sm:$0xf]
        %v3694 = vld [vmem:[#allocation10 + $0x2c] sm:$0xf]
        %v3695 = vld [vmem:[#allocation10 + $0x30] sm:$0xf]
        %v3696 = vld [vmem:[#allocation10 + $0x34] sm:$0xf]
        %v3697 = vld [vmem:[#allocation10 + $0x38] sm:$0xf]
        %v3698 = vld [vmem:[#allocation10 + $0x3c] sm:$0xf]
        %v3699 = vld [vmem:[#allocation10 + $0x40] sm:$0xf]
        %v3700 = vld [vmem:[#allocation10 + $0x44] sm:$0xf]
        %v3701 = vld [vmem:[#allocation10 + $0x48] sm:$0xf]
        %v3702 = vld [vmem:[#allocation10 + $0x4c] sm:$0xf]
        %v3703 = vld [vmem:[#allocation10 + $0x50] sm:$0xf]
        %v3704 = vld [vmem:[#allocation10 + $0x54] sm:$0xf]
        %v3705 = vld [vmem:[#allocation10 + $0x58] sm:$0xf]
        %v3706 = vld [vmem:[#allocation10 + $0x5c] sm:$0xf]
        %v3707 = vld [vmem:[#allocation10 + $0x60] sm:$0xf]
        %v3708 = vld [vmem:[#allocation10 + $0x64] sm:$0xf]
        %v3709 = vld [vmem:[#allocation10 + $0x68] sm:$0xf]
        %v3710 = vld [vmem:[#allocation10 + $0x6c] sm:$0xf]
        %v3711 = vld [vmem:[#allocation10 + $0x70] sm:$0xf]
        %v3712 = vld [vmem:[#allocation10 + $0x74] sm:$0xf]
        %v3713 = vld [vmem:[#allocation10 + $0x78] sm:$0xf]
        %v3714 = vld [vmem:[#allocation10 + $0x7c] sm:$0xf]
        %v3715 = vld [vmem:[#allocation10 + $0x80] sm:$0xf]
        %v3716 = vld [vmem:[#allocation10 + $0x84] sm:$0xf]
        %v3717 = vld [vmem:[#allocation10 + $0x88] sm:$0xf]
        %v3718 = vld [vmem:[#allocation10 + $0x8c] sm:$0xf]
        %v3719 = vld [vmem:[#allocation11] sm:$0x1]
        %v3721 = vlaneseq
        %v3722 = vshrl.u32 %v3721, 7
        %v3723 = vsub.s32 0, %v3722
        %v3724 = vrot.slane %v3719, %v3723
        %v3762 = vunpack.c.l.b16 %v3683
        %v3763 = vunpack.c.l.b16 %v3684
        %v3764 = vunpack.c.l.b16 %v3685
        %v3765 = vunpack.c.l.b16 %v3686
        %v3766 = vunpack.c.l.b16 %v3687
        %v3767 = vunpack.c.l.b16 %v3688
        %v3768 = vunpack.c.l.b16 %v3689
        %v3769 = vunpack.c.l.b16 %v3690
        %v3770 = vunpack.c.l.b16 %v3691
        %v3771 = vunpack.c.l.b16 %v3692
        %v3772 = vunpack.c.l.b16 %v3693
        %v3773 = vunpack.c.l.b16 %v3694
        %v3774 = vunpack.c.l.b16 %v3695
        %v3775 = vunpack.c.l.b16 %v3696
        %v3776 = vunpack.c.l.b16 %v3697
        %v3777 = vunpack.c.l.b16 %v3698
        %v3778 = vunpack.c.l.b16 %v3699
        %v3779 = vunpack.c.l.b16 %v3700
        %v3780 = vunpack.c.l.b16 %v3701
        %v3781 = vunpack.c.l.b16 %v3702
        %v3782 = vunpack.c.l.b16 %v3703
        %v3783 = vunpack.c.l.b16 %v3704
        %v3784 = vunpack.c.l.b16 %v3705
        %v3785 = vunpack.c.l.b16 %v3706
        %v3786 = vunpack.c.l.b16 %v3707
        %v3787 = vunpack.c.l.b16 %v3708
        %v3788 = vunpack.c.l.b16 %v3709
        %v3789 = vunpack.c.l.b16 %v3710
        %v3790 = vunpack.c.l.b16 %v3711
        %v3791 = vunpack.c.l.b16 %v3712
        %v3792 = vunpack.c.l.b16 %v3713
        %v3793 = vunpack.c.l.b16 %v3714
        %v3794 = vunpack.c.l.b16 %v3715
        %v3795 = vunpack.c.l.b16 %v3716
        %v3796 = vunpack.c.l.b16 %v3717
        %v3797 = vunpack.c.l.b16 %v3718
        %v3798 = vpack.c.b16 %v3763, %v3762
        %v3799 = vpack.c.b16 %v3765, %v3764
        %v3800 = vpack.c.b16 %v3767, %v3766
        %v3801 = vpack.c.b16 %v3769, %v3768
        %v3802 = vpack.c.b16 %v3771, %v3770
        %v3803 = vpack.c.b16 %v3773, %v3772
        %v3804 = vpack.c.b16 %v3775, %v3774
        %v3805 = vpack.c.b16 %v3777, %v3776
        %v3806 = vpack.c.b16 %v3779, %v3778
        %v3807 = vpack.c.b16 %v3781, %v3780
        %v3808 = vpack.c.b16 %v3783, %v3782
        %v3809 = vpack.c.b16 %v3785, %v3784
        %v3810 = vpack.c.b16 %v3787, %v3786
        %v3811 = vpack.c.b16 %v3789, %v3788
        %v3812 = vpack.c.b16 %v3791, %v3790
        %v3813 = vpack.c.b16 %v3793, %v3792
        %v3814 = vpack.c.b16 %v3795, %v3794
        %v3815 = vpack.c.b16 %v3797, %v3796
        %v3835 = vsel %vm1687, %v3096, 0
        %v3838 = vsel %vm1687, %v3099, 0
        %v3841 = vsel %vm1687, %v3102, 0
        %v3844 = vsel %vm1687, %v3105, 0
        %v3847 = vsel %vm1687, %v3108, 0
        %v3850 = vsel %vm1687, %v3111, 0
        %v3853 = vsel %vm1687, %v3114, 0
        %v3856 = vsel %vm1687, %v3117, 0
        %v3859 = vsel %vm1687, %v3120, 0
        %v3862 = vsel %vm1687, %v3123, 0
        %v3865 = vsel %vm1687, %v3126, 0
        %v3868 = vsel %vm1687, %v3129, 0
        %v3871 = vsel %vm1687, %v3132, 0
        %v3874 = vsel %vm1687, %v3135, 0
        %v3877 = vsel %vm1687, %v3138, 0
        %v3880 = vsel %vm1687, %v3141, 0
        %v3883 = vsel %vm1687, %v3144, 0
        %v3886 = vsel %vm1687, %v3147, 0
        %v3889 = vsel %vm1687, %v3244, 0
        %v3892 = vsel %vm1687, %v3381, 0
        %3894 = vmatprep.subr.bf16.mxu0 0
        %3895 = vmatpush1.bf16.msra.mxu0 %v3798
        %3896 = vmatprep.subr.bf16.mxu0 0
        %3897 = vmatpush1.bf16.msra.mxu0 %v3799
        %3898 = vmatprep.subr.bf16.mxu0 0
        %3899 = vmatpush1.bf16.msra.mxu0 %v3800
        %3900 = vmatprep.subr.bf16.mxu0 0
        %3901 = vmatpush1.bf16.msra.mxu0 %v3801
        %3902 = vmatprep.subr.bf16.mxu0 0
        %3903 = vmatpush1.bf16.msra.mxu0 %v3802
        %3904 = vmatprep.subr.bf16.mxu0 0
        %3905 = vmatpush1.bf16.msra.mxu0 %v3803
        %3906 = vmatprep.subr.bf16.mxu0 0
        %3907 = vmatpush1.bf16.msra.mxu0 %v3804
        %3908 = vmatprep.subr.bf16.mxu0 0
        %3909 = vmatpush1.bf16.msra.mxu0 %v3805
        %3910 = vmatprep.subr.bf16.mxu0 0
        %3911 = vmatpush1.bf16.msra.mxu0 %v3806
        %3912 = vmatprep.subr.bf16.mxu0 0
        %3913 = vmatpush1.bf16.msra.mxu0 %v3807
        %3914 = vmatprep.subr.bf16.mxu0 0
        %3915 = vmatpush1.bf16.msra.mxu0 %v3808
        %3916 = vmatprep.subr.bf16.mxu0 0
        %3917 = vmatpush1.bf16.msra.mxu0 %v3809
        %3918 = vmatprep.subr.bf16.mxu0 0
        %3919 = vmatpush1.bf16.msra.mxu0 %v3810
        %3920 = vmatprep.subr.bf16.mxu0 0
        %3921 = vmatpush1.bf16.msra.mxu0 %v3811
        %3922 = vmatprep.subr.bf16.mxu0 0
        %3923 = vmatpush1.bf16.msra.mxu0 %v3812
        %3924 = vmatprep.subr.bf16.mxu0 0
        %3925 = vmatpush1.bf16.msra.mxu0 %v3813
        %3926 = vmatprep.mubr.bf16.mxu0 %v3624
        %3927 = vmatmul.mubr.bf16.gmra.mrb[0].mxu0 %v3464
        %v3928 = vpop.f32.mrb[0].mxu0
        %v3929 = vadd.f32 %v3724, %v3928
        %v3930 = vpop.f32.mrb[0].mxu0
        %v3931 = vpop.f32.mrb[0].mxu0
        %v3932 = vadd.f32 %v3724, %v3931
        %v3933 = vpop.f32.mrb[0].mxu0
        %3934 = vmatprep.mubr.bf16.mxu0 %v3627
        %3935 = vmatmul.mubr.bf16.gmra.mrb[0].mxu0 %v3467
        %v3936 = vpop.f32.mrb[0].mxu0
        %v3937 = vadd.f32 %v3724, %v3936
        %v3938 = vpop.f32.mrb[0].mxu0
        %v3939 = vpop.f32.mrb[0].mxu0
        %v3940 = vadd.f32 %v3724, %v3939
        %v3941 = vpop.f32.mrb[0].mxu0
        %3942 = vmatprep.mubr.bf16.mxu0 %v3630
        %3943 = vmatmul.mubr.bf16.gmra.mrb[0].mxu0 %v3470
        %v3944 = vpop.f32.mrb[0].mxu0
        %v3945 = vadd.f32 %v3724, %v3944
        %v3946 = vpop.f32.mrb[0].mxu0
        %v3947 = vpop.f32.mrb[0].mxu0
        %v3948 = vadd.f32 %v3724, %v3947
        %v3949 = vpop.f32.mrb[0].mxu0
        %3950 = vmatprep.mubr.bf16.mxu0 %v3633
        %3951 = vmatmul.mubr.bf16.gmra.mrb[0].mxu0 %v3473
        %v3952 = vpop.f32.mrb[0].mxu0
        %v3953 = vadd.f32 %v3724, %v3952
        %v3954 = vpop.f32.mrb[0].mxu0
        %v3955 = vpop.f32.mrb[0].mxu0
        %v3956 = vadd.f32 %v3724, %v3955
        %v3957 = vpop.f32.mrb[0].mxu0
        %3958 = vmatprep.mubr.bf16.mxu0 %v3636
        %3959 = vmatmul.mubr.bf16.gmra.mrb[0].mxu0 %v3476
        %v3960 = vpop.f32.mrb[0].mxu0
        %v3961 = vadd.f32 %v3724, %v3960
        %v3962 = vpop.f32.mrb[0].mxu0
        %v3963 = vpop.f32.mrb[0].mxu0
        %v3964 = vadd.f32 %v3724, %v3963
        %v3965 = vpop.f32.mrb[0].mxu0
        %3966 = vmatprep.mubr.bf16.mxu0 %v3639
        %3967 = vmatmul.mubr.bf16.gmra.mrb[0].mxu0 %v3479
        %v3968 = vpop.f32.mrb[0].mxu0
        %v3969 = vadd.f32 %v3724, %v3968
        %v3970 = vpop.f32.mrb[0].mxu0
        %v3971 = vpop.f32.mrb[0].mxu0
        %v3972 = vadd.f32 %v3724, %v3971
        %v3973 = vpop.f32.mrb[0].mxu0
        %3974 = vmatprep.mubr.bf16.mxu0 %v3642
        %3975 = vmatmul.mubr.bf16.gmra.mrb[0].mxu0 %v3482
        %v3976 = vpop.f32.mrb[0].mxu0
        %v3977 = vadd.f32 %v3724, %v3976
        %v3978 = vpop.f32.mrb[0].mxu0
        %v3979 = vpop.f32.mrb[0].mxu0
        %v3980 = vadd.f32 %v3724, %v3979
        %v3981 = vpop.f32.mrb[0].mxu0
        %3982 = vmatprep.mubr.bf16.mxu0 %v3645
        %3983 = vmatmul.mubr.bf16.gmra.mrb[0].mxu0 %v3485
        %v3984 = vpop.f32.mrb[0].mxu0
        %v3985 = vadd.f32 %v3724, %v3984
        %v3986 = vpop.f32.mrb[0].mxu0
        %v3987 = vpop.f32.mrb[0].mxu0
        %v3988 = vadd.f32 %v3724, %v3987
        %v3989 = vpop.f32.mrb[0].mxu0
        %3990 = vmatprep.mubr.bf16.mxu0 %v3648
        %3991 = vmatmul.mubr.bf16.gmra.mrb[0].mxu0 %v3488
        %v3992 = vpop.f32.mrb[0].mxu0
        %v3993 = vadd.f32 %v3724, %v3992
        %v3994 = vpop.f32.mrb[0].mxu0
        %v3995 = vpop.f32.mrb[0].mxu0
        %v3996 = vadd.f32 %v3724, %v3995
        %v3997 = vpop.f32.mrb[0].mxu0
        %3998 = vmatprep.mubr.bf16.mxu0 %v3651
        %3999 = vmatmul.mubr.bf16.gmra.mrb[0].mxu0 %v3491
        %v4000 = vpop.f32.mrb[0].mxu0
        %v4001 = vadd.f32 %v3724, %v4000
        %v4002 = vpop.f32.mrb[0].mxu0
        %v4003 = vpop.f32.mrb[0].mxu0
        %v4004 = vadd.f32 %v3724, %v4003
        %v4005 = vpop.f32.mrb[0].mxu0
        %4006 = vmatprep.mubr.bf16.mxu0 %v3654
        %4007 = vmatmul.mubr.bf16.gmra.mrb[0].mxu0 %v3494
        %v4008 = vpop.f32.mrb[0].mxu0
        %v4009 = vadd.f32 %v3724, %v4008
        %v4010 = vpop.f32.mrb[0].mxu0
        %v4011 = vpop.f32.mrb[0].mxu0
        %v4012 = vadd.f32 %v3724, %v4011
        %v4013 = vpop.f32.mrb[0].mxu0
        %4014 = vmatprep.mubr.bf16.mxu0 %v3657
        %4015 = vmatmul.mubr.bf16.gmra.mrb[0].mxu0 %v3497
        %v4016 = vpop.f32.mrb[0].mxu0
        %v4017 = vadd.f32 %v3724, %v4016
        %v4018 = vpop.f32.mrb[0].mxu0
        %v4019 = vpop.f32.mrb[0].mxu0
        %v4020 = vadd.f32 %v3724, %v4019
        %v4021 = vpop.f32.mrb[0].mxu0
        %4022 = vmatprep.mubr.bf16.mxu0 %v3660
        %4023 = vmatmul.mubr.bf16.gmra.mrb[0].mxu0 %v3500
        %v4024 = vpop.f32.mrb[0].mxu0
        %v4025 = vadd.f32 %v3724, %v4024
        %v4026 = vpop.f32.mrb[0].mxu0
        %v4027 = vpop.f32.mrb[0].mxu0
        %v4028 = vadd.f32 %v3724, %v4027
        %v4029 = vpop.f32.mrb[0].mxu0
        %4030 = vmatprep.mubr.bf16.mxu0 %v3663
        %4031 = vmatmul.mubr.bf16.gmra.mrb[0].mxu0 %v3503
        %v4032 = vpop.f32.mrb[0].mxu0
        %v4033 = vadd.f32 %v3724, %v4032
        %v4034 = vpop.f32.mrb[0].mxu0
        %v4035 = vpop.f32.mrb[0].mxu0
        %v4036 = vadd.f32 %v3724, %v4035
        %v4037 = vpop.f32.mrb[0].mxu0
        %4038 = vmatprep.mubr.bf16.mxu0 %v3666
        %4039 = vmatmul.mubr.bf16.gmra.mrb[0].mxu0 %v3506
        %v4040 = vpop.f32.mrb[0].mxu0
        %v4041 = vadd.f32 %v3724, %v4040
        %v4042 = vpop.f32.mrb[0].mxu0
        %v4043 = vpop.f32.mrb[0].mxu0
        %v4044 = vadd.f32 %v3724, %v4043
        %v4045 = vpop.f32.mrb[0].mxu0
        %4046 = vmatprep.mubr.bf16.mxu0 %v3669
        %4047 = vmatmul.mubr.bf16.gmra.mrb[0].mxu0 %v3509
        %v4048 = vpop.f32.mrb[0].mxu0
        %v4049 = vadd.f32 %v3724, %v4048
        %v4050 = vpop.f32.mrb[0].mxu0
        %v4051 = vpop.f32.mrb[0].mxu0
        %v4052 = vadd.f32 %v3724, %v4051
        %v4053 = vpop.f32.mrb[0].mxu0
        %4054 = vmatprep.mubr.bf16.mxu0 %v3672
        %4055 = vmatmul.mubr.bf16.gmra.mrb[0].mxu0 %v3512
        %v4056 = vpop.f32.mrb[0].mxu0
        %v4057 = vadd.f32 %v3724, %v4056
        %v4058 = vpop.f32.mrb[0].mxu0
        %v4059 = vpop.f32.mrb[0].mxu0
        %v4060 = vadd.f32 %v3724, %v4059
        %v4061 = vpop.f32.mrb[0].mxu0
        %4062 = vmatprep.mubr.bf16.mxu0 %v3675
        %4063 = vmatmul.mubr.bf16.gmra.mrb[0].mxu0 %v3515
        %v4064 = vpop.f32.mrb[0].mxu0
        %v4065 = vadd.f32 %v3724, %v4064
        %v4066 = vpop.f32.mrb[0].mxu0
        %v4067 = vpop.f32.mrb[0].mxu0
        %v4068 = vadd.f32 %v3724, %v4067
        %v4069 = vpop.f32.mrb[0].mxu0
        %4070 = vmatprep.mubr.bf16.mxu0 %v3678
        %4071 = vmatmul.mubr.bf16.gmra.mrb[0].mxu0 %v3518
        %v4072 = vpop.f32.mrb[0].mxu0
        %v4073 = vadd.f32 %v3724, %v4072
        %v4074 = vpop.f32.mrb[0].mxu0
        %v4075 = vpop.f32.mrb[0].mxu0
        %v4076 = vadd.f32 %v3724, %v4075
        %v4077 = vpop.f32.mrb[0].mxu0
        %4078 = vmatprep.mubr.bf16.mxu0 %v3681
        %4079 = vmatmul.mubr.bf16.gmra.mrb[0].mxu0 %v3521
        %v4080 = vpop.f32.mrb[0].mxu0
        %v4081 = vadd.f32 %v3724, %v4080
        %v4082 = vpop.f32.mrb[0].mxu0
        %v4083 = vpop.f32.mrb[0].mxu0
        %v4084 = vadd.f32 %v3724, %v4083
        %v4085 = vpop.f32.mrb[0].mxu0
        %4086 = vdwg.mxu0
        %4087 = vmatprep.subr.bf16.mxu0 0
        %4088 = vmatpush1.bf16.msra.mxu0 %v3814
        %4089 = vmatprep.subr.bf16.mxu0 0
        %4090 = vmatpush1.bf16.msra.mxu0 %v3815
        %4091 = vmatprep.subr.bf16.mxu0 0
        %4092 = vmatpush1.bf16.msra.mxu0 0
        %4093 = vmatprep.subr.bf16.mxu0 0
        %4094 = vmatpush1.bf16.msra.mxu0 0
        %4095 = vmatprep.subr.bf16.mxu0 0
        %4096 = vmatpush1.bf16.msra.mxu0 0
        %4097 = vmatprep.subr.bf16.mxu0 0
        %4098 = vmatpush1.bf16.msra.mxu0 0
        %4099 = vmatprep.subr.bf16.mxu0 0
        %4100 = vmatpush1.bf16.msra.mxu0 0
        %4101 = vmatprep.subr.bf16.mxu0 0
        %4102 = vmatpush1.bf16.msra.mxu0 0
        %4103 = vmatprep.subr.bf16.mxu0 0
        %4104 = vmatpush1.bf16.msra.mxu0 0
        %4105 = vmatprep.subr.bf16.mxu0 0
        %4106 = vmatpush1.bf16.msra.mxu0 0
        %4107 = vmatprep.subr.bf16.mxu0 0
        %4108 = vmatpush1.bf16.msra.mxu0 0
        %4109 = vmatprep.subr.bf16.mxu0 0
        %4110 = vmatpush1.bf16.msra.mxu0 0
        %4111 = vmatprep.subr.bf16.mxu0 0
        %4112 = vmatpush1.bf16.msra.mxu0 0
        %4113 = vmatprep.subr.bf16.mxu0 0
        %4114 = vmatpush1.bf16.msra.mxu0 0
        %4115 = vmatprep.subr.bf16.mxu0 0
        %4116 = vmatpush1.bf16.msra.mxu0 0
        %4117 = vmatprep.subr.bf16.mxu0 0
        %4118 = vmatpush1.bf16.msra.mxu0 0
        %4119 = vmatprep.mubr.bf16.mxu0 0
        %4120 = vmatmul.mubr.bf16.gmra.mrb[0].mxu0 %v3835
        %v4121 = vpop.f32.mrb[0].mxu0
        %v4122 = vadd.f32 %v3929, %v4121
        %v4123 = vpop.f32.mrb[0].mxu0
        %v4124 = vpop.f32.mrb[0].mxu0
        %v4125 = vadd.f32 %v3932, %v4124
        %v4126 = vpop.f32.mrb[0].mxu0
        %4127 = vmatprep.mubr.bf16.mxu0 0
        %4128 = vmatmul.mubr.bf16.gmra.mrb[0].mxu0 %v3838
        %v4129 = vpop.f32.mrb[0].mxu0
        %v4130 = vadd.f32 %v3937, %v4129
        %v4131 = vpop.f32.mrb[0].mxu0
        %v4132 = vpop.f32.mrb[0].mxu0
        %v4133 = vadd.f32 %v3940, %v4132
        %v4134 = vpop.f32.mrb[0].mxu0
        %4135 = vmatprep.mubr.bf16.mxu0 0
        %4136 = vmatmul.mubr.bf16.gmra.mrb[0].mxu0 %v3841
        %v4137 = vpop.f32.mrb[0].mxu0
        %v4138 = vadd.f32 %v3945, %v4137
        %v4139 = vpop.f32.mrb[0].mxu0
        %v4140 = vpop.f32.mrb[0].mxu0
        %v4141 = vadd.f32 %v3948, %v4140
        %v4142 = vpop.f32.mrb[0].mxu0
        %4143 = vmatprep.mubr.bf16.mxu0 0
        %4144 = vmatmul.mubr.bf16.gmra.mrb[0].mxu0 %v3844
        %v4145 = vpop.f32.mrb[0].mxu0
        %v4146 = vadd.f32 %v3953, %v4145
        %v4147 = vpop.f32.mrb[0].mxu0
        %v4148 = vpop.f32.mrb[0].mxu0
        %v4149 = vadd.f32 %v3956, %v4148
        %v4150 = vpop.f32.mrb[0].mxu0
        %4151 = vmatprep.mubr.bf16.mxu0 0
        %4152 = vmatmul.mubr.bf16.gmra.mrb[0].mxu0 %v3847
        %v4153 = vpop.f32.mrb[0].mxu0
        %v4154 = vadd.f32 %v3961, %v4153
        %v4155 = vpop.f32.mrb[0].mxu0
        %v4156 = vpop.f32.mrb[0].mxu0
        %v4157 = vadd.f32 %v3964, %v4156
        %v4158 = vpop.f32.mrb[0].mxu0
        %4159 = vmatprep.mubr.bf16.mxu0 0
        %4160 = vmatmul.mubr.bf16.gmra.mrb[0].mxu0 %v3850
        %v4161 = vpop.f32.mrb[0].mxu0
        %v4162 = vadd.f32 %v3969, %v4161
        %v4163 = vpop.f32.mrb[0].mxu0
        %v4164 = vpop.f32.mrb[0].mxu0
        %v4165 = vadd.f32 %v3972, %v4164
        %v4166 = vpop.f32.mrb[0].mxu0
        %4167 = vmatprep.mubr.bf16.mxu0 0
        %4168 = vmatmul.mubr.bf16.gmra.mrb[0].mxu0 %v3853
        %v4169 = vpop.f32.mrb[0].mxu0
        %v4170 = vadd.f32 %v3977, %v4169
        %v4171 = vpop.f32.mrb[0].mxu0
        %v4172 = vpop.f32.mrb[0].mxu0
        %v4173 = vadd.f32 %v3980, %v4172
        %v4174 = vpop.f32.mrb[0].mxu0
        %4175 = vmatprep.mubr.bf16.mxu0 0
        %4176 = vmatmul.mubr.bf16.gmra.mrb[0].mxu0 %v3856
        %v4177 = vpop.f32.mrb[0].mxu0
        %v4178 = vadd.f32 %v3985, %v4177
        %v4179 = vpop.f32.mrb[0].mxu0
        %v4180 = vpop.f32.mrb[0].mxu0
        %v4181 = vadd.f32 %v3988, %v4180
        %v4182 = vpop.f32.mrb[0].mxu0
        %4183 = vmatprep.mubr.bf16.mxu0 0
        %4184 = vmatmul.mubr.bf16.gmra.mrb[0].mxu0 %v3859
        %v4185 = vpop.f32.mrb[0].mxu0
        %v4186 = vadd.f32 %v3993, %v4185
        %v4187 = vpop.f32.mrb[0].mxu0
        %v4188 = vpop.f32.mrb[0].mxu0
        %v4189 = vadd.f32 %v3996, %v4188
        %v4190 = vpop.f32.mrb[0].mxu0
        %4191 = vmatprep.mubr.bf16.mxu0 0
        %4192 = vmatmul.mubr.bf16.gmra.mrb[0].mxu0 %v3862
        %v4193 = vpop.f32.mrb[0].mxu0
        %v4194 = vadd.f32 %v4001, %v4193
        %v4195 = vpop.f32.mrb[0].mxu0
        %v4196 = vpop.f32.mrb[0].mxu0
        %v4197 = vadd.f32 %v4004, %v4196
        %v4198 = vpop.f32.mrb[0].mxu0
        %4199 = vmatprep.mubr.bf16.mxu0 0
        %4200 = vmatmul.mubr.bf16.gmra.mrb[0].mxu0 %v3865
        %v4201 = vpop.f32.mrb[0].mxu0
        %v4202 = vadd.f32 %v4009, %v4201
        %v4203 = vpop.f32.mrb[0].mxu0
        %v4204 = vpop.f32.mrb[0].mxu0
        %v4205 = vadd.f32 %v4012, %v4204
        %v4206 = vpop.f32.mrb[0].mxu0
        %4207 = vmatprep.mubr.bf16.mxu0 0
        %4208 = vmatmul.mubr.bf16.gmra.mrb[0].mxu0 %v3868
        %v4209 = vpop.f32.mrb[0].mxu0
        %v4210 = vadd.f32 %v4017, %v4209
        %v4211 = vpop.f32.mrb[0].mxu0
        %v4212 = vpop.f32.mrb[0].mxu0
        %v4213 = vadd.f32 %v4020, %v4212
        %v4214 = vpop.f32.mrb[0].mxu0
        %4215 = vmatprep.mubr.bf16.mxu0 0
        %4216 = vmatmul.mubr.bf16.gmra.mrb[0].mxu0 %v3871
        %v4217 = vpop.f32.mrb[0].mxu0
        %v4218 = vadd.f32 %v4025, %v4217
        %v4219 = vpop.f32.mrb[0].mxu0
        %v4220 = vpop.f32.mrb[0].mxu0
        %v4221 = vadd.f32 %v4028, %v4220
        %v4222 = vpop.f32.mrb[0].mxu0
        %4223 = vmatprep.mubr.bf16.mxu0 0
        %4224 = vmatmul.mubr.bf16.gmra.mrb[0].mxu0 %v3874
        %v4225 = vpop.f32.mrb[0].mxu0
        %v4226 = vadd.f32 %v4033, %v4225
        %v4227 = vpop.f32.mrb[0].mxu0
        %v4228 = vpop.f32.mrb[0].mxu0
        %v4229 = vadd.f32 %v4036, %v4228
        %v4230 = vpop.f32.mrb[0].mxu0
        %4231 = vmatprep.mubr.bf16.mxu0 0
        %4232 = vmatmul.mubr.bf16.gmra.mrb[0].mxu0 %v3877
        %v4233 = vpop.f32.mrb[0].mxu0
        %v4234 = vadd.f32 %v4041, %v4233
        %v4235 = vpop.f32.mrb[0].mxu0
        %v4236 = vpop.f32.mrb[0].mxu0
        %v4237 = vadd.f32 %v4044, %v4236
        %v4238 = vpop.f32.mrb[0].mxu0
        %4239 = vmatprep.mubr.bf16.mxu0 0
        %4240 = vmatmul.mubr.bf16.gmra.mrb[0].mxu0 %v3880
        %v4241 = vpop.f32.mrb[0].mxu0
        %v4242 = vadd.f32 %v4049, %v4241
        %v4243 = vpop.f32.mrb[0].mxu0
        %v4244 = vpop.f32.mrb[0].mxu0
        %v4245 = vadd.f32 %v4052, %v4244
        %v4246 = vpop.f32.mrb[0].mxu0
        %4247 = vmatprep.mubr.bf16.mxu0 0
        %4248 = vmatmul.mubr.bf16.gmra.mrb[0].mxu0 %v3883
        %v4249 = vpop.f32.mrb[0].mxu0
        %v4250 = vadd.f32 %v4057, %v4249
        %v4251 = vpop.f32.mrb[0].mxu0
        %v4252 = vpop.f32.mrb[0].mxu0
        %v4253 = vadd.f32 %v4060, %v4252
        %v4254 = vpop.f32.mrb[0].mxu0
        %4255 = vmatprep.mubr.bf16.mxu0 0
        %4256 = vmatmul.mubr.bf16.gmra.mrb[0].mxu0 %v3886
        %v4257 = vpop.f32.mrb[0].mxu0
        %v4258 = vadd.f32 %v4065, %v4257
        %v4259 = vpop.f32.mrb[0].mxu0
        %v4260 = vpop.f32.mrb[0].mxu0
        %v4261 = vadd.f32 %v4068, %v4260
        %v4262 = vpop.f32.mrb[0].mxu0
        %4263 = vmatprep.mubr.bf16.mxu0 0
        %4264 = vmatmul.mubr.bf16.gmra.mrb[0].mxu0 %v3889
        %v4265 = vpop.f32.mrb[0].mxu0
        %v4266 = vadd.f32 %v4073, %v4265
        %v4267 = vpop.f32.mrb[0].mxu0
        %v4268 = vpop.f32.mrb[0].mxu0
        %v4269 = vadd.f32 %v4076, %v4268
        %v4270 = vpop.f32.mrb[0].mxu0
        %4271 = vmatprep.mubr.bf16.mxu0 0
        %4272 = vmatmul.mubr.bf16.gmra.mrb[0].mxu0 %v3892
        %v4273 = vpop.f32.mrb[0].mxu0
        %v4274 = vadd.f32 %v4081, %v4273
        %v4275 = vpop.f32.mrb[0].mxu0
        %v4276 = vpop.f32.mrb[0].mxu0
        %v4277 = vadd.f32 %v4084, %v4276
        %v4278 = vpop.f32.mrb[0].mxu0
        %4279 = vdwg.mxu0
        %vm4280 = vcmp.gt.f32.partialorder %v4122, 0.0
        %vm4281 = vcmp.gt.f32.partialorder %v4125, 0.0
        %vm4282 = vcmp.gt.f32.partialorder %v4130, 0.0
        %vm4283 = vcmp.gt.f32.partialorder %v4133, 0.0
        %vm4284 = vcmp.gt.f32.partialorder %v4138, 0.0
        %vm4285 = vcmp.gt.f32.partialorder %v4141, 0.0
        %vm4286 = vcmp.gt.f32.partialorder %v4146, 0.0
        %vm4287 = vcmp.gt.f32.partialorder %v4149, 0.0
        %vm4288 = vcmp.gt.f32.partialorder %v4154, 0.0
        %vm4289 = vcmp.gt.f32.partialorder %v4157, 0.0
        %vm4290 = vcmp.gt.f32.partialorder %v4162, 0.0
        %vm4291 = vcmp.gt.f32.partialorder %v4165, 0.0
        %vm4292 = vcmp.gt.f32.partialorder %v4170, 0.0
        %vm4293 = vcmp.gt.f32.partialorder %v4173, 0.0
        %vm4294 = vcmp.gt.f32.partialorder %v4178, 0.0
        %vm4295 = vcmp.gt.f32.partialorder %v4181, 0.0
        %vm4296 = vcmp.gt.f32.partialorder %v4186, 0.0
        %vm4297 = vcmp.gt.f32.partialorder %v4189, 0.0
        %vm4298 = vcmp.gt.f32.partialorder %v4194, 0.0
        %vm4299 = vcmp.gt.f32.partialorder %v4197, 0.0
        %vm4300 = vcmp.gt.f32.partialorder %v4202, 0.0
        %vm4301 = vcmp.gt.f32.partialorder %v4205, 0.0
        %vm4302 = vcmp.gt.f32.partialorder %v4210, 0.0
        %vm4303 = vcmp.gt.f32.partialorder %v4213, 0.0
        %vm4304 = vcmp.gt.f32.partialorder %v4218, 0.0
        %vm4305 = vcmp.gt.f32.partialorder %v4221, 0.0
        %vm4306 = vcmp.gt.f32.partialorder %v4226, 0.0
        %vm4307 = vcmp.gt.f32.partialorder %v4229, 0.0
        %vm4308 = vcmp.gt.f32.partialorder %v4234, 0.0
        %vm4309 = vcmp.gt.f32.partialorder %v4237, 0.0
        %vm4310 = vcmp.gt.f32.partialorder %v4242, 0.0
        %vm4311 = vcmp.gt.f32.partialorder %v4245, 0.0
        %vm4312 = vcmp.gt.f32.partialorder %v4250, 0.0
        %vm4313 = vcmp.gt.f32.partialorder %v4253, 0.0
        %vm4314 = vcmp.gt.f32.partialorder %v4258, 0.0
        %vm4315 = vcmp.gt.f32.partialorder %v4261, 0.0
        %vm4316 = vcmp.gt.f32.partialorder %v4266, 0.0
        %vm4317 = vcmp.gt.f32.partialorder %v4269, 0.0
        %vm4318 = vcmp.gt.f32.partialorder %v4274, 0.0
        %vm4319 = vcmp.gt.f32.partialorder %v4277, 0.0
        %v4320 = vmul.f32 %v4122, 0.1
        %v4321 = vmul.f32 %v4125, 0.1
        %v4322 = vmul.f32 %v4130, 0.1
        %v4323 = vmul.f32 %v4133, 0.1
        %v4324 = vmul.f32 %v4138, 0.1
        %v4325 = vmul.f32 %v4141, 0.1
        %v4326 = vmul.f32 %v4146, 0.1
        %v4327 = vmul.f32 %v4149, 0.1
        %v4328 = vmul.f32 %v4154, 0.1
        %v4329 = vmul.f32 %v4157, 0.1
        %v4330 = vmul.f32 %v4162, 0.1
        %v4331 = vmul.f32 %v4165, 0.1
        %v4332 = vmul.f32 %v4170, 0.1
        %v4333 = vmul.f32 %v4173, 0.1
        %v4334 = vmul.f32 %v4178, 0.1
        %v4335 = vmul.f32 %v4181, 0.1
        %v4336 = vmul.f32 %v4186, 0.1
        %v4337 = vmul.f32 %v4189, 0.1
        %v4338 = vmul.f32 %v4194, 0.1
        %v4339 = vmul.f32 %v4197, 0.1
        %v4340 = vmul.f32 %v4202, 0.1
        %v4341 = vmul.f32 %v4205, 0.1
        %v4342 = vmul.f32 %v4210, 0.1
        %v4343 = vmul.f32 %v4213, 0.1
        %v4344 = vmul.f32 %v4218, 0.1
        %v4345 = vmul.f32 %v4221, 0.1
        %v4346 = vmul.f32 %v4226, 0.1
        %v4347 = vmul.f32 %v4229, 0.1
        %v4348 = vmul.f32 %v4234, 0.1
        %v4349 = vmul.f32 %v4237, 0.1
        %v4350 = vmul.f32 %v4242, 0.1
        %v4351 = vmul.f32 %v4245, 0.1
        %v4352 = vmul.f32 %v4250, 0.1
        %v4353 = vmul.f32 %v4253, 0.1
        %v4354 = vmul.f32 %v4258, 0.1
        %v4355 = vmul.f32 %v4261, 0.1
        %v4356 = vmul.f32 %v4266, 0.1
        %v4357 = vmul.f32 %v4269, 0.1
        %v4358 = vmul.f32 %v4274, 0.1
        %v4359 = vmul.f32 %v4277, 0.1
        %v4360 = vsel %vm4280, %v4122, %v4320
        %v4361 = vsel %vm4281, %v4125, %v4321
        %v4362 = vsel %vm4282, %v4130, %v4322
        %v4363 = vsel %vm4283, %v4133, %v4323
        %v4364 = vsel %vm4284, %v4138, %v4324
        %v4365 = vsel %vm4285, %v4141, %v4325
        %v4366 = vsel %vm4286, %v4146, %v4326
        %v4367 = vsel %vm4287, %v4149, %v4327
        %v4368 = vsel %vm4288, %v4154, %v4328
        %v4369 = vsel %vm4289, %v4157, %v4329
        %v4370 = vsel %vm4290, %v4162, %v4330
        %v4371 = vsel %vm4291, %v4165, %v4331
        %v4372 = vsel %vm4292, %v4170, %v4332
        %v4373 = vsel %vm4293, %v4173, %v4333
        %v4374 = vsel %vm4294, %v4178, %v4334
        %v4375 = vsel %vm4295, %v4181, %v4335
        %v4376 = vsel %vm4296, %v4186, %v4336
        %v4377 = vsel %vm4297, %v4189, %v4337
        %v4378 = vsel %vm4298, %v4194, %v4338
        %v4379 = vsel %vm4299, %v4197, %v4339
        %v4380 = vsel %vm4300, %v4202, %v4340
        %v4381 = vsel %vm4301, %v4205, %v4341
        %v4382 = vsel %vm4302, %v4210, %v4342
        %v4383 = vsel %vm4303, %v4213, %v4343
        %v4384 = vsel %vm4304, %v4218, %v4344
        %v4385 = vsel %vm4305, %v4221, %v4345
        %v4386 = vsel %vm4306, %v4226, %v4346
        %v4387 = vsel %vm4307, %v4229, %v4347
        %v4388 = vsel %vm4308, %v4234, %v4348
        %v4389 = vsel %vm4309, %v4237, %v4349
        %v4390 = vsel %vm4310, %v4242, %v4350
        %v4391 = vsel %vm4311, %v4245, %v4351
        %v4392 = vsel %vm4312, %v4250, %v4352
        %v4393 = vsel %vm4313, %v4253, %v4353
        %v4394 = vsel %vm4314, %v4258, %v4354
        %v4395 = vsel %vm4315, %v4261, %v4355
        %v4396 = vsel %vm4316, %v4266, %v4356
        %v4397 = vsel %vm4317, %v4269, %v4357
        %v4398 = vsel %vm4318, %v4274, %v4358
        %v4399 = vsel %vm4319, %v4277, %v4359
        %v4400 = vpack.c.bf16 %v4361, %v4360
        %v4401 = vpack.c.bf16 %v4363, %v4362
        %v4402 = vpack.c.bf16 %v4365, %v4364
        %v4403 = vpack.c.bf16 %v4367, %v4366
        %v4404 = vpack.c.bf16 %v4369, %v4368
        %v4405 = vpack.c.bf16 %v4371, %v4370
        %v4406 = vpack.c.bf16 %v4373, %v4372
        %v4407 = vpack.c.bf16 %v4375, %v4374
        %v4408 = vpack.c.bf16 %v4377, %v4376
        %v4409 = vpack.c.bf16 %v4379, %v4378
        %v4410 = vpack.c.bf16 %v4381, %v4380
        %v4411 = vpack.c.bf16 %v4383, %v4382
        %v4412 = vpack.c.bf16 %v4385, %v4384
        %v4413 = vpack.c.bf16 %v4387, %v4386
        %v4414 = vpack.c.bf16 %v4389, %v4388
        %v4415 = vpack.c.bf16 %v4391, %v4390
        %v4416 = vpack.c.bf16 %v4393, %v4392
        %v4417 = vpack.c.bf16 %v4395, %v4394
        %v4418 = vpack.c.bf16 %v4397, %v4396
        %v4419 = vpack.c.bf16 %v4399, %v4398
        %s4420 = ssub.s32 %s2367, 2
        %v4421 = vstv %s4420
        %v4422 = vadd.s32 %v4421, 1
        %v4423 = vadd.s32 %v4421, 2
        %v4424 = vadd.s32 %v4421, 3
        %v4425 = vadd.s32 %v4421, 4
        %v4426 = vadd.s32 %v4421, 5
        %v4427 = vadd.s32 %v4421, 6
        %v4428 = vadd.s32 %v4421, 7
        %v4429 = vadd.s32 %v4421, 8
        %v4430 = vadd.s32 %v4421, 9
        %v4431 = vadd.s32 %v4421, 10
        %v4432 = vadd.s32 %v4421, 11
        %v4433 = vadd.s32 %v4421, 12
        %v4434 = vadd.s32 %v4421, 13
        %v4435 = vadd.s32 %v4421, 14
        %v4436 = vadd.s32 %v4421, 15
        %v4437 = vadd.s32 %v4421, 16
        %v4438 = vadd.s32 %v4421, 17
        %v4439 = vadd.s32 %v4421, 18
        %v4440 = vadd.s32 %v4421, 19
        %vm4441 = vcmp.ge.s32.totalorder %v4421, 0
        %vm4442 = vcmp.ge.s32.totalorder %v4422, 0
        %vm4443 = vcmp.ge.s32.totalorder %v4423, 0
        %vm4444 = vcmp.ge.s32.totalorder %v4424, 0
        %vm4445 = vcmp.ge.s32.totalorder %v4425, 0
        %vm4446 = vcmp.ge.s32.totalorder %v4426, 0
        %vm4447 = vcmp.ge.s32.totalorder %v4427, 0
        %vm4448 = vcmp.ge.s32.totalorder %v4428, 0
        %vm4449 = vcmp.ge.s32.totalorder %v4429, 0
        %vm4450 = vcmp.ge.s32.totalorder %v4430, 0
        %vm4451 = vcmp.ge.s32.totalorder %v4431, 0
        %vm4452 = vcmp.ge.s32.totalorder %v4432, 0
        %vm4453 = vcmp.ge.s32.totalorder %v4433, 0
        %vm4454 = vcmp.ge.s32.totalorder %v4434, 0
        %vm4455 = vcmp.ge.s32.totalorder %v4435, 0
        %vm4456 = vcmp.ge.s32.totalorder %v4436, 0
        %vm4457 = vcmp.ge.s32.totalorder %v4437, 0
        %vm4458 = vcmp.ge.s32.totalorder %v4438, 0
        %vm4459 = vcmp.ge.s32.totalorder %v4439, 0
        %vm4460 = vcmp.ge.s32.totalorder %v4440, 0
        %vm4461 = vcmp.lt.s32.totalorder %v4421, 16
        %vm4462 = vcmp.lt.s32.totalorder %v4422, 16
        %vm4463 = vcmp.lt.s32.totalorder %v4423, 16
        %vm4464 = vcmp.lt.s32.totalorder %v4424, 16
        %vm4465 = vcmp.lt.s32.totalorder %v4425, 16
        %vm4466 = vcmp.lt.s32.totalorder %v4426, 16
        %vm4467 = vcmp.lt.s32.totalorder %v4427, 16
        %vm4468 = vcmp.lt.s32.totalorder %v4428, 16
        %vm4469 = vcmp.lt.s32.totalorder %v4429, 16
        %vm4470 = vcmp.lt.s32.totalorder %v4430, 16
        %vm4471 = vcmp.lt.s32.totalorder %v4431, 16
        %vm4472 = vcmp.lt.s32.totalorder %v4432, 16
        %vm4473 = vcmp.lt.s32.totalorder %v4433, 16
        %vm4474 = vcmp.lt.s32.totalorder %v4434, 16
        %vm4475 = vcmp.lt.s32.totalorder %v4435, 16
        %vm4476 = vcmp.lt.s32.totalorder %v4436, 16
        %vm4477 = vcmp.lt.s32.totalorder %v4437, 16
        %vm4478 = vcmp.lt.s32.totalorder %v4438, 16
        %vm4479 = vcmp.lt.s32.totalorder %v4439, 16
        %vm4480 = vcmp.lt.s32.totalorder %v4440, 16
        %vm4481 = vmand %vm4441, %vm4461
        %vm4482 = vmand %vm4442, %vm4462
        %vm4483 = vmand %vm4443, %vm4463
        %vm4484 = vmand %vm4444, %vm4464
        %vm4485 = vmand %vm4445, %vm4465
        %vm4486 = vmand %vm4446, %vm4466
        %vm4487 = vmand %vm4447, %vm4467
        %vm4488 = vmand %vm4448, %vm4468
        %vm4489 = vmand %vm4449, %vm4469
        %vm4490 = vmand %vm4450, %vm4470
        %vm4491 = vmand %vm4451, %vm4471
        %vm4492 = vmand %vm4452, %vm4472
        %vm4493 = vmand %vm4453, %vm4473
        %vm4494 = vmand %vm4454, %vm4474
        %vm4495 = vmand %vm4455, %vm4475
        %vm4496 = vmand %vm4456, %vm4476
        %vm4497 = vmand %vm4457, %vm4477
        %vm4498 = vmand %vm4458, %vm4478
        %vm4499 = vmand %vm4459, %vm4479
        %vm4500 = vmand %vm4460, %vm4480
        %v4501 = vsel %vm4481, 1, 0
        %v4502 = vsel %vm4482, 1, 0
        %v4503 = vsel %vm4483, 1, 0
        %v4504 = vsel %vm4484, 1, 0
        %v4505 = vsel %vm4485, 1, 0
        %v4506 = vsel %vm4486, 1, 0
        %v4507 = vsel %vm4487, 1, 0
        %v4508 = vsel %vm4488, 1, 0
        %v4509 = vsel %vm4489, 1, 0
        %v4510 = vsel %vm4490, 1, 0
        %v4511 = vsel %vm4491, 1, 0
        %v4512 = vsel %vm4492, 1, 0
        %v4513 = vsel %vm4493, 1, 0
        %v4514 = vsel %vm4494, 1, 0
        %v4515 = vsel %vm4495, 1, 0
        %v4516 = vsel %vm4496, 1, 0
        %v4517 = vsel %vm4497, 1, 0
        %v4518 = vsel %vm4498, 1, 0
        %v4519 = vsel %vm4499, 1, 0
        %v4520 = vsel %vm4500, 1, 0
        %vm4521 = vcmp.eq.s32.totalorder %v4501, 1
        %vm4522 = vcmp.eq.s32.totalorder %v4502, 1
        %vm4523 = vcmp.eq.s32.totalorder %v4503, 1
        %vm4524 = vcmp.eq.s32.totalorder %v4504, 1
        %vm4525 = vcmp.eq.s32.totalorder %v4505, 1
        %vm4526 = vcmp.eq.s32.totalorder %v4506, 1
        %vm4527 = vcmp.eq.s32.totalorder %v4507, 1
        %vm4528 = vcmp.eq.s32.totalorder %v4508, 1
        %vm4529 = vcmp.eq.s32.totalorder %v4509, 1
        %vm4530 = vcmp.eq.s32.totalorder %v4510, 1
        %vm4531 = vcmp.eq.s32.totalorder %v4511, 1
        %vm4532 = vcmp.eq.s32.totalorder %v4512, 1
        %vm4533 = vcmp.eq.s32.totalorder %v4513, 1
        %vm4534 = vcmp.eq.s32.totalorder %v4514, 1
        %vm4535 = vcmp.eq.s32.totalorder %v4515, 1
        %vm4536 = vcmp.eq.s32.totalorder %v4516, 1
        %vm4537 = vcmp.eq.s32.totalorder %v4517, 1
        %vm4538 = vcmp.eq.s32.totalorder %v4518, 1
        %vm4539 = vcmp.eq.s32.totalorder %v4519, 1
        %vm4540 = vcmp.eq.s32.totalorder %v4520, 1
        %v4541 = vsel %vm4521, %v4400, 0
        %v4542 = vsel %vm4522, %v4401, 0
        %v4543 = vsel %vm4523, %v4402, 0
        %v4544 = vsel %vm4524, %v4403, 0
        %v4545 = vsel %vm4525, %v4404, 0
        %v4546 = vsel %vm4526, %v4405, 0
        %v4547 = vsel %vm4527, %v4406, 0
        %v4548 = vsel %vm4528, %v4407, 0
        %v4549 = vsel %vm4529, %v4408, 0
        %v4550 = vsel %vm4530, %v4409, 0
        %v4551 = vsel %vm4531, %v4410, 0
        %v4552 = vsel %vm4532, %v4411, 0
        %v4553 = vsel %vm4533, %v4412, 0
        %v4554 = vsel %vm4534, %v4413, 0
        %v4555 = vsel %vm4535, %v4414, 0
        %v4556 = vsel %vm4536, %v4415, 0
        %v4557 = vsel %vm4537, %v4416, 0
        %v4558 = vsel %vm4538, %v4417, 0
        %v4559 = vsel %vm4539, %v4418, 0
        %v4560 = vsel %vm4540, %v4419, 0
        %v4562 = vshrl.u32 %v4541, 16
        %v4564 = vrot.slane %v4562, 7
        %v4565 = vshll.u32 %v4541, 16
        %v4567 = vor.u32 %v4564, %v4565
        %v4569 = vshrl.u32 %v4542, 16
        %v4571 = vrot.slane %v4569, 7
        %v4572 = vshll.u32 %v4542, 16
        %v4574 = vor.u32 %v4571, %v4572
        %v4576 = vshrl.u32 %v4543, 16
        %v4578 = vrot.slane %v4576, 7
        %v4579 = vshll.u32 %v4543, 16
        %v4581 = vor.u32 %v4578, %v4579
        %v4583 = vshrl.u32 %v4544, 16
        %v4585 = vrot.slane %v4583, 7
        %v4586 = vshll.u32 %v4544, 16
        %v4588 = vor.u32 %v4585, %v4586
        %v4590 = vshrl.u32 %v4545, 16
        %v4592 = vrot.slane %v4590, 7
        %v4593 = vshll.u32 %v4545, 16
        %v4595 = vor.u32 %v4592, %v4593
        %v4597 = vshrl.u32 %v4546, 16
        %v4599 = vrot.slane %v4597, 7
        %v4600 = vshll.u32 %v4546, 16
        %v4602 = vor.u32 %v4599, %v4600
        %v4604 = vshrl.u32 %v4547, 16
        %v4606 = vrot.slane %v4604, 7
        %v4607 = vshll.u32 %v4547, 16
        %v4609 = vor.u32 %v4606, %v4607
        %v4611 = vshrl.u32 %v4548, 16
        %v4613 = vrot.slane %v4611, 7
        %v4614 = vshll.u32 %v4548, 16
        %v4616 = vor.u32 %v4613, %v4614
        %v4618 = vshrl.u32 %v4549, 16
        %v4620 = vrot.slane %v4618, 7
        %v4621 = vshll.u32 %v4549, 16
        %v4623 = vor.u32 %v4620, %v4621
        %v4625 = vshrl.u32 %v4550, 16
        %v4627 = vrot.slane %v4625, 7
        %v4628 = vshll.u32 %v4550, 16
        %v4630 = vor.u32 %v4627, %v4628
        %v4632 = vshrl.u32 %v4551, 16
        %v4634 = vrot.slane %v4632, 7
        %v4635 = vshll.u32 %v4551, 16
        %v4637 = vor.u32 %v4634, %v4635
        %v4639 = vshrl.u32 %v4552, 16
        %v4641 = vrot.slane %v4639, 7
        %v4642 = vshll.u32 %v4552, 16
        %v4644 = vor.u32 %v4641, %v4642
        %v4646 = vshrl.u32 %v4553, 16
        %v4648 = vrot.slane %v4646, 7
        %v4649 = vshll.u32 %v4553, 16
        %v4651 = vor.u32 %v4648, %v4649
        %v4653 = vshrl.u32 %v4554, 16
        %v4655 = vrot.slane %v4653, 7
        %v4656 = vshll.u32 %v4554, 16
        %v4658 = vor.u32 %v4655, %v4656
        %v4660 = vshrl.u32 %v4555, 16
        %v4662 = vrot.slane %v4660, 7
        %v4663 = vshll.u32 %v4555, 16
        %v4665 = vor.u32 %v4662, %v4663
        %v4667 = vshrl.u32 %v4556, 16
        %v4669 = vrot.slane %v4667, 7
        %v4670 = vshll.u32 %v4556, 16
        %v4672 = vor.u32 %v4669, %v4670
        %v4674 = vshrl.u32 %v4557, 16
        %v4676 = vrot.slane %v4674, 7
        %v4677 = vshll.u32 %v4557, 16
        %v4679 = vor.u32 %v4676, %v4677
        %v4681 = vshrl.u32 %v4558, 16
        %v4683 = vrot.slane %v4681, 7
        %v4684 = vshll.u32 %v4558, 16
        %v4686 = vor.u32 %v4683, %v4684
        %v4688 = vshrl.u32 %v4559, 16
        %v4690 = vrot.slane %v4688, 7
        %v4691 = vshll.u32 %v4559, 16
        %v4693 = vor.u32 %v4690, %v4691
        %v4695 = vshrl.u32 %v4560, 16
        %v4697 = vrot.slane %v4695, 7
        %v4698 = vshll.u32 %v4560, 16
        %v4700 = vor.u32 %v4697, %v4698
        %v4741 = vsel %vm2723, 0, %v4567
        %v4742 = vsel %vm2723, 0, %v4574
        %v4743 = vsel %vm2723, 0, %v4581
        %v4744 = vsel %vm2723, 0, %v4588
        %v4745 = vsel %vm2723, 0, %v4595
        %v4746 = vsel %vm2723, 0, %v4602
        %v4747 = vsel %vm2723, 0, %v4609
        %v4748 = vsel %vm2723, 0, %v4616
        %v4749 = vsel %vm2723, 0, %v4623
        %v4750 = vsel %vm2723, 0, %v4630
        %v4751 = vsel %vm2723, 0, %v4637
        %v4752 = vsel %vm2723, 0, %v4644
        %v4753 = vsel %vm2723, 0, %v4651
        %v4754 = vsel %vm2723, 0, %v4658
        %v4755 = vsel %vm2723, 0, %v4665
        %v4756 = vsel %vm2723, 0, %v4672
        %v4757 = vsel %vm2723, 0, %v4679
        %v4758 = vsel %vm2723, 0, %v4686
        %v4759 = vsel %vm2723, 0, %v4693
        %v4760 = vsel %vm2723, 0, %v4700
        %v4761 = vsel %vm2723, %v4564, 0
        %v4762 = vsel %vm2723, %v4571, 0
        %v4763 = vsel %vm2723, %v4578, 0
        %v4764 = vsel %vm2723, %v4585, 0
        %v4765 = vsel %vm2723, %v4592, 0
        %v4766 = vsel %vm2723, %v4599, 0
        %v4767 = vsel %vm2723, %v4606, 0
        %v4768 = vsel %vm2723, %v4613, 0
        %v4769 = vsel %vm2723, %v4620, 0
        %v4770 = vsel %vm2723, %v4627, 0
        %v4771 = vsel %vm2723, %v4634, 0
        %v4772 = vsel %vm2723, %v4641, 0
        %v4773 = vsel %vm2723, %v4648, 0
        %v4774 = vsel %vm2723, %v4655, 0
        %v4775 = vsel %vm2723, %v4662, 0
        %v4776 = vsel %vm2723, %v4669, 0
        %v4777 = vsel %vm2723, %v4676, 0
        %v4778 = vsel %vm2723, %v4683, 0
        %v4779 = vsel %vm2723, %v4690, 0
        %v4780 = vsel %vm2723, %v4697, 0
        %v4782 = vshrl.u32 %v4741, 16
        %v4784 = vshll.u32 %v4741, 16
        %v4786 = vrot.slane %v4784, 1
        %v4787 = vor.u32 %v4782, %v4786
        %v4789 = vshll.u32 %v4761, 16
        %v4791 = vrot.slane %v4789, 1
        %v4792 = vsel %vm822, %v4787, %v4791
        %v4794 = vshrl.u32 %v4742, 16
        %v4796 = vshll.u32 %v4742, 16
        %v4798 = vrot.slane %v4796, 1
        %v4799 = vor.u32 %v4794, %v4798
        %v4801 = vshll.u32 %v4762, 16
        %v4803 = vrot.slane %v4801, 1
        %v4804 = vsel %vm822, %v4799, %v4803
        %v4806 = vshrl.u32 %v4743, 16
        %v4808 = vshll.u32 %v4743, 16
        %v4810 = vrot.slane %v4808, 1
        %v4811 = vor.u32 %v4806, %v4810
        %v4813 = vshll.u32 %v4763, 16
        %v4815 = vrot.slane %v4813, 1
        %v4816 = vsel %vm822, %v4811, %v4815
        %v4818 = vshrl.u32 %v4744, 16
        %v4820 = vshll.u32 %v4744, 16
        %v4822 = vrot.slane %v4820, 1
        %v4823 = vor.u32 %v4818, %v4822
        %v4825 = vshll.u32 %v4764, 16
        %v4827 = vrot.slane %v4825, 1
        %v4828 = vsel %vm822, %v4823, %v4827
        %v4830 = vshrl.u32 %v4745, 16
        %v4832 = vshll.u32 %v4745, 16
        %v4834 = vrot.slane %v4832, 1
        %v4835 = vor.u32 %v4830, %v4834
        %v4837 = vshll.u32 %v4765, 16
        %v4839 = vrot.slane %v4837, 1
        %v4840 = vsel %vm822, %v4835, %v4839
        %v4842 = vshrl.u32 %v4746, 16
        %v4844 = vshll.u32 %v4746, 16
        %v4846 = vrot.slane %v4844, 1
        %v4847 = vor.u32 %v4842, %v4846
        %v4849 = vshll.u32 %v4766, 16
        %v4851 = vrot.slane %v4849, 1
        %v4852 = vsel %vm822, %v4847, %v4851
        %v4854 = vshrl.u32 %v4747, 16
        %v4856 = vshll.u32 %v4747, 16
        %v4858 = vrot.slane %v4856, 1
        %v4859 = vor.u32 %v4854, %v4858
        %v4861 = vshll.u32 %v4767, 16
        %v4863 = vrot.slane %v4861, 1
        %v4864 = vsel %vm822, %v4859, %v4863
        %v4866 = vshrl.u32 %v4748, 16
        %v4868 = vshll.u32 %v4748, 16
        %v4870 = vrot.slane %v4868, 1
        %v4871 = vor.u32 %v4866, %v4870
        %v4873 = vshll.u32 %v4768, 16
        %v4875 = vrot.slane %v4873, 1
        %v4876 = vsel %vm822, %v4871, %v4875
        %v4878 = vshrl.u32 %v4749, 16
        %v4880 = vshll.u32 %v4749, 16
        %v4882 = vrot.slane %v4880, 1
        %v4883 = vor.u32 %v4878, %v4882
        %v4885 = vshll.u32 %v4769, 16
        %v4887 = vrot.slane %v4885, 1
        %v4888 = vsel %vm822, %v4883, %v4887
        %v4890 = vshrl.u32 %v4750, 16
        %v4892 = vshll.u32 %v4750, 16
        %v4894 = vrot.slane %v4892, 1
        %v4895 = vor.u32 %v4890, %v4894
        %v4897 = vshll.u32 %v4770, 16
        %v4899 = vrot.slane %v4897, 1
        %v4900 = vsel %vm822, %v4895, %v4899
        %v4902 = vshrl.u32 %v4751, 16
        %v4904 = vshll.u32 %v4751, 16
        %v4906 = vrot.slane %v4904, 1
        %v4907 = vor.u32 %v4902, %v4906
        %v4909 = vshll.u32 %v4771, 16
        %v4911 = vrot.slane %v4909, 1
        %v4912 = vsel %vm822, %v4907, %v4911
        %v4914 = vshrl.u32 %v4752, 16
        %v4916 = vshll.u32 %v4752, 16
        %v4918 = vrot.slane %v4916, 1
        %v4919 = vor.u32 %v4914, %v4918
        %v4921 = vshll.u32 %v4772, 16
        %v4923 = vrot.slane %v4921, 1
        %v4924 = vsel %vm822, %v4919, %v4923
        %v4926 = vshrl.u32 %v4753, 16
        %v4928 = vshll.u32 %v4753, 16
        %v4930 = vrot.slane %v4928, 1
        %v4931 = vor.u32 %v4926, %v4930
        %v4933 = vshll.u32 %v4773, 16
        %v4935 = vrot.slane %v4933, 1
        %v4936 = vsel %vm822, %v4931, %v4935
        %v4938 = vshrl.u32 %v4754, 16
        %v4940 = vshll.u32 %v4754, 16
        %v4942 = vrot.slane %v4940, 1
        %v4943 = vor.u32 %v4938, %v4942
        %v4945 = vshll.u32 %v4774, 16
        %v4947 = vrot.slane %v4945, 1
        %v4948 = vsel %vm822, %v4943, %v4947
        %v4950 = vshrl.u32 %v4755, 16
        %v4952 = vshll.u32 %v4755, 16
        %v4954 = vrot.slane %v4952, 1
        %v4955 = vor.u32 %v4950, %v4954
        %v4957 = vshll.u32 %v4775, 16
        %v4959 = vrot.slane %v4957, 1
        %v4960 = vsel %vm822, %v4955, %v4959
        %v4962 = vshrl.u32 %v4756, 16
        %v4964 = vshll.u32 %v4756, 16
        %v4966 = vrot.slane %v4964, 1
        %v4967 = vor.u32 %v4962, %v4966
        %v4969 = vshll.u32 %v4776, 16
        %v4971 = vrot.slane %v4969, 1
        %v4972 = vsel %vm822, %v4967, %v4971
        %v4974 = vshrl.u32 %v4757, 16
        %v4976 = vshll.u32 %v4757, 16
        %v4978 = vrot.slane %v4976, 1
        %v4979 = vor.u32 %v4974, %v4978
        %v4981 = vshll.u32 %v4777, 16
        %v4983 = vrot.slane %v4981, 1
        %v4984 = vsel %vm822, %v4979, %v4983
        %v4986 = vshrl.u32 %v4758, 16
        %v4988 = vshll.u32 %v4758, 16
        %v4990 = vrot.slane %v4988, 1
        %v4991 = vor.u32 %v4986, %v4990
        %v4993 = vshll.u32 %v4778, 16
        %v4995 = vrot.slane %v4993, 1
        %v4996 = vsel %vm822, %v4991, %v4995
        %4997 = vrot.lane.b32.xlu0 %v4792, 32
        %v4998 = vpop.permute.xlu0 %4997
        %4999 = vrot.lane.b32.xlu0 %v4804, 32
        %v5000 = vpop.permute.xlu0 %4999
        %5001 = vrot.lane.b32.xlu0 %v4816, 32
        %v5002 = vpop.permute.xlu0 %5001
        %5003 = vrot.lane.b32.xlu0 %v4828, 32
        %v5004 = vpop.permute.xlu0 %5003
        %5005 = vrot.lane.b32.xlu0 %v4840, 32
        %v5006 = vpop.permute.xlu0 %5005
        %5007 = vrot.lane.b32.xlu0 %v4852, 32
        %v5008 = vpop.permute.xlu0 %5007
        %5009 = vrot.lane.b32.xlu0 %v4864, 32
        %v5010 = vpop.permute.xlu0 %5009
        %5011 = vrot.lane.b32.xlu0 %v4876, 32
        %v5012 = vpop.permute.xlu0 %5011
        %5013 = vrot.lane.b32.xlu0 %v4888, 32
        %v5014 = vpop.permute.xlu0 %5013
        %5015 = vrot.lane.b32.xlu0 %v4900, 32
        %v5016 = vpop.permute.xlu0 %5015
        %5017 = vrot.lane.b32.xlu0 %v4912, 32
        %v5018 = vpop.permute.xlu0 %5017
        %5019 = vrot.lane.b32.xlu0 %v4924, 32
        %v5020 = vpop.permute.xlu0 %5019
        %5021 = vrot.lane.b32.xlu0 %v4936, 32
        %v5022 = vpop.permute.xlu0 %5021
        %5023 = vrot.lane.b32.xlu0 %v4948, 32
        %v5024 = vpop.permute.xlu0 %5023
        %5025 = vrot.lane.b32.xlu0 %v4960, 32
        %v5026 = vpop.permute.xlu0 %5025
        %5027 = vrot.lane.b32.xlu0 %v4972, 32
        %v5028 = vpop.permute.xlu0 %5027
        %5029 = vrot.lane.b32.xlu0 %v4984, 32
        %v5030 = vpop.permute.xlu0 %5029
        %5031 = vrot.lane.b32.xlu0 %v4996, 32
        %v5032 = vpop.permute.xlu0 %5031
        %v5069 = vrot.slane %v4741, 1
        %v5070 = vrot.slane %v4761, 1
        %v5071 = vsel %vm1131, %v5069, %v5070
        %v5072 = vrot.slane %v4742, 1
        %v5073 = vrot.slane %v4762, 1
        %v5074 = vsel %vm1131, %v5072, %v5073
        %v5075 = vrot.slane %v4743, 1
        %v5076 = vrot.slane %v4763, 1
        %v5077 = vsel %vm1131, %v5075, %v5076
        %v5078 = vrot.slane %v4744, 1
        %v5079 = vrot.slane %v4764, 1
        %v5080 = vsel %vm1131, %v5078, %v5079
        %v5081 = vrot.slane %v4745, 1
        %v5082 = vrot.slane %v4765, 1
        %v5083 = vsel %vm1131, %v5081, %v5082
        %v5084 = vrot.slane %v4746, 1
        %v5085 = vrot.slane %v4766, 1
        %v5086 = vsel %vm1131, %v5084, %v5085
        %v5087 = vrot.slane %v4747, 1
        %v5088 = vrot.slane %v4767, 1
        %v5089 = vsel %vm1131, %v5087, %v5088
        %v5090 = vrot.slane %v4748, 1
        %v5091 = vrot.slane %v4768, 1
        %v5092 = vsel %vm1131, %v5090, %v5091
        %v5093 = vrot.slane %v4749, 1
        %v5094 = vrot.slane %v4769, 1
        %v5095 = vsel %vm1131, %v5093, %v5094
        %v5096 = vrot.slane %v4750, 1
        %v5097 = vrot.slane %v4770, 1
        %v5098 = vsel %vm1131, %v5096, %v5097
        %v5099 = vrot.slane %v4751, 1
        %v5100 = vrot.slane %v4771, 1
        %v5101 = vsel %vm1131, %v5099, %v5100
        %v5102 = vrot.slane %v4752, 1
        %v5103 = vrot.slane %v4772, 1
        %v5104 = vsel %vm1131, %v5102, %v5103
        %v5105 = vrot.slane %v4753, 1
        %v5106 = vrot.slane %v4773, 1
        %v5107 = vsel %vm1131, %v5105, %v5106
        %v5108 = vrot.slane %v4754, 1
        %v5109 = vrot.slane %v4774, 1
        %v5110 = vsel %vm1131, %v5108, %v5109
        %v5111 = vrot.slane %v4755, 1
        %v5112 = vrot.slane %v4775, 1
        %v5113 = vsel %vm1131, %v5111, %v5112
        %v5114 = vrot.slane %v4756, 1
        %v5115 = vrot.slane %v4776, 1
        %v5116 = vsel %vm1131, %v5114, %v5115
        %v5117 = vrot.slane %v4757, 1
        %v5118 = vrot.slane %v4777, 1
        %v5119 = vsel %vm1131, %v5117, %v5118
        %v5120 = vrot.slane %v4758, 1
        %v5121 = vrot.slane %v4778, 1
        %v5122 = vsel %vm1131, %v5120, %v5121
        %5123 = vrot.lane.b32.xlu0 %v5071, 64
        %v5124 = vpop.permute.xlu0 %5123
        %5125 = vrot.lane.b32.xlu0 %v5074, 64
        %v5126 = vpop.permute.xlu0 %5125
        %5127 = vrot.lane.b32.xlu0 %v5077, 64
        %v5128 = vpop.permute.xlu0 %5127
        %5129 = vrot.lane.b32.xlu0 %v5080, 64
        %v5130 = vpop.permute.xlu0 %5129
        %5131 = vrot.lane.b32.xlu0 %v5083, 64
        %v5132 = vpop.permute.xlu0 %5131
        %5133 = vrot.lane.b32.xlu0 %v5086, 64
        %v5134 = vpop.permute.xlu0 %5133
        %5135 = vrot.lane.b32.xlu0 %v5089, 64
        %v5136 = vpop.permute.xlu0 %5135
        %5137 = vrot.lane.b32.xlu0 %v5092, 64
        %v5138 = vpop.permute.xlu0 %5137
        %5139 = vrot.lane.b32.xlu0 %v5095, 64
        %v5140 = vpop.permute.xlu0 %5139
        %5141 = vrot.lane.b32.xlu0 %v5098, 64
        %v5142 = vpop.permute.xlu0 %5141
        %5143 = vrot.lane.b32.xlu0 %v5101, 64
        %v5144 = vpop.permute.xlu0 %5143
        %5145 = vrot.lane.b32.xlu0 %v5104, 64
        %v5146 = vpop.permute.xlu0 %5145
        %5147 = vrot.lane.b32.xlu0 %v5107, 64
        %v5148 = vpop.permute.xlu0 %5147
        %5149 = vrot.lane.b32.xlu0 %v5110, 64
        %v5150 = vpop.permute.xlu0 %5149
        %5151 = vrot.lane.b32.xlu0 %v5113, 64
        %v5152 = vpop.permute.xlu0 %5151
        %5153 = vrot.lane.b32.xlu0 %v5116, 64
        %v5154 = vpop.permute.xlu0 %5153
        %5155 = vrot.lane.b32.xlu0 %v5119, 64
        %v5156 = vpop.permute.xlu0 %5155
        %5157 = vrot.lane.b32.xlu0 %v5122, 64
        %v5158 = vpop.permute.xlu0 %5157
        %5160 = vrot.lane.b32.xlu0 %v4742, 96
        %v5161 = vpop.permute.xlu0 %5160
        %5162 = vrot.lane.b32.xlu0 %v4743, 96
        %v5163 = vpop.permute.xlu0 %5162
        %5164 = vrot.lane.b32.xlu0 %v4744, 96
        %v5165 = vpop.permute.xlu0 %5164
        %5166 = vrot.lane.b32.xlu0 %v4745, 96
        %v5167 = vpop.permute.xlu0 %5166
        %5168 = vrot.lane.b32.xlu0 %v4746, 96
        %v5169 = vpop.permute.xlu0 %5168
        %5170 = vrot.lane.b32.xlu0 %v4747, 96
        %v5171 = vpop.permute.xlu0 %5170
        %5172 = vrot.lane.b32.xlu0 %v4748, 96
        %v5173 = vpop.permute.xlu0 %5172
        %5174 = vrot.lane.b32.xlu0 %v4749, 96
        %v5175 = vpop.permute.xlu0 %5174
        %5176 = vrot.lane.b32.xlu0 %v4750, 96
        %v5177 = vpop.permute.xlu0 %5176
        %5178 = vrot.lane.b32.xlu0 %v4751, 96
        %v5179 = vpop.permute.xlu0 %5178
        %5180 = vrot.lane.b32.xlu0 %v4752, 96
        %v5181 = vpop.permute.xlu0 %5180
        %5182 = vrot.lane.b32.xlu0 %v4753, 96
        %v5183 = vpop.permute.xlu0 %5182
        %5184 = vrot.lane.b32.xlu0 %v4754, 96
        %v5185 = vpop.permute.xlu0 %5184
        %5186 = vrot.lane.b32.xlu0 %v4755, 96
        %v5187 = vpop.permute.xlu0 %5186
        %5188 = vrot.lane.b32.xlu0 %v4756, 96
        %v5189 = vpop.permute.xlu0 %5188
        %5190 = vrot.lane.b32.xlu0 %v4757, 96
        %v5191 = vpop.permute.xlu0 %5190
        %5192 = vrot.lane.b32.xlu0 %v4758, 96
        %v5193 = vpop.permute.xlu0 %5192
        %5194 = vrot.lane.b32.xlu0 %v4759, 96
        %v5195 = vpop.permute.xlu0 %5194
        %v5197 = vshrl.u32 %v4759, 16
        %v5199 = vshll.u32 %v4759, 16
        %v5201 = vrot.slane %v5199, 1
        %v5202 = vor.u32 %v5197, %v5201
        %v5204 = vshll.u32 %v4779, 16
        %v5206 = vrot.slane %v5204, 1
        %v5207 = vsel %vm822, %v5202, %v5206
        %v5209 = vrot.slane %v4759, 1
        %v5210 = vrot.slane %v4779, 1
        %v5211 = vsel %vm1131, %v5209, %v5210
        %5212 = vrot.lane.b32.xlu0 %v5074, 32
        %v5213 = vpop.permute.xlu0 %5212
        %5214 = vrot.lane.b32.xlu0 %v5077, 32
        %v5215 = vpop.permute.xlu0 %5214
        %5216 = vrot.lane.b32.xlu0 %v5080, 32
        %v5217 = vpop.permute.xlu0 %5216
        %5218 = vrot.lane.b32.xlu0 %v5083, 32
        %v5219 = vpop.permute.xlu0 %5218
        %5220 = vrot.lane.b32.xlu0 %v5086, 32
        %v5221 = vpop.permute.xlu0 %5220
        %5222 = vrot.lane.b32.xlu0 %v5089, 32
        %v5223 = vpop.permute.xlu0 %5222
        %5224 = vrot.lane.b32.xlu0 %v5092, 32
        %v5225 = vpop.permute.xlu0 %5224
        %5226 = vrot.lane.b32.xlu0 %v5095, 32
        %v5227 = vpop.permute.xlu0 %5226
        %5228 = vrot.lane.b32.xlu0 %v5098, 32
        %v5229 = vpop.permute.xlu0 %5228
        %5230 = vrot.lane.b32.xlu0 %v5101, 32
        %v5231 = vpop.permute.xlu0 %5230
        %5232 = vrot.lane.b32.xlu0 %v5104, 32
        %v5233 = vpop.permute.xlu0 %5232
        %5234 = vrot.lane.b32.xlu0 %v5107, 32
        %v5235 = vpop.permute.xlu0 %5234
        %5236 = vrot.lane.b32.xlu0 %v5110, 32
        %v5237 = vpop.permute.xlu0 %5236
        %5238 = vrot.lane.b32.xlu0 %v5113, 32
        %v5239 = vpop.permute.xlu0 %5238
        %5240 = vrot.lane.b32.xlu0 %v5116, 32
        %v5241 = vpop.permute.xlu0 %5240
        %5242 = vrot.lane.b32.xlu0 %v5119, 32
        %v5243 = vpop.permute.xlu0 %5242
        %5244 = vrot.lane.b32.xlu0 %v5122, 32
        %v5245 = vpop.permute.xlu0 %5244
        %5246 = vrot.lane.b32.xlu0 %v5211, 32
        %v5247 = vpop.permute.xlu0 %5246
        %5249 = vrot.lane.b32.xlu0 %v4743, 64
        %v5250 = vpop.permute.xlu0 %5249
        %5251 = vrot.lane.b32.xlu0 %v4744, 64
        %v5252 = vpop.permute.xlu0 %5251
        %5253 = vrot.lane.b32.xlu0 %v4745, 64
        %v5254 = vpop.permute.xlu0 %5253
        %5255 = vrot.lane.b32.xlu0 %v4746, 64
        %v5256 = vpop.permute.xlu0 %5255
        %5257 = vrot.lane.b32.xlu0 %v4747, 64
        %v5258 = vpop.permute.xlu0 %5257
        %5259 = vrot.lane.b32.xlu0 %v4748, 64
        %v5260 = vpop.permute.xlu0 %5259
        %5261 = vrot.lane.b32.xlu0 %v4749, 64
        %v5262 = vpop.permute.xlu0 %5261
        %5263 = vrot.lane.b32.xlu0 %v4750, 64
        %v5264 = vpop.permute.xlu0 %5263
        %5265 = vrot.lane.b32.xlu0 %v4751, 64
        %v5266 = vpop.permute.xlu0 %5265
        %5267 = vrot.lane.b32.xlu0 %v4752, 64
        %v5268 = vpop.permute.xlu0 %5267
        %5269 = vrot.lane.b32.xlu0 %v4753, 64
        %v5270 = vpop.permute.xlu0 %5269
        %5271 = vrot.lane.b32.xlu0 %v4754, 64
        %v5272 = vpop.permute.xlu0 %5271
        %5273 = vrot.lane.b32.xlu0 %v4755, 64
        %v5274 = vpop.permute.xlu0 %5273
        %5275 = vrot.lane.b32.xlu0 %v4756, 64
        %v5276 = vpop.permute.xlu0 %5275
        %5277 = vrot.lane.b32.xlu0 %v4757, 64
        %v5278 = vpop.permute.xlu0 %5277
        %5279 = vrot.lane.b32.xlu0 %v4758, 64
        %v5280 = vpop.permute.xlu0 %5279
        %5281 = vrot.lane.b32.xlu0 %v4759, 64
        %v5282 = vpop.permute.xlu0 %5281
        %5283 = vrot.lane.b32.xlu0 %v4760, 64
        %v5284 = vpop.permute.xlu0 %5283
        %v5286 = vshrl.u32 %v4760, 16
        %v5288 = vshll.u32 %v4760, 16
        %v5290 = vrot.slane %v5288, 1
        %v5291 = vor.u32 %v5286, %v5290
        %v5293 = vshll.u32 %v4780, 16
        %v5295 = vrot.slane %v5293, 1
        %v5296 = vsel %vm822, %v5291, %v5295
        %5297 = vrot.lane.b32.xlu0 %v4816, 96
        %v5298 = vpop.permute.xlu0 %5297
        %5299 = vrot.lane.b32.xlu0 %v4828, 96
        %v5300 = vpop.permute.xlu0 %5299
        %5301 = vrot.lane.b32.xlu0 %v4840, 96
        %v5302 = vpop.permute.xlu0 %5301
        %5303 = vrot.lane.b32.xlu0 %v4852, 96
        %v5304 = vpop.permute.xlu0 %5303
        %5305 = vrot.lane.b32.xlu0 %v4864, 96
        %v5306 = vpop.permute.xlu0 %5305
        %5307 = vrot.lane.b32.xlu0 %v4876, 96
        %v5308 = vpop.permute.xlu0 %5307
        %5309 = vrot.lane.b32.xlu0 %v4888, 96
        %v5310 = vpop.permute.xlu0 %5309
        %5311 = vrot.lane.b32.xlu0 %v4900, 96
        %v5312 = vpop.permute.xlu0 %5311
        %5313 = vrot.lane.b32.xlu0 %v4912, 96
        %v5314 = vpop.permute.xlu0 %5313
        %5315 = vrot.lane.b32.xlu0 %v4924, 96
        %v5316 = vpop.permute.xlu0 %5315
        %5317 = vrot.lane.b32.xlu0 %v4936, 96
        %v5318 = vpop.permute.xlu0 %5317
        %5319 = vrot.lane.b32.xlu0 %v4948, 96
        %v5320 = vpop.permute.xlu0 %5319
        %5321 = vrot.lane.b32.xlu0 %v4960, 96
        %v5322 = vpop.permute.xlu0 %5321
        %5323 = vrot.lane.b32.xlu0 %v4972, 96
        %v5324 = vpop.permute.xlu0 %5323
        %5325 = vrot.lane.b32.xlu0 %v4984, 96
        %v5326 = vpop.permute.xlu0 %5325
        %5327 = vrot.lane.b32.xlu0 %v4996, 96
        %v5328 = vpop.permute.xlu0 %5327
        %5329 = vrot.lane.b32.xlu0 %v5207, 96
        %v5330 = vpop.permute.xlu0 %5329
        %5331 = vrot.lane.b32.xlu0 %v5296, 96
        %v5332 = vpop.permute.xlu0 %5331
        %v5334 = vrot.slane %v4760, 1
        %v5335 = vrot.slane %v4780, 1
        %v5336 = vsel %vm1131, %v5334, %v5335
        %v5338 = vsel %vm1687, %v4741, %v4998
        %v5340 = vsel %vm1687, %v4742, %v5000
        %v5342 = vsel %vm1687, %v4743, %v5002
        %v5344 = vsel %vm1687, %v4744, %v5004
        %v5346 = vsel %vm1687, %v4745, %v5006
        %v5348 = vsel %vm1687, %v4746, %v5008
        %v5350 = vsel %vm1687, %v4747, %v5010
        %v5352 = vsel %vm1687, %v4748, %v5012
        %v5354 = vsel %vm1687, %v4749, %v5014
        %v5356 = vsel %vm1687, %v4750, %v5016
        %v5358 = vsel %vm1687, %v4751, %v5018
        %v5360 = vsel %vm1687, %v4752, %v5020
        %v5362 = vsel %vm1687, %v4753, %v5022
        %v5364 = vsel %vm1687, %v4754, %v5024
        %v5366 = vsel %vm1687, %v4755, %v5026
        %v5368 = vsel %vm1687, %v4756, %v5028
        %v5370 = vsel %vm1687, %v4757, %v5030
        %v5372 = vsel %vm1687, %v4758, %v5032
        %v5374 = vsel %vm1867, %v5338, %v5124
        %v5376 = vsel %vm1867, %v5340, %v5126
        %v5378 = vsel %vm1867, %v5342, %v5128
        %v5380 = vsel %vm1867, %v5344, %v5130
        %v5382 = vsel %vm1867, %v5346, %v5132
        %v5384 = vsel %vm1867, %v5348, %v5134
        %v5386 = vsel %vm1867, %v5350, %v5136
        %v5388 = vsel %vm1867, %v5352, %v5138
        %v5390 = vsel %vm1867, %v5354, %v5140
        %v5392 = vsel %vm1867, %v5356, %v5142
        %v5394 = vsel %vm1867, %v5358, %v5144
        %v5396 = vsel %vm1867, %v5360, %v5146
        %v5398 = vsel %vm1867, %v5362, %v5148
        %v5400 = vsel %vm1867, %v5364, %v5150
        %v5402 = vsel %vm1867, %v5366, %v5152
        %v5404 = vsel %vm1867, %v5368, %v5154
        %v5406 = vsel %vm1867, %v5370, %v5156
        %v5408 = vsel %vm1867, %v5372, %v5158
        %v5410 = vsel %vm3462, %v5374, %v5161
        %v5413 = vsel %vm3462, %v5376, %v5163
        %v5416 = vsel %vm3462, %v5378, %v5165
        %v5419 = vsel %vm3462, %v5380, %v5167
        %v5422 = vsel %vm3462, %v5382, %v5169
        %v5425 = vsel %vm3462, %v5384, %v5171
        %v5428 = vsel %vm3462, %v5386, %v5173
        %v5431 = vsel %vm3462, %v5388, %v5175
        %v5434 = vsel %vm3462, %v5390, %v5177
        %v5437 = vsel %vm3462, %v5392, %v5179
        %v5440 = vsel %vm3462, %v5394, %v5181
        %v5443 = vsel %vm3462, %v5396, %v5183
        %v5446 = vsel %vm3462, %v5398, %v5185
        %v5449 = vsel %vm3462, %v5400, %v5187
        %v5452 = vsel %vm3462, %v5402, %v5189
        %v5455 = vsel %vm3462, %v5404, %v5191
        %v5458 = vsel %vm3462, %v5406, %v5193
        %v5461 = vsel %vm3462, %v5408, %v5195
        %v5465 = vsel %vm1687, %v4804, %v5213
        %v5468 = vsel %vm1687, %v4816, %v5215
        %v5471 = vsel %vm1687, %v4828, %v5217
        %v5474 = vsel %vm1687, %v4840, %v5219
        %v5477 = vsel %vm1687, %v4852, %v5221
        %v5480 = vsel %vm1687, %v4864, %v5223
        %v5483 = vsel %vm1687, %v4876, %v5225
        %v5486 = vsel %vm1687, %v4888, %v5227
        %v5489 = vsel %vm1687, %v4900, %v5229
        %v5492 = vsel %vm1687, %v4912, %v5231
        %v5495 = vsel %vm1687, %v4924, %v5233
        %v5498 = vsel %vm1687, %v4936, %v5235
        %v5501 = vsel %vm1687, %v4948, %v5237
        %v5504 = vsel %vm1687, %v4960, %v5239
        %v5507 = vsel %vm1687, %v4972, %v5241
        %v5510 = vsel %vm1687, %v4984, %v5243
        %v5513 = vsel %vm1687, %v4996, %v5245
        %v5516 = vsel %vm1687, %v5207, %v5247
        %v5518 = vsel %vm1867, %v5465, %v5250
        %v5520 = vsel %vm1867, %v5468, %v5252
        %v5522 = vsel %vm1867, %v5471, %v5254
        %v5524 = vsel %vm1867, %v5474, %v5256
        %v5526 = vsel %vm1867, %v5477, %v5258
        %v5528 = vsel %vm1867, %v5480, %v5260
        %v5530 = vsel %vm1867, %v5483, %v5262
        %v5532 = vsel %vm1867, %v5486, %v5264
        %v5534 = vsel %vm1867, %v5489, %v5266
        %v5536 = vsel %vm1867, %v5492, %v5268
        %v5538 = vsel %vm1867, %v5495, %v5270
        %v5540 = vsel %vm1867, %v5498, %v5272
        %v5542 = vsel %vm1867, %v5501, %v5274
        %v5544 = vsel %vm1867, %v5504, %v5276
        %v5546 = vsel %vm1867, %v5507, %v5278
        %v5548 = vsel %vm1867, %v5510, %v5280
        %v5550 = vsel %vm1867, %v5513, %v5282
        %v5552 = vsel %vm1867, %v5516, %v5284
        %v5554 = vsel %vm3462, %v5518, %v5298
        %v5557 = vsel %vm3462, %v5520, %v5300
        %v5560 = vsel %vm3462, %v5522, %v5302
        %v5563 = vsel %vm3462, %v5524, %v5304
        %v5566 = vsel %vm3462, %v5526, %v5306
        %v5569 = vsel %vm3462, %v5528, %v5308
        %v5572 = vsel %vm3462, %v5530, %v5310
        %v5575 = vsel %vm3462, %v5532, %v5312
        %v5578 = vsel %vm3462, %v5534, %v5314
        %v5581 = vsel %vm3462, %v5536, %v5316
        %v5584 = vsel %vm3462, %v5538, %v5318
        %v5587 = vsel %vm3462, %v5540, %v5320
        %v5590 = vsel %vm3462, %v5542, %v5322
        %v5593 = vsel %vm3462, %v5544, %v5324
        %v5596 = vsel %vm3462, %v5546, %v5326
        %v5599 = vsel %vm3462, %v5548, %v5328
        %v5602 = vsel %vm3462, %v5550, %v5330
        %v5605 = vsel %vm3462, %v5552, %v5332
        %v5607 = vld [vmem:[#allocation13] sm:$0xf]
        %v5608 = vld [vmem:[#allocation13 + $0x4] sm:$0xf]
        %v5609 = vld [vmem:[#allocation13 + $0x8] sm:$0xf]
        %v5610 = vld [vmem:[#allocation13 + $0xc] sm:$0xf]
        %v5611 = vld [vmem:[#allocation13 + $0x10] sm:$0xf]
        %v5612 = vld [vmem:[#allocation13 + $0x14] sm:$0xf]
        %v5613 = vld [vmem:[#allocation13 + $0x18] sm:$0xf]
        %v5614 = vld [vmem:[#allocation13 + $0x1c] sm:$0xf]
        %v5615 = vld [vmem:[#allocation13 + $0x20] sm:$0xf]
        %v5616 = vld [vmem:[#allocation13 + $0x24] sm:$0xf]
        %v5617 = vld [vmem:[#allocation13 + $0x28] sm:$0xf]
        %v5618 = vld [vmem:[#allocation13 + $0x2c] sm:$0xf]
        %v5619 = vld [vmem:[#allocation13 + $0x30] sm:$0xf]
        %v5620 = vld [vmem:[#allocation13 + $0x34] sm:$0xf]
        %v5621 = vld [vmem:[#allocation13 + $0x38] sm:$0xf]
        %v5622 = vld [vmem:[#allocation13 + $0x3c] sm:$0xf]
        %v5623 = vld [vmem:[#allocation13 + $0x40] sm:$0xf]
        %v5624 = vld [vmem:[#allocation13 + $0x44] sm:$0xf]
        %v5625 = vld [vmem:[#allocation13 + $0x48] sm:$0xf]
        %v5626 = vld [vmem:[#allocation13 + $0x4c] sm:$0xf]
        %v5627 = vld [vmem:[#allocation13 + $0x50] sm:$0xf]
        %v5628 = vld [vmem:[#allocation13 + $0x54] sm:$0xf]
        %v5629 = vld [vmem:[#allocation13 + $0x58] sm:$0xf]
        %v5630 = vld [vmem:[#allocation13 + $0x5c] sm:$0xf]
        %v5631 = vld [vmem:[#allocation13 + $0x60] sm:$0xf]
        %v5632 = vld [vmem:[#allocation13 + $0x64] sm:$0xf]
        %v5633 = vld [vmem:[#allocation13 + $0x68] sm:$0xf]
        %v5634 = vld [vmem:[#allocation13 + $0x6c] sm:$0xf]
        %v5635 = vld [vmem:[#allocation13 + $0x70] sm:$0xf]
        %v5636 = vld [vmem:[#allocation13 + $0x74] sm:$0xf]
        %v5637 = vld [vmem:[#allocation13 + $0x78] sm:$0xf]
        %v5638 = vld [vmem:[#allocation13 + $0x7c] sm:$0xf]
        %v5639 = vld [vmem:[#allocation13 + $0x80] sm:$0xf]
        %v5640 = vld [vmem:[#allocation13 + $0x84] sm:$0xf]
        %v5641 = vld [vmem:[#allocation13 + $0x88] sm:$0xf]
        %v5642 = vld [vmem:[#allocation13 + $0x8c] sm:$0xf]
        %v5643 = vld [vmem:[#allocation14] sm:$0x1]
        %v5645 = vlaneseq
        %v5646 = vshrl.u32 %v5645, 7
        %v5647 = vsub.s32 0, %v5646
        %v5648 = vrot.slane %v5643, %v5647
        %v5686 = vunpack.c.l.b16 %v5607
        %v5687 = vunpack.c.l.b16 %v5608
        %v5688 = vunpack.c.l.b16 %v5609
        %v5689 = vunpack.c.l.b16 %v5610
        %v5690 = vunpack.c.l.b16 %v5611
        %v5691 = vunpack.c.l.b16 %v5612
        %v5692 = vunpack.c.l.b16 %v5613
        %v5693 = vunpack.c.l.b16 %v5614
        %v5694 = vunpack.c.l.b16 %v5615
        %v5695 = vunpack.c.l.b16 %v5616
        %v5696 = vunpack.c.l.b16 %v5617
        %v5697 = vunpack.c.l.b16 %v5618
        %v5698 = vunpack.c.l.b16 %v5619
        %v5699 = vunpack.c.l.b16 %v5620
        %v5700 = vunpack.c.l.b16 %v5621
        %v5701 = vunpack.c.l.b16 %v5622
        %v5702 = vunpack.c.l.b16 %v5623
        %v5703 = vunpack.c.l.b16 %v5624
        %v5704 = vunpack.c.l.b16 %v5625
        %v5705 = vunpack.c.l.b16 %v5626
        %v5706 = vunpack.c.l.b16 %v5627
        %v5707 = vunpack.c.l.b16 %v5628
        %v5708 = vunpack.c.l.b16 %v5629
        %v5709 = vunpack.c.l.b16 %v5630
        %v5710 = vunpack.c.l.b16 %v5631
        %v5711 = vunpack.c.l.b16 %v5632
        %v5712 = vunpack.c.l.b16 %v5633
        %v5713 = vunpack.c.l.b16 %v5634
        %v5714 = vunpack.c.l.b16 %v5635
        %v5715 = vunpack.c.l.b16 %v5636
        %v5716 = vunpack.c.l.b16 %v5637
        %v5717 = vunpack.c.l.b16 %v5638
        %v5718 = vunpack.c.l.b16 %v5639
        %v5719 = vunpack.c.l.b16 %v5640
        %v5720 = vunpack.c.l.b16 %v5641
        %v5721 = vunpack.c.l.b16 %v5642
        %v5722 = vpack.c.b16 %v5687, %v5686
        %v5723 = vpack.c.b16 %v5689, %v5688
        %v5724 = vpack.c.b16 %v5691, %v5690
        %v5725 = vpack.c.b16 %v5693, %v5692
        %v5726 = vpack.c.b16 %v5695, %v5694
        %v5727 = vpack.c.b16 %v5697, %v5696
        %v5728 = vpack.c.b16 %v5699, %v5698
        %v5729 = vpack.c.b16 %v5701, %v5700
        %v5730 = vpack.c.b16 %v5703, %v5702
        %v5731 = vpack.c.b16 %v5705, %v5704
        %v5732 = vpack.c.b16 %v5707, %v5706
        %v5733 = vpack.c.b16 %v5709, %v5708
        %v5734 = vpack.c.b16 %v5711, %v5710
        %v5735 = vpack.c.b16 %v5713, %v5712
        %v5736 = vpack.c.b16 %v5715, %v5714
        %v5737 = vpack.c.b16 %v5717, %v5716
        %v5738 = vpack.c.b16 %v5719, %v5718
        %v5739 = vpack.c.b16 %v5721, %v5720
        %v5759 = vsel %vm1687, %v5077, 0
        %v5762 = vsel %vm1687, %v5080, 0
        %v5765 = vsel %vm1687, %v5083, 0
        %v5768 = vsel %vm1687, %v5086, 0
        %v5771 = vsel %vm1687, %v5089, 0
        %v5774 = vsel %vm1687, %v5092, 0
        %v5777 = vsel %vm1687, %v5095, 0
        %v5780 = vsel %vm1687, %v5098, 0
        %v5783 = vsel %vm1687, %v5101, 0
        %v5786 = vsel %vm1687, %v5104, 0
        %v5789 = vsel %vm1687, %v5107, 0
        %v5792 = vsel %vm1687, %v5110, 0
        %v5795 = vsel %vm1687, %v5113, 0
        %v5798 = vsel %vm1687, %v5116, 0
        %v5801 = vsel %vm1687, %v5119, 0
        %v5804 = vsel %vm1687, %v5122, 0
        %v5807 = vsel %vm1687, %v5211, 0
        %v5810 = vsel %vm1687, %v5336, 0
        %5812 = vmatprep.subr.bf16.mxu0 0
        %5813 = vmatpush1.bf16.msra.mxu0 %v5722
        %5814 = vmatprep.subr.bf16.mxu0 0
        %5815 = vmatpush1.bf16.msra.mxu0 %v5723
        %5816 = vmatprep.subr.bf16.mxu0 0
        %5817 = vmatpush1.bf16.msra.mxu0 %v5724
        %5818 = vmatprep.subr.bf16.mxu0 0
        %5819 = vmatpush1.bf16.msra.mxu0 %v5725
        %5820 = vmatprep.subr.bf16.mxu0 0
        %5821 = vmatpush1.bf16.msra.mxu0 %v5726
        %5822 = vmatprep.subr.bf16.mxu0 0
        %5823 = vmatpush1.bf16.msra.mxu0 %v5727
        %5824 = vmatprep.subr.bf16.mxu0 0
        %5825 = vmatpush1.bf16.msra.mxu0 %v5728
        %5826 = vmatprep.subr.bf16.mxu0 0
        %5827 = vmatpush1.bf16.msra.mxu0 %v5729
        %5828 = vmatprep.subr.bf16.mxu0 0
        %5829 = vmatpush1.bf16.msra.mxu0 %v5730
        %5830 = vmatprep.subr.bf16.mxu0 0
        %5831 = vmatpush1.bf16.msra.mxu0 %v5731
        %5832 = vmatprep.subr.bf16.mxu0 0
        %5833 = vmatpush1.bf16.msra.mxu0 %v5732
        %5834 = vmatprep.subr.bf16.mxu0 0
        %5835 = vmatpush1.bf16.msra.mxu0 %v5733
        %5836 = vmatprep.subr.bf16.mxu0 0
        %5837 = vmatpush1.bf16.msra.mxu0 %v5734
        %5838 = vmatprep.subr.bf16.mxu0 0
        %5839 = vmatpush1.bf16.msra.mxu0 %v5735
        %5840 = vmatprep.subr.bf16.mxu0 0
        %5841 = vmatpush1.bf16.msra.mxu0 %v5736
        %5842 = vmatprep.subr.bf16.mxu0 0
        %5843 = vmatpush1.bf16.msra.mxu0 %v5737
        %5844 = vmatprep.mubr.bf16.mxu0 %v5554
        %5845 = vmatmul.mubr.bf16.gmra.mrb[0].mxu0 %v5410
        %v5846 = vpop.f32.mrb[0].mxu0
        %v5847 = vadd.f32 %v5648, %v5846
        %v5848 = vpop.f32.mrb[0].mxu0
        %v5849 = vpop.f32.mrb[0].mxu0
        %v5850 = vadd.f32 %v5648, %v5849
        %v5851 = vpop.f32.mrb[0].mxu0
        %5852 = vmatprep.mubr.bf16.mxu0 %v5557
        %5853 = vmatmul.mubr.bf16.gmra.mrb[0].mxu0 %v5413
        %v5854 = vpop.f32.mrb[0].mxu0
        %v5855 = vadd.f32 %v5648, %v5854
        %v5856 = vpop.f32.mrb[0].mxu0
        %v5857 = vpop.f32.mrb[0].mxu0
        %v5858 = vadd.f32 %v5648, %v5857
        %v5859 = vpop.f32.mrb[0].mxu0
        %5860 = vmatprep.mubr.bf16.mxu0 %v5560
        %5861 = vmatmul.mubr.bf16.gmra.mrb[0].mxu0 %v5416
        %v5862 = vpop.f32.mrb[0].mxu0
        %v5863 = vadd.f32 %v5648, %v5862
        %v5864 = vpop.f32.mrb[0].mxu0
        %v5865 = vpop.f32.mrb[0].mxu0
        %v5866 = vadd.f32 %v5648, %v5865
        %v5867 = vpop.f32.mrb[0].mxu0
        %5868 = vmatprep.mubr.bf16.mxu0 %v5563
        %5869 = vmatmul.mubr.bf16.gmra.mrb[0].mxu0 %v5419
        %v5870 = vpop.f32.mrb[0].mxu0
        %v5871 = vadd.f32 %v5648, %v5870
        %v5872 = vpop.f32.mrb[0].mxu0
        %v5873 = vpop.f32.mrb[0].mxu0
        %v5874 = vadd.f32 %v5648, %v5873
        %v5875 = vpop.f32.mrb[0].mxu0
        %5876 = vmatprep.mubr.bf16.mxu0 %v5566
        %5877 = vmatmul.mubr.bf16.gmra.mrb[0].mxu0 %v5422
        %v5878 = vpop.f32.mrb[0].mxu0
        %v5879 = vadd.f32 %v5648, %v5878
        %v5880 = vpop.f32.mrb[0].mxu0
        %v5881 = vpop.f32.mrb[0].mxu0
        %v5882 = vadd.f32 %v5648, %v5881
        %v5883 = vpop.f32.mrb[0].mxu0
        %5884 = vmatprep.mubr.bf16.mxu0 %v5569
        %5885 = vmatmul.mubr.bf16.gmra.mrb[0].mxu0 %v5425
        %v5886 = vpop.f32.mrb[0].mxu0
        %v5887 = vadd.f32 %v5648, %v5886
        %v5888 = vpop.f32.mrb[0].mxu0
        %v5889 = vpop.f32.mrb[0].mxu0
        %v5890 = vadd.f32 %v5648, %v5889
        %v5891 = vpop.f32.mrb[0].mxu0
        %5892 = vmatprep.mubr.bf16.mxu0 %v5572
        %5893 = vmatmul.mubr.bf16.gmra.mrb[0].mxu0 %v5428
        %v5894 = vpop.f32.mrb[0].mxu0
        %v5895 = vadd.f32 %v5648, %v5894
        %v5896 = vpop.f32.mrb[0].mxu0
        %v5897 = vpop.f32.mrb[0].mxu0
        %v5898 = vadd.f32 %v5648, %v5897
        %v5899 = vpop.f32.mrb[0].mxu0
        %5900 = vmatprep.mubr.bf16.mxu0 %v5575
        %5901 = vmatmul.mubr.bf16.gmra.mrb[0].mxu0 %v5431
        %v5902 = vpop.f32.mrb[0].mxu0
        %v5903 = vadd.f32 %v5648, %v5902
        %v5904 = vpop.f32.mrb[0].mxu0
        %v5905 = vpop.f32.mrb[0].mxu0
        %v5906 = vadd.f32 %v5648, %v5905
        %v5907 = vpop.f32.mrb[0].mxu0
        %5908 = vmatprep.mubr.bf16.mxu0 %v5578
        %5909 = vmatmul.mubr.bf16.gmra.mrb[0].mxu0 %v5434
        %v5910 = vpop.f32.mrb[0].mxu0
        %v5911 = vadd.f32 %v5648, %v5910
        %v5912 = vpop.f32.mrb[0].mxu0
        %v5913 = vpop.f32.mrb[0].mxu0
        %v5914 = vadd.f32 %v5648, %v5913
        %v5915 = vpop.f32.mrb[0].mxu0
        %5916 = vmatprep.mubr.bf16.mxu0 %v5581
        %5917 = vmatmul.mubr.bf16.gmra.mrb[0].mxu0 %v5437
        %v5918 = vpop.f32.mrb[0].mxu0
        %v5919 = vadd.f32 %v5648, %v5918
        %v5920 = vpop.f32.mrb[0].mxu0
        %v5921 = vpop.f32.mrb[0].mxu0
        %v5922 = vadd.f32 %v5648, %v5921
        %v5923 = vpop.f32.mrb[0].mxu0
        %5924 = vmatprep.mubr.bf16.mxu0 %v5584
        %5925 = vmatmul.mubr.bf16.gmra.mrb[0].mxu0 %v5440
        %v5926 = vpop.f32.mrb[0].mxu0
        %v5927 = vadd.f32 %v5648, %v5926
        %v5928 = vpop.f32.mrb[0].mxu0
        %v5929 = vpop.f32.mrb[0].mxu0
        %v5930 = vadd.f32 %v5648, %v5929
        %v5931 = vpop.f32.mrb[0].mxu0
        %5932 = vmatprep.mubr.bf16.mxu0 %v5587
        %5933 = vmatmul.mubr.bf16.gmra.mrb[0].mxu0 %v5443
        %v5934 = vpop.f32.mrb[0].mxu0
        %v5935 = vadd.f32 %v5648, %v5934
        %v5936 = vpop.f32.mrb[0].mxu0
        %v5937 = vpop.f32.mrb[0].mxu0
        %v5938 = vadd.f32 %v5648, %v5937
        %v5939 = vpop.f32.mrb[0].mxu0
        %5940 = vmatprep.mubr.bf16.mxu0 %v5590
        %5941 = vmatmul.mubr.bf16.gmra.mrb[0].mxu0 %v5446
        %v5942 = vpop.f32.mrb[0].mxu0
        %v5943 = vadd.f32 %v5648, %v5942
        %v5944 = vpop.f32.mrb[0].mxu0
        %v5945 = vpop.f32.mrb[0].mxu0
        %v5946 = vadd.f32 %v5648, %v5945
        %v5947 = vpop.f32.mrb[0].mxu0
        %5948 = vmatprep.mubr.bf16.mxu0 %v5593
        %5949 = vmatmul.mubr.bf16.gmra.mrb[0].mxu0 %v5449
        %v5950 = vpop.f32.mrb[0].mxu0
        %v5951 = vadd.f32 %v5648, %v5950
        %v5952 = vpop.f32.mrb[0].mxu0
        %v5953 = vpop.f32.mrb[0].mxu0
        %v5954 = vadd.f32 %v5648, %v5953
        %v5955 = vpop.f32.mrb[0].mxu0
        %5956 = vmatprep.mubr.bf16.mxu0 %v5596
        %5957 = vmatmul.mubr.bf16.gmra.mrb[0].mxu0 %v5452
        %v5958 = vpop.f32.mrb[0].mxu0
        %v5959 = vadd.f32 %v5648, %v5958
        %v5960 = vpop.f32.mrb[0].mxu0
        %v5961 = vpop.f32.mrb[0].mxu0
        %v5962 = vadd.f32 %v5648, %v5961
        %v5963 = vpop.f32.mrb[0].mxu0
        %5964 = vmatprep.mubr.bf16.mxu0 %v5599
        %5965 = vmatmul.mubr.bf16.gmra.mrb[0].mxu0 %v5455
        %v5966 = vpop.f32.mrb[0].mxu0
        %v5967 = vadd.f32 %v5648, %v5966
        %v5968 = vpop.f32.mrb[0].mxu0
        %v5969 = vpop.f32.mrb[0].mxu0
        %v5970 = vadd.f32 %v5648, %v5969
        %v5971 = vpop.f32.mrb[0].mxu0
        %5972 = vmatprep.mubr.bf16.mxu0 %v5602
        %5973 = vmatmul.mubr.bf16.gmra.mrb[0].mxu0 %v5458
        %v5974 = vpop.f32.mrb[0].mxu0
        %v5975 = vadd.f32 %v5648, %v5974
        %v5976 = vpop.f32.mrb[0].mxu0
        %v5977 = vpop.f32.mrb[0].mxu0
        %v5978 = vadd.f32 %v5648, %v5977
        %v5979 = vpop.f32.mrb[0].mxu0
        %5980 = vmatprep.mubr.bf16.mxu0 %v5605
        %5981 = vmatmul.mubr.bf16.gmra.mrb[0].mxu0 %v5461
        %v5982 = vpop.f32.mrb[0].mxu0
        %v5983 = vadd.f32 %v5648, %v5982
        %v5984 = vpop.f32.mrb[0].mxu0
        %v5985 = vpop.f32.mrb[0].mxu0
        %v5986 = vadd.f32 %v5648, %v5985
        %v5987 = vpop.f32.mrb[0].mxu0
        %5988 = vdwg.mxu0
        %5989 = vmatprep.subr.bf16.mxu0 0
        %5990 = vmatpush1.bf16.msra.mxu0 %v5738
        %5991 = vmatprep.subr.bf16.mxu0 0
        %5992 = vmatpush1.bf16.msra.mxu0 %v5739
        %5993 = vmatprep.subr.bf16.mxu0 0
        %5994 = vmatpush1.bf16.msra.mxu0 0
        %5995 = vmatprep.subr.bf16.mxu0 0
        %5996 = vmatpush1.bf16.msra.mxu0 0
        %5997 = vmatprep.subr.bf16.mxu0 0
        %5998 = vmatpush1.bf16.msra.mxu0 0
        %5999 = vmatprep.subr.bf16.mxu0 0
        %6000 = vmatpush1.bf16.msra.mxu0 0
        %6001 = vmatprep.subr.bf16.mxu0 0
        %6002 = vmatpush1.bf16.msra.mxu0 0
        %6003 = vmatprep.subr.bf16.mxu0 0
        %6004 = vmatpush1.bf16.msra.mxu0 0
        %6005 = vmatprep.subr.bf16.mxu0 0
        %6006 = vmatpush1.bf16.msra.mxu0 0
        %6007 = vmatprep.subr.bf16.mxu0 0
        %6008 = vmatpush1.bf16.msra.mxu0 0
        %6009 = vmatprep.subr.bf16.mxu0 0
        %6010 = vmatpush1.bf16.msra.mxu0 0
        %6011 = vmatprep.subr.bf16.mxu0 0
        %6012 = vmatpush1.bf16.msra.mxu0 0
        %6013 = vmatprep.subr.bf16.mxu0 0
        %6014 = vmatpush1.bf16.msra.mxu0 0
        %6015 = vmatprep.subr.bf16.mxu0 0
        %6016 = vmatpush1.bf16.msra.mxu0 0
        %6017 = vmatprep.subr.bf16.mxu0 0
        %6018 = vmatpush1.bf16.msra.mxu0 0
        %6019 = vmatprep.subr.bf16.mxu0 0
        %6020 = vmatpush1.bf16.msra.mxu0 0
        %6021 = vmatprep.mubr.bf16.mxu0 0
        %6022 = vmatmul.mubr.bf16.gmra.mrb[0].mxu0 %v5759
        %v6023 = vpop.f32.mrb[0].mxu0
        %v6024 = vadd.f32 %v5847, %v6023
        %v6025 = vpop.f32.mrb[0].mxu0
        %v6026 = vpop.f32.mrb[0].mxu0
        %v6027 = vadd.f32 %v5850, %v6026
        %v6028 = vpop.f32.mrb[0].mxu0
        %6029 = vmatprep.mubr.bf16.mxu0 0
        %6030 = vmatmul.mubr.bf16.gmra.mrb[0].mxu0 %v5762
        %v6031 = vpop.f32.mrb[0].mxu0
        %v6032 = vadd.f32 %v5855, %v6031
        %v6033 = vpop.f32.mrb[0].mxu0
        %v6034 = vpop.f32.mrb[0].mxu0
        %v6035 = vadd.f32 %v5858, %v6034
        %v6036 = vpop.f32.mrb[0].mxu0
        %6037 = vmatprep.mubr.bf16.mxu0 0
        %6038 = vmatmul.mubr.bf16.gmra.mrb[0].mxu0 %v5765
        %v6039 = vpop.f32.mrb[0].mxu0
        %v6040 = vadd.f32 %v5863, %v6039
        %v6041 = vpop.f32.mrb[0].mxu0
        %v6042 = vpop.f32.mrb[0].mxu0
        %v6043 = vadd.f32 %v5866, %v6042
        %v6044 = vpop.f32.mrb[0].mxu0
        %6045 = vmatprep.mubr.bf16.mxu0 0
        %6046 = vmatmul.mubr.bf16.gmra.mrb[0].mxu0 %v5768
        %v6047 = vpop.f32.mrb[0].mxu0
        %v6048 = vadd.f32 %v5871, %v6047
        %v6049 = vpop.f32.mrb[0].mxu0
        %v6050 = vpop.f32.mrb[0].mxu0
        %v6051 = vadd.f32 %v5874, %v6050
        %v6052 = vpop.f32.mrb[0].mxu0
        %6053 = vmatprep.mubr.bf16.mxu0 0
        %6054 = vmatmul.mubr.bf16.gmra.mrb[0].mxu0 %v5771
        %v6055 = vpop.f32.mrb[0].mxu0
        %v6056 = vadd.f32 %v5879, %v6055
        %v6057 = vpop.f32.mrb[0].mxu0
        %v6058 = vpop.f32.mrb[0].mxu0
        %v6059 = vadd.f32 %v5882, %v6058
        %v6060 = vpop.f32.mrb[0].mxu0
        %6061 = vmatprep.mubr.bf16.mxu0 0
        %6062 = vmatmul.mubr.bf16.gmra.mrb[0].mxu0 %v5774
        %v6063 = vpop.f32.mrb[0].mxu0
        %v6064 = vadd.f32 %v5887, %v6063
        %v6065 = vpop.f32.mrb[0].mxu0
        %v6066 = vpop.f32.mrb[0].mxu0
        %v6067 = vadd.f32 %v5890, %v6066
        %v6068 = vpop.f32.mrb[0].mxu0
        %6069 = vmatprep.mubr.bf16.mxu0 0
        %6070 = vmatmul.mubr.bf16.gmra.mrb[0].mxu0 %v5777
        %v6071 = vpop.f32.mrb[0].mxu0
        %v6072 = vadd.f32 %v5895, %v6071
        %v6073 = vpop.f32.mrb[0].mxu0
        %v6074 = vpop.f32.mrb[0].mxu0
        %v6075 = vadd.f32 %v5898, %v6074
        %v6076 = vpop.f32.mrb[0].mxu0
        %6077 = vmatprep.mubr.bf16.mxu0 0
        %6078 = vmatmul.mubr.bf16.gmra.mrb[0].mxu0 %v5780
        %v6079 = vpop.f32.mrb[0].mxu0
        %v6080 = vadd.f32 %v5903, %v6079
        %v6081 = vpop.f32.mrb[0].mxu0
        %v6082 = vpop.f32.mrb[0].mxu0
        %v6083 = vadd.f32 %v5906, %v6082
        %v6084 = vpop.f32.mrb[0].mxu0
        %6085 = vmatprep.mubr.bf16.mxu0 0
        %6086 = vmatmul.mubr.bf16.gmra.mrb[0].mxu0 %v5783
        %v6087 = vpop.f32.mrb[0].mxu0
        %v6088 = vadd.f32 %v5911, %v6087
        %v6089 = vpop.f32.mrb[0].mxu0
        %v6090 = vpop.f32.mrb[0].mxu0
        %v6091 = vadd.f32 %v5914, %v6090
        %v6092 = vpop.f32.mrb[0].mxu0
        %6093 = vmatprep.mubr.bf16.mxu0 0
        %6094 = vmatmul.mubr.bf16.gmra.mrb[0].mxu0 %v5786
        %v6095 = vpop.f32.mrb[0].mxu0
        %v6096 = vadd.f32 %v5919, %v6095
        %v6097 = vpop.f32.mrb[0].mxu0
        %v6098 = vpop.f32.mrb[0].mxu0
        %v6099 = vadd.f32 %v5922, %v6098
        %v6100 = vpop.f32.mrb[0].mxu0
        %6101 = vmatprep.mubr.bf16.mxu0 0
        %6102 = vmatmul.mubr.bf16.gmra.mrb[0].mxu0 %v5789
        %v6103 = vpop.f32.mrb[0].mxu0
        %v6104 = vadd.f32 %v5927, %v6103
        %v6105 = vpop.f32.mrb[0].mxu0
        %v6106 = vpop.f32.mrb[0].mxu0
        %v6107 = vadd.f32 %v5930, %v6106
        %v6108 = vpop.f32.mrb[0].mxu0
        %6109 = vmatprep.mubr.bf16.mxu0 0
        %6110 = vmatmul.mubr.bf16.gmra.mrb[0].mxu0 %v5792
        %v6111 = vpop.f32.mrb[0].mxu0
        %v6112 = vadd.f32 %v5935, %v6111
        %v6113 = vpop.f32.mrb[0].mxu0
        %v6114 = vpop.f32.mrb[0].mxu0
        %v6115 = vadd.f32 %v5938, %v6114
        %v6116 = vpop.f32.mrb[0].mxu0
        %6117 = vmatprep.mubr.bf16.mxu0 0
        %6118 = vmatmul.mubr.bf16.gmra.mrb[0].mxu0 %v5795
        %v6119 = vpop.f32.mrb[0].mxu0
        %v6120 = vadd.f32 %v5943, %v6119
        %v6121 = vpop.f32.mrb[0].mxu0
        %v6122 = vpop.f32.mrb[0].mxu0
        %v6123 = vadd.f32 %v5946, %v6122
        %v6124 = vpop.f32.mrb[0].mxu0
        %6125 = vmatprep.mubr.bf16.mxu0 0
        %6126 = vmatmul.mubr.bf16.gmra.mrb[0].mxu0 %v5798
        %v6127 = vpop.f32.mrb[0].mxu0
        %v6128 = vadd.f32 %v5951, %v6127
        %v6129 = vpop.f32.mrb[0].mxu0
        %v6130 = vpop.f32.mrb[0].mxu0
        %v6131 = vadd.f32 %v5954, %v6130
        %v6132 = vpop.f32.mrb[0].mxu0
        %6133 = vmatprep.mubr.bf16.mxu0 0
        %6134 = vmatmul.mubr.bf16.gmra.mrb[0].mxu0 %v5801
        %v6135 = vpop.f32.mrb[0].mxu0
        %v6136 = vadd.f32 %v5959, %v6135
        %v6137 = vpop.f32.mrb[0].mxu0
        %v6138 = vpop.f32.mrb[0].mxu0
        %v6139 = vadd.f32 %v5962, %v6138
        %v6140 = vpop.f32.mrb[0].mxu0
        %6141 = vmatprep.mubr.bf16.mxu0 0
        %6142 = vmatmul.mubr.bf16.gmra.mrb[0].mxu0 %v5804
        %v6143 = vpop.f32.mrb[0].mxu0
        %v6144 = vadd.f32 %v5967, %v6143
        %v6145 = vpop.f32.mrb[0].mxu0
        %v6146 = vpop.f32.mrb[0].mxu0
        %v6147 = vadd.f32 %v5970, %v6146
        %v6148 = vpop.f32.mrb[0].mxu0
        %6149 = vmatprep.mubr.bf16.mxu0 0
        %6150 = vmatmul.mubr.bf16.gmra.mrb[0].mxu0 %v5807
        %v6151 = vpop.f32.mrb[0].mxu0
        %v6152 = vadd.f32 %v5975, %v6151
        %v6153 = vpop.f32.mrb[0].mxu0
        %v6154 = vpop.f32.mrb[0].mxu0
        %v6155 = vadd.f32 %v5978, %v6154
        %v6156 = vpop.f32.mrb[0].mxu0
        %6157 = vmatprep.mubr.bf16.mxu0 0
        %6158 = vmatmul.mubr.bf16.gmra.mrb[0].mxu0 %v5810
        %v6159 = vpop.f32.mrb[0].mxu0
        %v6160 = vadd.f32 %v5983, %v6159
        %v6161 = vpop.f32.mrb[0].mxu0
        %v6162 = vpop.f32.mrb[0].mxu0
        %v6163 = vadd.f32 %v5986, %v6162
        %v6164 = vpop.f32.mrb[0].mxu0
        %6165 = vdwg.mxu0
        %vm6166 = vcmp.gt.f32.partialorder %v6024, 0.0
        %vm6167 = vcmp.gt.f32.partialorder %v6027, 0.0
        %vm6168 = vcmp.gt.f32.partialorder %v6032, 0.0
        %vm6169 = vcmp.gt.f32.partialorder %v6035, 0.0
        %vm6170 = vcmp.gt.f32.partialorder %v6040, 0.0
        %vm6171 = vcmp.gt.f32.partialorder %v6043, 0.0
        %vm6172 = vcmp.gt.f32.partialorder %v6048, 0.0
        %vm6173 = vcmp.gt.f32.partialorder %v6051, 0.0
        %vm6174 = vcmp.gt.f32.partialorder %v6056, 0.0
        %vm6175 = vcmp.gt.f32.partialorder %v6059, 0.0
        %vm6176 = vcmp.gt.f32.partialorder %v6064, 0.0
        %vm6177 = vcmp.gt.f32.partialorder %v6067, 0.0
        %vm6178 = vcmp.gt.f32.partialorder %v6072, 0.0
        %vm6179 = vcmp.gt.f32.partialorder %v6075, 0.0
        %vm6180 = vcmp.gt.f32.partialorder %v6080, 0.0
        %vm6181 = vcmp.gt.f32.partialorder %v6083, 0.0
        %vm6182 = vcmp.gt.f32.partialorder %v6088, 0.0
        %vm6183 = vcmp.gt.f32.partialorder %v6091, 0.0
        %vm6184 = vcmp.gt.f32.partialorder %v6096, 0.0
        %vm6185 = vcmp.gt.f32.partialorder %v6099, 0.0
        %vm6186 = vcmp.gt.f32.partialorder %v6104, 0.0
        %vm6187 = vcmp.gt.f32.partialorder %v6107, 0.0
        %vm6188 = vcmp.gt.f32.partialorder %v6112, 0.0
        %vm6189 = vcmp.gt.f32.partialorder %v6115, 0.0
        %vm6190 = vcmp.gt.f32.partialorder %v6120, 0.0
        %vm6191 = vcmp.gt.f32.partialorder %v6123, 0.0
        %vm6192 = vcmp.gt.f32.partialorder %v6128, 0.0
        %vm6193 = vcmp.gt.f32.partialorder %v6131, 0.0
        %vm6194 = vcmp.gt.f32.partialorder %v6136, 0.0
        %vm6195 = vcmp.gt.f32.partialorder %v6139, 0.0
        %vm6196 = vcmp.gt.f32.partialorder %v6144, 0.0
        %vm6197 = vcmp.gt.f32.partialorder %v6147, 0.0
        %vm6198 = vcmp.gt.f32.partialorder %v6152, 0.0
        %vm6199 = vcmp.gt.f32.partialorder %v6155, 0.0
        %vm6200 = vcmp.gt.f32.partialorder %v6160, 0.0
        %vm6201 = vcmp.gt.f32.partialorder %v6163, 0.0
        %v6202 = vmul.f32 %v6024, 0.1
        %v6203 = vmul.f32 %v6027, 0.1
        %v6204 = vmul.f32 %v6032, 0.1
        %v6205 = vmul.f32 %v6035, 0.1
        %v6206 = vmul.f32 %v6040, 0.1
        %v6207 = vmul.f32 %v6043, 0.1
        %v6208 = vmul.f32 %v6048, 0.1
        %v6209 = vmul.f32 %v6051, 0.1
        %v6210 = vmul.f32 %v6056, 0.1
        %v6211 = vmul.f32 %v6059, 0.1
        %v6212 = vmul.f32 %v6064, 0.1
        %v6213 = vmul.f32 %v6067, 0.1
        %v6214 = vmul.f32 %v6072, 0.1
        %v6215 = vmul.f32 %v6075, 0.1
        %v6216 = vmul.f32 %v6080, 0.1
        %v6217 = vmul.f32 %v6083, 0.1
        %v6218 = vmul.f32 %v6088, 0.1
        %v6219 = vmul.f32 %v6091, 0.1
        %v6220 = vmul.f32 %v6096, 0.1
        %v6221 = vmul.f32 %v6099, 0.1
        %v6222 = vmul.f32 %v6104, 0.1
        %v6223 = vmul.f32 %v6107, 0.1
        %v6224 = vmul.f32 %v6112, 0.1
        %v6225 = vmul.f32 %v6115, 0.1
        %v6226 = vmul.f32 %v6120, 0.1
        %v6227 = vmul.f32 %v6123, 0.1
        %v6228 = vmul.f32 %v6128, 0.1
        %v6229 = vmul.f32 %v6131, 0.1
        %v6230 = vmul.f32 %v6136, 0.1
        %v6231 = vmul.f32 %v6139, 0.1
        %v6232 = vmul.f32 %v6144, 0.1
        %v6233 = vmul.f32 %v6147, 0.1
        %v6234 = vmul.f32 %v6152, 0.1
        %v6235 = vmul.f32 %v6155, 0.1
        %v6236 = vmul.f32 %v6160, 0.1
        %v6237 = vmul.f32 %v6163, 0.1
        %v6238 = vsel %vm6166, %v6024, %v6202
        %v6239 = vsel %vm6167, %v6027, %v6203
        %v6240 = vsel %vm6168, %v6032, %v6204
        %v6241 = vsel %vm6169, %v6035, %v6205
        %v6242 = vsel %vm6170, %v6040, %v6206
        %v6243 = vsel %vm6171, %v6043, %v6207
        %v6244 = vsel %vm6172, %v6048, %v6208
        %v6245 = vsel %vm6173, %v6051, %v6209
        %v6246 = vsel %vm6174, %v6056, %v6210
        %v6247 = vsel %vm6175, %v6059, %v6211
        %v6248 = vsel %vm6176, %v6064, %v6212
        %v6249 = vsel %vm6177, %v6067, %v6213
        %v6250 = vsel %vm6178, %v6072, %v6214
        %v6251 = vsel %vm6179, %v6075, %v6215
        %v6252 = vsel %vm6180, %v6080, %v6216
        %v6253 = vsel %vm6181, %v6083, %v6217
        %v6254 = vsel %vm6182, %v6088, %v6218
        %v6255 = vsel %vm6183, %v6091, %v6219
        %v6256 = vsel %vm6184, %v6096, %v6220
        %v6257 = vsel %vm6185, %v6099, %v6221
        %v6258 = vsel %vm6186, %v6104, %v6222
        %v6259 = vsel %vm6187, %v6107, %v6223
        %v6260 = vsel %vm6188, %v6112, %v6224
        %v6261 = vsel %vm6189, %v6115, %v6225
        %v6262 = vsel %vm6190, %v6120, %v6226
        %v6263 = vsel %vm6191, %v6123, %v6227
        %v6264 = vsel %vm6192, %v6128, %v6228
        %v6265 = vsel %vm6193, %v6131, %v6229
        %v6266 = vsel %vm6194, %v6136, %v6230
        %v6267 = vsel %vm6195, %v6139, %v6231
        %v6268 = vsel %vm6196, %v6144, %v6232
        %v6269 = vsel %vm6197, %v6147, %v6233
        %v6270 = vsel %vm6198, %v6152, %v6234
        %v6271 = vsel %vm6199, %v6155, %v6235
        %v6272 = vsel %vm6200, %v6160, %v6236
        %v6273 = vsel %vm6201, %v6163, %v6237
        %v6274 = vpack.c.bf16 %v6239, %v6238
        %v6275 = vpack.c.bf16 %v6241, %v6240
        %v6276 = vpack.c.bf16 %v6243, %v6242
        %v6277 = vpack.c.bf16 %v6245, %v6244
        %v6278 = vpack.c.bf16 %v6247, %v6246
        %v6279 = vpack.c.bf16 %v6249, %v6248
        %v6280 = vpack.c.bf16 %v6251, %v6250
        %v6281 = vpack.c.bf16 %v6253, %v6252
        %v6282 = vpack.c.bf16 %v6255, %v6254
        %v6283 = vpack.c.bf16 %v6257, %v6256
        %v6284 = vpack.c.bf16 %v6259, %v6258
        %v6285 = vpack.c.bf16 %v6261, %v6260
        %v6286 = vpack.c.bf16 %v6263, %v6262
        %v6287 = vpack.c.bf16 %v6265, %v6264
        %v6288 = vpack.c.bf16 %v6267, %v6266
        %v6289 = vpack.c.bf16 %v6269, %v6268
        %v6290 = vpack.c.bf16 %v6271, %v6270
        %v6291 = vpack.c.bf16 %v6273, %v6272
        %s6292 = ssub.s32 %s2367, 1
        %v6293 = vstv %s6292
        %v6294 = vadd.s32 %v6293, 1
        %v6295 = vadd.s32 %v6293, 2
        %v6296 = vadd.s32 %v6293, 3
        %v6297 = vadd.s32 %v6293, 4
        %v6298 = vadd.s32 %v6293, 5
        %v6299 = vadd.s32 %v6293, 6
        %v6300 = vadd.s32 %v6293, 7
        %v6301 = vadd.s32 %v6293, 8
        %v6302 = vadd.s32 %v6293, 9
        %v6303 = vadd.s32 %v6293, 10
        %v6304 = vadd.s32 %v6293, 11
        %v6305 = vadd.s32 %v6293, 12
        %v6306 = vadd.s32 %v6293, 13
        %v6307 = vadd.s32 %v6293, 14
        %v6308 = vadd.s32 %v6293, 15
        %v6309 = vadd.s32 %v6293, 16
        %v6310 = vadd.s32 %v6293, 17
        %vm6311 = vcmp.ge.s32.totalorder %v6293, 0
        %vm6312 = vcmp.ge.s32.totalorder %v6294, 0
        %vm6313 = vcmp.ge.s32.totalorder %v6295, 0
        %vm6314 = vcmp.ge.s32.totalorder %v6296, 0
        %vm6315 = vcmp.ge.s32.totalorder %v6297, 0
        %vm6316 = vcmp.ge.s32.totalorder %v6298, 0
        %vm6317 = vcmp.ge.s32.totalorder %v6299, 0
        %vm6318 = vcmp.ge.s32.totalorder %v6300, 0
        %vm6319 = vcmp.ge.s32.totalorder %v6301, 0
        %vm6320 = vcmp.ge.s32.totalorder %v6302, 0
        %vm6321 = vcmp.ge.s32.totalorder %v6303, 0
        %vm6322 = vcmp.ge.s32.totalorder %v6304, 0
        %vm6323 = vcmp.ge.s32.totalorder %v6305, 0
        %vm6324 = vcmp.ge.s32.totalorder %v6306, 0
        %vm6325 = vcmp.ge.s32.totalorder %v6307, 0
        %vm6326 = vcmp.ge.s32.totalorder %v6308, 0
        %vm6327 = vcmp.ge.s32.totalorder %v6309, 0
        %vm6328 = vcmp.ge.s32.totalorder %v6310, 0
        %vm6329 = vcmp.lt.s32.totalorder %v6293, 16
        %vm6330 = vcmp.lt.s32.totalorder %v6294, 16
        %vm6331 = vcmp.lt.s32.totalorder %v6295, 16
        %vm6332 = vcmp.lt.s32.totalorder %v6296, 16
        %vm6333 = vcmp.lt.s32.totalorder %v6297, 16
        %vm6334 = vcmp.lt.s32.totalorder %v6298, 16
        %vm6335 = vcmp.lt.s32.totalorder %v6299, 16
        %vm6336 = vcmp.lt.s32.totalorder %v6300, 16
        %vm6337 = vcmp.lt.s32.totalorder %v6301, 16
        %vm6338 = vcmp.lt.s32.totalorder %v6302, 16
        %vm6339 = vcmp.lt.s32.totalorder %v6303, 16
        %vm6340 = vcmp.lt.s32.totalorder %v6304, 16
        %vm6341 = vcmp.lt.s32.totalorder %v6305, 16
        %vm6342 = vcmp.lt.s32.totalorder %v6306, 16
        %vm6343 = vcmp.lt.s32.totalorder %v6307, 16
        %vm6344 = vcmp.lt.s32.totalorder %v6308, 16
        %vm6345 = vcmp.lt.s32.totalorder %v6309, 16
        %vm6346 = vcmp.lt.s32.totalorder %v6310, 16
        %vm6347 = vmand %vm6311, %vm6329
        %vm6348 = vmand %vm6312, %vm6330
        %vm6349 = vmand %vm6313, %vm6331
        %vm6350 = vmand %vm6314, %vm6332
        %vm6351 = vmand %vm6315, %vm6333
        %vm6352 = vmand %vm6316, %vm6334
        %vm6353 = vmand %vm6317, %vm6335
        %vm6354 = vmand %vm6318, %vm6336
        %vm6355 = vmand %vm6319, %vm6337
        %vm6356 = vmand %vm6320, %vm6338
        %vm6357 = vmand %vm6321, %vm6339
        %vm6358 = vmand %vm6322, %vm6340
        %vm6359 = vmand %vm6323, %vm6341
        %vm6360 = vmand %vm6324, %vm6342
        %vm6361 = vmand %vm6325, %vm6343
        %vm6362 = vmand %vm6326, %vm6344
        %vm6363 = vmand %vm6327, %vm6345
        %vm6364 = vmand %vm6328, %vm6346
        %v6365 = vsel %vm6347, 1, 0
        %v6366 = vsel %vm6348, 1, 0
        %v6367 = vsel %vm6349, 1, 0
        %v6368 = vsel %vm6350, 1, 0
        %v6369 = vsel %vm6351, 1, 0
        %v6370 = vsel %vm6352, 1, 0
        %v6371 = vsel %vm6353, 1, 0
        %v6372 = vsel %vm6354, 1, 0
        %v6373 = vsel %vm6355, 1, 0
        %v6374 = vsel %vm6356, 1, 0
        %v6375 = vsel %vm6357, 1, 0
        %v6376 = vsel %vm6358, 1, 0
        %v6377 = vsel %vm6359, 1, 0
        %v6378 = vsel %vm6360, 1, 0
        %v6379 = vsel %vm6361, 1, 0
        %v6380 = vsel %vm6362, 1, 0
        %v6381 = vsel %vm6363, 1, 0
        %v6382 = vsel %vm6364, 1, 0
        %vm6383 = vcmp.eq.s32.totalorder %v6365, 1
        %vm6384 = vcmp.eq.s32.totalorder %v6366, 1
        %vm6385 = vcmp.eq.s32.totalorder %v6367, 1
        %vm6386 = vcmp.eq.s32.totalorder %v6368, 1
        %vm6387 = vcmp.eq.s32.totalorder %v6369, 1
        %vm6388 = vcmp.eq.s32.totalorder %v6370, 1
        %vm6389 = vcmp.eq.s32.totalorder %v6371, 1
        %vm6390 = vcmp.eq.s32.totalorder %v6372, 1
        %vm6391 = vcmp.eq.s32.totalorder %v6373, 1
        %vm6392 = vcmp.eq.s32.totalorder %v6374, 1
        %vm6393 = vcmp.eq.s32.totalorder %v6375, 1
        %vm6394 = vcmp.eq.s32.totalorder %v6376, 1
        %vm6395 = vcmp.eq.s32.totalorder %v6377, 1
        %vm6396 = vcmp.eq.s32.totalorder %v6378, 1
        %vm6397 = vcmp.eq.s32.totalorder %v6379, 1
        %vm6398 = vcmp.eq.s32.totalorder %v6380, 1
        %vm6399 = vcmp.eq.s32.totalorder %v6381, 1
        %vm6400 = vcmp.eq.s32.totalorder %v6382, 1
        %v6401 = vsel %vm6383, %v6274, 0
        %v6402 = vsel %vm6384, %v6275, 0
        %v6403 = vsel %vm6385, %v6276, 0
        %v6404 = vsel %vm6386, %v6277, 0
        %v6405 = vsel %vm6387, %v6278, 0
        %v6406 = vsel %vm6388, %v6279, 0
        %v6407 = vsel %vm6389, %v6280, 0
        %v6408 = vsel %vm6390, %v6281, 0
        %v6409 = vsel %vm6391, %v6282, 0
        %v6410 = vsel %vm6392, %v6283, 0
        %v6411 = vsel %vm6393, %v6284, 0
        %v6412 = vsel %vm6394, %v6285, 0
        %v6413 = vsel %vm6395, %v6286, 0
        %v6414 = vsel %vm6396, %v6287, 0
        %v6415 = vsel %vm6397, %v6288, 0
        %v6416 = vsel %vm6398, %v6289, 0
        %v6417 = vsel %vm6399, %v6290, 0
        %v6418 = vsel %vm6400, %v6291, 0
        %v6420 = vshrl.u32 %v6401, 16
        %v6422 = vrot.slane %v6420, 7
        %v6423 = vshll.u32 %v6401, 16
        %v6425 = vor.u32 %v6422, %v6423
        %v6427 = vshrl.u32 %v6402, 16
        %v6429 = vrot.slane %v6427, 7
        %v6430 = vshll.u32 %v6402, 16
        %v6432 = vor.u32 %v6429, %v6430
        %v6434 = vshrl.u32 %v6403, 16
        %v6436 = vrot.slane %v6434, 7
        %v6437 = vshll.u32 %v6403, 16
        %v6439 = vor.u32 %v6436, %v6437
        %v6441 = vshrl.u32 %v6404, 16
        %v6443 = vrot.slane %v6441, 7
        %v6444 = vshll.u32 %v6404, 16
        %v6446 = vor.u32 %v6443, %v6444
        %v6448 = vshrl.u32 %v6405, 16
        %v6450 = vrot.slane %v6448, 7
        %v6451 = vshll.u32 %v6405, 16
        %v6453 = vor.u32 %v6450, %v6451
        %v6455 = vshrl.u32 %v6406, 16
        %v6457 = vrot.slane %v6455, 7
        %v6458 = vshll.u32 %v6406, 16
        %v6460 = vor.u32 %v6457, %v6458
        %v6462 = vshrl.u32 %v6407, 16
        %v6464 = vrot.slane %v6462, 7
        %v6465 = vshll.u32 %v6407, 16
        %v6467 = vor.u32 %v6464, %v6465
        %v6469 = vshrl.u32 %v6408, 16
        %v6471 = vrot.slane %v6469, 7
        %v6472 = vshll.u32 %v6408, 16
        %v6474 = vor.u32 %v6471, %v6472
        %v6476 = vshrl.u32 %v6409, 16
        %v6478 = vrot.slane %v6476, 7
        %v6479 = vshll.u32 %v6409, 16
        %v6481 = vor.u32 %v6478, %v6479
        %v6483 = vshrl.u32 %v6410, 16
        %v6485 = vrot.slane %v6483, 7
        %v6486 = vshll.u32 %v6410, 16
        %v6488 = vor.u32 %v6485, %v6486
        %v6490 = vshrl.u32 %v6411, 16
        %v6492 = vrot.slane %v6490, 7
        %v6493 = vshll.u32 %v6411, 16
        %v6495 = vor.u32 %v6492, %v6493
        %v6497 = vshrl.u32 %v6412, 16
        %v6499 = vrot.slane %v6497, 7
        %v6500 = vshll.u32 %v6412, 16
        %v6502 = vor.u32 %v6499, %v6500
        %v6504 = vshrl.u32 %v6413, 16
        %v6506 = vrot.slane %v6504, 7
        %v6507 = vshll.u32 %v6413, 16
        %v6509 = vor.u32 %v6506, %v6507
        %v6511 = vshrl.u32 %v6414, 16
        %v6513 = vrot.slane %v6511, 7
        %v6514 = vshll.u32 %v6414, 16
        %v6516 = vor.u32 %v6513, %v6514
        %v6518 = vshrl.u32 %v6415, 16
        %v6520 = vrot.slane %v6518, 7
        %v6521 = vshll.u32 %v6415, 16
        %v6523 = vor.u32 %v6520, %v6521
        %v6525 = vshrl.u32 %v6416, 16
        %v6527 = vrot.slane %v6525, 7
        %v6528 = vshll.u32 %v6416, 16
        %v6530 = vor.u32 %v6527, %v6528
        %v6532 = vshrl.u32 %v6417, 16
        %v6534 = vrot.slane %v6532, 7
        %v6535 = vshll.u32 %v6417, 16
        %v6537 = vor.u32 %v6534, %v6535
        %v6539 = vshrl.u32 %v6418, 16
        %v6541 = vrot.slane %v6539, 7
        %v6542 = vshll.u32 %v6418, 16
        %v6544 = vor.u32 %v6541, %v6542
        %v6581 = vsel %vm2723, 0, %v6425
        %v6582 = vsel %vm2723, 0, %v6432
        %v6583 = vsel %vm2723, 0, %v6439
        %v6584 = vsel %vm2723, 0, %v6446
        %v6585 = vsel %vm2723, 0, %v6453
        %v6586 = vsel %vm2723, 0, %v6460
        %v6587 = vsel %vm2723, 0, %v6467
        %v6588 = vsel %vm2723, 0, %v6474
        %v6589 = vsel %vm2723, 0, %v6481
        %v6590 = vsel %vm2723, 0, %v6488
        %v6591 = vsel %vm2723, 0, %v6495
        %v6592 = vsel %vm2723, 0, %v6502
        %v6593 = vsel %vm2723, 0, %v6509
        %v6594 = vsel %vm2723, 0, %v6516
        %v6595 = vsel %vm2723, 0, %v6523
        %v6596 = vsel %vm2723, 0, %v6530
        %v6597 = vsel %vm2723, 0, %v6537
        %v6598 = vsel %vm2723, 0, %v6544
        %v6599 = vsel %vm2723, %v6422, 0
        %v6600 = vsel %vm2723, %v6429, 0
        %v6601 = vsel %vm2723, %v6436, 0
        %v6602 = vsel %vm2723, %v6443, 0
        %v6603 = vsel %vm2723, %v6450, 0
        %v6604 = vsel %vm2723, %v6457, 0
        %v6605 = vsel %vm2723, %v6464, 0
        %v6606 = vsel %vm2723, %v6471, 0
        %v6607 = vsel %vm2723, %v6478, 0
        %v6608 = vsel %vm2723, %v6485, 0
        %v6609 = vsel %vm2723, %v6492, 0
        %v6610 = vsel %vm2723, %v6499, 0
        %v6611 = vsel %vm2723, %v6506, 0
        %v6612 = vsel %vm2723, %v6513, 0
        %v6613 = vsel %vm2723, %v6520, 0
        %v6614 = vsel %vm2723, %v6527, 0
        %v6615 = vsel %vm2723, %v6534, 0
        %v6616 = vsel %vm2723, %v6541, 0
        %v6618 = vshrl.u32 %v6581, 16
        %v6620 = vshll.u32 %v6581, 16
        %v6622 = vrot.slane %v6620, 1
        %v6623 = vor.u32 %v6618, %v6622
        %v6625 = vshll.u32 %v6599, 16
        %v6627 = vrot.slane %v6625, 1
        %v6628 = vsel %vm822, %v6623, %v6627
        %v6630 = vshrl.u32 %v6582, 16
        %v6632 = vshll.u32 %v6582, 16
        %v6634 = vrot.slane %v6632, 1
        %v6635 = vor.u32 %v6630, %v6634
        %v6637 = vshll.u32 %v6600, 16
        %v6639 = vrot.slane %v6637, 1
        %v6640 = vsel %vm822, %v6635, %v6639
        %v6642 = vshrl.u32 %v6583, 16
        %v6644 = vshll.u32 %v6583, 16
        %v6646 = vrot.slane %v6644, 1
        %v6647 = vor.u32 %v6642, %v6646
        %v6649 = vshll.u32 %v6601, 16
        %v6651 = vrot.slane %v6649, 1
        %v6652 = vsel %vm822, %v6647, %v6651
        %v6654 = vshrl.u32 %v6584, 16
        %v6656 = vshll.u32 %v6584, 16
        %v6658 = vrot.slane %v6656, 1
        %v6659 = vor.u32 %v6654, %v6658
        %v6661 = vshll.u32 %v6602, 16
        %v6663 = vrot.slane %v6661, 1
        %v6664 = vsel %vm822, %v6659, %v6663
        %v6666 = vshrl.u32 %v6585, 16
        %v6668 = vshll.u32 %v6585, 16
        %v6670 = vrot.slane %v6668, 1
        %v6671 = vor.u32 %v6666, %v6670
        %v6673 = vshll.u32 %v6603, 16
        %v6675 = vrot.slane %v6673, 1
        %v6676 = vsel %vm822, %v6671, %v6675
        %v6678 = vshrl.u32 %v6586, 16
        %v6680 = vshll.u32 %v6586, 16
        %v6682 = vrot.slane %v6680, 1
        %v6683 = vor.u32 %v6678, %v6682
        %v6685 = vshll.u32 %v6604, 16
        %v6687 = vrot.slane %v6685, 1
        %v6688 = vsel %vm822, %v6683, %v6687
        %v6690 = vshrl.u32 %v6587, 16
        %v6692 = vshll.u32 %v6587, 16
        %v6694 = vrot.slane %v6692, 1
        %v6695 = vor.u32 %v6690, %v6694
        %v6697 = vshll.u32 %v6605, 16
        %v6699 = vrot.slane %v6697, 1
        %v6700 = vsel %vm822, %v6695, %v6699
        %v6702 = vshrl.u32 %v6588, 16
        %v6704 = vshll.u32 %v6588, 16
        %v6706 = vrot.slane %v6704, 1
        %v6707 = vor.u32 %v6702, %v6706
        %v6709 = vshll.u32 %v6606, 16
        %v6711 = vrot.slane %v6709, 1
        %v6712 = vsel %vm822, %v6707, %v6711
        %v6714 = vshrl.u32 %v6589, 16
        %v6716 = vshll.u32 %v6589, 16
        %v6718 = vrot.slane %v6716, 1
        %v6719 = vor.u32 %v6714, %v6718
        %v6721 = vshll.u32 %v6607, 16
        %v6723 = vrot.slane %v6721, 1
        %v6724 = vsel %vm822, %v6719, %v6723
        %v6726 = vshrl.u32 %v6590, 16
        %v6728 = vshll.u32 %v6590, 16
        %v6730 = vrot.slane %v6728, 1
        %v6731 = vor.u32 %v6726, %v6730
        %v6733 = vshll.u32 %v6608, 16
        %v6735 = vrot.slane %v6733, 1
        %v6736 = vsel %vm822, %v6731, %v6735
        %v6738 = vshrl.u32 %v6591, 16
        %v6740 = vshll.u32 %v6591, 16
        %v6742 = vrot.slane %v6740, 1
        %v6743 = vor.u32 %v6738, %v6742
        %v6745 = vshll.u32 %v6609, 16
        %v6747 = vrot.slane %v6745, 1
        %v6748 = vsel %vm822, %v6743, %v6747
        %v6750 = vshrl.u32 %v6592, 16
        %v6752 = vshll.u32 %v6592, 16
        %v6754 = vrot.slane %v6752, 1
        %v6755 = vor.u32 %v6750, %v6754
        %v6757 = vshll.u32 %v6610, 16
        %v6759 = vrot.slane %v6757, 1
        %v6760 = vsel %vm822, %v6755, %v6759
        %v6762 = vshrl.u32 %v6593, 16
        %v6764 = vshll.u32 %v6593, 16
        %v6766 = vrot.slane %v6764, 1
        %v6767 = vor.u32 %v6762, %v6766
        %v6769 = vshll.u32 %v6611, 16
        %v6771 = vrot.slane %v6769, 1
        %v6772 = vsel %vm822, %v6767, %v6771
        %v6774 = vshrl.u32 %v6594, 16
        %v6776 = vshll.u32 %v6594, 16
        %v6778 = vrot.slane %v6776, 1
        %v6779 = vor.u32 %v6774, %v6778
        %v6781 = vshll.u32 %v6612, 16
        %v6783 = vrot.slane %v6781, 1
        %v6784 = vsel %vm822, %v6779, %v6783
        %v6786 = vshrl.u32 %v6595, 16
        %v6788 = vshll.u32 %v6595, 16
        %v6790 = vrot.slane %v6788, 1
        %v6791 = vor.u32 %v6786, %v6790
        %v6793 = vshll.u32 %v6613, 16
        %v6795 = vrot.slane %v6793, 1
        %v6796 = vsel %vm822, %v6791, %v6795
        %v6798 = vshrl.u32 %v6596, 16
        %v6800 = vshll.u32 %v6596, 16
        %v6802 = vrot.slane %v6800, 1
        %v6803 = vor.u32 %v6798, %v6802
        %v6805 = vshll.u32 %v6614, 16
        %v6807 = vrot.slane %v6805, 1
        %v6808 = vsel %vm822, %v6803, %v6807
        %6809 = vrot.lane.b32.xlu0 %v6628, 32
        %v6810 = vpop.permute.xlu0 %6809
        %6811 = vrot.lane.b32.xlu0 %v6640, 32
        %v6812 = vpop.permute.xlu0 %6811
        %6813 = vrot.lane.b32.xlu0 %v6652, 32
        %v6814 = vpop.permute.xlu0 %6813
        %6815 = vrot.lane.b32.xlu0 %v6664, 32
        %v6816 = vpop.permute.xlu0 %6815
        %6817 = vrot.lane.b32.xlu0 %v6676, 32
        %v6818 = vpop.permute.xlu0 %6817
        %6819 = vrot.lane.b32.xlu0 %v6688, 32
        %v6820 = vpop.permute.xlu0 %6819
        %6821 = vrot.lane.b32.xlu0 %v6700, 32
        %v6822 = vpop.permute.xlu0 %6821
        %6823 = vrot.lane.b32.xlu0 %v6712, 32
        %v6824 = vpop.permute.xlu0 %6823
        %6825 = vrot.lane.b32.xlu0 %v6724, 32
        %v6826 = vpop.permute.xlu0 %6825
        %6827 = vrot.lane.b32.xlu0 %v6736, 32
        %v6828 = vpop.permute.xlu0 %6827
        %6829 = vrot.lane.b32.xlu0 %v6748, 32
        %v6830 = vpop.permute.xlu0 %6829
        %6831 = vrot.lane.b32.xlu0 %v6760, 32
        %v6832 = vpop.permute.xlu0 %6831
        %6833 = vrot.lane.b32.xlu0 %v6772, 32
        %v6834 = vpop.permute.xlu0 %6833
        %6835 = vrot.lane.b32.xlu0 %v6784, 32
        %v6836 = vpop.permute.xlu0 %6835
        %6837 = vrot.lane.b32.xlu0 %v6796, 32
        %v6838 = vpop.permute.xlu0 %6837
        %6839 = vrot.lane.b32.xlu0 %v6808, 32
        %v6840 = vpop.permute.xlu0 %6839
        %v6873 = vrot.slane %v6581, 1
        %v6874 = vrot.slane %v6599, 1
        %v6875 = vsel %vm1131, %v6873, %v6874
        %v6876 = vrot.slane %v6582, 1
        %v6877 = vrot.slane %v6600, 1
        %v6878 = vsel %vm1131, %v6876, %v6877
        %v6879 = vrot.slane %v6583, 1
        %v6880 = vrot.slane %v6601, 1
        %v6881 = vsel %vm1131, %v6879, %v6880
        %v6882 = vrot.slane %v6584, 1
        %v6883 = vrot.slane %v6602, 1
        %v6884 = vsel %vm1131, %v6882, %v6883
        %v6885 = vrot.slane %v6585, 1
        %v6886 = vrot.slane %v6603, 1
        %v6887 = vsel %vm1131, %v6885, %v6886
        %v6888 = vrot.slane %v6586, 1
        %v6889 = vrot.slane %v6604, 1
        %v6890 = vsel %vm1131, %v6888, %v6889
        %v6891 = vrot.slane %v6587, 1
        %v6892 = vrot.slane %v6605, 1
        %v6893 = vsel %vm1131, %v6891, %v6892
        %v6894 = vrot.slane %v6588, 1
        %v6895 = vrot.slane %v6606, 1
        %v6896 = vsel %vm1131, %v6894, %v6895
        %v6897 = vrot.slane %v6589, 1
        %v6898 = vrot.slane %v6607, 1
        %v6899 = vsel %vm1131, %v6897, %v6898
        %v6900 = vrot.slane %v6590, 1
        %v6901 = vrot.slane %v6608, 1
        %v6902 = vsel %vm1131, %v6900, %v6901
        %v6903 = vrot.slane %v6591, 1
        %v6904 = vrot.slane %v6609, 1
        %v6905 = vsel %vm1131, %v6903, %v6904
        %v6906 = vrot.slane %v6592, 1
        %v6907 = vrot.slane %v6610, 1
        %v6908 = vsel %vm1131, %v6906, %v6907
        %v6909 = vrot.slane %v6593, 1
        %v6910 = vrot.slane %v6611, 1
        %v6911 = vsel %vm1131, %v6909, %v6910
        %v6912 = vrot.slane %v6594, 1
        %v6913 = vrot.slane %v6612, 1
        %v6914 = vsel %vm1131, %v6912, %v6913
        %v6915 = vrot.slane %v6595, 1
        %v6916 = vrot.slane %v6613, 1
        %v6917 = vsel %vm1131, %v6915, %v6916
        %v6918 = vrot.slane %v6596, 1
        %v6919 = vrot.slane %v6614, 1
        %v6920 = vsel %vm1131, %v6918, %v6919
        %6921 = vrot.lane.b32.xlu0 %v6875, 64
        %v6922 = vpop.permute.xlu0 %6921
        %6923 = vrot.lane.b32.xlu0 %v6878, 64
        %v6924 = vpop.permute.xlu0 %6923
        %6925 = vrot.lane.b32.xlu0 %v6881, 64
        %v6926 = vpop.permute.xlu0 %6925
        %6927 = vrot.lane.b32.xlu0 %v6884, 64
        %v6928 = vpop.permute.xlu0 %6927
        %6929 = vrot.lane.b32.xlu0 %v6887, 64
        %v6930 = vpop.permute.xlu0 %6929
        %6931 = vrot.lane.b32.xlu0 %v6890, 64
        %v6932 = vpop.permute.xlu0 %6931
        %6933 = vrot.lane.b32.xlu0 %v6893, 64
        %v6934 = vpop.permute.xlu0 %6933
        %6935 = vrot.lane.b32.xlu0 %v6896, 64
        %v6936 = vpop.permute.xlu0 %6935
        %6937 = vrot.lane.b32.xlu0 %v6899, 64
        %v6938 = vpop.permute.xlu0 %6937
        %6939 = vrot.lane.b32.xlu0 %v6902, 64
        %v6940 = vpop.permute.xlu0 %6939
        %6941 = vrot.lane.b32.xlu0 %v6905, 64
        %v6942 = vpop.permute.xlu0 %6941
        %6943 = vrot.lane.b32.xlu0 %v6908, 64
        %v6944 = vpop.permute.xlu0 %6943
        %6945 = vrot.lane.b32.xlu0 %v6911, 64
        %v6946 = vpop.permute.xlu0 %6945
        %6947 = vrot.lane.b32.xlu0 %v6914, 64
        %v6948 = vpop.permute.xlu0 %6947
        %6949 = vrot.lane.b32.xlu0 %v6917, 64
        %v6950 = vpop.permute.xlu0 %6949
        %6951 = vrot.lane.b32.xlu0 %v6920, 64
        %v6952 = vpop.permute.xlu0 %6951
        %6954 = vrot.lane.b32.xlu0 %v6582, 96
        %v6955 = vpop.permute.xlu0 %6954
        %6956 = vrot.lane.b32.xlu0 %v6583, 96
        %v6957 = vpop.permute.xlu0 %6956
        %6958 = vrot.lane.b32.xlu0 %v6584, 96
        %v6959 = vpop.permute.xlu0 %6958
        %6960 = vrot.lane.b32.xlu0 %v6585, 96
        %v6961 = vpop.permute.xlu0 %6960
        %6962 = vrot.lane.b32.xlu0 %v6586, 96
        %v6963 = vpop.permute.xlu0 %6962
        %6964 = vrot.lane.b32.xlu0 %v6587, 96
        %v6965 = vpop.permute.xlu0 %6964
        %6966 = vrot.lane.b32.xlu0 %v6588, 96
        %v6967 = vpop.permute.xlu0 %6966
        %6968 = vrot.lane.b32.xlu0 %v6589, 96
        %v6969 = vpop.permute.xlu0 %6968
        %6970 = vrot.lane.b32.xlu0 %v6590, 96
        %v6971 = vpop.permute.xlu0 %6970
        %6972 = vrot.lane.b32.xlu0 %v6591, 96
        %v6973 = vpop.permute.xlu0 %6972
        %6974 = vrot.lane.b32.xlu0 %v6592, 96
        %v6975 = vpop.permute.xlu0 %6974
        %6976 = vrot.lane.b32.xlu0 %v6593, 96
        %v6977 = vpop.permute.xlu0 %6976
        %6978 = vrot.lane.b32.xlu0 %v6594, 96
        %v6979 = vpop.permute.xlu0 %6978
        %6980 = vrot.lane.b32.xlu0 %v6595, 96
        %v6981 = vpop.permute.xlu0 %6980
        %6982 = vrot.lane.b32.xlu0 %v6596, 96
        %v6983 = vpop.permute.xlu0 %6982
        %6984 = vrot.lane.b32.xlu0 %v6597, 96
        %v6985 = vpop.permute.xlu0 %6984
        %v6987 = vshrl.u32 %v6597, 16
        %v6989 = vshll.u32 %v6597, 16
        %v6991 = vrot.slane %v6989, 1
        %v6992 = vor.u32 %v6987, %v6991
        %v6994 = vshll.u32 %v6615, 16
        %v6996 = vrot.slane %v6994, 1
        %v6997 = vsel %vm822, %v6992, %v6996
        %v6999 = vrot.slane %v6597, 1
        %v7000 = vrot.slane %v6615, 1
        %v7001 = vsel %vm1131, %v6999, %v7000
        %7002 = vrot.lane.b32.xlu0 %v6878, 32
        %v7003 = vpop.permute.xlu0 %7002
        %7004 = vrot.lane.b32.xlu0 %v6881, 32
        %v7005 = vpop.permute.xlu0 %7004
        %7006 = vrot.lane.b32.xlu0 %v6884, 32
        %v7007 = vpop.permute.xlu0 %7006
        %7008 = vrot.lane.b32.xlu0 %v6887, 32
        %v7009 = vpop.permute.xlu0 %7008
        %7010 = vrot.lane.b32.xlu0 %v6890, 32
        %v7011 = vpop.permute.xlu0 %7010
        %7012 = vrot.lane.b32.xlu0 %v6893, 32
        %v7013 = vpop.permute.xlu0 %7012
        %7014 = vrot.lane.b32.xlu0 %v6896, 32
        %v7015 = vpop.permute.xlu0 %7014
        %7016 = vrot.lane.b32.xlu0 %v6899, 32
        %v7017 = vpop.permute.xlu0 %7016
        %7018 = vrot.lane.b32.xlu0 %v6902, 32
        %v7019 = vpop.permute.xlu0 %7018
        %7020 = vrot.lane.b32.xlu0 %v6905, 32
        %v7021 = vpop.permute.xlu0 %7020
        %7022 = vrot.lane.b32.xlu0 %v6908, 32
        %v7023 = vpop.permute.xlu0 %7022
        %7024 = vrot.lane.b32.xlu0 %v6911, 32
        %v7025 = vpop.permute.xlu0 %7024
        %7026 = vrot.lane.b32.xlu0 %v6914, 32
        %v7027 = vpop.permute.xlu0 %7026
        %7028 = vrot.lane.b32.xlu0 %v6917, 32
        %v7029 = vpop.permute.xlu0 %7028
        %7030 = vrot.lane.b32.xlu0 %v6920, 32
        %v7031 = vpop.permute.xlu0 %7030
        %7032 = vrot.lane.b32.xlu0 %v7001, 32
        %v7033 = vpop.permute.xlu0 %7032
        %7035 = vrot.lane.b32.xlu0 %v6583, 64
        %v7036 = vpop.permute.xlu0 %7035
        %7037 = vrot.lane.b32.xlu0 %v6584, 64
        %v7038 = vpop.permute.xlu0 %7037
        %7039 = vrot.lane.b32.xlu0 %v6585, 64
        %v7040 = vpop.permute.xlu0 %7039
        %7041 = vrot.lane.b32.xlu0 %v6586, 64
        %v7042 = vpop.permute.xlu0 %7041
        %7043 = vrot.lane.b32.xlu0 %v6587, 64
        %v7044 = vpop.permute.xlu0 %7043
        %7045 = vrot.lane.b32.xlu0 %v6588, 64
        %v7046 = vpop.permute.xlu0 %7045
        %7047 = vrot.lane.b32.xlu0 %v6589, 64
        %v7048 = vpop.permute.xlu0 %7047
        %7049 = vrot.lane.b32.xlu0 %v6590, 64
        %v7050 = vpop.permute.xlu0 %7049
        %7051 = vrot.lane.b32.xlu0 %v6591, 64
        %v7052 = vpop.permute.xlu0 %7051
        %7053 = vrot.lane.b32.xlu0 %v6592, 64
        %v7054 = vpop.permute.xlu0 %7053
        %7055 = vrot.lane.b32.xlu0 %v6593, 64
        %v7056 = vpop.permute.xlu0 %7055
        %7057 = vrot.lane.b32.xlu0 %v6594, 64
        %v7058 = vpop.permute.xlu0 %7057
        %7059 = vrot.lane.b32.xlu0 %v6595, 64
        %v7060 = vpop.permute.xlu0 %7059
        %7061 = vrot.lane.b32.xlu0 %v6596, 64
        %v7062 = vpop.permute.xlu0 %7061
        %7063 = vrot.lane.b32.xlu0 %v6597, 64
        %v7064 = vpop.permute.xlu0 %7063
        %7065 = vrot.lane.b32.xlu0 %v6598, 64
        %v7066 = vpop.permute.xlu0 %7065
        %v7068 = vshrl.u32 %v6598, 16
        %v7070 = vshll.u32 %v6598, 16
        %v7072 = vrot.slane %v7070, 1
        %v7073 = vor.u32 %v7068, %v7072
        %v7075 = vshll.u32 %v6616, 16
        %v7077 = vrot.slane %v7075, 1
        %v7078 = vsel %vm822, %v7073, %v7077
        %7079 = vrot.lane.b32.xlu0 %v6652, 96
        %v7080 = vpop.permute.xlu0 %7079
        %7081 = vrot.lane.b32.xlu0 %v6664, 96
        %v7082 = vpop.permute.xlu0 %7081
        %7083 = vrot.lane.b32.xlu0 %v6676, 96
        %v7084 = vpop.permute.xlu0 %7083
        %7085 = vrot.lane.b32.xlu0 %v6688, 96
        %v7086 = vpop.permute.xlu0 %7085
        %7087 = vrot.lane.b32.xlu0 %v6700, 96
        %v7088 = vpop.permute.xlu0 %7087
        %7089 = vrot.lane.b32.xlu0 %v6712, 96
        %v7090 = vpop.permute.xlu0 %7089
        %7091 = vrot.lane.b32.xlu0 %v6724, 96
        %v7092 = vpop.permute.xlu0 %7091
        %7093 = vrot.lane.b32.xlu0 %v6736, 96
        %v7094 = vpop.permute.xlu0 %7093
        %7095 = vrot.lane.b32.xlu0 %v6748, 96
        %v7096 = vpop.permute.xlu0 %7095
        %7097 = vrot.lane.b32.xlu0 %v6760, 96
        %v7098 = vpop.permute.xlu0 %7097
        %7099 = vrot.lane.b32.xlu0 %v6772, 96
        %v7100 = vpop.permute.xlu0 %7099
        %7101 = vrot.lane.b32.xlu0 %v6784, 96
        %v7102 = vpop.permute.xlu0 %7101
        %7103 = vrot.lane.b32.xlu0 %v6796, 96
        %v7104 = vpop.permute.xlu0 %7103
        %7105 = vrot.lane.b32.xlu0 %v6808, 96
        %v7106 = vpop.permute.xlu0 %7105
        %7107 = vrot.lane.b32.xlu0 %v6997, 96
        %v7108 = vpop.permute.xlu0 %7107
        %7109 = vrot.lane.b32.xlu0 %v7078, 96
        %v7110 = vpop.permute.xlu0 %7109
        %v7112 = vrot.slane %v6598, 1
        %v7113 = vrot.slane %v6616, 1
        %v7114 = vsel %vm1131, %v7112, %v7113
        %v7116 = vsel %vm1687, %v6581, %v6810
        %v7118 = vsel %vm1687, %v6582, %v6812
        %v7120 = vsel %vm1687, %v6583, %v6814
        %v7122 = vsel %vm1687, %v6584, %v6816
        %v7124 = vsel %vm1687, %v6585, %v6818
        %v7126 = vsel %vm1687, %v6586, %v6820
        %v7128 = vsel %vm1687, %v6587, %v6822
        %v7130 = vsel %vm1687, %v6588, %v6824
        %v7132 = vsel %vm1687, %v6589, %v6826
        %v7134 = vsel %vm1687, %v6590, %v6828
        %v7136 = vsel %vm1687, %v6591, %v6830
        %v7138 = vsel %vm1687, %v6592, %v6832
        %v7140 = vsel %vm1687, %v6593, %v6834
        %v7142 = vsel %vm1687, %v6594, %v6836
        %v7144 = vsel %vm1687, %v6595, %v6838
        %v7146 = vsel %vm1687, %v6596, %v6840
        %v7148 = vsel %vm1867, %v7116, %v6922
        %v7150 = vsel %vm1867, %v7118, %v6924
        %v7152 = vsel %vm1867, %v7120, %v6926
        %v7154 = vsel %vm1867, %v7122, %v6928
        %v7156 = vsel %vm1867, %v7124, %v6930
        %v7158 = vsel %vm1867, %v7126, %v6932
        %v7160 = vsel %vm1867, %v7128, %v6934
        %v7162 = vsel %vm1867, %v7130, %v6936
        %v7164 = vsel %vm1867, %v7132, %v6938
        %v7166 = vsel %vm1867, %v7134, %v6940
        %v7168 = vsel %vm1867, %v7136, %v6942
        %v7170 = vsel %vm1867, %v7138, %v6944
        %v7172 = vsel %vm1867, %v7140, %v6946
        %v7174 = vsel %vm1867, %v7142, %v6948
        %v7176 = vsel %vm1867, %v7144, %v6950
        %v7178 = vsel %vm1867, %v7146, %v6952
        %v7180 = vsel %vm3462, %v7148, %v6955
        %v7183 = vsel %vm3462, %v7150, %v6957
        %v7186 = vsel %vm3462, %v7152, %v6959
        %v7189 = vsel %vm3462, %v7154, %v6961
        %v7192 = vsel %vm3462, %v7156, %v6963
        %v7195 = vsel %vm3462, %v7158, %v6965
        %v7198 = vsel %vm3462, %v7160, %v6967
        %v7201 = vsel %vm3462, %v7162, %v6969
        %v7204 = vsel %vm3462, %v7164, %v6971
        %v7207 = vsel %vm3462, %v7166, %v6973
        %v7210 = vsel %vm3462, %v7168, %v6975
        %v7213 = vsel %vm3462, %v7170, %v6977
        %v7216 = vsel %vm3462, %v7172, %v6979
        %v7219 = vsel %vm3462, %v7174, %v6981
        %v7222 = vsel %vm3462, %v7176, %v6983
        %v7225 = vsel %vm3462, %v7178, %v6985
        %v7229 = vsel %vm1687, %v6640, %v7003
        %v7232 = vsel %vm1687, %v6652, %v7005
        %v7235 = vsel %vm1687, %v6664, %v7007
        %v7238 = vsel %vm1687, %v6676, %v7009
        %v7241 = vsel %vm1687, %v6688, %v7011
        %v7244 = vsel %vm1687, %v6700, %v7013
        %v7247 = vsel %vm1687, %v6712, %v7015
        %v7250 = vsel %vm1687, %v6724, %v7017
        %v7253 = vsel %vm1687, %v6736, %v7019
        %v7256 = vsel %vm1687, %v6748, %v7021
        %v7259 = vsel %vm1687, %v6760, %v7023
        %v7262 = vsel %vm1687, %v6772, %v7025
        %v7265 = vsel %vm1687, %v6784, %v7027
        %v7268 = vsel %vm1687, %v6796, %v7029
        %v7271 = vsel %vm1687, %v6808, %v7031
        %v7274 = vsel %vm1687, %v6997, %v7033
        %v7276 = vsel %vm1867, %v7229, %v7036
        %v7278 = vsel %vm1867, %v7232, %v7038
        %v7280 = vsel %vm1867, %v7235, %v7040
        %v7282 = vsel %vm1867, %v7238, %v7042
        %v7284 = vsel %vm1867, %v7241, %v7044
        %v7286 = vsel %vm1867, %v7244, %v7046
        %v7288 = vsel %vm1867, %v7247, %v7048
        %v7290 = vsel %vm1867, %v7250, %v7050
        %v7292 = vsel %vm1867, %v7253, %v7052
        %v7294 = vsel %vm1867, %v7256, %v7054
        %v7296 = vsel %vm1867, %v7259, %v7056
        %v7298 = vsel %vm1867, %v7262, %v7058
        %v7300 = vsel %vm1867, %v7265, %v7060
        %v7302 = vsel %vm1867, %v7268, %v7062
        %v7304 = vsel %vm1867, %v7271, %v7064
        %v7306 = vsel %vm1867, %v7274, %v7066
        %v7308 = vsel %vm3462, %v7276, %v7080
        %v7311 = vsel %vm3462, %v7278, %v7082
        %v7314 = vsel %vm3462, %v7280, %v7084
        %v7317 = vsel %vm3462, %v7282, %v7086
        %v7320 = vsel %vm3462, %v7284, %v7088
        %v7323 = vsel %vm3462, %v7286, %v7090
        %v7326 = vsel %vm3462, %v7288, %v7092
        %v7329 = vsel %vm3462, %v7290, %v7094
        %v7332 = vsel %vm3462, %v7292, %v7096
        %v7335 = vsel %vm3462, %v7294, %v7098
        %v7338 = vsel %vm3462, %v7296, %v7100
        %v7341 = vsel %vm3462, %v7298, %v7102
        %v7344 = vsel %vm3462, %v7300, %v7104
        %v7347 = vsel %vm3462, %v7302, %v7106
        %v7350 = vsel %vm3462, %v7304, %v7108
        %v7353 = vsel %vm3462, %v7306, %v7110
        %v7355 = vld [vmem:[#allocation16] sm:$0xf]
        %v7356 = vld [vmem:[#allocation16 + $0x4] sm:$0xf]
        %v7357 = vld [vmem:[#allocation16 + $0x8] sm:$0xf]
        %v7358 = vld [vmem:[#allocation16 + $0xc] sm:$0xf]
        %v7359 = vld [vmem:[#allocation16 + $0x10] sm:$0xf]
        %v7360 = vld [vmem:[#allocation16 + $0x14] sm:$0xf]
        %v7361 = vld [vmem:[#allocation16 + $0x18] sm:$0xf]
        %v7362 = vld [vmem:[#allocation16 + $0x1c] sm:$0xf]
        %v7363 = vld [vmem:[#allocation16 + $0x20] sm:$0xf]
        %v7364 = vld [vmem:[#allocation16 + $0x24] sm:$0xf]
        %v7365 = vld [vmem:[#allocation16 + $0x28] sm:$0xf]
        %v7366 = vld [vmem:[#allocation16 + $0x2c] sm:$0xf]
        %v7367 = vld [vmem:[#allocation16 + $0x30] sm:$0xf]
        %v7368 = vld [vmem:[#allocation16 + $0x34] sm:$0xf]
        %v7369 = vld [vmem:[#allocation16 + $0x38] sm:$0xf]
        %v7370 = vld [vmem:[#allocation16 + $0x3c] sm:$0xf]
        %v7371 = vld [vmem:[#allocation16 + $0x40] sm:$0xf]
        %v7372 = vld [vmem:[#allocation16 + $0x44] sm:$0xf]
        %v7373 = vld [vmem:[#allocation16 + $0x48] sm:$0xf]
        %v7374 = vld [vmem:[#allocation16 + $0x4c] sm:$0xf]
        %v7375 = vld [vmem:[#allocation16 + $0x50] sm:$0xf]
        %v7376 = vld [vmem:[#allocation16 + $0x54] sm:$0xf]
        %v7377 = vld [vmem:[#allocation16 + $0x58] sm:$0xf]
        %v7378 = vld [vmem:[#allocation16 + $0x5c] sm:$0xf]
        %v7379 = vld [vmem:[#allocation16 + $0x60] sm:$0xf]
        %v7380 = vld [vmem:[#allocation16 + $0x64] sm:$0xf]
        %v7381 = vld [vmem:[#allocation16 + $0x68] sm:$0xf]
        %v7382 = vld [vmem:[#allocation16 + $0x6c] sm:$0xf]
        %v7383 = vld [vmem:[#allocation16 + $0x70] sm:$0xf]
        %v7384 = vld [vmem:[#allocation16 + $0x74] sm:$0xf]
        %v7385 = vld [vmem:[#allocation16 + $0x78] sm:$0xf]
        %v7386 = vld [vmem:[#allocation16 + $0x7c] sm:$0xf]
        %v7387 = vld [vmem:[#allocation16 + $0x80] sm:$0xf]
        %v7388 = vld [vmem:[#allocation16 + $0x84] sm:$0xf]
        %v7389 = vld [vmem:[#allocation16 + $0x88] sm:$0xf]
        %v7390 = vld [vmem:[#allocation16 + $0x8c] sm:$0xf]
        %v7391 = vld [vmem:[#allocation17] sm:$0x1]
        %v7393 = vlaneseq
        %v7394 = vshrl.u32 %v7393, 7
        %v7395 = vsub.s32 0, %v7394
        %v7396 = vrot.slane %v7391, %v7395
        %v7434 = vunpack.c.l.b16 %v7355
        %v7435 = vunpack.c.l.b16 %v7356
        %v7436 = vunpack.c.l.b16 %v7357
        %v7437 = vunpack.c.l.b16 %v7358
        %v7438 = vunpack.c.l.b16 %v7359
        %v7439 = vunpack.c.l.b16 %v7360
        %v7440 = vunpack.c.l.b16 %v7361
        %v7441 = vunpack.c.l.b16 %v7362
        %v7442 = vunpack.c.l.b16 %v7363
        %v7443 = vunpack.c.l.b16 %v7364
        %v7444 = vunpack.c.l.b16 %v7365
        %v7445 = vunpack.c.l.b16 %v7366
        %v7446 = vunpack.c.l.b16 %v7367
        %v7447 = vunpack.c.l.b16 %v7368
        %v7448 = vunpack.c.l.b16 %v7369
        %v7449 = vunpack.c.l.b16 %v7370
        %v7450 = vunpack.c.l.b16 %v7371
        %v7451 = vunpack.c.l.b16 %v7372
        %v7452 = vunpack.c.l.b16 %v7373
        %v7453 = vunpack.c.l.b16 %v7374
        %v7454 = vunpack.c.l.b16 %v7375
        %v7455 = vunpack.c.l.b16 %v7376
        %v7456 = vunpack.c.l.b16 %v7377
        %v7457 = vunpack.c.l.b16 %v7378
        %v7458 = vunpack.c.l.b16 %v7379
        %v7459 = vunpack.c.l.b16 %v7380
        %v7460 = vunpack.c.l.b16 %v7381
        %v7461 = vunpack.c.l.b16 %v7382
        %v7462 = vunpack.c.l.b16 %v7383
        %v7463 = vunpack.c.l.b16 %v7384
        %v7464 = vunpack.c.l.b16 %v7385
        %v7465 = vunpack.c.l.b16 %v7386
        %v7466 = vunpack.c.l.b16 %v7387
        %v7467 = vunpack.c.l.b16 %v7388
        %v7468 = vunpack.c.l.b16 %v7389
        %v7469 = vunpack.c.l.b16 %v7390
        %v7470 = vpack.c.b16 %v7435, %v7434
        %v7471 = vpack.c.b16 %v7437, %v7436
        %v7472 = vpack.c.b16 %v7439, %v7438
        %v7473 = vpack.c.b16 %v7441, %v7440
        %v7474 = vpack.c.b16 %v7443, %v7442
        %v7475 = vpack.c.b16 %v7445, %v7444
        %v7476 = vpack.c.b16 %v7447, %v7446
        %v7477 = vpack.c.b16 %v7449, %v7448
        %v7478 = vpack.c.b16 %v7451, %v7450
        %v7479 = vpack.c.b16 %v7453, %v7452
        %v7480 = vpack.c.b16 %v7455, %v7454
        %v7481 = vpack.c.b16 %v7457, %v7456
        %v7482 = vpack.c.b16 %v7459, %v7458
        %v7483 = vpack.c.b16 %v7461, %v7460
        %v7484 = vpack.c.b16 %v7463, %v7462
        %v7485 = vpack.c.b16 %v7465, %v7464
        %v7486 = vpack.c.b16 %v7467, %v7466
        %v7487 = vpack.c.b16 %v7469, %v7468
        %v7507 = vsel %vm1687, %v6881, 0
        %v7510 = vsel %vm1687, %v6884, 0
        %v7513 = vsel %vm1687, %v6887, 0
        %v7516 = vsel %vm1687, %v6890, 0
        %v7519 = vsel %vm1687, %v6893, 0
        %v7522 = vsel %vm1687, %v6896, 0
        %v7525 = vsel %vm1687, %v6899, 0
        %v7528 = vsel %vm1687, %v6902, 0
        %v7531 = vsel %vm1687, %v6905, 0
        %v7534 = vsel %vm1687, %v6908, 0
        %v7537 = vsel %vm1687, %v6911, 0
        %v7540 = vsel %vm1687, %v6914, 0
        %v7543 = vsel %vm1687, %v6917, 0
        %v7546 = vsel %vm1687, %v6920, 0
        %v7549 = vsel %vm1687, %v7001, 0
        %v7552 = vsel %vm1687, %v7114, 0
        %7554 = vmatprep.subr.bf16.mxu0 0
        %7555 = vmatpush1.bf16.msra.mxu0 %v7470
        %7556 = vmatprep.subr.bf16.mxu0 0
        %7557 = vmatpush1.bf16.msra.mxu0 %v7471
        %7558 = vmatprep.subr.bf16.mxu0 0
        %7559 = vmatpush1.bf16.msra.mxu0 %v7472
        %7560 = vmatprep.subr.bf16.mxu0 0
        %7561 = vmatpush1.bf16.msra.mxu0 %v7473
        %7562 = vmatprep.subr.bf16.mxu0 0
        %7563 = vmatpush1.bf16.msra.mxu0 %v7474
        %7564 = vmatprep.subr.bf16.mxu0 0
        %7565 = vmatpush1.bf16.msra.mxu0 %v7475
        %7566 = vmatprep.subr.bf16.mxu0 0
        %7567 = vmatpush1.bf16.msra.mxu0 %v7476
        %7568 = vmatprep.subr.bf16.mxu0 0
        %7569 = vmatpush1.bf16.msra.mxu0 %v7477
        %7570 = vmatprep.subr.bf16.mxu0 0
        %7571 = vmatpush1.bf16.msra.mxu0 %v7478
        %7572 = vmatprep.subr.bf16.mxu0 0
        %7573 = vmatpush1.bf16.msra.mxu0 %v7479
        %7574 = vmatprep.subr.bf16.mxu0 0
        %7575 = vmatpush1.bf16.msra.mxu0 %v7480
        %7576 = vmatprep.subr.bf16.mxu0 0
        %7577 = vmatpush1.bf16.msra.mxu0 %v7481
        %7578 = vmatprep.subr.bf16.mxu0 0
        %7579 = vmatpush1.bf16.msra.mxu0 %v7482
        %7580 = vmatprep.subr.bf16.mxu0 0
        %7581 = vmatpush1.bf16.msra.mxu0 %v7483
        %7582 = vmatprep.subr.bf16.mxu0 0
        %7583 = vmatpush1.bf16.msra.mxu0 %v7484
        %7584 = vmatprep.subr.bf16.mxu0 0
        %7585 = vmatpush1.bf16.msra.mxu0 %v7485
        %7586 = vmatprep.mubr.bf16.mxu0 %v7308
        %7587 = vmatmul.mubr.bf16.gmra.mrb[0].mxu0 %v7180
        %v7588 = vpop.f32.mrb[0].mxu0
        %v7589 = vadd.f32 %v7396, %v7588
        %v7590 = vpop.f32.mrb[0].mxu0
        %v7591 = vpop.f32.mrb[0].mxu0
        %v7592 = vadd.f32 %v7396, %v7591
        %v7593 = vpop.f32.mrb[0].mxu0
        %7594 = vmatprep.mubr.bf16.mxu0 %v7311
        %7595 = vmatmul.mubr.bf16.gmra.mrb[0].mxu0 %v7183
        %v7596 = vpop.f32.mrb[0].mxu0
        %v7597 = vadd.f32 %v7396, %v7596
        %v7598 = vpop.f32.mrb[0].mxu0
        %v7599 = vpop.f32.mrb[0].mxu0
        %v7600 = vadd.f32 %v7396, %v7599
        %v7601 = vpop.f32.mrb[0].mxu0
        %7602 = vmatprep.mubr.bf16.mxu0 %v7314
        %7603 = vmatmul.mubr.bf16.gmra.mrb[0].mxu0 %v7186
        %v7604 = vpop.f32.mrb[0].mxu0
        %v7605 = vadd.f32 %v7396, %v7604
        %v7606 = vpop.f32.mrb[0].mxu0
        %v7607 = vpop.f32.mrb[0].mxu0
        %v7608 = vadd.f32 %v7396, %v7607
        %v7609 = vpop.f32.mrb[0].mxu0
        %7610 = vmatprep.mubr.bf16.mxu0 %v7317
        %7611 = vmatmul.mubr.bf16.gmra.mrb[0].mxu0 %v7189
        %v7612 = vpop.f32.mrb[0].mxu0
        %v7613 = vadd.f32 %v7396, %v7612
        %v7614 = vpop.f32.mrb[0].mxu0
        %v7615 = vpop.f32.mrb[0].mxu0
        %v7616 = vadd.f32 %v7396, %v7615
        %v7617 = vpop.f32.mrb[0].mxu0
        %7618 = vmatprep.mubr.bf16.mxu0 %v7320
        %7619 = vmatmul.mubr.bf16.gmra.mrb[0].mxu0 %v7192
        %v7620 = vpop.f32.mrb[0].mxu0
        %v7621 = vadd.f32 %v7396, %v7620
        %v7622 = vpop.f32.mrb[0].mxu0
        %v7623 = vpop.f32.mrb[0].mxu0
        %v7624 = vadd.f32 %v7396, %v7623
        %v7625 = vpop.f32.mrb[0].mxu0
        %7626 = vmatprep.mubr.bf16.mxu0 %v7323
        %7627 = vmatmul.mubr.bf16.gmra.mrb[0].mxu0 %v7195
        %v7628 = vpop.f32.mrb[0].mxu0
        %v7629 = vadd.f32 %v7396, %v7628
        %v7630 = vpop.f32.mrb[0].mxu0
        %v7631 = vpop.f32.mrb[0].mxu0
        %v7632 = vadd.f32 %v7396, %v7631
        %v7633 = vpop.f32.mrb[0].mxu0
        %7634 = vmatprep.mubr.bf16.mxu0 %v7326
        %7635 = vmatmul.mubr.bf16.gmra.mrb[0].mxu0 %v7198
        %v7636 = vpop.f32.mrb[0].mxu0
        %v7637 = vadd.f32 %v7396, %v7636
        %v7638 = vpop.f32.mrb[0].mxu0
        %v7639 = vpop.f32.mrb[0].mxu0
        %v7640 = vadd.f32 %v7396, %v7639
        %v7641 = vpop.f32.mrb[0].mxu0
        %7642 = vmatprep.mubr.bf16.mxu0 %v7329
        %7643 = vmatmul.mubr.bf16.gmra.mrb[0].mxu0 %v7201
        %v7644 = vpop.f32.mrb[0].mxu0
        %v7645 = vadd.f32 %v7396, %v7644
        %v7646 = vpop.f32.mrb[0].mxu0
        %v7647 = vpop.f32.mrb[0].mxu0
        %v7648 = vadd.f32 %v7396, %v7647
        %v7649 = vpop.f32.mrb[0].mxu0
        %7650 = vmatprep.mubr.bf16.mxu0 %v7332
        %7651 = vmatmul.mubr.bf16.gmra.mrb[0].mxu0 %v7204
        %v7652 = vpop.f32.mrb[0].mxu0
        %v7653 = vadd.f32 %v7396, %v7652
        %v7654 = vpop.f32.mrb[0].mxu0
        %v7655 = vpop.f32.mrb[0].mxu0
        %v7656 = vadd.f32 %v7396, %v7655
        %v7657 = vpop.f32.mrb[0].mxu0
        %7658 = vmatprep.mubr.bf16.mxu0 %v7335
        %7659 = vmatmul.mubr.bf16.gmra.mrb[0].mxu0 %v7207
        %v7660 = vpop.f32.mrb[0].mxu0
        %v7661 = vadd.f32 %v7396, %v7660
        %v7662 = vpop.f32.mrb[0].mxu0
        %v7663 = vpop.f32.mrb[0].mxu0
        %v7664 = vadd.f32 %v7396, %v7663
        %v7665 = vpop.f32.mrb[0].mxu0
        %7666 = vmatprep.mubr.bf16.mxu0 %v7338
        %7667 = vmatmul.mubr.bf16.gmra.mrb[0].mxu0 %v7210
        %v7668 = vpop.f32.mrb[0].mxu0
        %v7669 = vadd.f32 %v7396, %v7668
        %v7670 = vpop.f32.mrb[0].mxu0
        %v7671 = vpop.f32.mrb[0].mxu0
        %v7672 = vadd.f32 %v7396, %v7671
        %v7673 = vpop.f32.mrb[0].mxu0
        %7674 = vmatprep.mubr.bf16.mxu0 %v7341
        %7675 = vmatmul.mubr.bf16.gmra.mrb[0].mxu0 %v7213
        %v7676 = vpop.f32.mrb[0].mxu0
        %v7677 = vadd.f32 %v7396, %v7676
        %v7678 = vpop.f32.mrb[0].mxu0
        %v7679 = vpop.f32.mrb[0].mxu0
        %v7680 = vadd.f32 %v7396, %v7679
        %v7681 = vpop.f32.mrb[0].mxu0
        %7682 = vmatprep.mubr.bf16.mxu0 %v7344
        %7683 = vmatmul.mubr.bf16.gmra.mrb[0].mxu0 %v7216
        %v7684 = vpop.f32.mrb[0].mxu0
        %v7685 = vadd.f32 %v7396, %v7684
        %v7686 = vpop.f32.mrb[0].mxu0
        %v7687 = vpop.f32.mrb[0].mxu0
        %v7688 = vadd.f32 %v7396, %v7687
        %v7689 = vpop.f32.mrb[0].mxu0
        %7690 = vmatprep.mubr.bf16.mxu0 %v7347
        %7691 = vmatmul.mubr.bf16.gmra.mrb[0].mxu0 %v7219
        %v7692 = vpop.f32.mrb[0].mxu0
        %v7693 = vadd.f32 %v7396, %v7692
        %v7694 = vpop.f32.mrb[0].mxu0
        %v7695 = vpop.f32.mrb[0].mxu0
        %v7696 = vadd.f32 %v7396, %v7695
        %v7697 = vpop.f32.mrb[0].mxu0
        %7698 = vmatprep.mubr.bf16.mxu0 %v7350
        %7699 = vmatmul.mubr.bf16.gmra.mrb[0].mxu0 %v7222
        %v7700 = vpop.f32.mrb[0].mxu0
        %v7701 = vadd.f32 %v7396, %v7700
        %v7702 = vpop.f32.mrb[0].mxu0
        %v7703 = vpop.f32.mrb[0].mxu0
        %v7704 = vadd.f32 %v7396, %v7703
        %v7705 = vpop.f32.mrb[0].mxu0
        %7706 = vmatprep.mubr.bf16.mxu0 %v7353
        %7707 = vmatmul.mubr.bf16.gmra.mrb[0].mxu0 %v7225
        %v7708 = vpop.f32.mrb[0].mxu0
        %v7709 = vadd.f32 %v7396, %v7708
        %v7710 = vpop.f32.mrb[0].mxu0
        %v7711 = vpop.f32.mrb[0].mxu0
        %v7712 = vadd.f32 %v7396, %v7711
        %v7713 = vpop.f32.mrb[0].mxu0
        %7714 = vdwg.mxu0
        %7715 = vmatprep.subr.bf16.mxu0 0
        %7716 = vmatpush1.bf16.msra.mxu0 %v7486
        %7717 = vmatprep.subr.bf16.mxu0 0
        %7718 = vmatpush1.bf16.msra.mxu0 %v7487
        %7719 = vmatprep.subr.bf16.mxu0 0
        %7720 = vmatpush1.bf16.msra.mxu0 0
        %7721 = vmatprep.subr.bf16.mxu0 0
        %7722 = vmatpush1.bf16.msra.mxu0 0
        %7723 = vmatprep.subr.bf16.mxu0 0
        %7724 = vmatpush1.bf16.msra.mxu0 0
        %7725 = vmatprep.subr.bf16.mxu0 0
        %7726 = vmatpush1.bf16.msra.mxu0 0
        %7727 = vmatprep.subr.bf16.mxu0 0
        %7728 = vmatpush1.bf16.msra.mxu0 0
        %7729 = vmatprep.subr.bf16.mxu0 0
        %7730 = vmatpush1.bf16.msra.mxu0 0
        %7731 = vmatprep.subr.bf16.mxu0 0
        %7732 = vmatpush1.bf16.msra.mxu0 0
        %7733 = vmatprep.subr.bf16.mxu0 0
        %7734 = vmatpush1.bf16.msra.mxu0 0
        %7735 = vmatprep.subr.bf16.mxu0 0
        %7736 = vmatpush1.bf16.msra.mxu0 0
        %7737 = vmatprep.subr.bf16.mxu0 0
        %7738 = vmatpush1.bf16.msra.mxu0 0
        %7739 = vmatprep.subr.bf16.mxu0 0
        %7740 = vmatpush1.bf16.msra.mxu0 0
        %7741 = vmatprep.subr.bf16.mxu0 0
        %7742 = vmatpush1.bf16.msra.mxu0 0
        %7743 = vmatprep.subr.bf16.mxu0 0
        %7744 = vmatpush1.bf16.msra.mxu0 0
        %7745 = vmatprep.subr.bf16.mxu0 0
        %7746 = vmatpush1.bf16.msra.mxu0 0
        %7747 = vmatprep.mubr.bf16.mxu0 0
        %7748 = vmatmul.mubr.bf16.gmra.mrb[0].mxu0 %v7507
        %v7749 = vpop.f32.mrb[0].mxu0
        %v7750 = vadd.f32 %v7589, %v7749
        %v7751 = vpop.f32.mrb[0].mxu0
        %v7752 = vpop.f32.mrb[0].mxu0
        %v7753 = vadd.f32 %v7592, %v7752
        %v7754 = vpop.f32.mrb[0].mxu0
        %7755 = vmatprep.mubr.bf16.mxu0 0
        %7756 = vmatmul.mubr.bf16.gmra.mrb[0].mxu0 %v7510
        %v7757 = vpop.f32.mrb[0].mxu0
        %v7758 = vadd.f32 %v7597, %v7757
        %v7759 = vpop.f32.mrb[0].mxu0
        %v7760 = vpop.f32.mrb[0].mxu0
        %v7761 = vadd.f32 %v7600, %v7760
        %v7762 = vpop.f32.mrb[0].mxu0
        %7763 = vmatprep.mubr.bf16.mxu0 0
        %7764 = vmatmul.mubr.bf16.gmra.mrb[0].mxu0 %v7513
        %v7765 = vpop.f32.mrb[0].mxu0
        %v7766 = vadd.f32 %v7605, %v7765
        %v7767 = vpop.f32.mrb[0].mxu0
        %v7768 = vpop.f32.mrb[0].mxu0
        %v7769 = vadd.f32 %v7608, %v7768
        %v7770 = vpop.f32.mrb[0].mxu0
        %7771 = vmatprep.mubr.bf16.mxu0 0
        %7772 = vmatmul.mubr.bf16.gmra.mrb[0].mxu0 %v7516
        %v7773 = vpop.f32.mrb[0].mxu0
        %v7774 = vadd.f32 %v7613, %v7773
        %v7775 = vpop.f32.mrb[0].mxu0
        %v7776 = vpop.f32.mrb[0].mxu0
        %v7777 = vadd.f32 %v7616, %v7776
        %v7778 = vpop.f32.mrb[0].mxu0
        %7779 = vmatprep.mubr.bf16.mxu0 0
        %7780 = vmatmul.mubr.bf16.gmra.mrb[0].mxu0 %v7519
        %v7781 = vpop.f32.mrb[0].mxu0
        %v7782 = vadd.f32 %v7621, %v7781
        %v7783 = vpop.f32.mrb[0].mxu0
        %v7784 = vpop.f32.mrb[0].mxu0
        %v7785 = vadd.f32 %v7624, %v7784
        %v7786 = vpop.f32.mrb[0].mxu0
        %7787 = vmatprep.mubr.bf16.mxu0 0
        %7788 = vmatmul.mubr.bf16.gmra.mrb[0].mxu0 %v7522
        %v7789 = vpop.f32.mrb[0].mxu0
        %v7790 = vadd.f32 %v7629, %v7789
        %v7791 = vpop.f32.mrb[0].mxu0
        %v7792 = vpop.f32.mrb[0].mxu0
        %v7793 = vadd.f32 %v7632, %v7792
        %v7794 = vpop.f32.mrb[0].mxu0
        %7795 = vmatprep.mubr.bf16.mxu0 0
        %7796 = vmatmul.mubr.bf16.gmra.mrb[0].mxu0 %v7525
        %v7797 = vpop.f32.mrb[0].mxu0
        %v7798 = vadd.f32 %v7637, %v7797
        %v7799 = vpop.f32.mrb[0].mxu0
        %v7800 = vpop.f32.mrb[0].mxu0
        %v7801 = vadd.f32 %v7640, %v7800
        %v7802 = vpop.f32.mrb[0].mxu0
        %7803 = vmatprep.mubr.bf16.mxu0 0
        %7804 = vmatmul.mubr.bf16.gmra.mrb[0].mxu0 %v7528
        %v7805 = vpop.f32.mrb[0].mxu0
        %v7806 = vadd.f32 %v7645, %v7805
        %v7807 = vpop.f32.mrb[0].mxu0
        %v7808 = vpop.f32.mrb[0].mxu0
        %v7809 = vadd.f32 %v7648, %v7808
        %v7810 = vpop.f32.mrb[0].mxu0
        %7811 = vmatprep.mubr.bf16.mxu0 0
        %7812 = vmatmul.mubr.bf16.gmra.mrb[0].mxu0 %v7531
        %v7813 = vpop.f32.mrb[0].mxu0
        %v7814 = vadd.f32 %v7653, %v7813
        %v7815 = vpop.f32.mrb[0].mxu0
        %v7816 = vpop.f32.mrb[0].mxu0
        %v7817 = vadd.f32 %v7656, %v7816
        %v7818 = vpop.f32.mrb[0].mxu0
        %7819 = vmatprep.mubr.bf16.mxu0 0
        %7820 = vmatmul.mubr.bf16.gmra.mrb[0].mxu0 %v7534
        %v7821 = vpop.f32.mrb[0].mxu0
        %v7822 = vadd.f32 %v7661, %v7821
        %v7823 = vpop.f32.mrb[0].mxu0
        %v7824 = vpop.f32.mrb[0].mxu0
        %v7825 = vadd.f32 %v7664, %v7824
        %v7826 = vpop.f32.mrb[0].mxu0
        %7827 = vmatprep.mubr.bf16.mxu0 0
        %7828 = vmatmul.mubr.bf16.gmra.mrb[0].mxu0 %v7537
        %v7829 = vpop.f32.mrb[0].mxu0
        %v7830 = vadd.f32 %v7669, %v7829
        %v7831 = vpop.f32.mrb[0].mxu0
        %v7832 = vpop.f32.mrb[0].mxu0
        %v7833 = vadd.f32 %v7672, %v7832
        %v7834 = vpop.f32.mrb[0].mxu0
        %7835 = vmatprep.mubr.bf16.mxu0 0
        %7836 = vmatmul.mubr.bf16.gmra.mrb[0].mxu0 %v7540
        %v7837 = vpop.f32.mrb[0].mxu0
        %v7838 = vadd.f32 %v7677, %v7837
        %v7839 = vpop.f32.mrb[0].mxu0
        %v7840 = vpop.f32.mrb[0].mxu0
        %v7841 = vadd.f32 %v7680, %v7840
        %v7842 = vpop.f32.mrb[0].mxu0
        %7843 = vmatprep.mubr.bf16.mxu0 0
        %7844 = vmatmul.mubr.bf16.gmra.mrb[0].mxu0 %v7543
        %v7845 = vpop.f32.mrb[0].mxu0
        %v7846 = vadd.f32 %v7685, %v7845
        %v7847 = vpop.f32.mrb[0].mxu0
        %v7848 = vpop.f32.mrb[0].mxu0
        %v7849 = vadd.f32 %v7688, %v7848
        %v7850 = vpop.f32.mrb[0].mxu0
        %7851 = vmatprep.mubr.bf16.mxu0 0
        %7852 = vmatmul.mubr.bf16.gmra.mrb[0].mxu0 %v7546
        %v7853 = vpop.f32.mrb[0].mxu0
        %v7854 = vadd.f32 %v7693, %v7853
        %v7855 = vpop.f32.mrb[0].mxu0
        %v7856 = vpop.f32.mrb[0].mxu0
        %v7857 = vadd.f32 %v7696, %v7856
        %v7858 = vpop.f32.mrb[0].mxu0
        %7859 = vmatprep.mubr.bf16.mxu0 0
        %7860 = vmatmul.mubr.bf16.gmra.mrb[0].mxu0 %v7549
        %v7861 = vpop.f32.mrb[0].mxu0
        %v7862 = vadd.f32 %v7701, %v7861
        %v7863 = vpop.f32.mrb[0].mxu0
        %v7864 = vpop.f32.mrb[0].mxu0
        %v7865 = vadd.f32 %v7704, %v7864
        %v7866 = vpop.f32.mrb[0].mxu0
        %7867 = vmatprep.mubr.bf16.mxu0 0
        %7868 = vmatmul.mubr.bf16.gmra.mrb[0].mxu0 %v7552
        %v7869 = vpop.f32.mrb[0].mxu0
        %v7870 = vadd.f32 %v7709, %v7869
        %v7871 = vpop.f32.mrb[0].mxu0
        %v7872 = vpop.f32.mrb[0].mxu0
        %v7873 = vadd.f32 %v7712, %v7872
        %v7874 = vpop.f32.mrb[0].mxu0
        %7875 = vdwg.mxu0
        %vm7876 = vcmp.gt.f32.partialorder %v7750, 0.0
        %vm7877 = vcmp.gt.f32.partialorder %v7753, 0.0
        %vm7878 = vcmp.gt.f32.partialorder %v7758, 0.0
        %vm7879 = vcmp.gt.f32.partialorder %v7761, 0.0
        %vm7880 = vcmp.gt.f32.partialorder %v7766, 0.0
        %vm7881 = vcmp.gt.f32.partialorder %v7769, 0.0
        %vm7882 = vcmp.gt.f32.partialorder %v7774, 0.0
        %vm7883 = vcmp.gt.f32.partialorder %v7777, 0.0
        %vm7884 = vcmp.gt.f32.partialorder %v7782, 0.0
        %vm7885 = vcmp.gt.f32.partialorder %v7785, 0.0
        %vm7886 = vcmp.gt.f32.partialorder %v7790, 0.0
        %vm7887 = vcmp.gt.f32.partialorder %v7793, 0.0
        %vm7888 = vcmp.gt.f32.partialorder %v7798, 0.0
        %vm7889 = vcmp.gt.f32.partialorder %v7801, 0.0
        %vm7890 = vcmp.gt.f32.partialorder %v7806, 0.0
        %vm7891 = vcmp.gt.f32.partialorder %v7809, 0.0
        %vm7892 = vcmp.gt.f32.partialorder %v7814, 0.0
        %vm7893 = vcmp.gt.f32.partialorder %v7817, 0.0
        %vm7894 = vcmp.gt.f32.partialorder %v7822, 0.0
        %vm7895 = vcmp.gt.f32.partialorder %v7825, 0.0
        %vm7896 = vcmp.gt.f32.partialorder %v7830, 0.0
        %vm7897 = vcmp.gt.f32.partialorder %v7833, 0.0
        %vm7898 = vcmp.gt.f32.partialorder %v7838, 0.0
        %vm7899 = vcmp.gt.f32.partialorder %v7841, 0.0
        %vm7900 = vcmp.gt.f32.partialorder %v7846, 0.0
        %vm7901 = vcmp.gt.f32.partialorder %v7849, 0.0
        %vm7902 = vcmp.gt.f32.partialorder %v7854, 0.0
        %vm7903 = vcmp.gt.f32.partialorder %v7857, 0.0
        %vm7904 = vcmp.gt.f32.partialorder %v7862, 0.0
        %vm7905 = vcmp.gt.f32.partialorder %v7865, 0.0
        %vm7906 = vcmp.gt.f32.partialorder %v7870, 0.0
        %vm7907 = vcmp.gt.f32.partialorder %v7873, 0.0
        %v7908 = vmul.f32 %v7750, 0.1
        %v7909 = vmul.f32 %v7753, 0.1
        %v7910 = vmul.f32 %v7758, 0.1
        %v7911 = vmul.f32 %v7761, 0.1
        %v7912 = vmul.f32 %v7766, 0.1
        %v7913 = vmul.f32 %v7769, 0.1
        %v7914 = vmul.f32 %v7774, 0.1
        %v7915 = vmul.f32 %v7777, 0.1
        %v7916 = vmul.f32 %v7782, 0.1
        %v7917 = vmul.f32 %v7785, 0.1
        %v7918 = vmul.f32 %v7790, 0.1
        %v7919 = vmul.f32 %v7793, 0.1
        %v7920 = vmul.f32 %v7798, 0.1
        %v7921 = vmul.f32 %v7801, 0.1
        %v7922 = vmul.f32 %v7806, 0.1
        %v7923 = vmul.f32 %v7809, 0.1
        %v7924 = vmul.f32 %v7814, 0.1
        %v7925 = vmul.f32 %v7817, 0.1
        %v7926 = vmul.f32 %v7822, 0.1
        %v7927 = vmul.f32 %v7825, 0.1
        %v7928 = vmul.f32 %v7830, 0.1
        %v7929 = vmul.f32 %v7833, 0.1
        %v7930 = vmul.f32 %v7838, 0.1
        %v7931 = vmul.f32 %v7841, 0.1
        %v7932 = vmul.f32 %v7846, 0.1
        %v7933 = vmul.f32 %v7849, 0.1
        %v7934 = vmul.f32 %v7854, 0.1
        %v7935 = vmul.f32 %v7857, 0.1
        %v7936 = vmul.f32 %v7862, 0.1
        %v7937 = vmul.f32 %v7865, 0.1
        %v7938 = vmul.f32 %v7870, 0.1
        %v7939 = vmul.f32 %v7873, 0.1
        %v7940 = vsel %vm7876, %v7750, %v7908
        %v7941 = vsel %vm7877, %v7753, %v7909
        %v7942 = vsel %vm7878, %v7758, %v7910
        %v7943 = vsel %vm7879, %v7761, %v7911
        %v7944 = vsel %vm7880, %v7766, %v7912
        %v7945 = vsel %vm7881, %v7769, %v7913
        %v7946 = vsel %vm7882, %v7774, %v7914
        %v7947 = vsel %vm7883, %v7777, %v7915
        %v7948 = vsel %vm7884, %v7782, %v7916
        %v7949 = vsel %vm7885, %v7785, %v7917
        %v7950 = vsel %vm7886, %v7790, %v7918
        %v7951 = vsel %vm7887, %v7793, %v7919
        %v7952 = vsel %vm7888, %v7798, %v7920
        %v7953 = vsel %vm7889, %v7801, %v7921
        %v7954 = vsel %vm7890, %v7806, %v7922
        %v7955 = vsel %vm7891, %v7809, %v7923
        %v7956 = vsel %vm7892, %v7814, %v7924
        %v7957 = vsel %vm7893, %v7817, %v7925
        %v7958 = vsel %vm7894, %v7822, %v7926
        %v7959 = vsel %vm7895, %v7825, %v7927
        %v7960 = vsel %vm7896, %v7830, %v7928
        %v7961 = vsel %vm7897, %v7833, %v7929
        %v7962 = vsel %vm7898, %v7838, %v7930
        %v7963 = vsel %vm7899, %v7841, %v7931
        %v7964 = vsel %vm7900, %v7846, %v7932
        %v7965 = vsel %vm7901, %v7849, %v7933
        %v7966 = vsel %vm7902, %v7854, %v7934
        %v7967 = vsel %vm7903, %v7857, %v7935
        %v7968 = vsel %vm7904, %v7862, %v7936
        %v7969 = vsel %vm7905, %v7865, %v7937
        %v7970 = vsel %vm7906, %v7870, %v7938
        %v7971 = vsel %vm7907, %v7873, %v7939
        %7980 = vrot.lane.b32.xlu0 %v7948, 32
        %v7981 = vpop.permute.xlu0 %7980
        %7982 = vrot.lane.b32.xlu0 %v7949, 32
        %v7983 = vpop.permute.xlu0 %7982
        %7984 = vrot.lane.b32.xlu0 %v7950, 32
        %v7985 = vpop.permute.xlu0 %7984
        %7986 = vrot.lane.b32.xlu0 %v7951, 32
        %v7987 = vpop.permute.xlu0 %7986
        %7988 = vrot.lane.b32.xlu0 %v7952, 32
        %v7989 = vpop.permute.xlu0 %7988
        %7990 = vrot.lane.b32.xlu0 %v7953, 32
        %v7991 = vpop.permute.xlu0 %7990
        %7992 = vrot.lane.b32.xlu0 %v7954, 32
        %v7993 = vpop.permute.xlu0 %7992
        %7994 = vrot.lane.b32.xlu0 %v7955, 32
        %v7995 = vpop.permute.xlu0 %7994
        %8012 = vrot.lane.b32.xlu0 %v7956, 64
        %v8013 = vpop.permute.xlu0 %8012
        %8014 = vrot.lane.b32.xlu0 %v7957, 64
        %v8015 = vpop.permute.xlu0 %8014
        %8016 = vrot.lane.b32.xlu0 %v7958, 64
        %v8017 = vpop.permute.xlu0 %8016
        %8018 = vrot.lane.b32.xlu0 %v7959, 64
        %v8019 = vpop.permute.xlu0 %8018
        %8020 = vrot.lane.b32.xlu0 %v7960, 64
        %v8021 = vpop.permute.xlu0 %8020
        %8022 = vrot.lane.b32.xlu0 %v7961, 64
        %v8023 = vpop.permute.xlu0 %8022
        %8024 = vrot.lane.b32.xlu0 %v7962, 64
        %v8025 = vpop.permute.xlu0 %8024
        %8026 = vrot.lane.b32.xlu0 %v7963, 64
        %v8027 = vpop.permute.xlu0 %8026
        %8044 = vrot.lane.b32.xlu0 %v7964, 96
        %v8045 = vpop.permute.xlu0 %8044
        %8046 = vrot.lane.b32.xlu0 %v7965, 96
        %v8047 = vpop.permute.xlu0 %8046
        %8048 = vrot.lane.b32.xlu0 %v7966, 96
        %v8049 = vpop.permute.xlu0 %8048
        %8050 = vrot.lane.b32.xlu0 %v7967, 96
        %v8051 = vpop.permute.xlu0 %8050
        %8052 = vrot.lane.b32.xlu0 %v7968, 96
        %v8053 = vpop.permute.xlu0 %8052
        %8054 = vrot.lane.b32.xlu0 %v7969, 96
        %v8055 = vpop.permute.xlu0 %8054
        %8056 = vrot.lane.b32.xlu0 %v7970, 96
        %v8057 = vpop.permute.xlu0 %8056
        %8058 = vrot.lane.b32.xlu0 %v7971, 96
        %v8059 = vpop.permute.xlu0 %8058
        %v8068 = vsel %vm1687, %v7940, %v7981
        %v8069 = vsel %vm1687, %v7941, %v7983
        %v8070 = vsel %vm1687, %v7942, %v7985
        %v8071 = vsel %vm1687, %v7943, %v7987
        %v8072 = vsel %vm1687, %v7944, %v7989
        %v8073 = vsel %vm1687, %v7945, %v7991
        %v8074 = vsel %vm1687, %v7946, %v7993
        %v8075 = vsel %vm1687, %v7947, %v7995
        %v8076 = vsel %vm1867, %v8068, %v8013
        %v8077 = vsel %vm1867, %v8069, %v8015
        %v8078 = vsel %vm1867, %v8070, %v8017
        %v8079 = vsel %vm1867, %v8071, %v8019
        %v8080 = vsel %vm1867, %v8072, %v8021
        %v8081 = vsel %vm1867, %v8073, %v8023
        %v8082 = vsel %vm1867, %v8074, %v8025
        %v8083 = vsel %vm1867, %v8075, %v8027
        %v8084 = vsel %vm3462, %v8076, %v8045
        %v8085 = vsel %vm3462, %v8077, %v8047
        %v8086 = vsel %vm3462, %v8078, %v8049
        %v8087 = vsel %vm3462, %v8079, %v8051
        %v8088 = vsel %vm3462, %v8080, %v8053
        %v8089 = vsel %vm3462, %v8081, %v8055
        %v8090 = vsel %vm3462, %v8082, %v8057
        %v8091 = vsel %vm3462, %v8083, %v8059
        %8092 = vst [vmem:[%s563] sm:$0xff] %v8084
        %8093 = vst [vmem:[%s563 + $0x8] sm:$0xff] %v8085
        %8094 = vst [vmem:[%s563 + $0x10] sm:$0xff] %v8086
        %8095 = vst [vmem:[%s563 + $0x18] sm:$0xff] %v8087
        %8096 = vst [vmem:[%s563 + $0x20] sm:$0xff] %v8088
        %8097 = vst [vmem:[%s563 + $0x28] sm:$0xff] %v8089
        %8098 = vst [vmem:[%s563 + $0x30] sm:$0xff] %v8090
        %8099 = vst [vmem:[%s563 + $0x38] sm:$0xff] %v8091
        %s8100 = sand.u32 %s284, 1
        %s8101 = scalar_lea.sflag [#allocation4], %s8100
        %s8102 = sand.u32 %s284, 1
        %s8103 = smul.addr %s8102, 64
        %s8104 = scalar_lea.vmem [#allocation19], %s8103
        // Predicated region
        $region101: #{quadruple_conv_lr.1} parent=59 // pred_check
          %p8105 = pneg %p294
        $region102: #{quadruple_conv_lr.1} parent=59 // pred_check_branch
          %8107 = sbr.rel (%p8105) target = $region104
        $region103: #{quadruple_conv_lr.1} parent=59 // pred_region
          %s8109 = ssub.s32 1024, 1024
          %8110 = vsyncadd %s8101, %s8109
          %s8111 = smul.addr %s39, 8
          %s8112 = smul.addr %s38, 8
          %s8113 = sadd.s32 %s8111, %s8112
          %s8114 = smul.addr %s8113, 128
          %s8115 = scalar_lea.hbm %s10, %s8114
          %s8116 = sshll.u32 %s8104, 4
          %s8117 = int_to_ptr.vmem [resolvable:$true] %s8116
          %8122 = dma.vmem_to_hbm [thread:$0]  %s8117, 1024, %s8115, %s8101, 128, 128, 8
        $region104: #{quadruple_conv_lr.1} parent=59 // pred_fallthru
          _
      $region60: #{quadruple_conv_lr.1} parent=5 // pred_fallthru
        _
      %p8123 = scmp.le.s32.totalorder 2, %s29
      // Predicated region
      $region105: #{quadruple_conv_lr.1} parent=5 // pred_check
        %p8124 = pneg %p8123
      $region106: #{quadruple_conv_lr.1} parent=5 // pred_check_branch
        %8126 = sbr.rel (%p8124) target = $region108
      $region107: #{quadruple_conv_lr.1} parent=5 // pred_region
        %s8127 = ssub.s32 %s29, 2
        // Predicated region
        $region109: #{quadruple_conv_lr.1} parent=107 // pred_check
          %p8128 = pneg %p300
        $region110: #{quadruple_conv_lr.1} parent=107 // pred_check_branch
          %8130 = sbr.rel (%p8128) target = $region112
        $region111: #{quadruple_conv_lr.1} parent=107 // pred_region
          %s8131 = sand.u32 %s285, 1
          %s8132 = scalar_lea.sflag [#allocation4], %s8131
          %s8133 = sand.u32 %s285, 1
          %s8134 = smul.addr %s8133, 64
          %s8135 = scalar_lea.vmem [#allocation19], %s8134
          %8136 = dma.done %s8132, 1024
        $region112: #{quadruple_conv_lr.1} parent=107 // pred_fallthru
          _
      $region108: #{quadruple_conv_lr.1} parent=5 // pred_fallthru
        _
    $region6: #{quadruple_conv_lr.1} parent=1 // loop_footer
      %s33 = sadd.s32 1, %s29
    $region7: #{quadruple_conv_lr.1} parent=1 // loop_footer_branch
      %28 = sbr.rel target = $region3
    $region8: #{quadruple_conv_lr.1} parent=1 // loop_exit
      _
    %8137 = vsyncpa [#allocation3], 1
    %s8138 = scalar_lea.sflag [#allocation3], 1
    %8139 = vsyncpa %s8138, 1
    %8140 = vsyncpa [#allocation6], 1
    %s8141 = scalar_lea.sflag [#allocation6], 1
    %8142 = vsyncpa %s8141, 1
    %8143 = vsyncpa [#allocation9], 1
    %8144 = vsyncpa [#allocation12], 1
    %8145 = vsyncpa [#allocation15], 1
    %8146 = vsyncpa [#allocation18], 1
    %8147 = vsyncpa [#allocation4], 1
    %s8148 = scalar_lea.sflag [#allocation4], 1
    %8149 = vsyncpa %s8148, 1

</llo_original>
